<compile_context>
chip_gen: v5e
topology: v5e:2x2
jax: 0.10.0
libtpu: 0.0.40
codegen_flags: <defaults>
</compile_context>

<pallas_src>
import math

import jax
import jax.numpy as jnp
from jax.experimental import pallas as pl
from jax.experimental.pallas import tpu as pltpu

_EPS = 1e-5                      # PyTorch BatchNorm2d default eps
_VMEM_LIMIT = 32 * 1024 * 1024   # explicit scoped-VMEM limit (safe on v5e/v6e/v7x)


# ----------------------------------------------------------------------------
# Fused BN(precomputed scale/shift) + ReLU + 3x3 conv + partial batch stats.
# One image per grid step.
# ----------------------------------------------------------------------------
def _bn_relu_conv_kernel(x_ref, scale_ref, shift_ref, w_ref, o_ref, s_ref, q_ref):
    """
    x_ref     : (1, H+2, (W+2)*Cin)  f32; spatially padded with the BN-neutral
                value and flattened channel-minor (pure 2D slices in-kernel).
    scale_ref : (1, (W+2)*Cin)       gamma / sqrt(var + eps), tiled over w.
    shift_ref : (1, (W+2)*Cin)       beta  - mean * scale,   tiled over w.
    w_ref     : (9, W*Cin, W*Cout)   block-diagonal conv weights, tap = kh*3+kw.
    o_ref     : (1, H, W*Cout)       lane-dense conv output (W*Cout = 128 here).
    s_ref/q_ref: (1, 1, W*Cout)      per-image column sum / sum-of-squares of the
                output (finished into per-channel BN stats by the wrapper).
    """
    hp, pcin = x_ref.shape[1], x_ref.shape[2]
    h = hp - 2
    wcin = w_ref.shape[1]
    wcout = w_ref.shape[2]
    cin = (pcin - wcin) // 2

    # BatchNorm (global batch stats folded into scale/shift) + ReLU over the
    # whole padded slab.  The halo holds -shift/scale, so it maps to ~0 here:
    # no iota / compare / where masking needed.
    x = x_ref[0]
    y = jnp.maximum(x * scale_ref[...] + shift_ref[...], 0.0)

    # 3x3 conv as 9 (H, W*Cin) x (W*Cin, W*Cout) matmuls against block-diagonal
    # weights: the accumulator is natively (H, W*Cout) = lane-dense.  MXU has
    # plenty of slack at these sizes, so the ~W x zero-padding of the weights
    # is free; the win is unmasked full-lane stores.
    acc = jnp.zeros((h, wcout), jnp.float32)
    for kh in range(3):
        for kw in range(3):
            lhs = y[kh:kh + h, kw * cin:kw * cin + wcin]
            acc = acc + jnp.dot(lhs, w_ref[kh * 3 + kw],
                                preferred_element_type=jnp.float32)

    # Dropout2d: identity in eval mode.
    o_ref[0] = acc.astype(o_ref.dtype)

    # Fused partial batch statistics of this layer's output (for the next
    # layer's BatchNorm) -- avoids a separate stats pallas_call + HBM re-read.
    s_ref[0] = jnp.sum(acc, axis=0, keepdims=True)
    q_ref[0] = jnp.sum(acc * acc, axis=0, keepdims=True)


def _bn_relu_conv3x3(feats_nhwc, scale, shift, w_oihw):
    """One DenseNetCompositeLayer forward (eval-mode dropout), NHWC in / NHWC out.

    Returns (y_nhwc, mean_of_y, var_of_y) with stats over (N, H, W) per channel.
    """
    n, h, w, cin = feats_nhwc.shape
    cout = w_oihw.shape[0]
    pcin = (w + 2) * cin

    # BN-neutral pad value: BN+ReLU maps the halo to ~0 (f32 rounding only).
    # TODO(synk): degenerate gamma==0 & beta>0 channels would need halo masking.
    safe_scale = jnp.where(scale != 0.0, scale, 1.0)
    pad_val = jnp.where(scale != 0.0, -shift / safe_scale, 0.0)

    xpad = jnp.broadcast_to(pad_val.astype(jnp.float32), (n, h + 2, w + 2, cin))
    xpad = jax.lax.dynamic_update_slice(
        xpad, feats_nhwc.astype(jnp.float32), (0, 1, 1, 0))
    xpad2 = xpad.reshape(n, h + 2, pcin)              # metadata-only trailing merge

    scale_t = jnp.tile(scale, w + 2).reshape(1, pcin).astype(jnp.float32)
    shift_t = jnp.tile(shift, w + 2).reshape(1, pcin).astype(jnp.float32)

    # (Cout, Cin, 3, 3) -> per-tap (Cin, Cout) -> block-diagonal (W*Cin, W*Cout).
    w_tap = jnp.transpose(w_oihw, (2, 3, 1, 0)).reshape(9, cin, cout)
    w_tap = w_tap.astype(jnp.float32)
    eye_w = jnp.eye(w, dtype=jnp.float32)
    w_bd = jnp.einsum("vw,kio->kviwo", eye_w, w_tap).reshape(9, w * cin, w * cout)

    flops = 2 * n * h * 9 * (w * cin) * (w * cout)
    bytes_accessed = (xpad2.size * 4 + w_bd.size * 4 + 2 * pcin * 4
                      + n * h * w * cout * 4 + 2 * n * w * cout * 4)

    out, s_part, q_part = pl.pallas_call(
        _bn_relu_conv_kernel,
        out_shape=(jax.ShapeDtypeStruct((n, h, w * cout), jnp.float32),
                   jax.ShapeDtypeStruct((n, 1, w * cout), jnp.float32),
                   jax.ShapeDtypeStruct((n, 1, w * cout), jnp.float32)),
        grid=(n,),
        in_specs=[
            pl.BlockSpec((1, h + 2, pcin), lambda i: (i, 0, 0)),
            pl.BlockSpec((1, pcin), lambda i: (0, 0)),
            pl.BlockSpec((1, pcin), lambda i: (0, 0)),
            pl.BlockSpec((9, w * cin, w * cout), lambda i: (0, 0, 0)),
        ],
        out_specs=(pl.BlockSpec((1, h, w * cout), lambda i: (i, 0, 0)),
                   pl.BlockSpec((1, 1, w * cout), lambda i: (i, 0, 0)),
                   pl.BlockSpec((1, 1, w * cout), lambda i: (i, 0, 0))),
        compiler_params=pltpu.CompilerParams(
            dimension_semantics=("parallel",),        # batch axis -> v7x megacore
            vmem_limit_bytes=_VMEM_LIMIT),
        cost_estimate=pl.CostEstimate(flops=flops, transcendentals=0,
                                      bytes_accessed=bytes_accessed),
    )(xpad2, scale_t, shift_t, w_bd)

    # Finish the fused batch statistics (tiny: (N, W, Cout) partials).
    count = n * h * w
    s_c = jnp.sum(s_part.reshape(n, w, cout), axis=(0, 1))
    q_c = jnp.sum(q_part.reshape(n, w, cout), axis=(0, 1))
    mean = s_c / count
    var = jnp.maximum(q_c / count - mean * mean, 0.0)  # clamp one-pass variance

    return out.reshape(n, h, w, cout), mean, var       # metadata-only reshape


# ----------------------------------------------------------------------------
# DenseNetBlock forward (NCHW interface, matching the PyTorch module).
# ----------------------------------------------------------------------------
def densenet_block(x_nchw, params):
    """params: list of (gamma, beta, conv_weight_OIHW) per composite layer."""
    x_nhwc = jnp.transpose(x_nchw, (0, 2, 3, 1))       # single NCHW->NHWC transpose
    feats = x_nhwc

    # Per-channel stats are independent per channel, so stats of a concatenated
    # tensor == concatenation of per-segment stats.  The original-input segment
    # has no previous conv kernel to fuse into -> one tiny jnp reduction.
    m0 = jnp.mean(x_nhwc, axis=(0, 1, 2))
    v0 = jnp.maximum(jnp.mean(x_nhwc * x_nhwc, axis=(0, 1, 2)) - m0 * m0, 0.0)
    seg_means, seg_vars = [m0], [v0]

    num_layers = len(params)
    for li, (gamma, beta, w_oihw) in enumerate(params):
        mean = jnp.concatenate(seg_means)
        var = jnp.concatenate(seg_vars)
        scale = gamma * jax.lax.rsqrt(var + _EPS)
        shift = beta - mean * scale

        y, my, vy = _bn_relu_conv3x3(feats, scale, shift, w_oihw)
        # TODO(synk): Dropout2d(p=0.1) training-mode channel dropout not implemented.

        if li + 1 < num_layers:                        # next layer's new-segment stats
            seg_means.append(my)
            seg_vars.append(vy)
        feats = jnp.concatenate([feats, y], axis=-1)   # dense connection (<=36 KB)

    return jnp.transpose(feats, (0, 3, 1, 2))          # single NHWC->NCHW transpose


# ----------------------------------------------------------------------------
# Pure-JAX reference (tolerance check; everything is f32 now -> tight-ish tol).
# ----------------------------------------------------------------------------
def _reference_block(x_nchw, params):
    x = x_nchw
    for gamma, beta, w in params:
        mean = jnp.mean(x, axis=(0, 2, 3), keepdims=True)
        var = jnp.mean((x - mean) ** 2, axis=(0, 2, 3), keepdims=True)
        xn = (x - mean) * jax.lax.rsqrt(var + _EPS)
        xn = xn * gamma.reshape(1, -1, 1, 1) + beta.reshape(1, -1, 1, 1)
        y = jnp.maximum(xn, 0.0)
        y = jax.lax.conv_general_dilated(
            y, w, window_strides=(1, 1), padding=((1, 1), (1, 1)),
            dimension_numbers=("NCHW", "OIHW", "NCHW"))
        x = jnp.concatenate([x, y], axis=1)
    return x


if __name__ == "__main__":
    N, C_IN, H, W = 2, 4, 16, 16
    NUM_LAYERS, GROWTH = 4, 8

    key = jax.random.PRNGKey(0)
    key, kx = jax.random.split(key)
    x = jax.random.normal(kx, (N, C_IN, H, W), dtype=jnp.float32)

    params = []
    c_now = C_IN
    for _ in range(NUM_LAYERS):
        key, kw = jax.random.split(key)
        gamma = jnp.ones((c_now,), jnp.float32)        # BatchNorm2d default affine init
        beta = jnp.zeros((c_now,), jnp.float32)
        std = math.sqrt(2.0 / (c_now * 9))             # kaiming_normal_ (fan_in, relu)
        weight = jax.random.normal(kw, (GROWTH, c_now, 3, 3), jnp.float32) * std
        params.append((gamma, beta, weight))
        c_now += GROWTH

    out = jax.jit(densenet_block)(x, params)
    out = jax.block_until_ready(out)

    assert out.shape == (N, C_IN + NUM_LAYERS * GROWTH, H, W), out.shape
    assert out.dtype == jnp.float32

    ref = jax.jit(_reference_block)(x, params)
    err = float(jnp.max(jnp.abs(out - ref)))
    assert err < 2e-2, f"max abs error vs reference: {err}"

    print("KERNEL_OK")
</pallas_src>

<mosaic_0001>
module attributes {stable_mosaic.version = 11 : i64} {
  func.func @_bn_relu_conv_kernel(%arg0: i32, %arg1: memref<1x18x72xf32, #tpu.memory_space<vmem>>, %arg2: memref<1x72xf32, #tpu.memory_space<vmem>>, %arg3: memref<1x72xf32, #tpu.memory_space<vmem>>, %arg4: memref<9x64x128xf32, #tpu.memory_space<vmem>>, %arg5: memref<1x16x128xf32, #tpu.memory_space<vmem>>, %arg6: memref<1x1x128xf32, #tpu.memory_space<vmem>>, %arg7: memref<1x1x128xf32, #tpu.memory_space<vmem>>) attributes {dimension_semantics = [#tpu.dimension_semantics<parallel>], iteration_bounds = array<i64: 2>, scalar_prefetch = 0 : i64, scratch_operands = 0 : i64, tpu.core_type = #tpu.core_type<tc>, window_params = [{transform_indices = @transform_0, window_bounds = array<i64: 1, 18, 72>}, {pipeline_mode = #tpu.pipeline_mode<synchronous>, transform_indices = @transform_1, window_bounds = array<i64: 1, 72>}, {pipeline_mode = #tpu.pipeline_mode<synchronous>, transform_indices = @transform_2, window_bounds = array<i64: 1, 72>}, {pipeline_mode = #tpu.pipeline_mode<synchronous>, transform_indices = @transform_3, window_bounds = array<i64: 9, 64, 128>}, {transform_indices = @transform_4, window_bounds = array<i64: 1, 16, 128>}, {transform_indices = @transform_5, window_bounds = array<i64: 1, 1, 128>}, {transform_indices = @transform_6, window_bounds = array<i64: 1, 1, 128>}]} {
    %c0 = arith.constant 0 : index
    %c0_0 = arith.constant 0 : index
    %c0_1 = arith.constant 0 : index
    %0 = vector.load %arg1[%c0, %c0_0, %c0_1] : memref<1x18x72xf32, #tpu.memory_space<vmem>>, vector<1x18x72xf32>
    %1 = vector.shape_cast %0 : vector<1x18x72xf32> to vector<18x72xf32>
    %c0_2 = arith.constant 0 : index
    %c0_3 = arith.constant 0 : index
    %2 = vector.load %arg2[%c0_2, %c0_3] : memref<1x72xf32, #tpu.memory_space<vmem>>, vector<1x72xf32>
    %3 = vector.broadcast %2 : vector<1x72xf32> to vector<18x72xf32>
    %4 = arith.mulf %1, %3 : vector<18x72xf32>
    %c0_4 = arith.constant 0 : index
    %c0_5 = arith.constant 0 : index
    %5 = vector.load %arg3[%c0_4, %c0_5] : memref<1x72xf32, #tpu.memory_space<vmem>>, vector<1x72xf32>
    %6 = vector.broadcast %5 : vector<1x72xf32> to vector<18x72xf32>
    %7 = arith.addf %4, %6 : vector<18x72xf32>
    %cst = arith.constant 0.000000e+00 : f32
    %8 = vector.broadcast %cst : f32 to vector<18x72xf32>
    %9 = arith.maximumf %7, %8 : vector<18x72xf32>
    %cst_6 = arith.constant 0.000000e+00 : f32
    %10 = vector.broadcast %cst_6 : f32 to vector<16x128xf32>
    %11 = vector.extract_strided_slice %9 {offsets = [0, 0], sizes = [16, 64], strides = [1, 1]} : vector<18x72xf32> to vector<16x64xf32>
    %c0_7 = arith.constant 0 : index
    %c0_8 = arith.constant 0 : index
    %c0_9 = arith.constant 0 : index
    %12 = vector.load %arg4[%c0_7, %c0_8, %c0_9] : memref<9x64x128xf32, #tpu.memory_space<vmem>>, vector<1x64x128xf32>
    %13 = vector.shape_cast %12 : vector<1x64x128xf32> to vector<64x128xf32>
    %cst_10 = arith.constant dense<0.000000e+00> : vector<16x128xf32>
    %14 = tpu.matmul %11, %13, %cst_10 {dimension_numbers = #tpu.dot_dimension_numbers<[1], [0], [0], [1], [0, 0, 1, 1], [], []>} : vector<16x64xf32>, vector<64x128xf32>, vector<16x128xf32> -> vector<16x128xf32>
    %15 = arith.addf %10, %14 : vector<16x128xf32>
    %16 = vector.extract_strided_slice %9 {offsets = [0, 4], sizes = [16, 64], strides = [1, 1]} : vector<18x72xf32> to vector<16x64xf32>
    %c1 = arith.constant 1 : index
    %c0_11 = arith.constant 0 : index
    %c0_12 = arith.constant 0 : index
    %17 = vector.load %arg4[%c1, %c0_11, %c0_12] : memref<9x64x128xf32, #tpu.memory_space<vmem>>, vector<1x64x128xf32>
    %18 = vector.shape_cast %17 : vector<1x64x128xf32> to vector<64x128xf32>
    %cst_13 = arith.constant dense<0.000000e+00> : vector<16x128xf32>
    %19 = tpu.matmul %16, %18, %cst_13 {dimension_numbers = #tpu.dot_dimension_numbers<[1], [0], [0], [1], [0, 0, 1, 1], [], []>} : vector<16x64xf32>, vector<64x128xf32>, vector<16x128xf32> -> vector<16x128xf32>
    %20 = arith.addf %15, %19 : vector<16x128xf32>
    %21 = vector.extract_strided_slice %9 {offsets = [0, 8], sizes = [16, 64], strides = [1, 1]} : vector<18x72xf32> to vector<16x64xf32>
    %c2 = arith.constant 2 : index
    %c0_14 = arith.constant 0 : index
    %c0_15 = arith.constant 0 : index
    %22 = vector.load %arg4[%c2, %c0_14, %c0_15] : memref<9x64x128xf32, #tpu.memory_space<vmem>>, vector<1x64x128xf32>
    %23 = vector.shape_cast %22 : vector<1x64x128xf32> to vector<64x128xf32>
    %cst_16 = arith.constant dense<0.000000e+00> : vector<16x128xf32>
    %24 = tpu.matmul %21, %23, %cst_16 {dimension_numbers = #tpu.dot_dimension_numbers<[1], [0], [0], [1], [0, 0, 1, 1], [], []>} : vector<16x64xf32>, vector<64x128xf32>, vector<16x128xf32> -> vector<16x128xf32>
    %25 = arith.addf %20, %24 : vector<16x128xf32>
    %26 = vector.extract_strided_slice %9 {offsets = [1, 0], sizes = [16, 64], strides = [1, 1]} : vector<18x72xf32> to vector<16x64xf32>
    %c3 = arith.constant 3 : index
    %c0_17 = arith.constant 0 : index
    %c0_18 = arith.constant 0 : index
    %27 = vector.load %arg4[%c3, %c0_17, %c0_18] : memref<9x64x128xf32, #tpu.memory_space<vmem>>, vector<1x64x128xf32>
    %28 = vector.shape_cast %27 : vector<1x64x128xf32> to vector<64x128xf32>
    %cst_19 = arith.constant dense<0.000000e+00> : vector<16x128xf32>
    %29 = tpu.matmul %26, %28, %cst_19 {dimension_numbers = #tpu.dot_dimension_numbers<[1], [0], [0], [1], [0, 0, 1, 1], [], []>} : vector<16x64xf32>, vector<64x128xf32>, vector<16x128xf32> -> vector<16x128xf32>
    %30 = arith.addf %25, %29 : vector<16x128xf32>
    %31 = vector.extract_strided_slice %9 {offsets = [1, 4], sizes = [16, 64], strides = [1, 1]} : vector<18x72xf32> to vector<16x64xf32>
    %c4 = arith.constant 4 : index
    %c0_20 = arith.constant 0 : index
    %c0_21 = arith.constant 0 : index
    %32 = vector.load %arg4[%c4, %c0_20, %c0_21] : memref<9x64x128xf32, #tpu.memory_space<vmem>>, vector<1x64x128xf32>
    %33 = vector.shape_cast %32 : vector<1x64x128xf32> to vector<64x128xf32>
    %cst_22 = arith.constant dense<0.000000e+00> : vector<16x128xf32>
    %34 = tpu.matmul %31, %33, %cst_22 {dimension_numbers = #tpu.dot_dimension_numbers<[1], [0], [0], [1], [0, 0, 1, 1], [], []>} : vector<16x64xf32>, vector<64x128xf32>, vector<16x128xf32> -> vector<16x128xf32>
    %35 = arith.addf %30, %34 : vector<16x128xf32>
    %36 = vector.extract_strided_slice %9 {offsets = [1, 8], sizes = [16, 64], strides = [1, 1]} : vector<18x72xf32> to vector<16x64xf32>
    %c5 = arith.constant 5 : index
    %c0_23 = arith.constant 0 : index
    %c0_24 = arith.constant 0 : index
    %37 = vector.load %arg4[%c5, %c0_23, %c0_24] : memref<9x64x128xf32, #tpu.memory_space<vmem>>, vector<1x64x128xf32>
    %38 = vector.shape_cast %37 : vector<1x64x128xf32> to vector<64x128xf32>
    %cst_25 = arith.constant dense<0.000000e+00> : vector<16x128xf32>
    %39 = tpu.matmul %36, %38, %cst_25 {dimension_numbers = #tpu.dot_dimension_numbers<[1], [0], [0], [1], [0, 0, 1, 1], [], []>} : vector<16x64xf32>, vector<64x128xf32>, vector<16x128xf32> -> vector<16x128xf32>
    %40 = arith.addf %35, %39 : vector<16x128xf32>
    %41 = vector.extract_strided_slice %9 {offsets = [2, 0], sizes = [16, 64], strides = [1, 1]} : vector<18x72xf32> to vector<16x64xf32>
    %c6 = arith.constant 6 : index
    %c0_26 = arith.constant 0 : index
    %c0_27 = arith.constant 0 : index
    %42 = vector.load %arg4[%c6, %c0_26, %c0_27] : memref<9x64x128xf32, #tpu.memory_space<vmem>>, vector<1x64x128xf32>
    %43 = vector.shape_cast %42 : vector<1x64x128xf32> to vector<64x128xf32>
    %cst_28 = arith.constant dense<0.000000e+00> : vector<16x128xf32>
    %44 = tpu.matmul %41, %43, %cst_28 {dimension_numbers = #tpu.dot_dimension_numbers<[1], [0], [0], [1], [0, 0, 1, 1], [], []>} : vector<16x64xf32>, vector<64x128xf32>, vector<16x128xf32> -> vector<16x128xf32>
    %45 = arith.addf %40, %44 : vector<16x128xf32>
    %46 = vector.extract_strided_slice %9 {offsets = [2, 4], sizes = [16, 64], strides = [1, 1]} : vector<18x72xf32> to vector<16x64xf32>
    %c7 = arith.constant 7 : index
    %c0_29 = arith.constant 0 : index
    %c0_30 = arith.constant 0 : index
    %47 = vector.load %arg4[%c7, %c0_29, %c0_30] : memref<9x64x128xf32, #tpu.memory_space<vmem>>, vector<1x64x128xf32>
    %48 = vector.shape_cast %47 : vector<1x64x128xf32> to vector<64x128xf32>
    %cst_31 = arith.constant dense<0.000000e+00> : vector<16x128xf32>
    %49 = tpu.matmul %46, %48, %cst_31 {dimension_numbers = #tpu.dot_dimension_numbers<[1], [0], [0], [1], [0, 0, 1, 1], [], []>} : vector<16x64xf32>, vector<64x128xf32>, vector<16x128xf32> -> vector<16x128xf32>
    %50 = arith.addf %45, %49 : vector<16x128xf32>
    %51 = vector.extract_strided_slice %9 {offsets = [2, 8], sizes = [16, 64], strides = [1, 1]} : vector<18x72xf32> to vector<16x64xf32>
    %c8 = arith.constant 8 : index
    %c0_32 = arith.constant 0 : index
    %c0_33 = arith.constant 0 : index
    %52 = vector.load %arg4[%c8, %c0_32, %c0_33] : memref<9x64x128xf32, #tpu.memory_space<vmem>>, vector<1x64x128xf32>
    %53 = vector.shape_cast %52 : vector<1x64x128xf32> to vector<64x128xf32>
    %cst_34 = arith.constant dense<0.000000e+00> : vector<16x128xf32>
    %54 = tpu.matmul %51, %53, %cst_34 {dimension_numbers = #tpu.dot_dimension_numbers<[1], [0], [0], [1], [0, 0, 1, 1], [], []>} : vector<16x64xf32>, vector<64x128xf32>, vector<16x128xf32> -> vector<16x128xf32>
    %55 = arith.addf %50, %54 : vector<16x128xf32>
    %c0_35 = arith.constant 0 : index
    %c0_36 = arith.constant 0 : index
    %c0_37 = arith.constant 0 : index
    %56 = vector.load %arg5[%c0_35, %c0_36, %c0_37] : memref<1x16x128xf32, #tpu.memory_space<vmem>>, vector<1x16x128xf32>
    %57 = vector.shape_cast %56 : vector<1x16x128xf32> to vector<16x128xf32>
    %58 = vector.shape_cast %55 : vector<16x128xf32> to vector<1x16x128xf32>
    tpu.vector_store %arg5[%c0_35, %c0_36, %c0_37], %58 {strides = array<i32>} : memref<1x16x128xf32, #tpu.memory_space<vmem>>, vector<1x16x128xf32>,
    %cst_38 = arith.constant dense<0.000000e+00> : vector<128xf32>
    %59 = vector.multi_reduction <add>, %55, %cst_38 [0] : vector<16x128xf32> to vector<128xf32>
    %60 = vector.shape_cast %59 : vector<128xf32> to vector<1x128xf32>
    %c0_39 = arith.constant 0 : index
    %c0_40 = arith.constant 0 : index
    %c0_41 = arith.constant 0 : index
    %61 = vector.load %arg6[%c0_39, %c0_40, %c0_41] : memref<1x1x128xf32, #tpu.memory_space<vmem>>, vector<1x1x128xf32>
    %62 = vector.shape_cast %61 : vector<1x1x128xf32> to vector<1x128xf32>
    %63 = vector.shape_cast %60 : vector<1x128xf32> to vector<1x1x128xf32>
    tpu.vector_store %arg6[%c0_39, %c0_40, %c0_41], %63 {strides = array<i32>} : memref<1x1x128xf32, #tpu.memory_space<vmem>>, vector<1x1x128xf32>,
    %64 = arith.mulf %55, %55 : vector<16x128xf32>
    %cst_42 = arith.constant dense<0.000000e+00> : vector<128xf32>
    %65 = vector.multi_reduction <add>, %64, %cst_42 [0] : vector<16x128xf32> to vector<128xf32>
    %66 = vector.shape_cast %65 : vector<128xf32> to vector<1x128xf32>
    %c0_43 = arith.constant 0 : index
    %c0_44 = arith.constant 0 : index
    %c0_45 = arith.constant 0 : index
    %67 = vector.load %arg7[%c0_43, %c0_44, %c0_45] : memref<1x1x128xf32, #tpu.memory_space<vmem>>, vector<1x1x128xf32>
    %68 = vector.shape_cast %67 : vector<1x1x128xf32> to vector<1x128xf32>
    %69 = vector.shape_cast %66 : vector<1x128xf32> to vector<1x1x128xf32>
    tpu.vector_store %arg7[%c0_43, %c0_44, %c0_45], %69 {strides = array<i32>} : memref<1x1x128xf32, #tpu.memory_space<vmem>>, vector<1x1x128xf32>,
    return
  }
  func.func @transform_0(%arg0: i32) -> (i32, i32, i32) {
    %c0_i32 = arith.constant 0 : i32
    %c0_i32_0 = arith.constant 0 : i32
    %c0_i32_1 = arith.constant 0 : i32
    return %arg0, %c0_i32, %c0_i32_0 : i32, i32, i32
  }
  func.func @transform_1(%arg0: i32) -> (i32, i32) {
    %c0_i32 = arith.constant 0 : i32
    %c0_i32_0 = arith.constant 0 : i32
    %c0_i32_1 = arith.constant 0 : i32
    return %c0_i32, %c0_i32_0 : i32, i32
  }
  func.func @transform_2(%arg0: i32) -> (i32, i32) {
    %c0_i32 = arith.constant 0 : i32
    %c0_i32_0 = arith.constant 0 : i32
    %c0_i32_1 = arith.constant 0 : i32
    return %c0_i32, %c0_i32_0 : i32, i32
  }
  func.func @transform_3(%arg0: i32) -> (i32, i32, i32) {
    %c0_i32 = arith.constant 0 : i32
    %c0_i32_0 = arith.constant 0 : i32
    %c0_i32_1 = arith.constant 0 : i32
    %c0_i32_2 = arith.constant 0 : i32
    return %c0_i32, %c0_i32_0, %c0_i32_1 : i32, i32, i32
  }
  func.func @transform_4(%arg0: i32) -> (i32, i32, i32) {
    %c0_i32 = arith.constant 0 : i32
    %c0_i32_0 = arith.constant 0 : i32
    %c0_i32_1 = arith.constant 0 : i32
    return %arg0, %c0_i32, %c0_i32_0 : i32, i32, i32
  }
  func.func @transform_5(%arg0: i32) -> (i32, i32, i32) {
    %c0_i32 = arith.constant 0 : i32
    %c0_i32_0 = arith.constant 0 : i32
    %c0_i32_1 = arith.constant 0 : i32
    return %arg0, %c0_i32, %c0_i32_0 : i32, i32, i32
  }
  func.func @transform_6(%arg0: i32) -> (i32, i32, i32) {
    %c0_i32 = arith.constant 0 : i32
    %c0_i32_0 = arith.constant 0 : i32
    %c0_i32_1 = arith.constant 0 : i32
    return %arg0, %c0_i32, %c0_i32_0 : i32, i32, i32
  }
}

module attributes {stable_mosaic.version = 11 : i64} {
  func.func @_bn_relu_conv_kernel(%arg0: i32, %arg1: memref<1x18x216xf32, #tpu.memory_space<vmem>>, %arg2: memref<1x216xf32, #tpu.memory_space<vmem>>, %arg3: memref<1x216xf32, #tpu.memory_space<vmem>>, %arg4: memref<9x192x128xf32, #tpu.memory_space<vmem>>, %arg5: memref<1x16x128xf32, #tpu.memory_space<vmem>>, %arg6: memref<1x1x128xf32, #tpu.memory_space<vmem>>, %arg7: memref<1x1x128xf32, #tpu.memory_space<vmem>>) attributes {dimension_semantics = [#tpu.dimension_semantics<parallel>], iteration_bounds = array<i64: 2>, scalar_prefetch = 0 : i64, scratch_operands = 0 : i64, tpu.core_type = #tpu.core_type<tc>, window_params = [{transform_indices = @transform_0, window_bounds = array<i64: 1, 18, 216>}, {pipeline_mode = #tpu.pipeline_mode<synchronous>, transform_indices = @transform_1, window_bounds = array<i64: 1, 216>}, {pipeline_mode = #tpu.pipeline_mode<synchronous>, transform_indices = @transform_2, window_bounds = array<i64: 1, 216>}, {pipeline_mode = #tpu.pipeline_mode<synchronous>, transform_indices = @transform_3, window_bounds = array<i64: 9, 192, 128>}, {transform_indices = @transform_4, window_bounds = array<i64: 1, 16, 128>}, {transform_indices = @transform_5, window_bounds = array<i64: 1, 1, 128>}, {transform_indices = @transform_6, window_bounds = array<i64: 1, 1, 128>}]} {
    %c0 = arith.constant 0 : index
    %c0_0 = arith.constant 0 : index
    %c0_1 = arith.constant 0 : index
    %0 = vector.load %arg1[%c0, %c0_0, %c0_1] : memref<1x18x216xf32, #tpu.memory_space<vmem>>, vector<1x18x216xf32>
    %1 = vector.shape_cast %0 : vector<1x18x216xf32> to vector<18x216xf32>
    %c0_2 = arith.constant 0 : index
    %c0_3 = arith.constant 0 : index
    %2 = vector.load %arg2[%c0_2, %c0_3] : memref<1x216xf32, #tpu.memory_space<vmem>>, vector<1x216xf32>
    %3 = vector.broadcast %2 : vector<1x216xf32> to vector<18x216xf32>
    %4 = arith.mulf %1, %3 : vector<18x216xf32>
    %c0_4 = arith.constant 0 : index
    %c0_5 = arith.constant 0 : index
    %5 = vector.load %arg3[%c0_4, %c0_5] : memref<1x216xf32, #tpu.memory_space<vmem>>, vector<1x216xf32>
    %6 = vector.broadcast %5 : vector<1x216xf32> to vector<18x216xf32>
    %7 = arith.addf %4, %6 : vector<18x216xf32>
    %cst = arith.constant 0.000000e+00 : f32
    %8 = vector.broadcast %cst : f32 to vector<18x216xf32>
    %9 = arith.maximumf %7, %8 : vector<18x216xf32>
    %cst_6 = arith.constant 0.000000e+00 : f32
    %10 = vector.broadcast %cst_6 : f32 to vector<16x128xf32>
    %11 = vector.extract_strided_slice %9 {offsets = [0, 0], sizes = [16, 192], strides = [1, 1]} : vector<18x216xf32> to vector<16x192xf32>
    %c0_7 = arith.constant 0 : index
    %c0_8 = arith.constant 0 : index
    %c0_9 = arith.constant 0 : index
    %12 = vector.load %arg4[%c0_7, %c0_8, %c0_9] : memref<9x192x128xf32, #tpu.memory_space<vmem>>, vector<1x192x128xf32>
    %13 = vector.shape_cast %12 : vector<1x192x128xf32> to vector<192x128xf32>
    %cst_10 = arith.constant dense<0.000000e+00> : vector<16x128xf32>
    %14 = tpu.matmul %11, %13, %cst_10 {dimension_numbers = #tpu.dot_dimension_numbers<[1], [0], [0], [1], [0, 0, 1, 1], [], []>} : vector<16x192xf32>, vector<192x128xf32>, vector<16x128xf32> -> vector<16x128xf32>
    %15 = arith.addf %10, %14 : vector<16x128xf32>
    %16 = vector.extract_strided_slice %9 {offsets = [0, 12], sizes = [16, 192], strides = [1, 1]} : vector<18x216xf32> to vector<16x192xf32>
    %c1 = arith.constant 1 : index
    %c0_11 = arith.constant 0 : index
    %c0_12 = arith.constant 0 : index
    %17 = vector.load %arg4[%c1, %c0_11, %c0_12] : memref<9x192x128xf32, #tpu.memory_space<vmem>>, vector<1x192x128xf32>
    %18 = vector.shape_cast %17 : vector<1x192x128xf32> to vector<192x128xf32>
    %cst_13 = arith.constant dense<0.000000e+00> : vector<16x128xf32>
    %19 = tpu.matmul %16, %18, %cst_13 {dimension_numbers = #tpu.dot_dimension_numbers<[1], [0], [0], [1], [0, 0, 1, 1], [], []>} : vector<16x192xf32>, vector<192x128xf32>, vector<16x128xf32> -> vector<16x128xf32>
    %20 = arith.addf %15, %19 : vector<16x128xf32>
    %21 = vector.extract_strided_slice %9 {offsets = [0, 24], sizes = [16, 192], strides = [1, 1]} : vector<18x216xf32> to vector<16x192xf32>
    %c2 = arith.constant 2 : index
    %c0_14 = arith.constant 0 : index
    %c0_15 = arith.constant 0 : index
    %22 = vector.load %arg4[%c2, %c0_14, %c0_15] : memref<9x192x128xf32, #tpu.memory_space<vmem>>, vector<1x192x128xf32>
    %23 = vector.shape_cast %22 : vector<1x192x128xf32> to vector<192x128xf32>
    %cst_16 = arith.constant dense<0.000000e+00> : vector<16x128xf32>
    %24 = tpu.matmul %21, %23, %cst_16 {dimension_numbers = #tpu.dot_dimension_numbers<[1], [0], [0], [1], [0, 0, 1, 1], [], []>} : vector<16x192xf32>, vector<192x128xf32>, vector<16x128xf32> -> vector<16x128xf32>
    %25 = arith.addf %20, %24 : vector<16x128xf32>
    %26 = vector.extract_strided_slice %9 {offsets = [1, 0], sizes = [16, 192], strides = [1, 1]} : vector<18x216xf32> to vector<16x192xf32>
    %c3 = arith.constant 3 : index
    %c0_17 = arith.constant 0 : index
    %c0_18 = arith.constant 0 : index
    %27 = vector.load %arg4[%c3, %c0_17, %c0_18] : memref<9x192x128xf32, #tpu.memory_space<vmem>>, vector<1x192x128xf32>
    %28 = vector.shape_cast %27 : vector<1x192x128xf32> to vector<192x128xf32>
    %cst_19 = arith.constant dense<0.000000e+00> : vector<16x128xf32>
    %29 = tpu.matmul %26, %28, %cst_19 {dimension_numbers = #tpu.dot_dimension_numbers<[1], [0], [0], [1], [0, 0, 1, 1], [], []>} : vector<16x192xf32>, vector<192x128xf32>, vector<16x128xf32> -> vector<16x128xf32>
    %30 = arith.addf %25, %29 : vector<16x128xf32>
    %31 = vector.extract_strided_slice %9 {offsets = [1, 12], sizes = [16, 192], strides = [1, 1]} : vector<18x216xf32> to vector<16x192xf32>
    %c4 = arith.constant 4 : index
    %c0_20 = arith.constant 0 : index
    %c0_21 = arith.constant 0 : index
    %32 = vector.load %arg4[%c4, %c0_20, %c0_21] : memref<9x192x128xf32, #tpu.memory_space<vmem>>, vector<1x192x128xf32>
    %33 = vector.shape_cast %32 : vector<1x192x128xf32> to vector<192x128xf32>
    %cst_22 = arith.constant dense<0.000000e+00> : vector<16x128xf32>
    %34 = tpu.matmul %31, %33, %cst_22 {dimension_numbers = #tpu.dot_dimension_numbers<[1], [0], [0], [1], [0, 0, 1, 1], [], []>} : vector<16x192xf32>, vector<192x128xf32>, vector<16x128xf32> -> vector<16x128xf32>
    %35 = arith.addf %30, %34 : vector<16x128xf32>
    %36 = vector.extract_strided_slice %9 {offsets = [1, 24], sizes = [16, 192], strides = [1, 1]} : vector<18x216xf32> to vector<16x192xf32>
    %c5 = arith.constant 5 : index
    %c0_23 = arith.constant 0 : index
    %c0_24 = arith.constant 0 : index
    %37 = vector.load %arg4[%c5, %c0_23, %c0_24] : memref<9x192x128xf32, #tpu.memory_space<vmem>>, vector<1x192x128xf32>
    %38 = vector.shape_cast %37 : vector<1x192x128xf32> to vector<192x128xf32>
    %cst_25 = arith.constant dense<0.000000e+00> : vector<16x128xf32>
    %39 = tpu.matmul %36, %38, %cst_25 {dimension_numbers = #tpu.dot_dimension_numbers<[1], [0], [0], [1], [0, 0, 1, 1], [], []>} : vector<16x192xf32>, vector<192x128xf32>, vector<16x128xf32> -> vector<16x128xf32>
    %40 = arith.addf %35, %39 : vector<16x128xf32>
    %41 = vector.extract_strided_slice %9 {offsets = [2, 0], sizes = [16, 192], strides = [1, 1]} : vector<18x216xf32> to vector<16x192xf32>
    %c6 = arith.constant 6 : index
    %c0_26 = arith.constant 0 : index
    %c0_27 = arith.constant 0 : index
    %42 = vector.load %arg4[%c6, %c0_26, %c0_27] : memref<9x192x128xf32, #tpu.memory_space<vmem>>, vector<1x192x128xf32>
    %43 = vector.shape_cast %42 : vector<1x192x128xf32> to vector<192x128xf32>
    %cst_28 = arith.constant dense<0.000000e+00> : vector<16x128xf32>
    %44 = tpu.matmul %41, %43, %cst_28 {dimension_numbers = #tpu.dot_dimension_numbers<[1], [0], [0], [1], [0, 0, 1, 1], [], []>} : vector<16x192xf32>, vector<192x128xf32>, vector<16x128xf32> -> vector<16x128xf32>
    %45 = arith.addf %40, %44 : vector<16x128xf32>
    %46 = vector.extract_strided_slice %9 {offsets = [2, 12], sizes = [16, 192], strides = [1, 1]} : vector<18x216xf32> to vector<16x192xf32>
    %c7 = arith.constant 7 : index
    %c0_29 = arith.constant 0 : index
    %c0_30 = arith.constant 0 : index
    %47 = vector.load %arg4[%c7, %c0_29, %c0_30] : memref<9x192x128xf32, #tpu.memory_space<vmem>>, vector<1x192x128xf32>
    %48 = vector.shape_cast %47 : vector<1x192x128xf32> to vector<192x128xf32>
    %cst_31 = arith.constant dense<0.000000e+00> : vector<16x128xf32>
    %49 = tpu.matmul %46, %48, %cst_31 {dimension_numbers = #tpu.dot_dimension_numbers<[1], [0], [0], [1], [0, 0, 1, 1], [], []>} : vector<16x192xf32>, vector<192x128xf32>, vector<16x128xf32> -> vector<16x128xf32>
    %50 = arith.addf %45, %49 : vector<16x128xf32>
    %51 = vector.extract_strided_slice %9 {offsets = [2, 24], sizes = [16, 192], strides = [1, 1]} : vector<18x216xf32> to vector<16x192xf32>
    %c8 = arith.constant 8 : index
    %c0_32 = arith.constant 0 : index
    %c0_33 = arith.constant 0 : index
    %52 = vector.load %arg4[%c8, %c0_32, %c0_33] : memref<9x192x128xf32, #tpu.memory_space<vmem>>, vector<1x192x128xf32>
    %53 = vector.shape_cast %52 : vector<1x192x128xf32> to vector<192x128xf32>
    %cst_34 = arith.constant dense<0.000000e+00> : vector<16x128xf32>
    %54 = tpu.matmul %51, %53, %cst_34 {dimension_numbers = #tpu.dot_dimension_numbers<[1], [0], [0], [1], [0, 0, 1, 1], [], []>} : vector<16x192xf32>, vector<192x128xf32>, vector<16x128xf32> -> vector<16x128xf32>
    %55 = arith.addf %50, %54 : vector<16x128xf32>
    %c0_35 = arith.constant 0 : index
    %c0_36 = arith.constant 0 : index
    %c0_37 = arith.constant 0 : index
    %56 = vector.load %arg5[%c0_35, %c0_36, %c0_37] : memref<1x16x128xf32, #tpu.memory_space<vmem>>, vector<1x16x128xf32>
    %57 = vector.shape_cast %56 : vector<1x16x128xf32> to vector<16x128xf32>
    %58 = vector.shape_cast %55 : vector<16x128xf32> to vector<1x16x128xf32>
    tpu.vector_store %arg5[%c0_35, %c0_36, %c0_37], %58 {strides = array<i32>} : memref<1x16x128xf32, #tpu.memory_space<vmem>>, vector<1x16x128xf32>,
    %cst_38 = arith.constant dense<0.000000e+00> : vector<128xf32>
    %59 = vector.multi_reduction <add>, %55, %cst_38 [0] : vector<16x128xf32> to vector<128xf32>
    %60 = vector.shape_cast %59 : vector<128xf32> to vector<1x128xf32>
    %c0_39 = arith.constant 0 : index
    %c0_40 = arith.constant 0 : index
    %c0_41 = arith.constant 0 : index
    %61 = vector.load %arg6[%c0_39, %c0_40, %c0_41] : memref<1x1x128xf32, #tpu.memory_space<vmem>>, vector<1x1x128xf32>
    %62 = vector.shape_cast %61 : vector<1x1x128xf32> to vector<1x128xf32>
    %63 = vector.shape_cast %60 : vector<1x128xf32> to vector<1x1x128xf32>
    tpu.vector_store %arg6[%c0_39, %c0_40, %c0_41], %63 {strides = array<i32>} : memref<1x1x128xf32, #tpu.memory_space<vmem>>, vector<1x1x128xf32>,
    %64 = arith.mulf %55, %55 : vector<16x128xf32>
    %cst_42 = arith.constant dense<0.000000e+00> : vector<128xf32>
    %65 = vector.multi_reduction <add>, %64, %cst_42 [0] : vector<16x128xf32> to vector<128xf32>
    %66 = vector.shape_cast %65 : vector<128xf32> to vector<1x128xf32>
    %c0_43 = arith.constant 0 : index
    %c0_44 = arith.constant 0 : index
    %c0_45 = arith.constant 0 : index
    %67 = vector.load %arg7[%c0_43, %c0_44, %c0_45] : memref<1x1x128xf32, #tpu.memory_space<vmem>>, vector<1x1x128xf32>
    %68 = vector.shape_cast %67 : vector<1x1x128xf32> to vector<1x128xf32>
    %69 = vector.shape_cast %66 : vector<1x128xf32> to vector<1x1x128xf32>
    tpu.vector_store %arg7[%c0_43, %c0_44, %c0_45], %69 {strides = array<i32>} : memref<1x1x128xf32, #tpu.memory_space<vmem>>, vector<1x1x128xf32>,
    return
  }
  func.func @transform_0(%arg0: i32) -> (i32, i32, i32) {
    %c0_i32 = arith.constant 0 : i32
    %c0_i32_0 = arith.constant 0 : i32
    %c0_i32_1 = arith.constant 0 : i32
    return %arg0, %c0_i32, %c0_i32_0 : i32, i32, i32
  }
  func.func @transform_1(%arg0: i32) -> (i32, i32) {
    %c0_i32 = arith.constant 0 : i32
    %c0_i32_0 = arith.constant 0 : i32
    %c0_i32_1 = arith.constant 0 : i32
    return %c0_i32, %c0_i32_0 : i32, i32
  }
  func.func @transform_2(%arg0: i32) -> (i32, i32) {
    %c0_i32 = arith.constant 0 : i32
    %c0_i32_0 = arith.constant 0 : i32
    %c0_i32_1 = arith.constant 0 : i32
    return %c0_i32, %c0_i32_0 : i32, i32
  }
  func.func @transform_3(%arg0: i32) -> (i32, i32, i32) {
    %c0_i32 = arith.constant 0 : i32
    %c0_i32_0 = arith.constant 0 : i32
    %c0_i32_1 = arith.constant 0 : i32
    %c0_i32_2 = arith.constant 0 : i32
    return %c0_i32, %c0_i32_0, %c0_i32_1 : i32, i32, i32
  }
  func.func @transform_4(%arg0: i32) -> (i32, i32, i32) {
    %c0_i32 = arith.constant 0 : i32
    %c0_i32_0 = arith.constant 0 : i32
    %c0_i32_1 = arith.constant 0 : i32
    return %arg0, %c0_i32, %c0_i32_0 : i32, i32, i32
  }
  func.func @transform_5(%arg0: i32) -> (i32, i32, i32) {
    %c0_i32 = arith.constant 0 : i32
    %c0_i32_0 = arith.constant 0 : i32
    %c0_i32_1 = arith.constant 0 : i32
    return %arg0, %c0_i32, %c0_i32_0 : i32, i32, i32
  }
  func.func @transform_6(%arg0: i32) -> (i32, i32, i32) {
    %c0_i32 = arith.constant 0 : i32
    %c0_i32_0 = arith.constant 0 : i32
    %c0_i32_1 = arith.constant 0 : i32
    return %arg0, %c0_i32, %c0_i32_0 : i32, i32, i32
  }
}

module attributes {stable_mosaic.version = 11 : i64} {
  func.func @_bn_relu_conv_kernel(%arg0: i32, %arg1: memref<1x18x360xf32, #tpu.memory_space<vmem>>, %arg2: memref<1x360xf32, #tpu.memory_space<vmem>>, %arg3: memref<1x360xf32, #tpu.memory_space<vmem>>, %arg4: memref<9x320x128xf32, #tpu.memory_space<vmem>>, %arg5: memref<1x16x128xf32, #tpu.memory_space<vmem>>, %arg6: memref<1x1x128xf32, #tpu.memory_space<vmem>>, %arg7: memref<1x1x128xf32, #tpu.memory_space<vmem>>) attributes {dimension_semantics = [#tpu.dimension_semantics<parallel>], iteration_bounds = array<i64: 2>, scalar_prefetch = 0 : i64, scratch_operands = 0 : i64, tpu.core_type = #tpu.core_type<tc>, window_params = [{transform_indices = @transform_0, window_bounds = array<i64: 1, 18, 360>}, {pipeline_mode = #tpu.pipeline_mode<synchronous>, transform_indices = @transform_1, window_bounds = array<i64: 1, 360>}, {pipeline_mode = #tpu.pipeline_mode<synchronous>, transform_indices = @transform_2, window_bounds = array<i64: 1, 360>}, {pipeline_mode = #tpu.pipeline_mode<synchronous>, transform_indices = @transform_3, window_bounds = array<i64: 9, 320, 128>}, {transform_indices = @transform_4, window_bounds = array<i64: 1, 16, 128>}, {transform_indices = @transform_5, window_bounds = array<i64: 1, 1, 128>}, {transform_indices = @transform_6, window_bounds = array<i64: 1, 1, 128>}]} {
    %c0 = arith.constant 0 : index
    %c0_0 = arith.constant 0 : index
    %c0_1 = arith.constant 0 : index
    %0 = vector.load %arg1[%c0, %c0_0, %c0_1] : memref<1x18x360xf32, #tpu.memory_space<vmem>>, vector<1x18x360xf32>
    %1 = vector.shape_cast %0 : vector<1x18x360xf32> to vector<18x360xf32>
    %c0_2 = arith.constant 0 : index
    %c0_3 = arith.constant 0 : index
    %2 = vector.load %arg2[%c0_2, %c0_3] : memref<1x360xf32, #tpu.memory_space<vmem>>, vector<1x360xf32>
    %3 = vector.broadcast %2 : vector<1x360xf32> to vector<18x360xf32>
    %4 = arith.mulf %1, %3 : vector<18x360xf32>
    %c0_4 = arith.constant 0 : index
    %c0_5 = arith.constant 0 : index
    %5 = vector.load %arg3[%c0_4, %c0_5] : memref<1x360xf32, #tpu.memory_space<vmem>>, vector<1x360xf32>
    %6 = vector.broadcast %5 : vector<1x360xf32> to vector<18x360xf32>
    %7 = arith.addf %4, %6 : vector<18x360xf32>
    %cst = arith.constant 0.000000e+00 : f32
    %8 = vector.broadcast %cst : f32 to vector<18x360xf32>
    %9 = arith.maximumf %7, %8 : vector<18x360xf32>
    %cst_6 = arith.constant 0.000000e+00 : f32
    %10 = vector.broadcast %cst_6 : f32 to vector<16x128xf32>
    %11 = vector.extract_strided_slice %9 {offsets = [0, 0], sizes = [16, 320], strides = [1, 1]} : vector<18x360xf32> to vector<16x320xf32>
    %c0_7 = arith.constant 0 : index
    %c0_8 = arith.constant 0 : index
    %c0_9 = arith.constant 0 : index
    %12 = vector.load %arg4[%c0_7, %c0_8, %c0_9] : memref<9x320x128xf32, #tpu.memory_space<vmem>>, vector<1x320x128xf32>
    %13 = vector.shape_cast %12 : vector<1x320x128xf32> to vector<320x128xf32>
    %cst_10 = arith.constant dense<0.000000e+00> : vector<16x128xf32>
    %14 = tpu.matmul %11, %13, %cst_10 {dimension_numbers = #tpu.dot_dimension_numbers<[1], [0], [0], [1], [0, 0, 1, 1], [], []>} : vector<16x320xf32>, vector<320x128xf32>, vector<16x128xf32> -> vector<16x128xf32>
    %15 = arith.addf %10, %14 : vector<16x128xf32>
    %16 = vector.extract_strided_slice %9 {offsets = [0, 20], sizes = [16, 320], strides = [1, 1]} : vector<18x360xf32> to vector<16x320xf32>
    %c1 = arith.constant 1 : index
    %c0_11 = arith.constant 0 : index
    %c0_12 = arith.constant 0 : index
    %17 = vector.load %arg4[%c1, %c0_11, %c0_12] : memref<9x320x128xf32, #tpu.memory_space<vmem>>, vector<1x320x128xf32>
    %18 = vector.shape_cast %17 : vector<1x320x128xf32> to vector<320x128xf32>
    %cst_13 = arith.constant dense<0.000000e+00> : vector<16x128xf32>
    %19 = tpu.matmul %16, %18, %cst_13 {dimension_numbers = #tpu.dot_dimension_numbers<[1], [0], [0], [1], [0, 0, 1, 1], [], []>} : vector<16x320xf32>, vector<320x128xf32>, vector<16x128xf32> -> vector<16x128xf32>
    %20 = arith.addf %15, %19 : vector<16x128xf32>
    %21 = vector.extract_strided_slice %9 {offsets = [0, 40], sizes = [16, 320], strides = [1, 1]} : vector<18x360xf32> to vector<16x320xf32>
    %c2 = arith.constant 2 : index
    %c0_14 = arith.constant 0 : index
    %c0_15 = arith.constant 0 : index
    %22 = vector.load %arg4[%c2, %c0_14, %c0_15] : memref<9x320x128xf32, #tpu.memory_space<vmem>>, vector<1x320x128xf32>
    %23 = vector.shape_cast %22 : vector<1x320x128xf32> to vector<320x128xf32>
    %cst_16 = arith.constant dense<0.000000e+00> : vector<16x128xf32>
    %24 = tpu.matmul %21, %23, %cst_16 {dimension_numbers = #tpu.dot_dimension_numbers<[1], [0], [0], [1], [0, 0, 1, 1], [], []>} : vector<16x320xf32>, vector<320x128xf32>, vector<16x128xf32> -> vector<16x128xf32>
    %25 = arith.addf %20, %24 : vector<16x128xf32>
    %26 = vector.extract_strided_slice %9 {offsets = [1, 0], sizes = [16, 320], strides = [1, 1]} : vector<18x360xf32> to vector<16x320xf32>
    %c3 = arith.constant 3 : index
    %c0_17 = arith.constant 0 : index
    %c0_18 = arith.constant 0 : index
    %27 = vector.load %arg4[%c3, %c0_17, %c0_18] : memref<9x320x128xf32, #tpu.memory_space<vmem>>, vector<1x320x128xf32>
    %28 = vector.shape_cast %27 : vector<1x320x128xf32> to vector<320x128xf32>
    %cst_19 = arith.constant dense<0.000000e+00> : vector<16x128xf32>
    %29 = tpu.matmul %26, %28, %cst_19 {dimension_numbers = #tpu.dot_dimension_numbers<[1], [0], [0], [1], [0, 0, 1, 1], [], []>} : vector<16x320xf32>, vector<320x128xf32>, vector<16x128xf32> -> vector<16x128xf32>
    %30 = arith.addf %25, %29 : vector<16x128xf32>
    %31 = vector.extract_strided_slice %9 {offsets = [1, 20], sizes = [16, 320], strides = [1, 1]} : vector<18x360xf32> to vector<16x320xf32>
    %c4 = arith.constant 4 : index
    %c0_20 = arith.constant 0 : index
    %c0_21 = arith.constant 0 : index
    %32 = vector.load %arg4[%c4, %c0_20, %c0_21] : memref<9x320x128xf32, #tpu.memory_space<vmem>>, vector<1x320x128xf32>
    %33 = vector.shape_cast %32 : vector<1x320x128xf32> to vector<320x128xf32>
    %cst_22 = arith.constant dense<0.000000e+00> : vector<16x128xf32>
    %34 = tpu.matmul %31, %33, %cst_22 {dimension_numbers = #tpu.dot_dimension_numbers<[1], [0], [0], [1], [0, 0, 1, 1], [], []>} : vector<16x320xf32>, vector<320x128xf32>, vector<16x128xf32> -> vector<16x128xf32>
    %35 = arith.addf %30, %34 : vector<16x128xf32>
    %36 = vector.extract_strided_slice %9 {offsets = [1, 40], sizes = [16, 320], strides = [1, 1]} : vector<18x360xf32> to vector<16x320xf32>
    %c5 = arith.constant 5 : index
    %c0_23 = arith.constant 0 : index
    %c0_24 = arith.constant 0 : index
    %37 = vector.load %arg4[%c5, %c0_23, %c0_24] : memref<9x320x128xf32, #tpu.memory_space<vmem>>, vector<1x320x128xf32>
    %38 = vector.shape_cast %37 : vector<1x320x128xf32> to vector<320x128xf32>
    %cst_25 = arith.constant dense<0.000000e+00> : vector<16x128xf32>
    %39 = tpu.matmul %36, %38, %cst_25 {dimension_numbers = #tpu.dot_dimension_numbers<[1], [0], [0], [1], [0, 0, 1, 1], [], []>} : vector<16x320xf32>, vector<320x128xf32>, vector<16x128xf32> -> vector<16x128xf32>
    %40 = arith.addf %35, %39 : vector<16x128xf32>
    %41 = vector.extract_strided_slice %9 {offsets = [2, 0], sizes = [16, 320], strides = [1, 1]} : vector<18x360xf32> to vector<16x320xf32>
    %c6 = arith.constant 6 : index
    %c0_26 = arith.constant 0 : index
    %c0_27 = arith.constant 0 : index
    %42 = vector.load %arg4[%c6, %c0_26, %c0_27] : memref<9x320x128xf32, #tpu.memory_space<vmem>>, vector<1x320x128xf32>
    %43 = vector.shape_cast %42 : vector<1x320x128xf32> to vector<320x128xf32>
    %cst_28 = arith.constant dense<0.000000e+00> : vector<16x128xf32>
    %44 = tpu.matmul %41, %43, %cst_28 {dimension_numbers = #tpu.dot_dimension_numbers<[1], [0], [0], [1], [0, 0, 1, 1], [], []>} : vector<16x320xf32>, vector<320x128xf32>, vector<16x128xf32> -> vector<16x128xf32>
    %45 = arith.addf %40, %44 : vector<16x128xf32>
    %46 = vector.extract_strided_slice %9 {offsets = [2, 20], sizes = [16, 320], strides = [1, 1]} : vector<18x360xf32> to vector<16x320xf32>
    %c7 = arith.constant 7 : index
    %c0_29 = arith.constant 0 : index
    %c0_30 = arith.constant 0 : index
    %47 = vector.load %arg4[%c7, %c0_29, %c0_30] : memref<9x320x128xf32, #tpu.memory_space<vmem>>, vector<1x320x128xf32>
    %48 = vector.shape_cast %47 : vector<1x320x128xf32> to vector<320x128xf32>
    %cst_31 = arith.constant dense<0.000000e+00> : vector<16x128xf32>
    %49 = tpu.matmul %46, %48, %cst_31 {dimension_numbers = #tpu.dot_dimension_numbers<[1], [0], [0], [1], [0, 0, 1, 1], [], []>} : vector<16x320xf32>, vector<320x128xf32>, vector<16x128xf32> -> vector<16x128xf32>
    %50 = arith.addf %45, %49 : vector<16x128xf32>
    %51 = vector.extract_strided_slice %9 {offsets = [2, 40], sizes = [16, 320], strides = [1, 1]} : vector<18x360xf32> to vector<16x320xf32>
    %c8 = arith.constant 8 : index
    %c0_32 = arith.constant 0 : index
    %c0_33 = arith.constant 0 : index
    %52 = vector.load %arg4[%c8, %c0_32, %c0_33] : memref<9x320x128xf32, #tpu.memory_space<vmem>>, vector<1x320x128xf32>
    %53 = vector.shape_cast %52 : vector<1x320x128xf32> to vector<320x128xf32>
    %cst_34 = arith.constant dense<0.000000e+00> : vector<16x128xf32>
    %54 = tpu.matmul %51, %53, %cst_34 {dimension_numbers = #tpu.dot_dimension_numbers<[1], [0], [0], [1], [0, 0, 1, 1], [], []>} : vector<16x320xf32>, vector<320x128xf32>, vector<16x128xf32> -> vector<16x128xf32>
    %55 = arith.addf %50, %54 : vector<16x128xf32>
    %c0_35 = arith.constant 0 : index
    %c0_36 = arith.constant 0 : index
    %c0_37 = arith.constant 0 : index
    %56 = vector.load %arg5[%c0_35, %c0_36, %c0_37] : memref<1x16x128xf32, #tpu.memory_space<vmem>>, vector<1x16x128xf32>
    %57 = vector.shape_cast %56 : vector<1x16x128xf32> to vector<16x128xf32>
    %58 = vector.shape_cast %55 : vector<16x128xf32> to vector<1x16x128xf32>
    tpu.vector_store %arg5[%c0_35, %c0_36, %c0_37], %58 {strides = array<i32>} : memref<1x16x128xf32, #tpu.memory_space<vmem>>, vector<1x16x128xf32>,
    %cst_38 = arith.constant dense<0.000000e+00> : vector<128xf32>
    %59 = vector.multi_reduction <add>, %55, %cst_38 [0] : vector<16x128xf32> to vector<128xf32>
    %60 = vector.shape_cast %59 : vector<128xf32> to vector<1x128xf32>
    %c0_39 = arith.constant 0 : index
    %c0_40 = arith.constant 0 : index
    %c0_41 = arith.constant 0 : index
    %61 = vector.load %arg6[%c0_39, %c0_40, %c0_41] : memref<1x1x128xf32, #tpu.memory_space<vmem>>, vector<1x1x128xf32>
    %62 = vector.shape_cast %61 : vector<1x1x128xf32> to vector<1x128xf32>
    %63 = vector.shape_cast %60 : vector<1x128xf32> to vector<1x1x128xf32>
    tpu.vector_store %arg6[%c0_39, %c0_40, %c0_41], %63 {strides = array<i32>} : memref<1x1x128xf32, #tpu.memory_space<vmem>>, vector<1x1x128xf32>,
    %64 = arith.mulf %55, %55 : vector<16x128xf32>
    %cst_42 = arith.constant dense<0.000000e+00> : vector<128xf32>
    %65 = vector.multi_reduction <add>, %64, %cst_42 [0] : vector<16x128xf32> to vector<128xf32>
    %66 = vector.shape_cast %65 : vector<128xf32> to vector<1x128xf32>
    %c0_43 = arith.constant 0 : index
    %c0_44 = arith.constant 0 : index
    %c0_45 = arith.constant 0 : index
    %67 = vector.load %arg7[%c0_43, %c0_44, %c0_45] : memref<1x1x128xf32, #tpu.memory_space<vmem>>, vector<1x1x128xf32>
    %68 = vector.shape_cast %67 : vector<1x1x128xf32> to vector<1x128xf32>
    %69 = vector.shape_cast %66 : vector<1x128xf32> to vector<1x1x128xf32>
    tpu.vector_store %arg7[%c0_43, %c0_44, %c0_45], %69 {strides = array<i32>} : memref<1x1x128xf32, #tpu.memory_space<vmem>>, vector<1x1x128xf32>,
    return
  }
  func.func @transform_0(%arg0: i32) -> (i32, i32, i32) {
    %c0_i32 = arith.constant 0 : i32
    %c0_i32_0 = arith.constant 0 : i32
    %c0_i32_1 = arith.constant 0 : i32
    return %arg0, %c0_i32, %c0_i32_0 : i32, i32, i32
  }
  func.func @transform_1(%arg0: i32) -> (i32, i32) {
    %c0_i32 = arith.constant 0 : i32
    %c0_i32_0 = arith.constant 0 : i32
    %c0_i32_1 = arith.constant 0 : i32
    return %c0_i32, %c0_i32_0 : i32, i32
  }
  func.func @transform_2(%arg0: i32) -> (i32, i32) {
    %c0_i32 = arith.constant 0 : i32
    %c0_i32_0 = arith.constant 0 : i32
    %c0_i32_1 = arith.constant 0 : i32
    return %c0_i32, %c0_i32_0 : i32, i32
  }
  func.func @transform_3(%arg0: i32) -> (i32, i32, i32) {
    %c0_i32 = arith.constant 0 : i32
    %c0_i32_0 = arith.constant 0 : i32
    %c0_i32_1 = arith.constant 0 : i32
    %c0_i32_2 = arith.constant 0 : i32
    return %c0_i32, %c0_i32_0, %c0_i32_1 : i32, i32, i32
  }
  func.func @transform_4(%arg0: i32) -> (i32, i32, i32) {
    %c0_i32 = arith.constant 0 : i32
    %c0_i32_0 = arith.constant 0 : i32
    %c0_i32_1 = arith.constant 0 : i32
    return %arg0, %c0_i32, %c0_i32_0 : i32, i32, i32
  }
  func.func @transform_5(%arg0: i32) -> (i32, i32, i32) {
    %c0_i32 = arith.constant 0 : i32
    %c0_i32_0 = arith.constant 0 : i32
    %c0_i32_1 = arith.constant 0 : i32
    return %arg0, %c0_i32, %c0_i32_0 : i32, i32, i32
  }
  func.func @transform_6(%arg0: i32) -> (i32, i32, i32) {
    %c0_i32 = arith.constant 0 : i32
    %c0_i32_0 = arith.constant 0 : i32
    %c0_i32_1 = arith.constant 0 : i32
    return %arg0, %c0_i32, %c0_i32_0 : i32, i32, i32
  }
}

module attributes {stable_mosaic.version = 11 : i64} {
  func.func @_bn_relu_conv_kernel(%arg0: i32, %arg1: memref<1x18x504xf32, #tpu.memory_space<vmem>>, %arg2: memref<1x504xf32, #tpu.memory_space<vmem>>, %arg3: memref<1x504xf32, #tpu.memory_space<vmem>>, %arg4: memref<9x448x128xf32, #tpu.memory_space<vmem>>, %arg5: memref<1x16x128xf32, #tpu.memory_space<vmem>>, %arg6: memref<1x1x128xf32, #tpu.memory_space<vmem>>, %arg7: memref<1x1x128xf32, #tpu.memory_space<vmem>>) attributes {dimension_semantics = [#tpu.dimension_semantics<parallel>], iteration_bounds = array<i64: 2>, scalar_prefetch = 0 : i64, scratch_operands = 0 : i64, tpu.core_type = #tpu.core_type<tc>, window_params = [{transform_indices = @transform_0, window_bounds = array<i64: 1, 18, 504>}, {pipeline_mode = #tpu.pipeline_mode<synchronous>, transform_indices = @transform_1, window_bounds = array<i64: 1, 504>}, {pipeline_mode = #tpu.pipeline_mode<synchronous>, transform_indices = @transform_2, window_bounds = array<i64: 1, 504>}, {pipeline_mode = #tpu.pipeline_mode<synchronous>, transform_indices = @transform_3, window_bounds = array<i64: 9, 448, 128>}, {transform_indices = @transform_4, window_bounds = array<i64: 1, 16, 128>}, {transform_indices = @transform_5, window_bounds = array<i64: 1, 1, 128>}, {transform_indices = @transform_6, window_bounds = array<i64: 1, 1, 128>}]} {
    %c0 = arith.constant 0 : index
    %c0_0 = arith.constant 0 : index
    %c0_1 = arith.constant 0 : index
    %0 = vector.load %arg1[%c0, %c0_0, %c0_1] : memref<1x18x504xf32, #tpu.memory_space<vmem>>, vector<1x18x504xf32>
    %1 = vector.shape_cast %0 : vector<1x18x504xf32> to vector<18x504xf32>
    %c0_2 = arith.constant 0 : index
    %c0_3 = arith.constant 0 : index
    %2 = vector.load %arg2[%c0_2, %c0_3] : memref<1x504xf32, #tpu.memory_space<vmem>>, vector<1x504xf32>
    %3 = vector.broadcast %2 : vector<1x504xf32> to vector<18x504xf32>
    %4 = arith.mulf %1, %3 : vector<18x504xf32>
    %c0_4 = arith.constant 0 : index
    %c0_5 = arith.constant 0 : index
    %5 = vector.load %arg3[%c0_4, %c0_5] : memref<1x504xf32, #tpu.memory_space<vmem>>, vector<1x504xf32>
    %6 = vector.broadcast %5 : vector<1x504xf32> to vector<18x504xf32>
    %7 = arith.addf %4, %6 : vector<18x504xf32>
    %cst = arith.constant 0.000000e+00 : f32
    %8 = vector.broadcast %cst : f32 to vector<18x504xf32>
    %9 = arith.maximumf %7, %8 : vector<18x504xf32>
    %cst_6 = arith.constant 0.000000e+00 : f32
    %10 = vector.broadcast %cst_6 : f32 to vector<16x128xf32>
    %11 = vector.extract_strided_slice %9 {offsets = [0, 0], sizes = [16, 448], strides = [1, 1]} : vector<18x504xf32> to vector<16x448xf32>
    %c0_7 = arith.constant 0 : index
    %c0_8 = arith.constant 0 : index
    %c0_9 = arith.constant 0 : index
    %12 = vector.load %arg4[%c0_7, %c0_8, %c0_9] : memref<9x448x128xf32, #tpu.memory_space<vmem>>, vector<1x448x128xf32>
    %13 = vector.shape_cast %12 : vector<1x448x128xf32> to vector<448x128xf32>
    %cst_10 = arith.constant dense<0.000000e+00> : vector<16x128xf32>
    %14 = tpu.matmul %11, %13, %cst_10 {dimension_numbers = #tpu.dot_dimension_numbers<[1], [0], [0], [1], [0, 0, 1, 1], [], []>} : vector<16x448xf32>, vector<448x128xf32>, vector<16x128xf32> -> vector<16x128xf32>
    %15 = arith.addf %10, %14 : vector<16x128xf32>
    %16 = vector.extract_strided_slice %9 {offsets = [0, 28], sizes = [16, 448], strides = [1, 1]} : vector<18x504xf32> to vector<16x448xf32>
    %c1 = arith.constant 1 : index
    %c0_11 = arith.constant 0 : index
    %c0_12 = arith.constant 0 : index
    %17 = vector.load %arg4[%c1, %c0_11, %c0_12] : memref<9x448x128xf32, #tpu.memory_space<vmem>>, vector<1x448x128xf32>
    %18 = vector.shape_cast %17 : vector<1x448x128xf32> to vector<448x128xf32>
    %cst_13 = arith.constant dense<0.000000e+00> : vector<16x128xf32>
    %19 = tpu.matmul %16, %18, %cst_13 {dimension_numbers = #tpu.dot_dimension_numbers<[1], [0], [0], [1], [0, 0, 1, 1], [], []>} : vector<16x448xf32>, vector<448x128xf32>, vector<16x128xf32> -> vector<16x128xf32>
    %20 = arith.addf %15, %19 : vector<16x128xf32>
    %21 = vector.extract_strided_slice %9 {offsets = [0, 56], sizes = [16, 448], strides = [1, 1]} : vector<18x504xf32> to vector<16x448xf32>
    %c2 = arith.constant 2 : index
    %c0_14 = arith.constant 0 : index
    %c0_15 = arith.constant 0 : index
    %22 = vector.load %arg4[%c2, %c0_14, %c0_15] : memref<9x448x128xf32, #tpu.memory_space<vmem>>, vector<1x448x128xf32>
    %23 = vector.shape_cast %22 : vector<1x448x128xf32> to vector<448x128xf32>
    %cst_16 = arith.constant dense<0.000000e+00> : vector<16x128xf32>
    %24 = tpu.matmul %21, %23, %cst_16 {dimension_numbers = #tpu.dot_dimension_numbers<[1], [0], [0], [1], [0, 0, 1, 1], [], []>} : vector<16x448xf32>, vector<448x128xf32>, vector<16x128xf32> -> vector<16x128xf32>
    %25 = arith.addf %20, %24 : vector<16x128xf32>
    %26 = vector.extract_strided_slice %9 {offsets = [1, 0], sizes = [16, 448], strides = [1, 1]} : vector<18x504xf32> to vector<16x448xf32>
    %c3 = arith.constant 3 : index
    %c0_17 = arith.constant 0 : index
    %c0_18 = arith.constant 0 : index
    %27 = vector.load %arg4[%c3, %c0_17, %c0_18] : memref<9x448x128xf32, #tpu.memory_space<vmem>>, vector<1x448x128xf32>
    %28 = vector.shape_cast %27 : vector<1x448x128xf32> to vector<448x128xf32>
    %cst_19 = arith.constant dense<0.000000e+00> : vector<16x128xf32>
    %29 = tpu.matmul %26, %28, %cst_19 {dimension_numbers = #tpu.dot_dimension_numbers<[1], [0], [0], [1], [0, 0, 1, 1], [], []>} : vector<16x448xf32>, vector<448x128xf32>, vector<16x128xf32> -> vector<16x128xf32>
    %30 = arith.addf %25, %29 : vector<16x128xf32>
    %31 = vector.extract_strided_slice %9 {offsets = [1, 28], sizes = [16, 448], strides = [1, 1]} : vector<18x504xf32> to vector<16x448xf32>
    %c4 = arith.constant 4 : index
    %c0_20 = arith.constant 0 : index
    %c0_21 = arith.constant 0 : index
    %32 = vector.load %arg4[%c4, %c0_20, %c0_21] : memref<9x448x128xf32, #tpu.memory_space<vmem>>, vector<1x448x128xf32>
    %33 = vector.shape_cast %32 : vector<1x448x128xf32> to vector<448x128xf32>
    %cst_22 = arith.constant dense<0.000000e+00> : vector<16x128xf32>
    %34 = tpu.matmul %31, %33, %cst_22 {dimension_numbers = #tpu.dot_dimension_numbers<[1], [0], [0], [1], [0, 0, 1, 1], [], []>} : vector<16x448xf32>, vector<448x128xf32>, vector<16x128xf32> -> vector<16x128xf32>
    %35 = arith.addf %30, %34 : vector<16x128xf32>
    %36 = vector.extract_strided_slice %9 {offsets = [1, 56], sizes = [16, 448], strides = [1, 1]} : vector<18x504xf32> to vector<16x448xf32>
    %c5 = arith.constant 5 : index
    %c0_23 = arith.constant 0 : index
    %c0_24 = arith.constant 0 : index
    %37 = vector.load %arg4[%c5, %c0_23, %c0_24] : memref<9x448x128xf32, #tpu.memory_space<vmem>>, vector<1x448x128xf32>
    %38 = vector.shape_cast %37 : vector<1x448x128xf32> to vector<448x128xf32>
    %cst_25 = arith.constant dense<0.000000e+00> : vector<16x128xf32>
    %39 = tpu.matmul %36, %38, %cst_25 {dimension_numbers = #tpu.dot_dimension_numbers<[1], [0], [0], [1], [0, 0, 1, 1], [], []>} : vector<16x448xf32>, vector<448x128xf32>, vector<16x128xf32> -> vector<16x128xf32>
    %40 = arith.addf %35, %39 : vector<16x128xf32>
    %41 = vector.extract_strided_slice %9 {offsets = [2, 0], sizes = [16, 448], strides = [1, 1]} : vector<18x504xf32> to vector<16x448xf32>
    %c6 = arith.constant 6 : index
    %c0_26 = arith.constant 0 : index
    %c0_27 = arith.constant 0 : index
    %42 = vector.load %arg4[%c6, %c0_26, %c0_27] : memref<9x448x128xf32, #tpu.memory_space<vmem>>, vector<1x448x128xf32>
    %43 = vector.shape_cast %42 : vector<1x448x128xf32> to vector<448x128xf32>
    %cst_28 = arith.constant dense<0.000000e+00> : vector<16x128xf32>
    %44 = tpu.matmul %41, %43, %cst_28 {dimension_numbers = #tpu.dot_dimension_numbers<[1], [0], [0], [1], [0, 0, 1, 1], [], []>} : vector<16x448xf32>, vector<448x128xf32>, vector<16x128xf32> -> vector<16x128xf32>
    %45 = arith.addf %40, %44 : vector<16x128xf32>
    %46 = vector.extract_strided_slice %9 {offsets = [2, 28], sizes = [16, 448], strides = [1, 1]} : vector<18x504xf32> to vector<16x448xf32>
    %c7 = arith.constant 7 : index
    %c0_29 = arith.constant 0 : index
    %c0_30 = arith.constant 0 : index
    %47 = vector.load %arg4[%c7, %c0_29, %c0_30] : memref<9x448x128xf32, #tpu.memory_space<vmem>>, vector<1x448x128xf32>
    %48 = vector.shape_cast %47 : vector<1x448x128xf32> to vector<448x128xf32>
    %cst_31 = arith.constant dense<0.000000e+00> : vector<16x128xf32>
    %49 = tpu.matmul %46, %48, %cst_31 {dimension_numbers = #tpu.dot_dimension_numbers<[1], [0], [0], [1], [0, 0, 1, 1], [], []>} : vector<16x448xf32>, vector<448x128xf32>, vector<16x128xf32> -> vector<16x128xf32>
    %50 = arith.addf %45, %49 : vector<16x128xf32>
    %51 = vector.extract_strided_slice %9 {offsets = [2, 56], sizes = [16, 448], strides = [1, 1]} : vector<18x504xf32> to vector<16x448xf32>
    %c8 = arith.constant 8 : index
    %c0_32 = arith.constant 0 : index
    %c0_33 = arith.constant 0 : index
    %52 = vector.load %arg4[%c8, %c0_32, %c0_33] : memref<9x448x128xf32, #tpu.memory_space<vmem>>, vector<1x448x128xf32>
    %53 = vector.shape_cast %52 : vector<1x448x128xf32> to vector<448x128xf32>
    %cst_34 = arith.constant dense<0.000000e+00> : vector<16x128xf32>
    %54 = tpu.matmul %51, %53, %cst_34 {dimension_numbers = #tpu.dot_dimension_numbers<[1], [0], [0], [1], [0, 0, 1, 1], [], []>} : vector<16x448xf32>, vector<448x128xf32>, vector<16x128xf32> -> vector<16x128xf32>
    %55 = arith.addf %50, %54 : vector<16x128xf32>
    %c0_35 = arith.constant 0 : index
    %c0_36 = arith.constant 0 : index
    %c0_37 = arith.constant 0 : index
    %56 = vector.load %arg5[%c0_35, %c0_36, %c0_37] : memref<1x16x128xf32, #tpu.memory_space<vmem>>, vector<1x16x128xf32>
    %57 = vector.shape_cast %56 : vector<1x16x128xf32> to vector<16x128xf32>
    %58 = vector.shape_cast %55 : vector<16x128xf32> to vector<1x16x128xf32>
    tpu.vector_store %arg5[%c0_35, %c0_36, %c0_37], %58 {strides = array<i32>} : memref<1x16x128xf32, #tpu.memory_space<vmem>>, vector<1x16x128xf32>,
    %cst_38 = arith.constant dense<0.000000e+00> : vector<128xf32>
    %59 = vector.multi_reduction <add>, %55, %cst_38 [0] : vector<16x128xf32> to vector<128xf32>
    %60 = vector.shape_cast %59 : vector<128xf32> to vector<1x128xf32>
    %c0_39 = arith.constant 0 : index
    %c0_40 = arith.constant 0 : index
    %c0_41 = arith.constant 0 : index
    %61 = vector.load %arg6[%c0_39, %c0_40, %c0_41] : memref<1x1x128xf32, #tpu.memory_space<vmem>>, vector<1x1x128xf32>
    %62 = vector.shape_cast %61 : vector<1x1x128xf32> to vector<1x128xf32>
    %63 = vector.shape_cast %60 : vector<1x128xf32> to vector<1x1x128xf32>
    tpu.vector_store %arg6[%c0_39, %c0_40, %c0_41], %63 {strides = array<i32>} : memref<1x1x128xf32, #tpu.memory_space<vmem>>, vector<1x1x128xf32>,
    %64 = arith.mulf %55, %55 : vector<16x128xf32>
    %cst_42 = arith.constant dense<0.000000e+00> : vector<128xf32>
    %65 = vector.multi_reduction <add>, %64, %cst_42 [0] : vector<16x128xf32> to vector<128xf32>
    %66 = vector.shape_cast %65 : vector<128xf32> to vector<1x128xf32>
    %c0_43 = arith.constant 0 : index
    %c0_44 = arith.constant 0 : index
    %c0_45 = arith.constant 0 : index
    %67 = vector.load %arg7[%c0_43, %c0_44, %c0_45] : memref<1x1x128xf32, #tpu.memory_space<vmem>>, vector<1x1x128xf32>
    %68 = vector.shape_cast %67 : vector<1x1x128xf32> to vector<1x128xf32>
    %69 = vector.shape_cast %66 : vector<1x128xf32> to vector<1x1x128xf32>
    tpu.vector_store %arg7[%c0_43, %c0_44, %c0_45], %69 {strides = array<i32>} : memref<1x1x128xf32, #tpu.memory_space<vmem>>, vector<1x1x128xf32>,
    return
  }
  func.func @transform_0(%arg0: i32) -> (i32, i32, i32) {
    %c0_i32 = arith.constant 0 : i32
    %c0_i32_0 = arith.constant 0 : i32
    %c0_i32_1 = arith.constant 0 : i32
    return %arg0, %c0_i32, %c0_i32_0 : i32, i32, i32
  }
  func.func @transform_1(%arg0: i32) -> (i32, i32) {
    %c0_i32 = arith.constant 0 : i32
    %c0_i32_0 = arith.constant 0 : i32
    %c0_i32_1 = arith.constant 0 : i32
    return %c0_i32, %c0_i32_0 : i32, i32
  }
  func.func @transform_2(%arg0: i32) -> (i32, i32) {
    %c0_i32 = arith.constant 0 : i32
    %c0_i32_0 = arith.constant 0 : i32
    %c0_i32_1 = arith.constant 0 : i32
    return %c0_i32, %c0_i32_0 : i32, i32
  }
  func.func @transform_3(%arg0: i32) -> (i32, i32, i32) {
    %c0_i32 = arith.constant 0 : i32
    %c0_i32_0 = arith.constant 0 : i32
    %c0_i32_1 = arith.constant 0 : i32
    %c0_i32_2 = arith.constant 0 : i32
    return %c0_i32, %c0_i32_0, %c0_i32_1 : i32, i32, i32
  }
  func.func @transform_4(%arg0: i32) -> (i32, i32, i32) {
    %c0_i32 = arith.constant 0 : i32
    %c0_i32_0 = arith.constant 0 : i32
    %c0_i32_1 = arith.constant 0 : i32
    return %arg0, %c0_i32, %c0_i32_0 : i32, i32, i32
  }
  func.func @transform_5(%arg0: i32) -> (i32, i32, i32) {
    %c0_i32 = arith.constant 0 : i32
    %c0_i32_0 = arith.constant 0 : i32
    %c0_i32_1 = arith.constant 0 : i32
    return %arg0, %c0_i32, %c0_i32_0 : i32, i32, i32
  }
  func.func @transform_6(%arg0: i32) -> (i32, i32, i32) {
    %c0_i32 = arith.constant 0 : i32
    %c0_i32_0 = arith.constant 0 : i32
    %c0_i32_1 = arith.constant 0 : i32
    return %arg0, %c0_i32, %c0_i32_0 : i32, i32, i32
  }
}

</mosaic_0001>

<llo_original>
// kernel: tile.43
$region0: #{tile.43}
  #allocation0 [shape = 's32[1]{0}', space=sflag, size = 0x4, scoped, tag = 'scoped memory for tile.43']
  %s0 = inlined_call_operand.vmem [shape: f32[4], index: 0, kind: input, shape index: {}]
  %s1 = inlined_call_operand.vmem [shape: f32[18,4], index: 1, kind: output, shape index: {}]
  // Predicated region
  $region2: #{tile.43} parent=0 // pred_check
    _
  $region3: #{tile.43} parent=0 // pred_check_branch
    %3 = sbr.rel (0) target = $region5
  $region4: #{tile.43} parent=0 // pred_region
    _
  $region5: #{tile.43} parent=0 // pred_fallthru
    _
  %v4 = vld [vmem:[%s0] ss:$0 sm:$0xff]
  %5 = vst [vmem:[%s1] sm:$0xff] %v4
  %s6 = scalar_lea.vmem %s1, 8
  %7 = vst [vmem:[%s6] sm:$0xff] %v4
  %s8 = scalar_lea.vmem %s1, 16
  %9 = vst [vmem:[%s8] sm:$0xff] %v4

// kernel: tile.44
$region0: #{tile.44}
  %s0 = inlined_call_operand.vmem [shape: f32[18,4], index: 0, kind: input, shape index: {}]
  %s1 = inlined_call_operand.vmem [shape: f32[1,72], index: 1, kind: output, shape index: {}]
  $region1: #{tile.44} parent=0
    #allocation0 [shape = 'u8[4096]{0}', space=vmem, size = 0x1000, scoped, tag = 'scoped mem for output reshape']
    %v2 = vld [vmem:[%s0] sm:$0x1]
    %vm3 = vcmask 31744
    %4 = vst.msk [vmem:[#allocation0] sm:$0x1] %vm3, %v2
    %s5 = scalar_lea.vmem %s0, 17
    %v6 = vld [vmem:[%s5] sm:$0x1]
    %7 = vrot.lane.b32.xlu0 %v6, 68
    %v8 = vpop.permute.xlu0 %7
    %vm9 = vcmask 589344
    %10 = vst.msk [vmem:[#allocation0] sm:$0x1] %vm9, %v8
    %s11 = scalar_lea.vmem %s0, 16
    %v12 = vld [vmem:[%s11] sm:$0x1]
    %13 = vrot.lane.b32.xlu0 %v12, 64
    %v14 = vpop.permute.xlu0 %13
    %vm15 = vcmask 556544
    %16 = vst.msk [vmem:[#allocation0] sm:$0x1] %vm15, %v14
    %s17 = scalar_lea.vmem %s0, 15
    %v18 = vld [vmem:[%s17] sm:$0x1]
    %19 = vrot.lane.b32.xlu0 %v18, 60
    %v20 = vpop.permute.xlu0 %19
    %vm21 = vcmask 523744
    %22 = vst.msk [vmem:[#allocation0] sm:$0x1] %vm21, %v20
    %s23 = scalar_lea.vmem %s0, 14
    %v24 = vld [vmem:[%s23] sm:$0x1]
    %25 = vrot.lane.b32.xlu0 %v24, 56
    %v26 = vpop.permute.xlu0 %25
    %vm27 = vcmask 490944
    %28 = vst.msk [vmem:[#allocation0] sm:$0x1] %vm27, %v26
    %s29 = scalar_lea.vmem %s0, 13
    %v30 = vld [vmem:[%s29] sm:$0x1]
    %31 = vrot.lane.b32.xlu0 %v30, 52
    %v32 = vpop.permute.xlu0 %31
    %vm33 = vcmask 458144
    %34 = vst.msk [vmem:[#allocation0] sm:$0x1] %vm33, %v32
    %s35 = scalar_lea.vmem %s0, 12
    %v36 = vld [vmem:[%s35] sm:$0x1]
    %37 = vrot.lane.b32.xlu0 %v36, 48
    %v38 = vpop.permute.xlu0 %37
    %vm39 = vcmask 425344
    %40 = vst.msk [vmem:[#allocation0] sm:$0x1] %vm39, %v38
    %s41 = scalar_lea.vmem %s0, 11
    %v42 = vld [vmem:[%s41] sm:$0x1]
    %43 = vrot.lane.b32.xlu0 %v42, 44
    %v44 = vpop.permute.xlu0 %43
    %vm45 = vcmask 392544
    %46 = vst.msk [vmem:[#allocation0] sm:$0x1] %vm45, %v44
    %s47 = scalar_lea.vmem %s0, 10
    %v48 = vld [vmem:[%s47] sm:$0x1]
    %49 = vrot.lane.b32.xlu0 %v48, 40
    %v50 = vpop.permute.xlu0 %49
    %vm51 = vcmask 359744
    %52 = vst.msk [vmem:[#allocation0] sm:$0x1] %vm51, %v50
    %s53 = scalar_lea.vmem %s0, 9
    %v54 = vld [vmem:[%s53] sm:$0x1]
    %55 = vrot.lane.b32.xlu0 %v54, 36
    %v56 = vpop.permute.xlu0 %55
    %vm57 = vcmask 326944
    %58 = vst.msk [vmem:[#allocation0] sm:$0x1] %vm57, %v56
    %s59 = scalar_lea.vmem %s0, 8
    %v60 = vld [vmem:[%s59] sm:$0x1]
    %61 = vrot.lane.b32.xlu0 %v60, 32
    %v62 = vpop.permute.xlu0 %61
    %vm63 = vcmask 294144
    %64 = vst.msk [vmem:[#allocation0] sm:$0x1] %vm63, %v62
    %s65 = scalar_lea.vmem %s0, 7
    %v66 = vld [vmem:[%s65] sm:$0x1]
    %67 = vrot.lane.b32.xlu0 %v66, 28
    %v68 = vpop.permute.xlu0 %67
    %vm69 = vcmask 261344
    %70 = vst.msk [vmem:[#allocation0] sm:$0x1] %vm69, %v68
    %s71 = scalar_lea.vmem %s0, 6
    %v72 = vld [vmem:[%s71] sm:$0x1]
    %73 = vrot.lane.b32.xlu0 %v72, 24
    %v74 = vpop.permute.xlu0 %73
    %vm75 = vcmask 228544
    %76 = vst.msk [vmem:[#allocation0] sm:$0x1] %vm75, %v74
    %s77 = scalar_lea.vmem %s0, 5
    %v78 = vld [vmem:[%s77] sm:$0x1]
    %79 = vrot.lane.b32.xlu0 %v78, 20
    %v80 = vpop.permute.xlu0 %79
    %vm81 = vcmask 195744
    %82 = vst.msk [vmem:[#allocation0] sm:$0x1] %vm81, %v80
    %s83 = scalar_lea.vmem %s0, 4
    %v84 = vld [vmem:[%s83] sm:$0x1]
    %85 = vrot.lane.b32.xlu0 %v84, 16
    %v86 = vpop.permute.xlu0 %85
    %vm87 = vcmask 162944
    %88 = vst.msk [vmem:[#allocation0] sm:$0x1] %vm87, %v86
    %s89 = scalar_lea.vmem %s0, 3
    %v90 = vld [vmem:[%s89] sm:$0x1]
    %91 = vrot.lane.b32.xlu0 %v90, 12
    %v92 = vpop.permute.xlu0 %91
    %vm93 = vcmask 130144
    %94 = vst.msk [vmem:[#allocation0] sm:$0x1] %vm93, %v92
    %s95 = scalar_lea.vmem %s0, 2
    %v96 = vld [vmem:[%s95] sm:$0x1]
    %97 = vrot.lane.b32.xlu0 %v96, 8
    %v98 = vpop.permute.xlu0 %97
    %vm99 = vcmask 97344
    %100 = vst.msk [vmem:[#allocation0] sm:$0x1] %vm99, %v98
    %s101 = scalar_lea.vmem %s0, 1
    %v102 = vld [vmem:[%s101] sm:$0x1]
    %103 = vrot.lane.b32.xlu0 %v102, 4
    %v104 = vpop.permute.xlu0 %103
    %vm105 = vcmask 64544
    %106 = vst.msk [vmem:[#allocation0] sm:$0x1] %vm105, %v104
    %s108 = ssub.s32 2, 1
    %v109 = vld [vmem:[#allocation0] sm:%s108]
    %s111 = ssub.s32 2, 1
    %112 = vst [vmem:[%s1] sm:%s111] %v109

// kernel: densenet_block.4
$region0: #{densenet_block.4}
  #allocation0 [shape = 'u32[]', space=smem, size = 0x4, offset = 0x4, fixed_abs, tag = 'smem constant byte address 0x4 - core index']
  #allocation1 [shape = 'u32[72,128]{1,0:T(1,128)}', space=vmem, size = 0x9000, scoped, tag = 'internal scratch']
  %s0 = inlined_call_operand.vmem [shape: f32[2,18,72], index: 0, kind: input, shape index: {}]
  %s1 = inlined_call_operand.vmem [shape: f32[1,72], index: 1, kind: input, shape index: {}]
  %s2 = inlined_call_operand.vmem [shape: f32[1,72], index: 2, kind: input, shape index: {}]
  %s3 = inlined_call_operand.vmem [shape: f32[9,64,128], index: 3, kind: input, shape index: {}]
  %s4 = inlined_call_operand.vmem [shape: f32[2,16,128], index: 4, kind: output, shape index: {0}]
  %s5 = inlined_call_operand.vmem [shape: f32[2,1,128], index: 5, kind: output, shape index: {1}]
  %s6 = inlined_call_operand.vmem [shape: f32[2,1,128], index: 6, kind: output, shape index: {2}]
  %7 = xla_tuple %s4, %s5, %s6
  %s8 = sld [smem:[#allocation0]]
  $region65: #{densenet_block.4} parent=0
    _
  %s10 = ssub.s32 1, %s8
  %s11 = scalar_select 0, %s10, %s8
  loop: start=0, step=1, limit=4
  $region2: #{densenet_block.4} parent=0 // loop_pre_header
    _
  $region3: #{densenet_block.4} parent=0 // loop_header
    %s13 = sphi 0, %s17
    %p14 = scmp.ge.s32.totalorder %s13, 4
    %s23 = sphi 0, %s25
    %s26 = sphi 0, %s23
    %s27 = sphi 0, %s26
    %s43 = sphi 0, %s27
    %s47 = sphi 0, %s47
    %s49 = sphi 0, %s47
    %s50 = sphi 0, %s49
    %s64 = sphi 0, %s50
    %s68 = sphi 0, %s68
    %s70 = sphi 0, %s68
    %s71 = sphi 0, %s70
    %s85 = sphi 0, %s71
    %s89 = sphi 0, %s89
    %s91 = sphi 0, %s89
    %s92 = sphi 0, %s91
    %s106 = sphi 0, %s92
    %s112 = sphi 0, %s114
    %s115 = sphi 0, %s112
    %s116 = sphi 0, %s115
    %s132 = sphi 0, %s116
    %s138 = sphi 0, %s140
    %s141 = sphi 0, %s138
    %s142 = sphi 0, %s141
    %s158 = sphi 0, %s142
    %s164 = sphi 0, %s166
    %s167 = sphi 0, %s164
    %s168 = sphi 0, %s167
    %s184 = sphi 0, %s168
  $region4: #{densenet_block.4} parent=0 // loop_header_branch
    %16 = sbr.rel (%p14) target = $region8
  $region5: #{densenet_block.4} parent=0 // loop_body
    %s18 = ssub.s32 %s13, 1
    %s19 = ssub.s32 %s13, 2
    %s20 = sadd.s32 %s13, 1
    %s21 = ssub.s32 %s13, %s20
    %p22 = scmp.eq.s32.totalorder %s21, 0
    %s24 = sadd.s32 %s23, 1
    %s25 = scalar_select %p22, %s23, %s24
    %p28 = pneg %p22
    %p29 = scmp.eq.s32.totalorder %s13, 1
    %p30 = por %p28, %p29
    %p31 = scmp.ne.s32.totalorder %s23, %s26
    %p32 = scmp.eq.s32.totalorder %s13, 0
    %p33 = por %p31, %p32
    %p34 = scmp.ne.s32.totalorder %s23, %s26
    %p35 = scmp.eq.s32.totalorder %s18, 1
    %p36 = por %p34, %p35
    %p37 = scmp.ne.s32.totalorder %s26, %s27
    %p38 = scmp.eq.s32.totalorder %s18, 0
    %p39 = por %p37, %p38
    %p40 = scmp.ne.s32.totalorder %s26, %s27
    %p41 = scmp.eq.s32.totalorder %s19, 1
    %p42 = por %p40, %p41
    %p44 = scmp.ne.s32.totalorder %s27, %s43
    %p45 = scmp.eq.s32.totalorder %s19, 0
    %p46 = por %p44, %p45
    %s48 = sadd.s32 %s47, 1
    %p51 = scmp.eq.s32.totalorder %s13, 1
    %p52 = scmp.ne.s32.totalorder %s47, %s49
    %p53 = scmp.eq.s32.totalorder %s13, 0
    %p54 = por %p52, %p53
    %p55 = scmp.ne.s32.totalorder %s47, %s49
    %p56 = scmp.eq.s32.totalorder %s18, 1
    %p57 = por %p55, %p56
    %p58 = scmp.ne.s32.totalorder %s49, %s50
    %p59 = scmp.eq.s32.totalorder %s18, 0
    %p60 = por %p58, %p59
    %p61 = scmp.ne.s32.totalorder %s49, %s50
    %p62 = scmp.eq.s32.totalorder %s19, 1
    %p63 = por %p61, %p62
    %p65 = scmp.ne.s32.totalorder %s50, %s64
    %p66 = scmp.eq.s32.totalorder %s19, 0
    %p67 = por %p65, %p66
    %s69 = sadd.s32 %s68, 1
    %p72 = scmp.eq.s32.totalorder %s13, 1
    %p73 = scmp.ne.s32.totalorder %s68, %s70
    %p74 = scmp.eq.s32.totalorder %s13, 0
    %p75 = por %p73, %p74
    %p76 = scmp.ne.s32.totalorder %s68, %s70
    %p77 = scmp.eq.s32.totalorder %s18, 1
    %p78 = por %p76, %p77
    %p79 = scmp.ne.s32.totalorder %s70, %s71
    %p80 = scmp.eq.s32.totalorder %s18, 0
    %p81 = por %p79, %p80
    %p82 = scmp.ne.s32.totalorder %s70, %s71
    %p83 = scmp.eq.s32.totalorder %s19, 1
    %p84 = por %p82, %p83
    %p86 = scmp.ne.s32.totalorder %s71, %s85
    %p87 = scmp.eq.s32.totalorder %s19, 0
    %p88 = por %p86, %p87
    %s90 = sadd.s32 %s89, 1
    %p93 = scmp.eq.s32.totalorder %s13, 1
    %p94 = scmp.ne.s32.totalorder %s89, %s91
    %p95 = scmp.eq.s32.totalorder %s13, 0
    %p96 = por %p94, %p95
    %p97 = scmp.ne.s32.totalorder %s89, %s91
    %p98 = scmp.eq.s32.totalorder %s18, 1
    %p99 = por %p97, %p98
    %p100 = scmp.ne.s32.totalorder %s91, %s92
    %p101 = scmp.eq.s32.totalorder %s18, 0
    %p102 = por %p100, %p101
    %p103 = scmp.ne.s32.totalorder %s91, %s92
    %p104 = scmp.eq.s32.totalorder %s19, 1
    %p105 = por %p103, %p104
    %p107 = scmp.ne.s32.totalorder %s92, %s106
    %p108 = scmp.eq.s32.totalorder %s19, 0
    %p109 = por %p107, %p108
    %s110 = ssub.s32 %s13, %s20
    %p111 = scmp.eq.s32.totalorder %s110, 0
    %s113 = sadd.s32 %s112, 1
    %s114 = scalar_select %p111, %s112, %s113
    %p117 = pneg %p111
    %p118 = scmp.eq.s32.totalorder %s13, 1
    %p119 = por %p117, %p118
    %p120 = scmp.ne.s32.totalorder %s112, %s115
    %p121 = scmp.eq.s32.totalorder %s13, 0
    %p122 = por %p120, %p121
    %p123 = scmp.ne.s32.totalorder %s112, %s115
    %p124 = scmp.eq.s32.totalorder %s18, 1
    %p125 = por %p123, %p124
    %p126 = scmp.ne.s32.totalorder %s115, %s116
    %p127 = scmp.eq.s32.totalorder %s18, 0
    %p128 = por %p126, %p127
    %p129 = scmp.ne.s32.totalorder %s115, %s116
    %p130 = scmp.eq.s32.totalorder %s19, 1
    %p131 = por %p129, %p130
    %p133 = scmp.ne.s32.totalorder %s116, %s132
    %p134 = scmp.eq.s32.totalorder %s19, 0
    %p135 = por %p133, %p134
    %s136 = ssub.s32 %s13, %s20
    %p137 = scmp.eq.s32.totalorder %s136, 0
    %s139 = sadd.s32 %s138, 1
    %s140 = scalar_select %p137, %s138, %s139
    %p143 = pneg %p137
    %p144 = scmp.eq.s32.totalorder %s13, 1
    %p145 = por %p143, %p144
    %p146 = scmp.ne.s32.totalorder %s138, %s141
    %p147 = scmp.eq.s32.totalorder %s13, 0
    %p148 = por %p146, %p147
    %p149 = scmp.ne.s32.totalorder %s138, %s141
    %p150 = scmp.eq.s32.totalorder %s18, 1
    %p151 = por %p149, %p150
    %p152 = scmp.ne.s32.totalorder %s141, %s142
    %p153 = scmp.eq.s32.totalorder %s18, 0
    %p154 = por %p152, %p153
    %p155 = scmp.ne.s32.totalorder %s141, %s142
    %p156 = scmp.eq.s32.totalorder %s19, 1
    %p157 = por %p155, %p156
    %p159 = scmp.ne.s32.totalorder %s142, %s158
    %p160 = scmp.eq.s32.totalorder %s19, 0
    %p161 = por %p159, %p160
    %s162 = ssub.s32 %s13, %s20
    %p163 = scmp.eq.s32.totalorder %s162, 0
    %s165 = sadd.s32 %s164, 1
    %s166 = scalar_select %p163, %s164, %s165
    %p169 = pneg %p163
    %p170 = scmp.eq.s32.totalorder %s13, 1
    %p171 = por %p169, %p170
    %p172 = scmp.ne.s32.totalorder %s164, %s167
    %p173 = scmp.eq.s32.totalorder %s13, 0
    %p174 = por %p172, %p173
    %p175 = scmp.ne.s32.totalorder %s164, %s167
    %p176 = scmp.eq.s32.totalorder %s18, 1
    %p177 = por %p175, %p176
    %p178 = scmp.ne.s32.totalorder %s167, %s168
    %p179 = scmp.eq.s32.totalorder %s18, 0
    %p180 = por %p178, %p179
    %p181 = scmp.ne.s32.totalorder %s167, %s168
    %p182 = scmp.eq.s32.totalorder %s19, 1
    %p183 = por %p181, %p182
    %p185 = scmp.ne.s32.totalorder %s168, %s184
    %p186 = scmp.eq.s32.totalorder %s19, 0
    %p187 = por %p185, %p186
    %p188 = scmp.le.s32.totalorder 1, %s13
    %p189 = scmp.lt.s32.totalorder %s13, 3
    %p190 = pnand %p188, %p189
    %p191 = pneg %p190
    // Predicated region
    $region9: #{densenet_block.4} parent=5 // pred_check
      _
    $region10: #{densenet_block.4} parent=5 // pred_check_branch
      %193 = sbr.rel (%p190) target = $region12
    $region11: #{densenet_block.4} parent=5 // pred_region
      %s194 = ssub.s32 %s13, 1
      // Predicated region
      $region13: #{densenet_block.4} parent=11 // pred_check
        %p195 = pneg %p60
      $region14: #{densenet_block.4} parent=11 // pred_check_branch
        %197 = sbr.rel (%p195) target = $region16
      $region15: #{densenet_block.4} parent=11 // pred_region
        _
      $region16: #{densenet_block.4} parent=11 // pred_fallthru
        _
      // Predicated region
      $region17: #{densenet_block.4} parent=11 // pred_check
        %p198 = pneg %p81
      $region18: #{densenet_block.4} parent=11 // pred_check_branch
        %200 = sbr.rel (%p198) target = $region20
      $region19: #{densenet_block.4} parent=11 // pred_region
        _
      $region20: #{densenet_block.4} parent=11 // pred_fallthru
        _
      // Predicated region
      $region21: #{densenet_block.4} parent=11 // pred_check
        %p201 = pneg %p102
      $region22: #{densenet_block.4} parent=11 // pred_check_branch
        %203 = sbr.rel (%p201) target = $region24
      $region23: #{densenet_block.4} parent=11 // pred_region
        _
      $region24: #{densenet_block.4} parent=11 // pred_fallthru
        _
    $region12: #{densenet_block.4} parent=5 // pred_fallthru
      _
    %p204 = scmp.lt.s32.totalorder %s13, 2
    // Predicated region
    $region25: #{densenet_block.4} parent=5 // pred_check
      %p205 = pneg %p204
    $region26: #{densenet_block.4} parent=5 // pred_check_branch
      %207 = sbr.rel (%p205) target = $region28
    $region27: #{densenet_block.4} parent=5 // pred_region
      // Predicated region
      $region29: #{densenet_block.4} parent=27 // pred_check
        %p208 = pneg %p33
      $region30: #{densenet_block.4} parent=27 // pred_check_branch
        %210 = sbr.rel (%p208) target = $region32
      $region31: #{densenet_block.4} parent=27 // pred_region
        %p211 = scmp.lt.s32.totalorder %s13, 1
        %s212 = scalar_select %p211, %s13, 1
        %s213 = smul.addr %s212, 3
        %s214 = smul.addr %s213, 8
        %s215 = scalar_lea.vmem %s0, %s214
      $region32: #{densenet_block.4} parent=27 // pred_fallthru
        _
    $region28: #{densenet_block.4} parent=5 // pred_fallthru
      _
    %p216 = scmp.le.s32.totalorder 1, %s13
    %p217 = scmp.lt.s32.totalorder %s13, 3
    %p218 = pnand %p216, %p217
    %p219 = pneg %p218
    // Predicated region
    $region33: #{densenet_block.4} parent=5 // pred_check
      _
    $region34: #{densenet_block.4} parent=5 // pred_check_branch
      %221 = sbr.rel (%p218) target = $region36
    $region35: #{densenet_block.4} parent=5 // pred_region
      %s222 = ssub.s32 %s13, 1
      %p223 = scmp.lt.s32.totalorder %s18, 1
      %s224 = scalar_select %p223, %s18, 1
      %s225 = smul.addr %s224, 3
      %s226 = smul.addr %s225, 8
      %s227 = scalar_lea.vmem %s0, %s226
      %p228 = pneg %p39
      %p229 = pneg %p36
      %p230 = pneg %p60
      %p231 = pneg %p57
      %p232 = pneg %p81
      %p233 = pneg %p78
      %p234 = pneg %p102
      %p235 = pneg %p99
      %p236 = pneg %p128
      %p237 = pneg %p125
      %p238 = scmp.lt.s32.totalorder %s18, 1
      %s239 = scalar_select %p238, %s18, 1
      %s240 = smul.addr %s239, 2
      %s241 = smul.addr %s240, 8
      %s242 = scalar_lea.vmem %s4, %s241
      %p243 = pneg %p154
      %p244 = pneg %p151
      %p245 = scmp.lt.s32.totalorder %s18, 1
      %s246 = scalar_select %p245, %s18, 1
      %s247 = scalar_lea.vmem %s5, %s246
      %p248 = pneg %p180
      %p249 = pneg %p177
      %p250 = scmp.lt.s32.totalorder %s18, 1
      %s251 = scalar_select %p250, %s18, 1
      %s252 = scalar_lea.vmem %s6, %s251
      %p253 = scmp.lt.s32.totalorder %s18, 1
      %s254 = scalar_select %p253, %s18, 1
      %s255 = smul.addr %s254, 3
      %s256 = smul.addr %s255, 8
      %s257 = scalar_lea.vmem %s0, %s256
      %p258 = scmp.lt.s32.totalorder %s18, 1
      %s259 = scalar_select %p258, %s18, 1
      %s260 = smul.addr %s259, 2
      %s261 = smul.addr %s260, 8
      %s262 = scalar_lea.vmem %s4, %s261
      %p263 = scmp.lt.s32.totalorder %s18, 1
      %s264 = scalar_select %p263, %s18, 1
      %s265 = scalar_lea.vmem %s5, %s264
      %p266 = scmp.lt.s32.totalorder %s18, 1
      %s267 = scalar_select %p266, %s18, 1
      %s268 = scalar_lea.vmem %s6, %s267
      %v269 = vld [vmem:[%s257] sm:$0xff]
      %v270 = vld [vmem:[%s257 + $0x8] sm:$0xff]
      %v271 = vld [vmem:[%s257 + $0x10] sm:$0x3]
      %v272 = vld [vmem:[%s1] sm:$0x1]
      %v274 = vperm.slane %v272, 0
      %v276 = vmul.f32 %v269, %v274
      %v277 = vmul.f32 %v270, %v274
      %v278 = vmul.f32 %v271, %v274
      %v279 = vld [vmem:[%s2] sm:$0x1]
      %v281 = vperm.slane %v279, 0
      %v283 = vadd.f32 %v276, %v281
      %v284 = vadd.f32 %v277, %v281
      %v285 = vadd.f32 %v278, %v281
      %v286 = vmax.f32 %v283, 0.0
      %v287 = vmax.f32 %v284, 0.0
      %v288 = vmax.f32 %v285, 0.0
      %v289 = vld [vmem:[%s3] sm:$0xff]
      %v290 = vld [vmem:[%s3 + $0x8] sm:$0xff]
      %v291 = vld [vmem:[%s3 + $0x10] sm:$0xff]
      %v292 = vld [vmem:[%s3 + $0x18] sm:$0xff]
      %v293 = vld [vmem:[%s3 + $0x20] sm:$0xff]
      %v294 = vld [vmem:[%s3 + $0x28] sm:$0xff]
      %v295 = vld [vmem:[%s3 + $0x30] sm:$0xff]
      %v296 = vld [vmem:[%s3 + $0x38] sm:$0xff]
      %s297 = scalar_lea.vmem %s3, 64
      %v298 = vld [vmem:[%s297] sm:$0xff]
      %v299 = vld [vmem:[%s297 + $0x8] sm:$0xff]
      %v300 = vld [vmem:[%s297 + $0x10] sm:$0xff]
      %v301 = vld [vmem:[%s297 + $0x18] sm:$0xff]
      %v302 = vld [vmem:[%s297 + $0x20] sm:$0xff]
      %v303 = vld [vmem:[%s297 + $0x28] sm:$0xff]
      %v304 = vld [vmem:[%s297 + $0x30] sm:$0xff]
      %v305 = vld [vmem:[%s297 + $0x38] sm:$0xff]
      %308 = vrot.lane.b32.xlu0 %v286, 124
      %v309 = vpop.permute.xlu0 %308
      %310 = vrot.lane.b32.xlu0 %v287, 124
      %v311 = vpop.permute.xlu0 %310
      %vm312 = vcmask 523264
      %v313 = vsel %vm312, %v309, 0
      %v315 = vsel %vm312, %v311, 0
      %317 = vmatpush.msra.mxu0 0.0
      %318 = vmatpush.msra.mxu0 0.0
      %319 = vmatpush.msra.mxu0 0.0
      %320 = vmatpush.msra.mxu0 0.0
      %321 = vmatpush.msra.mxu0 0.0
      %322 = vmatpush.msra.mxu0 0.0
      %323 = vmatpush.msra.mxu0 0.0
      %324 = vmatpush.msra.mxu0 0.0
      %325 = vmatpush.msra.mxu0 %v305
      %326 = vmatpush.msra.mxu0 %v304
      %327 = vmatpush.msra.mxu0 %v303
      %328 = vmatpush.msra.mxu0 %v302
      %329 = vmatpush.msra.mxu0 %v301
      %330 = vmatpush.msra.mxu0 %v300
      %331 = vmatpush.msra.mxu0 %v299
      %332 = vmatpush.msra.mxu0 %v298
      %333 = vmatmul.f32.gmra.mxu0 %v313
      %v334 = vpop.f32.mrf.mxu0
      %v335 = vadd.f32 0.0, %v334
      %336 = vmatmul.f32.gmra.mxu0 %v315
      %v337 = vpop.f32.mrf.mxu0
      %v338 = vadd.f32 0.0, %v337
      %339 = vdwg.mxu0
      %v340 = vsel %vm312, %v286, 0
      %v342 = vsel %vm312, %v287, 0
      %344 = vmatpush.msra.mxu0 0.0
      %345 = vmatpush.msra.mxu0 0.0
      %346 = vmatpush.msra.mxu0 0.0
      %347 = vmatpush.msra.mxu0 0.0
      %348 = vmatpush.msra.mxu0 0.0
      %349 = vmatpush.msra.mxu0 0.0
      %350 = vmatpush.msra.mxu0 0.0
      %351 = vmatpush.msra.mxu0 0.0
      %352 = vmatpush.msra.mxu0 %v296
      %353 = vmatpush.msra.mxu0 %v295
      %354 = vmatpush.msra.mxu0 %v294
      %355 = vmatpush.msra.mxu0 %v293
      %356 = vmatpush.msra.mxu0 %v292
      %357 = vmatpush.msra.mxu0 %v291
      %358 = vmatpush.msra.mxu0 %v290
      %359 = vmatpush.msra.mxu0 %v289
      %360 = vmatmul.f32.gmra.mxu0 %v340
      %v361 = vpop.f32.mrf.mxu0
      %v362 = vadd.f32 %v335, %v361
      %363 = vmatmul.f32.gmra.mxu0 %v342
      %v364 = vpop.f32.mrf.mxu0
      %v365 = vadd.f32 %v338, %v364
      %366 = vdwg.mxu0
      %s367 = scalar_lea.vmem %s3, 128
      %v368 = vld [vmem:[%s367] sm:$0xff]
      %v369 = vld [vmem:[%s367 + $0x8] sm:$0xff]
      %v370 = vld [vmem:[%s367 + $0x10] sm:$0xff]
      %v371 = vld [vmem:[%s367 + $0x18] sm:$0xff]
      %v372 = vld [vmem:[%s367 + $0x20] sm:$0xff]
      %v373 = vld [vmem:[%s367 + $0x28] sm:$0xff]
      %v374 = vld [vmem:[%s367 + $0x30] sm:$0xff]
      %v375 = vld [vmem:[%s367 + $0x38] sm:$0xff]
      %376 = vrot.lane.b32.xlu0 %v286, 120
      %v377 = vpop.permute.xlu0 %376
      %378 = vrot.lane.b32.xlu0 %v287, 120
      %v379 = vpop.permute.xlu0 %378
      %v380 = vsel %vm312, %v377, 0
      %v382 = vsel %vm312, %v379, 0
      %384 = vmatpush.msra.mxu0 0.0
      %385 = vmatpush.msra.mxu0 0.0
      %386 = vmatpush.msra.mxu0 0.0
      %387 = vmatpush.msra.mxu0 0.0
      %388 = vmatpush.msra.mxu0 0.0
      %389 = vmatpush.msra.mxu0 0.0
      %390 = vmatpush.msra.mxu0 0.0
      %391 = vmatpush.msra.mxu0 0.0
      %392 = vmatpush.msra.mxu0 %v375
      %393 = vmatpush.msra.mxu0 %v374
      %394 = vmatpush.msra.mxu0 %v373
      %395 = vmatpush.msra.mxu0 %v372
      %396 = vmatpush.msra.mxu0 %v371
      %397 = vmatpush.msra.mxu0 %v370
      %398 = vmatpush.msra.mxu0 %v369
      %399 = vmatpush.msra.mxu0 %v368
      %400 = vmatmul.f32.gmra.mxu0 %v380
      %v401 = vpop.f32.mrf.mxu0
      %v402 = vadd.f32 0.0, %v401
      %403 = vmatmul.f32.gmra.mxu0 %v382
      %v404 = vpop.f32.mrf.mxu0
      %v405 = vadd.f32 0.0, %v404
      %406 = vdwg.mxu0
      %v407 = vadd.f32 %v362, %v402
      %v408 = vadd.f32 %v365, %v405
      %s409 = scalar_lea.vmem %s3, 192
      %v410 = vld [vmem:[%s409] sm:$0xff]
      %v411 = vld [vmem:[%s409 + $0x8] sm:$0xff]
      %v412 = vld [vmem:[%s409 + $0x10] sm:$0xff]
      %v413 = vld [vmem:[%s409 + $0x18] sm:$0xff]
      %v414 = vld [vmem:[%s409 + $0x20] sm:$0xff]
      %v415 = vld [vmem:[%s409 + $0x28] sm:$0xff]
      %v416 = vld [vmem:[%s409 + $0x30] sm:$0xff]
      %v417 = vld [vmem:[%s409 + $0x38] sm:$0xff]
      %vm419 = vcmask 1046528
      %v420 = vrot.slane %v286, 1
      %v421 = vrot.slane %v287, 1
      %v422 = vsel %vm419, %v420, %v421
      %v423 = vrot.slane %v288, 1
      %v424 = vsel %vm419, %v421, %v423
      %v425 = vsel %vm312, %v422, 0
      %v427 = vsel %vm312, %v424, 0
      %429 = vmatpush.msra.mxu0 0.0
      %430 = vmatpush.msra.mxu0 0.0
      %431 = vmatpush.msra.mxu0 0.0
      %432 = vmatpush.msra.mxu0 0.0
      %433 = vmatpush.msra.mxu0 0.0
      %434 = vmatpush.msra.mxu0 0.0
      %435 = vmatpush.msra.mxu0 0.0
      %436 = vmatpush.msra.mxu0 0.0
      %437 = vmatpush.msra.mxu0 %v417
      %438 = vmatpush.msra.mxu0 %v416
      %439 = vmatpush.msra.mxu0 %v415
      %440 = vmatpush.msra.mxu0 %v414
      %441 = vmatpush.msra.mxu0 %v413
      %442 = vmatpush.msra.mxu0 %v412
      %443 = vmatpush.msra.mxu0 %v411
      %444 = vmatpush.msra.mxu0 %v410
      %445 = vmatmul.f32.gmra.mxu0 %v425
      %v446 = vpop.f32.mrf.mxu0
      %v447 = vadd.f32 0.0, %v446
      %448 = vmatmul.f32.gmra.mxu0 %v427
      %v449 = vpop.f32.mrf.mxu0
      %v450 = vadd.f32 0.0, %v449
      %451 = vdwg.mxu0
      %v452 = vadd.f32 %v407, %v447
      %v453 = vadd.f32 %v408, %v450
      %s454 = scalar_lea.vmem %s3, 256
      %v455 = vld [vmem:[%s454] sm:$0xff]
      %v456 = vld [vmem:[%s454 + $0x8] sm:$0xff]
      %v457 = vld [vmem:[%s454 + $0x10] sm:$0xff]
      %v458 = vld [vmem:[%s454 + $0x18] sm:$0xff]
      %v459 = vld [vmem:[%s454 + $0x20] sm:$0xff]
      %v460 = vld [vmem:[%s454 + $0x28] sm:$0xff]
      %v461 = vld [vmem:[%s454 + $0x30] sm:$0xff]
      %v462 = vld [vmem:[%s454 + $0x38] sm:$0xff]
      %463 = vrot.lane.b32.xlu0 %v422, 124
      %v464 = vpop.permute.xlu0 %463
      %465 = vrot.lane.b32.xlu0 %v424, 124
      %v466 = vpop.permute.xlu0 %465
      %v467 = vsel %vm312, %v464, 0
      %v469 = vsel %vm312, %v466, 0
      %471 = vmatpush.msra.mxu0 0.0
      %472 = vmatpush.msra.mxu0 0.0
      %473 = vmatpush.msra.mxu0 0.0
      %474 = vmatpush.msra.mxu0 0.0
      %475 = vmatpush.msra.mxu0 0.0
      %476 = vmatpush.msra.mxu0 0.0
      %477 = vmatpush.msra.mxu0 0.0
      %478 = vmatpush.msra.mxu0 0.0
      %479 = vmatpush.msra.mxu0 %v462
      %480 = vmatpush.msra.mxu0 %v461
      %481 = vmatpush.msra.mxu0 %v460
      %482 = vmatpush.msra.mxu0 %v459
      %483 = vmatpush.msra.mxu0 %v458
      %484 = vmatpush.msra.mxu0 %v457
      %485 = vmatpush.msra.mxu0 %v456
      %486 = vmatpush.msra.mxu0 %v455
      %487 = vmatmul.f32.gmra.mxu0 %v467
      %v488 = vpop.f32.mrf.mxu0
      %v489 = vadd.f32 0.0, %v488
      %490 = vmatmul.f32.gmra.mxu0 %v469
      %v491 = vpop.f32.mrf.mxu0
      %v492 = vadd.f32 0.0, %v491
      %493 = vdwg.mxu0
      %v494 = vadd.f32 %v452, %v489
      %v495 = vadd.f32 %v453, %v492
      %s496 = scalar_lea.vmem %s3, 320
      %v497 = vld [vmem:[%s496] sm:$0xff]
      %v498 = vld [vmem:[%s496 + $0x8] sm:$0xff]
      %v499 = vld [vmem:[%s496 + $0x10] sm:$0xff]
      %v500 = vld [vmem:[%s496 + $0x18] sm:$0xff]
      %v501 = vld [vmem:[%s496 + $0x20] sm:$0xff]
      %v502 = vld [vmem:[%s496 + $0x28] sm:$0xff]
      %v503 = vld [vmem:[%s496 + $0x30] sm:$0xff]
      %v504 = vld [vmem:[%s496 + $0x38] sm:$0xff]
      %505 = vrot.lane.b32.xlu0 %v422, 120
      %v506 = vpop.permute.xlu0 %505
      %507 = vrot.lane.b32.xlu0 %v424, 120
      %v508 = vpop.permute.xlu0 %507
      %v509 = vsel %vm312, %v506, 0
      %v511 = vsel %vm312, %v508, 0
      %513 = vmatpush.msra.mxu0 0.0
      %514 = vmatpush.msra.mxu0 0.0
      %515 = vmatpush.msra.mxu0 0.0
      %516 = vmatpush.msra.mxu0 0.0
      %517 = vmatpush.msra.mxu0 0.0
      %518 = vmatpush.msra.mxu0 0.0
      %519 = vmatpush.msra.mxu0 0.0
      %520 = vmatpush.msra.mxu0 0.0
      %521 = vmatpush.msra.mxu0 %v504
      %522 = vmatpush.msra.mxu0 %v503
      %523 = vmatpush.msra.mxu0 %v502
      %524 = vmatpush.msra.mxu0 %v501
      %525 = vmatpush.msra.mxu0 %v500
      %526 = vmatpush.msra.mxu0 %v499
      %527 = vmatpush.msra.mxu0 %v498
      %528 = vmatpush.msra.mxu0 %v497
      %529 = vmatmul.f32.gmra.mxu0 %v509
      %v530 = vpop.f32.mrf.mxu0
      %v531 = vadd.f32 0.0, %v530
      %532 = vmatmul.f32.gmra.mxu0 %v511
      %v533 = vpop.f32.mrf.mxu0
      %v534 = vadd.f32 0.0, %v533
      %535 = vdwg.mxu0
      %v536 = vadd.f32 %v494, %v531
      %v537 = vadd.f32 %v495, %v534
      %s538 = scalar_lea.vmem %s3, 384
      %v539 = vld [vmem:[%s538] sm:$0xff]
      %v540 = vld [vmem:[%s538 + $0x8] sm:$0xff]
      %v541 = vld [vmem:[%s538 + $0x10] sm:$0xff]
      %v542 = vld [vmem:[%s538 + $0x18] sm:$0xff]
      %v543 = vld [vmem:[%s538 + $0x20] sm:$0xff]
      %v544 = vld [vmem:[%s538 + $0x28] sm:$0xff]
      %v545 = vld [vmem:[%s538 + $0x30] sm:$0xff]
      %v546 = vld [vmem:[%s538 + $0x38] sm:$0xff]
      %vm547 = vcmask 1045504
      %v548 = vrot.slane %v286, 2
      %v549 = vrot.slane %v287, 2
      %v550 = vsel %vm547, %v548, %v549
      %v551 = vrot.slane %v288, 2
      %v552 = vsel %vm547, %v549, %v551
      %v553 = vsel %vm312, %v550, 0
      %v555 = vsel %vm312, %v552, 0
      %557 = vmatpush.msra.mxu0 0.0
      %558 = vmatpush.msra.mxu0 0.0
      %559 = vmatpush.msra.mxu0 0.0
      %560 = vmatpush.msra.mxu0 0.0
      %561 = vmatpush.msra.mxu0 0.0
      %562 = vmatpush.msra.mxu0 0.0
      %563 = vmatpush.msra.mxu0 0.0
      %564 = vmatpush.msra.mxu0 0.0
      %565 = vmatpush.msra.mxu0 %v546
      %566 = vmatpush.msra.mxu0 %v545
      %567 = vmatpush.msra.mxu0 %v544
      %568 = vmatpush.msra.mxu0 %v543
      %569 = vmatpush.msra.mxu0 %v542
      %570 = vmatpush.msra.mxu0 %v541
      %571 = vmatpush.msra.mxu0 %v540
      %572 = vmatpush.msra.mxu0 %v539
      %573 = vmatmul.f32.gmra.mxu0 %v553
      %v574 = vpop.f32.mrf.mxu0
      %v575 = vadd.f32 0.0, %v574
      %576 = vmatmul.f32.gmra.mxu0 %v555
      %v577 = vpop.f32.mrf.mxu0
      %v578 = vadd.f32 0.0, %v577
      %579 = vdwg.mxu0
      %v580 = vadd.f32 %v536, %v575
      %v581 = vadd.f32 %v537, %v578
      %s582 = scalar_lea.vmem %s3, 448
      %v583 = vld [vmem:[%s582] sm:$0xff]
      %v584 = vld [vmem:[%s582 + $0x8] sm:$0xff]
      %v585 = vld [vmem:[%s582 + $0x10] sm:$0xff]
      %v586 = vld [vmem:[%s582 + $0x18] sm:$0xff]
      %v587 = vld [vmem:[%s582 + $0x20] sm:$0xff]
      %v588 = vld [vmem:[%s582 + $0x28] sm:$0xff]
      %v589 = vld [vmem:[%s582 + $0x30] sm:$0xff]
      %v590 = vld [vmem:[%s582 + $0x38] sm:$0xff]
      %591 = vrot.lane.b32.xlu0 %v550, 124
      %v592 = vpop.permute.xlu0 %591
      %593 = vrot.lane.b32.xlu0 %v552, 124
      %v594 = vpop.permute.xlu0 %593
      %v595 = vsel %vm312, %v592, 0
      %v597 = vsel %vm312, %v594, 0
      %599 = vmatpush.msra.mxu0 0.0
      %600 = vmatpush.msra.mxu0 0.0
      %601 = vmatpush.msra.mxu0 0.0
      %602 = vmatpush.msra.mxu0 0.0
      %603 = vmatpush.msra.mxu0 0.0
      %604 = vmatpush.msra.mxu0 0.0
      %605 = vmatpush.msra.mxu0 0.0
      %606 = vmatpush.msra.mxu0 0.0
      %607 = vmatpush.msra.mxu0 %v590
      %608 = vmatpush.msra.mxu0 %v589
      %609 = vmatpush.msra.mxu0 %v588
      %610 = vmatpush.msra.mxu0 %v587
      %611 = vmatpush.msra.mxu0 %v586
      %612 = vmatpush.msra.mxu0 %v585
      %613 = vmatpush.msra.mxu0 %v584
      %614 = vmatpush.msra.mxu0 %v583
      %615 = vmatmul.f32.gmra.mxu0 %v595
      %v616 = vpop.f32.mrf.mxu0
      %v617 = vadd.f32 0.0, %v616
      %618 = vmatmul.f32.gmra.mxu0 %v597
      %v619 = vpop.f32.mrf.mxu0
      %v620 = vadd.f32 0.0, %v619
      %621 = vdwg.mxu0
      %v622 = vadd.f32 %v580, %v617
      %v623 = vadd.f32 %v581, %v620
      %s624 = scalar_lea.vmem %s3, 512
      %v625 = vld [vmem:[%s624] sm:$0xff]
      %v626 = vld [vmem:[%s624 + $0x8] sm:$0xff]
      %v627 = vld [vmem:[%s624 + $0x10] sm:$0xff]
      %v628 = vld [vmem:[%s624 + $0x18] sm:$0xff]
      %v629 = vld [vmem:[%s624 + $0x20] sm:$0xff]
      %v630 = vld [vmem:[%s624 + $0x28] sm:$0xff]
      %v631 = vld [vmem:[%s624 + $0x30] sm:$0xff]
      %v632 = vld [vmem:[%s624 + $0x38] sm:$0xff]
      %633 = vrot.lane.b32.xlu0 %v550, 120
      %v634 = vpop.permute.xlu0 %633
      %635 = vrot.lane.b32.xlu0 %v552, 120
      %v636 = vpop.permute.xlu0 %635
      %v637 = vsel %vm312, %v634, 0
      %v639 = vsel %vm312, %v636, 0
      %641 = vmatpush.msra.mxu0 0.0
      %642 = vmatpush.msra.mxu0 0.0
      %643 = vmatpush.msra.mxu0 0.0
      %644 = vmatpush.msra.mxu0 0.0
      %645 = vmatpush.msra.mxu0 0.0
      %646 = vmatpush.msra.mxu0 0.0
      %647 = vmatpush.msra.mxu0 0.0
      %648 = vmatpush.msra.mxu0 0.0
      %649 = vmatpush.msra.mxu0 %v632
      %650 = vmatpush.msra.mxu0 %v631
      %651 = vmatpush.msra.mxu0 %v630
      %652 = vmatpush.msra.mxu0 %v629
      %653 = vmatpush.msra.mxu0 %v628
      %654 = vmatpush.msra.mxu0 %v627
      %655 = vmatpush.msra.mxu0 %v626
      %656 = vmatpush.msra.mxu0 %v625
      %657 = vmatmul.f32.gmra.mxu0 %v637
      %v658 = vpop.f32.mrf.mxu0
      %v659 = vadd.f32 0.0, %v658
      %660 = vmatmul.f32.gmra.mxu0 %v639
      %v661 = vpop.f32.mrf.mxu0
      %v662 = vadd.f32 0.0, %v661
      %663 = vdwg.mxu0
      %v664 = vadd.f32 %v622, %v659
      %v665 = vadd.f32 %v623, %v662
      %666 = vst [vmem:[%s262] sm:$0xff] %v664
      %667 = vst [vmem:[%s262 + $0x8] sm:$0xff] %v665
      %v668 = vadd.f32 %v664, %v665
      %v669 = vrot.slane %v668, 4
      %v670 = vadd.f32 %v668, %v669
      %v671 = vrot.slane %v670, 2
      %v672 = vadd.f32 %v670, %v671
      %v673 = vrot.slane %v672, 1
      %v674 = vadd.f32 %v672, %v673
      %675 = vst [vmem:[%s265] sm:$0x1] %v674
      %v676 = vmul.f32 %v664, %v664
      %v677 = vmul.f32 %v665, %v665
      %v678 = vadd.f32 %v676, %v677
      %v679 = vrot.slane %v678, 4
      %v680 = vadd.f32 %v678, %v679
      %v681 = vrot.slane %v680, 2
      %v682 = vadd.f32 %v680, %v681
      %v683 = vrot.slane %v682, 1
      %v684 = vadd.f32 %v682, %v683
      %685 = vst [vmem:[%s268] sm:$0x1] %v684
      %p686 = scmp.lt.s32.totalorder %s18, 1
      %s687 = scalar_select %p686, %s18, 1
      %s688 = smul.addr %s687, 2
      %s689 = smul.addr %s688, 8
      %s690 = scalar_lea.vmem %s4, %s689
      %p691 = scmp.lt.s32.totalorder %s18, 1
      %s692 = scalar_select %p691, %s18, 1
      %s693 = scalar_lea.vmem %s5, %s692
      %p694 = scmp.lt.s32.totalorder %s18, 1
      %s695 = scalar_select %p694, %s18, 1
      %s696 = scalar_lea.vmem %s6, %s695
      // Predicated region
      $region37: #{densenet_block.4} parent=35 // pred_check
        %p697 = pneg %p125
      $region38: #{densenet_block.4} parent=35 // pred_check_branch
        %699 = sbr.rel (%p697) target = $region40
      $region39: #{densenet_block.4} parent=35 // pred_region
        _
      $region40: #{densenet_block.4} parent=35 // pred_fallthru
        _
      // Predicated region
      $region41: #{densenet_block.4} parent=35 // pred_check
        %p700 = pneg %p151
      $region42: #{densenet_block.4} parent=35 // pred_check_branch
        %702 = sbr.rel (%p700) target = $region44
      $region43: #{densenet_block.4} parent=35 // pred_region
        _
      $region44: #{densenet_block.4} parent=35 // pred_fallthru
        _
      // Predicated region
      $region45: #{densenet_block.4} parent=35 // pred_check
        %p703 = pneg %p177
      $region46: #{densenet_block.4} parent=35 // pred_check_branch
        %705 = sbr.rel (%p703) target = $region48
      $region47: #{densenet_block.4} parent=35 // pred_region
        _
      $region48: #{densenet_block.4} parent=35 // pred_fallthru
        _
    $region36: #{densenet_block.4} parent=5 // pred_fallthru
      _
    %p706 = scmp.le.s32.totalorder 2, %s13
    // Predicated region
    $region49: #{densenet_block.4} parent=5 // pred_check
      %p707 = pneg %p706
    $region50: #{densenet_block.4} parent=5 // pred_check_branch
      %709 = sbr.rel (%p707) target = $region52
    $region51: #{densenet_block.4} parent=5 // pred_region
      %s710 = ssub.s32 %s13, 2
      // Predicated region
      $region53: #{densenet_block.4} parent=51 // pred_check
        %p711 = pneg %p131
      $region54: #{densenet_block.4} parent=51 // pred_check_branch
        %713 = sbr.rel (%p711) target = $region56
      $region55: #{densenet_block.4} parent=51 // pred_region
        %p714 = scmp.lt.s32.totalorder %s19, 1
        %s715 = scalar_select %p714, %s19, 1
        %s716 = smul.addr %s715, 2
        %s717 = smul.addr %s716, 8
        %s718 = scalar_lea.vmem %s4, %s717
      $region56: #{densenet_block.4} parent=51 // pred_fallthru
        _
      // Predicated region
      $region57: #{densenet_block.4} parent=51 // pred_check
        %p719 = pneg %p157
      $region58: #{densenet_block.4} parent=51 // pred_check_branch
        %721 = sbr.rel (%p719) target = $region60
      $region59: #{densenet_block.4} parent=51 // pred_region
        %p722 = scmp.lt.s32.totalorder %s19, 1
        %s723 = scalar_select %p722, %s19, 1
        %s724 = scalar_lea.vmem %s5, %s723
      $region60: #{densenet_block.4} parent=51 // pred_fallthru
        _
      // Predicated region
      $region61: #{densenet_block.4} parent=51 // pred_check
        %p725 = pneg %p183
      $region62: #{densenet_block.4} parent=51 // pred_check_branch
        %727 = sbr.rel (%p725) target = $region64
      $region63: #{densenet_block.4} parent=51 // pred_region
        %p728 = scmp.lt.s32.totalorder %s19, 1
        %s729 = scalar_select %p728, %s19, 1
        %s730 = scalar_lea.vmem %s6, %s729
      $region64: #{densenet_block.4} parent=51 // pred_fallthru
        _
    $region52: #{densenet_block.4} parent=5 // pred_fallthru
      _
  $region6: #{densenet_block.4} parent=0 // loop_footer
    %s17 = sadd.s32 1, %s13
  $region7: #{densenet_block.4} parent=0 // loop_footer_branch
    %12 = sbr.rel target = $region3
  $region8: #{densenet_block.4} parent=0 // loop_exit
    _

// kernel: tile.53
$region0: #{tile.53}
  #allocation0 [shape = 's32[1]{0}', space=sflag, size = 0x4, scoped, tag = 'scoped memory for tile.53']
  %s0 = inlined_call_operand.vmem [shape: f32[12], index: 0, kind: input, shape index: {}]
  %s1 = inlined_call_operand.vmem [shape: f32[18,12], index: 1, kind: output, shape index: {}]
  // Predicated region
  $region2: #{tile.53} parent=0 // pred_check
    _
  $region3: #{tile.53} parent=0 // pred_check_branch
    %3 = sbr.rel (0) target = $region5
  $region4: #{tile.53} parent=0 // pred_region
    _
  $region5: #{tile.53} parent=0 // pred_fallthru
    _
  %v4 = vld [vmem:[%s0] ss:$0 sm:$0xff]
  %5 = vst [vmem:[%s1] sm:$0xff] %v4
  %s6 = scalar_lea.vmem %s1, 8
  %7 = vst [vmem:[%s6] sm:$0xff] %v4
  %s8 = scalar_lea.vmem %s1, 16
  %9 = vst [vmem:[%s8] sm:$0xff] %v4

// kernel: tile.54
$region0: #{tile.54}
  %s0 = inlined_call_operand.vmem [shape: f32[18,12], index: 0, kind: input, shape index: {}]
  %s1 = inlined_call_operand.vmem [shape: f32[1,216], index: 1, kind: output, shape index: {}]
  $region1: #{tile.54} parent=0
    #allocation0 [shape = 'u8[8192]{0}', space=vmem, size = 0x2000, scoped, tag = 'scoped mem for output reshape']
    %v2 = vld [vmem:[%s0] sm:$0x1]
    %vm3 = vcmask 97280
    %4 = vst.msk [vmem:[#allocation0] sm:$0x1] %vm3, %v2
    %s5 = scalar_lea.vmem %s0, 10
    %v6 = vld [vmem:[%s5] sm:$0x1]
    %s7 = scalar_lea.vmem %s0, 10
    %v8 = vld [vmem:[%s7] sm:$0x1]
    %vm9 = vcmask 64512
    %v10 = vsel %vm9, %v8, %v6
    %11 = vrot.lane.b32.xlu0 %v10, 120
    %v12 = vpop.permute.xlu0 %11
    %vm13 = vcmask 31744
    %s14 = scalar_lea.vmem [#allocation0], 8
    %15 = vst.msk [vmem:[%s14] sm:$0x1] %vm13, %v12
    %vm16 = vcmask 1048512
    %17 = vst.msk [vmem:[#allocation0] sm:$0x1] %vm16, %v12
    %s18 = scalar_lea.vmem %s0, 9
    %v19 = vld [vmem:[%s18] sm:$0x1]
    %20 = vrot.lane.b32.xlu0 %v19, 108
    %v21 = vpop.permute.xlu0 %20
    %vm22 = vcmask 982880
    %23 = vst.msk [vmem:[#allocation0] sm:$0x1] %vm22, %v21
    %s24 = scalar_lea.vmem %s0, 8
    %v25 = vld [vmem:[%s24] sm:$0x1]
    %26 = vrot.lane.b32.xlu0 %v25, 96
    %v27 = vpop.permute.xlu0 %26
    %vm28 = vcmask 884480
    %29 = vst.msk [vmem:[#allocation0] sm:$0x1] %vm28, %v27
    %s30 = scalar_lea.vmem %s0, 7
    %v31 = vld [vmem:[%s30] sm:$0x1]
    %32 = vrot.lane.b32.xlu0 %v31, 84
    %v33 = vpop.permute.xlu0 %32
    %vm34 = vcmask 786080
    %35 = vst.msk [vmem:[#allocation0] sm:$0x1] %vm34, %v33
    %s36 = scalar_lea.vmem %s0, 17
    %v37 = vld [vmem:[%s36] sm:$0x1]
    %38 = vrot.lane.b32.xlu0 %v37, 76
    %v39 = vpop.permute.xlu0 %38
    %vm40 = vcmask 720480
    %s41 = scalar_lea.vmem [#allocation0], 8
    %42 = vst.msk [vmem:[%s41] sm:$0x1] %vm40, %v39
    %s43 = scalar_lea.vmem %s0, 6
    %v44 = vld [vmem:[%s43] sm:$0x1]
    %45 = vrot.lane.b32.xlu0 %v44, 72
    %v46 = vpop.permute.xlu0 %45
    %vm47 = vcmask 687680
    %48 = vst.msk [vmem:[#allocation0] sm:$0x1] %vm47, %v46
    %s49 = scalar_lea.vmem %s0, 16
    %v50 = vld [vmem:[%s49] sm:$0x1]
    %51 = vrot.lane.b32.xlu0 %v50, 64
    %v52 = vpop.permute.xlu0 %51
    %vm53 = vcmask 622080
    %s54 = scalar_lea.vmem [#allocation0], 8
    %55 = vst.msk [vmem:[%s54] sm:$0x1] %vm53, %v52
    %s56 = scalar_lea.vmem %s0, 5
    %v57 = vld [vmem:[%s56] sm:$0x1]
    %58 = vrot.lane.b32.xlu0 %v57, 60
    %v59 = vpop.permute.xlu0 %58
    %vm60 = vcmask 589280
    %61 = vst.msk [vmem:[#allocation0] sm:$0x1] %vm60, %v59
    %s62 = scalar_lea.vmem %s0, 15
    %v63 = vld [vmem:[%s62] sm:$0x1]
    %64 = vrot.lane.b32.xlu0 %v63, 52
    %v65 = vpop.permute.xlu0 %64
    %vm66 = vcmask 523680
    %s67 = scalar_lea.vmem [#allocation0], 8
    %68 = vst.msk [vmem:[%s67] sm:$0x1] %vm66, %v65
    %s69 = scalar_lea.vmem %s0, 4
    %v70 = vld [vmem:[%s69] sm:$0x1]
    %71 = vrot.lane.b32.xlu0 %v70, 48
    %v72 = vpop.permute.xlu0 %71
    %vm73 = vcmask 490880
    %74 = vst.msk [vmem:[#allocation0] sm:$0x1] %vm73, %v72
    %s75 = scalar_lea.vmem %s0, 14
    %v76 = vld [vmem:[%s75] sm:$0x1]
    %77 = vrot.lane.b32.xlu0 %v76, 40
    %v78 = vpop.permute.xlu0 %77
    %vm79 = vcmask 425280
    %s80 = scalar_lea.vmem [#allocation0], 8
    %81 = vst.msk [vmem:[%s80] sm:$0x1] %vm79, %v78
    %s82 = scalar_lea.vmem %s0, 3
    %v83 = vld [vmem:[%s82] sm:$0x1]
    %84 = vrot.lane.b32.xlu0 %v83, 36
    %v85 = vpop.permute.xlu0 %84
    %vm86 = vcmask 392480
    %87 = vst.msk [vmem:[#allocation0] sm:$0x1] %vm86, %v85
    %s88 = scalar_lea.vmem %s0, 13
    %v89 = vld [vmem:[%s88] sm:$0x1]
    %90 = vrot.lane.b32.xlu0 %v89, 28
    %v91 = vpop.permute.xlu0 %90
    %vm92 = vcmask 326880
    %s93 = scalar_lea.vmem [#allocation0], 8
    %94 = vst.msk [vmem:[%s93] sm:$0x1] %vm92, %v91
    %s95 = scalar_lea.vmem %s0, 2
    %v96 = vld [vmem:[%s95] sm:$0x1]
    %97 = vrot.lane.b32.xlu0 %v96, 24
    %v98 = vpop.permute.xlu0 %97
    %vm99 = vcmask 294080
    %100 = vst.msk [vmem:[#allocation0] sm:$0x1] %vm99, %v98
    %s101 = scalar_lea.vmem %s0, 12
    %v102 = vld [vmem:[%s101] sm:$0x1]
    %103 = vrot.lane.b32.xlu0 %v102, 16
    %v104 = vpop.permute.xlu0 %103
    %vm105 = vcmask 228480
    %s106 = scalar_lea.vmem [#allocation0], 8
    %107 = vst.msk [vmem:[%s106] sm:$0x1] %vm105, %v104
    %s108 = scalar_lea.vmem %s0, 1
    %v109 = vld [vmem:[%s108] sm:$0x1]
    %110 = vrot.lane.b32.xlu0 %v109, 12
    %v111 = vpop.permute.xlu0 %110
    %vm112 = vcmask 195680
    %113 = vst.msk [vmem:[#allocation0] sm:$0x1] %vm112, %v111
    %s114 = scalar_lea.vmem %s0, 11
    %v115 = vld [vmem:[%s114] sm:$0x1]
    %116 = vrot.lane.b32.xlu0 %v115, 4
    %v117 = vpop.permute.xlu0 %116
    %vm118 = vcmask 130080
    %s119 = scalar_lea.vmem [#allocation0], 8
    %120 = vst.msk [vmem:[%s119] sm:$0x1] %vm118, %v117
    %s122 = ssub.s32 2, 1
    %v123 = vld [vmem:[#allocation0] sm:%s122]
    %s125 = ssub.s32 2, 1
    %126 = vst [vmem:[%s1] sm:%s125] %v123
    %s127 = scalar_lea.vmem [#allocation0], 8
    %v128 = vld [vmem:[%s127] sm:%s122]
    %s130 = ssub.s32 2, 1
    %s131 = scalar_lea.vmem %s1, 1
    %132 = vst [vmem:[%s131] sm:%s130] %v128

// kernel: densenet_block.5
$region0: #{densenet_block.5}
  #allocation0 [shape = 'u32[]', space=smem, size = 0x4, offset = 0x4, fixed_abs, tag = 'smem constant byte address 0x4 - core index']
  #allocation1 [shape = 'u32[72,128]{1,0:T(1,128)}', space=vmem, size = 0x9000, scoped, tag = 'internal scratch']
  %s0 = inlined_call_operand.vmem [shape: f32[2,18,216], index: 0, kind: input, shape index: {}]
  %s1 = inlined_call_operand.vmem [shape: f32[1,216], index: 1, kind: input, shape index: {}]
  %s2 = inlined_call_operand.vmem [shape: f32[1,216], index: 2, kind: input, shape index: {}]
  %s3 = inlined_call_operand.vmem [shape: f32[9,192,128], index: 3, kind: input, shape index: {}]
  %s4 = inlined_call_operand.vmem [shape: f32[2,16,128], index: 4, kind: output, shape index: {0}]
  %s5 = inlined_call_operand.vmem [shape: f32[2,1,128], index: 5, kind: output, shape index: {1}]
  %s6 = inlined_call_operand.vmem [shape: f32[2,1,128], index: 6, kind: output, shape index: {2}]
  %7 = xla_tuple %s4, %s5, %s6
  %s8 = sld [smem:[#allocation0]]
  $region65: #{densenet_block.5} parent=0
    _
  %s10 = ssub.s32 1, %s8
  %s11 = scalar_select 0, %s10, %s8
  loop: start=0, step=1, limit=4
  $region2: #{densenet_block.5} parent=0 // loop_pre_header
    _
  $region3: #{densenet_block.5} parent=0 // loop_header
    %s13 = sphi 0, %s17
    %p14 = scmp.ge.s32.totalorder %s13, 4
    %s23 = sphi 0, %s25
    %s26 = sphi 0, %s23
    %s27 = sphi 0, %s26
    %s43 = sphi 0, %s27
    %s47 = sphi 0, %s47
    %s49 = sphi 0, %s47
    %s50 = sphi 0, %s49
    %s64 = sphi 0, %s50
    %s68 = sphi 0, %s68
    %s70 = sphi 0, %s68
    %s71 = sphi 0, %s70
    %s85 = sphi 0, %s71
    %s89 = sphi 0, %s89
    %s91 = sphi 0, %s89
    %s92 = sphi 0, %s91
    %s106 = sphi 0, %s92
    %s112 = sphi 0, %s114
    %s115 = sphi 0, %s112
    %s116 = sphi 0, %s115
    %s132 = sphi 0, %s116
    %s138 = sphi 0, %s140
    %s141 = sphi 0, %s138
    %s142 = sphi 0, %s141
    %s158 = sphi 0, %s142
    %s164 = sphi 0, %s166
    %s167 = sphi 0, %s164
    %s168 = sphi 0, %s167
    %s184 = sphi 0, %s168
  $region4: #{densenet_block.5} parent=0 // loop_header_branch
    %16 = sbr.rel (%p14) target = $region8
  $region5: #{densenet_block.5} parent=0 // loop_body
    %s18 = ssub.s32 %s13, 1
    %s19 = ssub.s32 %s13, 2
    %s20 = sadd.s32 %s13, 1
    %s21 = ssub.s32 %s13, %s20
    %p22 = scmp.eq.s32.totalorder %s21, 0
    %s24 = sadd.s32 %s23, 1
    %s25 = scalar_select %p22, %s23, %s24
    %p28 = pneg %p22
    %p29 = scmp.eq.s32.totalorder %s13, 1
    %p30 = por %p28, %p29
    %p31 = scmp.ne.s32.totalorder %s23, %s26
    %p32 = scmp.eq.s32.totalorder %s13, 0
    %p33 = por %p31, %p32
    %p34 = scmp.ne.s32.totalorder %s23, %s26
    %p35 = scmp.eq.s32.totalorder %s18, 1
    %p36 = por %p34, %p35
    %p37 = scmp.ne.s32.totalorder %s26, %s27
    %p38 = scmp.eq.s32.totalorder %s18, 0
    %p39 = por %p37, %p38
    %p40 = scmp.ne.s32.totalorder %s26, %s27
    %p41 = scmp.eq.s32.totalorder %s19, 1
    %p42 = por %p40, %p41
    %p44 = scmp.ne.s32.totalorder %s27, %s43
    %p45 = scmp.eq.s32.totalorder %s19, 0
    %p46 = por %p44, %p45
    %s48 = sadd.s32 %s47, 1
    %p51 = scmp.eq.s32.totalorder %s13, 1
    %p52 = scmp.ne.s32.totalorder %s47, %s49
    %p53 = scmp.eq.s32.totalorder %s13, 0
    %p54 = por %p52, %p53
    %p55 = scmp.ne.s32.totalorder %s47, %s49
    %p56 = scmp.eq.s32.totalorder %s18, 1
    %p57 = por %p55, %p56
    %p58 = scmp.ne.s32.totalorder %s49, %s50
    %p59 = scmp.eq.s32.totalorder %s18, 0
    %p60 = por %p58, %p59
    %p61 = scmp.ne.s32.totalorder %s49, %s50
    %p62 = scmp.eq.s32.totalorder %s19, 1
    %p63 = por %p61, %p62
    %p65 = scmp.ne.s32.totalorder %s50, %s64
    %p66 = scmp.eq.s32.totalorder %s19, 0
    %p67 = por %p65, %p66
    %s69 = sadd.s32 %s68, 1
    %p72 = scmp.eq.s32.totalorder %s13, 1
    %p73 = scmp.ne.s32.totalorder %s68, %s70
    %p74 = scmp.eq.s32.totalorder %s13, 0
    %p75 = por %p73, %p74
    %p76 = scmp.ne.s32.totalorder %s68, %s70
    %p77 = scmp.eq.s32.totalorder %s18, 1
    %p78 = por %p76, %p77
    %p79 = scmp.ne.s32.totalorder %s70, %s71
    %p80 = scmp.eq.s32.totalorder %s18, 0
    %p81 = por %p79, %p80
    %p82 = scmp.ne.s32.totalorder %s70, %s71
    %p83 = scmp.eq.s32.totalorder %s19, 1
    %p84 = por %p82, %p83
    %p86 = scmp.ne.s32.totalorder %s71, %s85
    %p87 = scmp.eq.s32.totalorder %s19, 0
    %p88 = por %p86, %p87
    %s90 = sadd.s32 %s89, 1
    %p93 = scmp.eq.s32.totalorder %s13, 1
    %p94 = scmp.ne.s32.totalorder %s89, %s91
    %p95 = scmp.eq.s32.totalorder %s13, 0
    %p96 = por %p94, %p95
    %p97 = scmp.ne.s32.totalorder %s89, %s91
    %p98 = scmp.eq.s32.totalorder %s18, 1
    %p99 = por %p97, %p98
    %p100 = scmp.ne.s32.totalorder %s91, %s92
    %p101 = scmp.eq.s32.totalorder %s18, 0
    %p102 = por %p100, %p101
    %p103 = scmp.ne.s32.totalorder %s91, %s92
    %p104 = scmp.eq.s32.totalorder %s19, 1
    %p105 = por %p103, %p104
    %p107 = scmp.ne.s32.totalorder %s92, %s106
    %p108 = scmp.eq.s32.totalorder %s19, 0
    %p109 = por %p107, %p108
    %s110 = ssub.s32 %s13, %s20
    %p111 = scmp.eq.s32.totalorder %s110, 0
    %s113 = sadd.s32 %s112, 1
    %s114 = scalar_select %p111, %s112, %s113
    %p117 = pneg %p111
    %p118 = scmp.eq.s32.totalorder %s13, 1
    %p119 = por %p117, %p118
    %p120 = scmp.ne.s32.totalorder %s112, %s115
    %p121 = scmp.eq.s32.totalorder %s13, 0
    %p122 = por %p120, %p121
    %p123 = scmp.ne.s32.totalorder %s112, %s115
    %p124 = scmp.eq.s32.totalorder %s18, 1
    %p125 = por %p123, %p124
    %p126 = scmp.ne.s32.totalorder %s115, %s116
    %p127 = scmp.eq.s32.totalorder %s18, 0
    %p128 = por %p126, %p127
    %p129 = scmp.ne.s32.totalorder %s115, %s116
    %p130 = scmp.eq.s32.totalorder %s19, 1
    %p131 = por %p129, %p130
    %p133 = scmp.ne.s32.totalorder %s116, %s132
    %p134 = scmp.eq.s32.totalorder %s19, 0
    %p135 = por %p133, %p134
    %s136 = ssub.s32 %s13, %s20
    %p137 = scmp.eq.s32.totalorder %s136, 0
    %s139 = sadd.s32 %s138, 1
    %s140 = scalar_select %p137, %s138, %s139
    %p143 = pneg %p137
    %p144 = scmp.eq.s32.totalorder %s13, 1
    %p145 = por %p143, %p144
    %p146 = scmp.ne.s32.totalorder %s138, %s141
    %p147 = scmp.eq.s32.totalorder %s13, 0
    %p148 = por %p146, %p147
    %p149 = scmp.ne.s32.totalorder %s138, %s141
    %p150 = scmp.eq.s32.totalorder %s18, 1
    %p151 = por %p149, %p150
    %p152 = scmp.ne.s32.totalorder %s141, %s142
    %p153 = scmp.eq.s32.totalorder %s18, 0
    %p154 = por %p152, %p153
    %p155 = scmp.ne.s32.totalorder %s141, %s142
    %p156 = scmp.eq.s32.totalorder %s19, 1
    %p157 = por %p155, %p156
    %p159 = scmp.ne.s32.totalorder %s142, %s158
    %p160 = scmp.eq.s32.totalorder %s19, 0
    %p161 = por %p159, %p160
    %s162 = ssub.s32 %s13, %s20
    %p163 = scmp.eq.s32.totalorder %s162, 0
    %s165 = sadd.s32 %s164, 1
    %s166 = scalar_select %p163, %s164, %s165
    %p169 = pneg %p163
    %p170 = scmp.eq.s32.totalorder %s13, 1
    %p171 = por %p169, %p170
    %p172 = scmp.ne.s32.totalorder %s164, %s167
    %p173 = scmp.eq.s32.totalorder %s13, 0
    %p174 = por %p172, %p173
    %p175 = scmp.ne.s32.totalorder %s164, %s167
    %p176 = scmp.eq.s32.totalorder %s18, 1
    %p177 = por %p175, %p176
    %p178 = scmp.ne.s32.totalorder %s167, %s168
    %p179 = scmp.eq.s32.totalorder %s18, 0
    %p180 = por %p178, %p179
    %p181 = scmp.ne.s32.totalorder %s167, %s168
    %p182 = scmp.eq.s32.totalorder %s19, 1
    %p183 = por %p181, %p182
    %p185 = scmp.ne.s32.totalorder %s168, %s184
    %p186 = scmp.eq.s32.totalorder %s19, 0
    %p187 = por %p185, %p186
    %p188 = scmp.le.s32.totalorder 1, %s13
    %p189 = scmp.lt.s32.totalorder %s13, 3
    %p190 = pnand %p188, %p189
    %p191 = pneg %p190
    // Predicated region
    $region9: #{densenet_block.5} parent=5 // pred_check
      _
    $region10: #{densenet_block.5} parent=5 // pred_check_branch
      %193 = sbr.rel (%p190) target = $region12
    $region11: #{densenet_block.5} parent=5 // pred_region
      %s194 = ssub.s32 %s13, 1
      // Predicated region
      $region13: #{densenet_block.5} parent=11 // pred_check
        %p195 = pneg %p60
      $region14: #{densenet_block.5} parent=11 // pred_check_branch
        %197 = sbr.rel (%p195) target = $region16
      $region15: #{densenet_block.5} parent=11 // pred_region
        _
      $region16: #{densenet_block.5} parent=11 // pred_fallthru
        _
      // Predicated region
      $region17: #{densenet_block.5} parent=11 // pred_check
        %p198 = pneg %p81
      $region18: #{densenet_block.5} parent=11 // pred_check_branch
        %200 = sbr.rel (%p198) target = $region20
      $region19: #{densenet_block.5} parent=11 // pred_region
        _
      $region20: #{densenet_block.5} parent=11 // pred_fallthru
        _
      // Predicated region
      $region21: #{densenet_block.5} parent=11 // pred_check
        %p201 = pneg %p102
      $region22: #{densenet_block.5} parent=11 // pred_check_branch
        %203 = sbr.rel (%p201) target = $region24
      $region23: #{densenet_block.5} parent=11 // pred_region
        _
      $region24: #{densenet_block.5} parent=11 // pred_fallthru
        _
    $region12: #{densenet_block.5} parent=5 // pred_fallthru
      _
    %p204 = scmp.lt.s32.totalorder %s13, 2
    // Predicated region
    $region25: #{densenet_block.5} parent=5 // pred_check
      %p205 = pneg %p204
    $region26: #{densenet_block.5} parent=5 // pred_check_branch
      %207 = sbr.rel (%p205) target = $region28
    $region27: #{densenet_block.5} parent=5 // pred_region
      // Predicated region
      $region29: #{densenet_block.5} parent=27 // pred_check
        %p208 = pneg %p33
      $region30: #{densenet_block.5} parent=27 // pred_check_branch
        %210 = sbr.rel (%p208) target = $region32
      $region31: #{densenet_block.5} parent=27 // pred_region
        %p211 = scmp.lt.s32.totalorder %s13, 1
        %s212 = scalar_select %p211, %s13, 1
        %s213 = smul.addr %s212, 6
        %s214 = smul.addr %s213, 8
        %s215 = scalar_lea.vmem %s0, %s214
      $region32: #{densenet_block.5} parent=27 // pred_fallthru
        _
    $region28: #{densenet_block.5} parent=5 // pred_fallthru
      _
    %p216 = scmp.le.s32.totalorder 1, %s13
    %p217 = scmp.lt.s32.totalorder %s13, 3
    %p218 = pnand %p216, %p217
    %p219 = pneg %p218
    // Predicated region
    $region33: #{densenet_block.5} parent=5 // pred_check
      _
    $region34: #{densenet_block.5} parent=5 // pred_check_branch
      %221 = sbr.rel (%p218) target = $region36
    $region35: #{densenet_block.5} parent=5 // pred_region
      %s222 = ssub.s32 %s13, 1
      %p223 = scmp.lt.s32.totalorder %s18, 1
      %s224 = scalar_select %p223, %s18, 1
      %s225 = smul.addr %s224, 6
      %s226 = smul.addr %s225, 8
      %s227 = scalar_lea.vmem %s0, %s226
      %p228 = pneg %p39
      %p229 = pneg %p36
      %p230 = pneg %p60
      %p231 = pneg %p57
      %p232 = pneg %p81
      %p233 = pneg %p78
      %p234 = pneg %p102
      %p235 = pneg %p99
      %p236 = pneg %p128
      %p237 = pneg %p125
      %p238 = scmp.lt.s32.totalorder %s18, 1
      %s239 = scalar_select %p238, %s18, 1
      %s240 = smul.addr %s239, 2
      %s241 = smul.addr %s240, 8
      %s242 = scalar_lea.vmem %s4, %s241
      %p243 = pneg %p154
      %p244 = pneg %p151
      %p245 = scmp.lt.s32.totalorder %s18, 1
      %s246 = scalar_select %p245, %s18, 1
      %s247 = scalar_lea.vmem %s5, %s246
      %p248 = pneg %p180
      %p249 = pneg %p177
      %p250 = scmp.lt.s32.totalorder %s18, 1
      %s251 = scalar_select %p250, %s18, 1
      %s252 = scalar_lea.vmem %s6, %s251
      %p253 = scmp.lt.s32.totalorder %s18, 1
      %s254 = scalar_select %p253, %s18, 1
      %s255 = smul.addr %s254, 6
      %s256 = smul.addr %s255, 8
      %s257 = scalar_lea.vmem %s0, %s256
      %p258 = scmp.lt.s32.totalorder %s18, 1
      %s259 = scalar_select %p258, %s18, 1
      %s260 = smul.addr %s259, 2
      %s261 = smul.addr %s260, 8
      %s262 = scalar_lea.vmem %s4, %s261
      %p263 = scmp.lt.s32.totalorder %s18, 1
      %s264 = scalar_select %p263, %s18, 1
      %s265 = scalar_lea.vmem %s5, %s264
      %p266 = scmp.lt.s32.totalorder %s18, 1
      %s267 = scalar_select %p266, %s18, 1
      %s268 = scalar_lea.vmem %s6, %s267
      %v269 = vld [vmem:[%s257] sm:$0xff]
      %v270 = vld [vmem:[%s257 + $0x8] sm:$0xff]
      %v271 = vld [vmem:[%s257 + $0x10] sm:$0xff]
      %v272 = vld [vmem:[%s257 + $0x18] sm:$0xff]
      %v273 = vld [vmem:[%s257 + $0x20] sm:$0x3]
      %v274 = vld [vmem:[%s257 + $0x28] sm:$0x3]
      %v275 = vld [vmem:[%s1] sm:$0x3]
      %v277 = vperm.slane %v275, 0
      %v278 = vperm.slane %v275, 1
      %v281 = vmul.f32 %v269, %v277
      %v282 = vmul.f32 %v270, %v278
      %v283 = vmul.f32 %v271, %v277
      %v284 = vmul.f32 %v272, %v278
      %v285 = vmul.f32 %v273, %v277
      %v286 = vmul.f32 %v274, %v278
      %v287 = vld [vmem:[%s2] sm:$0x3]
      %v289 = vperm.slane %v287, 0
      %v290 = vperm.slane %v287, 1
      %v293 = vadd.f32 %v281, %v289
      %v294 = vadd.f32 %v282, %v290
      %v295 = vadd.f32 %v283, %v289
      %v296 = vadd.f32 %v284, %v290
      %v297 = vadd.f32 %v285, %v289
      %v298 = vadd.f32 %v286, %v290
      %v299 = vmax.f32 %v293, 0.0
      %v300 = vmax.f32 %v294, 0.0
      %v301 = vmax.f32 %v295, 0.0
      %v302 = vmax.f32 %v296, 0.0
      %v303 = vmax.f32 %v297, 0.0
      %v304 = vmax.f32 %v298, 0.0
      %v305 = vld [vmem:[%s3] sm:$0xff]
      %v306 = vld [vmem:[%s3 + $0x8] sm:$0xff]
      %v307 = vld [vmem:[%s3 + $0x10] sm:$0xff]
      %v308 = vld [vmem:[%s3 + $0x18] sm:$0xff]
      %v309 = vld [vmem:[%s3 + $0x20] sm:$0xff]
      %v310 = vld [vmem:[%s3 + $0x28] sm:$0xff]
      %v311 = vld [vmem:[%s3 + $0x30] sm:$0xff]
      %v312 = vld [vmem:[%s3 + $0x38] sm:$0xff]
      %v313 = vld [vmem:[%s3 + $0x40] sm:$0xff]
      %v314 = vld [vmem:[%s3 + $0x48] sm:$0xff]
      %v315 = vld [vmem:[%s3 + $0x50] sm:$0xff]
      %v316 = vld [vmem:[%s3 + $0x58] sm:$0xff]
      %v317 = vld [vmem:[%s3 + $0x60] sm:$0xff]
      %v318 = vld [vmem:[%s3 + $0x68] sm:$0xff]
      %v319 = vld [vmem:[%s3 + $0x70] sm:$0xff]
      %v320 = vld [vmem:[%s3 + $0x78] sm:$0xff]
      %v321 = vld [vmem:[%s3 + $0x80] sm:$0xff]
      %v322 = vld [vmem:[%s3 + $0x88] sm:$0xff]
      %v323 = vld [vmem:[%s3 + $0x90] sm:$0xff]
      %v324 = vld [vmem:[%s3 + $0x98] sm:$0xff]
      %v325 = vld [vmem:[%s3 + $0xa0] sm:$0xff]
      %v326 = vld [vmem:[%s3 + $0xa8] sm:$0xff]
      %v327 = vld [vmem:[%s3 + $0xb0] sm:$0xff]
      %v328 = vld [vmem:[%s3 + $0xb8] sm:$0xff]
      %s329 = scalar_lea.vmem %s3, 192
      %v330 = vld [vmem:[%s329] sm:$0xff]
      %v331 = vld [vmem:[%s329 + $0x8] sm:$0xff]
      %v332 = vld [vmem:[%s329 + $0x10] sm:$0xff]
      %v333 = vld [vmem:[%s329 + $0x18] sm:$0xff]
      %v334 = vld [vmem:[%s329 + $0x20] sm:$0xff]
      %v335 = vld [vmem:[%s329 + $0x28] sm:$0xff]
      %v336 = vld [vmem:[%s329 + $0x30] sm:$0xff]
      %v337 = vld [vmem:[%s329 + $0x38] sm:$0xff]
      %v338 = vld [vmem:[%s329 + $0x40] sm:$0xff]
      %v339 = vld [vmem:[%s329 + $0x48] sm:$0xff]
      %v340 = vld [vmem:[%s329 + $0x50] sm:$0xff]
      %v341 = vld [vmem:[%s329 + $0x58] sm:$0xff]
      %v342 = vld [vmem:[%s329 + $0x60] sm:$0xff]
      %v343 = vld [vmem:[%s329 + $0x68] sm:$0xff]
      %v344 = vld [vmem:[%s329 + $0x70] sm:$0xff]
      %v345 = vld [vmem:[%s329 + $0x78] sm:$0xff]
      %v346 = vld [vmem:[%s329 + $0x80] sm:$0xff]
      %v347 = vld [vmem:[%s329 + $0x88] sm:$0xff]
      %v348 = vld [vmem:[%s329 + $0x90] sm:$0xff]
      %v349 = vld [vmem:[%s329 + $0x98] sm:$0xff]
      %v350 = vld [vmem:[%s329 + $0xa0] sm:$0xff]
      %v351 = vld [vmem:[%s329 + $0xa8] sm:$0xff]
      %v352 = vld [vmem:[%s329 + $0xb0] sm:$0xff]
      %v353 = vld [vmem:[%s329 + $0xb8] sm:$0xff]
      %358 = vrot.lane.b32.xlu0 %v299, 116
      %v359 = vpop.permute.xlu0 %358
      %360 = vrot.lane.b32.xlu0 %v300, 116
      %v361 = vpop.permute.xlu0 %360
      %362 = vrot.lane.b32.xlu0 %v301, 116
      %v363 = vpop.permute.xlu0 %362
      %364 = vrot.lane.b32.xlu0 %v302, 116
      %v365 = vpop.permute.xlu0 %364
      %vm366 = vcmask 949248
      %v367 = vsel %vm366, %v359, %v361
      %v368 = vsel %vm366, %v363, %v365
      %vm371 = vcmask 523264
      %v372 = vsel %vm371, %v361, 0
      %v374 = vsel %vm371, %v365, 0
      %376 = vmatpush.msra.mxu0 %v345
      %377 = vmatpush.msra.mxu0 %v344
      %378 = vmatpush.msra.mxu0 %v343
      %379 = vmatpush.msra.mxu0 %v342
      %380 = vmatpush.msra.mxu0 %v341
      %381 = vmatpush.msra.mxu0 %v340
      %382 = vmatpush.msra.mxu0 %v339
      %383 = vmatpush.msra.mxu0 %v338
      %384 = vmatpush.msra.mxu0 %v337
      %385 = vmatpush.msra.mxu0 %v336
      %386 = vmatpush.msra.mxu0 %v335
      %387 = vmatpush.msra.mxu0 %v334
      %388 = vmatpush.msra.mxu0 %v333
      %389 = vmatpush.msra.mxu0 %v332
      %390 = vmatpush.msra.mxu0 %v331
      %391 = vmatpush.msra.mxu0 %v330
      %392 = vmatmul.f32.gmra.mxu0 %v367
      %v393 = vpop.f32.mrf.mxu0
      %v394 = vadd.f32 0.0, %v393
      %395 = vmatmul.f32.gmra.mxu0 %v368
      %v396 = vpop.f32.mrf.mxu0
      %v397 = vadd.f32 0.0, %v396
      %398 = vdwg.mxu0
      %399 = vmatpush.msra.mxu0 0.0
      %400 = vmatpush.msra.mxu0 0.0
      %401 = vmatpush.msra.mxu0 0.0
      %402 = vmatpush.msra.mxu0 0.0
      %403 = vmatpush.msra.mxu0 0.0
      %404 = vmatpush.msra.mxu0 0.0
      %405 = vmatpush.msra.mxu0 0.0
      %406 = vmatpush.msra.mxu0 0.0
      %407 = vmatpush.msra.mxu0 %v353
      %408 = vmatpush.msra.mxu0 %v352
      %409 = vmatpush.msra.mxu0 %v351
      %410 = vmatpush.msra.mxu0 %v350
      %411 = vmatpush.msra.mxu0 %v349
      %412 = vmatpush.msra.mxu0 %v348
      %413 = vmatpush.msra.mxu0 %v347
      %414 = vmatpush.msra.mxu0 %v346
      %415 = vmatmul.f32.gmra.mxu0 %v372
      %v416 = vpop.f32.mrf.mxu0
      %v417 = vadd.f32 %v394, %v416
      %418 = vmatmul.f32.gmra.mxu0 %v374
      %v419 = vpop.f32.mrf.mxu0
      %v420 = vadd.f32 %v397, %v419
      %421 = vdwg.mxu0
      %v422 = vsel %vm371, %v300, 0
      %v424 = vsel %vm371, %v302, 0
      %426 = vmatpush.msra.mxu0 %v320
      %427 = vmatpush.msra.mxu0 %v319
      %428 = vmatpush.msra.mxu0 %v318
      %429 = vmatpush.msra.mxu0 %v317
      %430 = vmatpush.msra.mxu0 %v316
      %431 = vmatpush.msra.mxu0 %v315
      %432 = vmatpush.msra.mxu0 %v314
      %433 = vmatpush.msra.mxu0 %v313
      %434 = vmatpush.msra.mxu0 %v312
      %435 = vmatpush.msra.mxu0 %v311
      %436 = vmatpush.msra.mxu0 %v310
      %437 = vmatpush.msra.mxu0 %v309
      %438 = vmatpush.msra.mxu0 %v308
      %439 = vmatpush.msra.mxu0 %v307
      %440 = vmatpush.msra.mxu0 %v306
      %441 = vmatpush.msra.mxu0 %v305
      %442 = vmatmul.f32.gmra.mxu0 %v299
      %v443 = vpop.f32.mrf.mxu0
      %v444 = vadd.f32 %v417, %v443
      %445 = vmatmul.f32.gmra.mxu0 %v301
      %v446 = vpop.f32.mrf.mxu0
      %v447 = vadd.f32 %v420, %v446
      %448 = vdwg.mxu0
      %449 = vmatpush.msra.mxu0 0.0
      %450 = vmatpush.msra.mxu0 0.0
      %451 = vmatpush.msra.mxu0 0.0
      %452 = vmatpush.msra.mxu0 0.0
      %453 = vmatpush.msra.mxu0 0.0
      %454 = vmatpush.msra.mxu0 0.0
      %455 = vmatpush.msra.mxu0 0.0
      %456 = vmatpush.msra.mxu0 0.0
      %457 = vmatpush.msra.mxu0 %v328
      %458 = vmatpush.msra.mxu0 %v327
      %459 = vmatpush.msra.mxu0 %v326
      %460 = vmatpush.msra.mxu0 %v325
      %461 = vmatpush.msra.mxu0 %v324
      %462 = vmatpush.msra.mxu0 %v323
      %463 = vmatpush.msra.mxu0 %v322
      %464 = vmatpush.msra.mxu0 %v321
      %465 = vmatmul.f32.gmra.mxu0 %v422
      %v466 = vpop.f32.mrf.mxu0
      %v467 = vadd.f32 %v444, %v466
      %468 = vmatmul.f32.gmra.mxu0 %v424
      %v469 = vpop.f32.mrf.mxu0
      %v470 = vadd.f32 %v447, %v469
      %471 = vdwg.mxu0
      %s472 = scalar_lea.vmem %s3, 384
      %v473 = vld [vmem:[%s472] sm:$0xff]
      %v474 = vld [vmem:[%s472 + $0x8] sm:$0xff]
      %v475 = vld [vmem:[%s472 + $0x10] sm:$0xff]
      %v476 = vld [vmem:[%s472 + $0x18] sm:$0xff]
      %v477 = vld [vmem:[%s472 + $0x20] sm:$0xff]
      %v478 = vld [vmem:[%s472 + $0x28] sm:$0xff]
      %v479 = vld [vmem:[%s472 + $0x30] sm:$0xff]
      %v480 = vld [vmem:[%s472 + $0x38] sm:$0xff]
      %v481 = vld [vmem:[%s472 + $0x40] sm:$0xff]
      %v482 = vld [vmem:[%s472 + $0x48] sm:$0xff]
      %v483 = vld [vmem:[%s472 + $0x50] sm:$0xff]
      %v484 = vld [vmem:[%s472 + $0x58] sm:$0xff]
      %v485 = vld [vmem:[%s472 + $0x60] sm:$0xff]
      %v486 = vld [vmem:[%s472 + $0x68] sm:$0xff]
      %v487 = vld [vmem:[%s472 + $0x70] sm:$0xff]
      %v488 = vld [vmem:[%s472 + $0x78] sm:$0xff]
      %v489 = vld [vmem:[%s472 + $0x80] sm:$0xff]
      %v490 = vld [vmem:[%s472 + $0x88] sm:$0xff]
      %v491 = vld [vmem:[%s472 + $0x90] sm:$0xff]
      %v492 = vld [vmem:[%s472 + $0x98] sm:$0xff]
      %v493 = vld [vmem:[%s472 + $0xa0] sm:$0xff]
      %v494 = vld [vmem:[%s472 + $0xa8] sm:$0xff]
      %v495 = vld [vmem:[%s472 + $0xb0] sm:$0xff]
      %v496 = vld [vmem:[%s472 + $0xb8] sm:$0xff]
      %497 = vrot.lane.b32.xlu0 %v299, 104
      %v498 = vpop.permute.xlu0 %497
      %499 = vrot.lane.b32.xlu0 %v300, 104
      %v500 = vpop.permute.xlu0 %499
      %501 = vrot.lane.b32.xlu0 %v301, 104
      %v502 = vpop.permute.xlu0 %501
      %503 = vrot.lane.b32.xlu0 %v302, 104
      %v504 = vpop.permute.xlu0 %503
      %vm505 = vcmask 850944
      %v506 = vsel %vm505, %v498, %v500
      %v507 = vsel %vm505, %v502, %v504
      %v510 = vsel %vm371, %v500, 0
      %v512 = vsel %vm371, %v504, 0
      %514 = vmatpush.msra.mxu0 %v488
      %515 = vmatpush.msra.mxu0 %v487
      %516 = vmatpush.msra.mxu0 %v486
      %517 = vmatpush.msra.mxu0 %v485
      %518 = vmatpush.msra.mxu0 %v484
      %519 = vmatpush.msra.mxu0 %v483
      %520 = vmatpush.msra.mxu0 %v482
      %521 = vmatpush.msra.mxu0 %v481
      %522 = vmatpush.msra.mxu0 %v480
      %523 = vmatpush.msra.mxu0 %v479
      %524 = vmatpush.msra.mxu0 %v478
      %525 = vmatpush.msra.mxu0 %v477
      %526 = vmatpush.msra.mxu0 %v476
      %527 = vmatpush.msra.mxu0 %v475
      %528 = vmatpush.msra.mxu0 %v474
      %529 = vmatpush.msra.mxu0 %v473
      %530 = vmatmul.f32.gmra.mxu0 %v506
      %v531 = vpop.f32.mrf.mxu0
      %v532 = vadd.f32 0.0, %v531
      %533 = vmatmul.f32.gmra.mxu0 %v507
      %v534 = vpop.f32.mrf.mxu0
      %v535 = vadd.f32 0.0, %v534
      %536 = vdwg.mxu0
      %537 = vmatpush.msra.mxu0 0.0
      %538 = vmatpush.msra.mxu0 0.0
      %539 = vmatpush.msra.mxu0 0.0
      %540 = vmatpush.msra.mxu0 0.0
      %541 = vmatpush.msra.mxu0 0.0
      %542 = vmatpush.msra.mxu0 0.0
      %543 = vmatpush.msra.mxu0 0.0
      %544 = vmatpush.msra.mxu0 0.0
      %545 = vmatpush.msra.mxu0 %v496
      %546 = vmatpush.msra.mxu0 %v495
      %547 = vmatpush.msra.mxu0 %v494
      %548 = vmatpush.msra.mxu0 %v493
      %549 = vmatpush.msra.mxu0 %v492
      %550 = vmatpush.msra.mxu0 %v491
      %551 = vmatpush.msra.mxu0 %v490
      %552 = vmatpush.msra.mxu0 %v489
      %553 = vmatmul.f32.gmra.mxu0 %v510
      %v554 = vpop.f32.mrf.mxu0
      %v555 = vadd.f32 %v532, %v554
      %556 = vmatmul.f32.gmra.mxu0 %v512
      %v557 = vpop.f32.mrf.mxu0
      %v558 = vadd.f32 %v535, %v557
      %559 = vdwg.mxu0
      %v560 = vadd.f32 %v467, %v555
      %v561 = vadd.f32 %v470, %v558
      %s562 = scalar_lea.vmem %s3, 576
      %v563 = vld [vmem:[%s562] sm:$0xff]
      %v564 = vld [vmem:[%s562 + $0x8] sm:$0xff]
      %v565 = vld [vmem:[%s562 + $0x10] sm:$0xff]
      %v566 = vld [vmem:[%s562 + $0x18] sm:$0xff]
      %v567 = vld [vmem:[%s562 + $0x20] sm:$0xff]
      %v568 = vld [vmem:[%s562 + $0x28] sm:$0xff]
      %v569 = vld [vmem:[%s562 + $0x30] sm:$0xff]
      %v570 = vld [vmem:[%s562 + $0x38] sm:$0xff]
      %v571 = vld [vmem:[%s562 + $0x40] sm:$0xff]
      %v572 = vld [vmem:[%s562 + $0x48] sm:$0xff]
      %v573 = vld [vmem:[%s562 + $0x50] sm:$0xff]
      %v574 = vld [vmem:[%s562 + $0x58] sm:$0xff]
      %v575 = vld [vmem:[%s562 + $0x60] sm:$0xff]
      %v576 = vld [vmem:[%s562 + $0x68] sm:$0xff]
      %v577 = vld [vmem:[%s562 + $0x70] sm:$0xff]
      %v578 = vld [vmem:[%s562 + $0x78] sm:$0xff]
      %v579 = vld [vmem:[%s562 + $0x80] sm:$0xff]
      %v580 = vld [vmem:[%s562 + $0x88] sm:$0xff]
      %v581 = vld [vmem:[%s562 + $0x90] sm:$0xff]
      %v582 = vld [vmem:[%s562 + $0x98] sm:$0xff]
      %v583 = vld [vmem:[%s562 + $0xa0] sm:$0xff]
      %v584 = vld [vmem:[%s562 + $0xa8] sm:$0xff]
      %v585 = vld [vmem:[%s562 + $0xb0] sm:$0xff]
      %v586 = vld [vmem:[%s562 + $0xb8] sm:$0xff]
      %vm589 = vcmask 1046528
      %v590 = vrot.slane %v299, 1
      %v591 = vrot.slane %v301, 1
      %v592 = vsel %vm589, %v590, %v591
      %v593 = vrot.slane %v300, 1
      %v594 = vrot.slane %v302, 1
      %v595 = vsel %vm589, %v593, %v594
      %v596 = vrot.slane %v303, 1
      %v597 = vsel %vm589, %v591, %v596
      %v598 = vrot.slane %v304, 1
      %v599 = vsel %vm589, %v594, %v598
      %v602 = vsel %vm371, %v595, 0
      %v604 = vsel %vm371, %v599, 0
      %606 = vmatpush.msra.mxu0 %v578
      %607 = vmatpush.msra.mxu0 %v577
      %608 = vmatpush.msra.mxu0 %v576
      %609 = vmatpush.msra.mxu0 %v575
      %610 = vmatpush.msra.mxu0 %v574
      %611 = vmatpush.msra.mxu0 %v573
      %612 = vmatpush.msra.mxu0 %v572
      %613 = vmatpush.msra.mxu0 %v571
      %614 = vmatpush.msra.mxu0 %v570
      %615 = vmatpush.msra.mxu0 %v569
      %616 = vmatpush.msra.mxu0 %v568
      %617 = vmatpush.msra.mxu0 %v567
      %618 = vmatpush.msra.mxu0 %v566
      %619 = vmatpush.msra.mxu0 %v565
      %620 = vmatpush.msra.mxu0 %v564
      %621 = vmatpush.msra.mxu0 %v563
      %622 = vmatmul.f32.gmra.mxu0 %v592
      %v623 = vpop.f32.mrf.mxu0
      %v624 = vadd.f32 0.0, %v623
      %625 = vmatmul.f32.gmra.mxu0 %v597
      %v626 = vpop.f32.mrf.mxu0
      %v627 = vadd.f32 0.0, %v626
      %628 = vdwg.mxu0
      %629 = vmatpush.msra.mxu0 0.0
      %630 = vmatpush.msra.mxu0 0.0
      %631 = vmatpush.msra.mxu0 0.0
      %632 = vmatpush.msra.mxu0 0.0
      %633 = vmatpush.msra.mxu0 0.0
      %634 = vmatpush.msra.mxu0 0.0
      %635 = vmatpush.msra.mxu0 0.0
      %636 = vmatpush.msra.mxu0 0.0
      %637 = vmatpush.msra.mxu0 %v586
      %638 = vmatpush.msra.mxu0 %v585
      %639 = vmatpush.msra.mxu0 %v584
      %640 = vmatpush.msra.mxu0 %v583
      %641 = vmatpush.msra.mxu0 %v582
      %642 = vmatpush.msra.mxu0 %v581
      %643 = vmatpush.msra.mxu0 %v580
      %644 = vmatpush.msra.mxu0 %v579
      %645 = vmatmul.f32.gmra.mxu0 %v602
      %v646 = vpop.f32.mrf.mxu0
      %v647 = vadd.f32 %v624, %v646
      %648 = vmatmul.f32.gmra.mxu0 %v604
      %v649 = vpop.f32.mrf.mxu0
      %v650 = vadd.f32 %v627, %v649
      %651 = vdwg.mxu0
      %v652 = vadd.f32 %v560, %v647
      %v653 = vadd.f32 %v561, %v650
      %s654 = scalar_lea.vmem %s3, 768
      %v655 = vld [vmem:[%s654] sm:$0xff]
      %v656 = vld [vmem:[%s654 + $0x8] sm:$0xff]
      %v657 = vld [vmem:[%s654 + $0x10] sm:$0xff]
      %v658 = vld [vmem:[%s654 + $0x18] sm:$0xff]
      %v659 = vld [vmem:[%s654 + $0x20] sm:$0xff]
      %v660 = vld [vmem:[%s654 + $0x28] sm:$0xff]
      %v661 = vld [vmem:[%s654 + $0x30] sm:$0xff]
      %v662 = vld [vmem:[%s654 + $0x38] sm:$0xff]
      %v663 = vld [vmem:[%s654 + $0x40] sm:$0xff]
      %v664 = vld [vmem:[%s654 + $0x48] sm:$0xff]
      %v665 = vld [vmem:[%s654 + $0x50] sm:$0xff]
      %v666 = vld [vmem:[%s654 + $0x58] sm:$0xff]
      %v667 = vld [vmem:[%s654 + $0x60] sm:$0xff]
      %v668 = vld [vmem:[%s654 + $0x68] sm:$0xff]
      %v669 = vld [vmem:[%s654 + $0x70] sm:$0xff]
      %v670 = vld [vmem:[%s654 + $0x78] sm:$0xff]
      %v671 = vld [vmem:[%s654 + $0x80] sm:$0xff]
      %v672 = vld [vmem:[%s654 + $0x88] sm:$0xff]
      %v673 = vld [vmem:[%s654 + $0x90] sm:$0xff]
      %v674 = vld [vmem:[%s654 + $0x98] sm:$0xff]
      %v675 = vld [vmem:[%s654 + $0xa0] sm:$0xff]
      %v676 = vld [vmem:[%s654 + $0xa8] sm:$0xff]
      %v677 = vld [vmem:[%s654 + $0xb0] sm:$0xff]
      %v678 = vld [vmem:[%s654 + $0xb8] sm:$0xff]
      %679 = vrot.lane.b32.xlu0 %v592, 116
      %v680 = vpop.permute.xlu0 %679
      %681 = vrot.lane.b32.xlu0 %v595, 116
      %v682 = vpop.permute.xlu0 %681
      %683 = vrot.lane.b32.xlu0 %v597, 116
      %v684 = vpop.permute.xlu0 %683
      %685 = vrot.lane.b32.xlu0 %v599, 116
      %v686 = vpop.permute.xlu0 %685
      %v687 = vsel %vm366, %v680, %v682
      %v688 = vsel %vm366, %v684, %v686
      %v691 = vsel %vm371, %v682, 0
      %v693 = vsel %vm371, %v686, 0
      %695 = vmatpush.msra.mxu0 %v670
      %696 = vmatpush.msra.mxu0 %v669
      %697 = vmatpush.msra.mxu0 %v668
      %698 = vmatpush.msra.mxu0 %v667
      %699 = vmatpush.msra.mxu0 %v666
      %700 = vmatpush.msra.mxu0 %v665
      %701 = vmatpush.msra.mxu0 %v664
      %702 = vmatpush.msra.mxu0 %v663
      %703 = vmatpush.msra.mxu0 %v662
      %704 = vmatpush.msra.mxu0 %v661
      %705 = vmatpush.msra.mxu0 %v660
      %706 = vmatpush.msra.mxu0 %v659
      %707 = vmatpush.msra.mxu0 %v658
      %708 = vmatpush.msra.mxu0 %v657
      %709 = vmatpush.msra.mxu0 %v656
      %710 = vmatpush.msra.mxu0 %v655
      %711 = vmatmul.f32.gmra.mxu0 %v687
      %v712 = vpop.f32.mrf.mxu0
      %v713 = vadd.f32 0.0, %v712
      %714 = vmatmul.f32.gmra.mxu0 %v688
      %v715 = vpop.f32.mrf.mxu0
      %v716 = vadd.f32 0.0, %v715
      %717 = vdwg.mxu0
      %718 = vmatpush.msra.mxu0 0.0
      %719 = vmatpush.msra.mxu0 0.0
      %720 = vmatpush.msra.mxu0 0.0
      %721 = vmatpush.msra.mxu0 0.0
      %722 = vmatpush.msra.mxu0 0.0
      %723 = vmatpush.msra.mxu0 0.0
      %724 = vmatpush.msra.mxu0 0.0
      %725 = vmatpush.msra.mxu0 0.0
      %726 = vmatpush.msra.mxu0 %v678
      %727 = vmatpush.msra.mxu0 %v677
      %728 = vmatpush.msra.mxu0 %v676
      %729 = vmatpush.msra.mxu0 %v675
      %730 = vmatpush.msra.mxu0 %v674
      %731 = vmatpush.msra.mxu0 %v673
      %732 = vmatpush.msra.mxu0 %v672
      %733 = vmatpush.msra.mxu0 %v671
      %734 = vmatmul.f32.gmra.mxu0 %v691
      %v735 = vpop.f32.mrf.mxu0
      %v736 = vadd.f32 %v713, %v735
      %737 = vmatmul.f32.gmra.mxu0 %v693
      %v738 = vpop.f32.mrf.mxu0
      %v739 = vadd.f32 %v716, %v738
      %740 = vdwg.mxu0
      %v741 = vadd.f32 %v652, %v736
      %v742 = vadd.f32 %v653, %v739
      %s743 = scalar_lea.vmem %s3, 960
      %v744 = vld [vmem:[%s743] sm:$0xff]
      %v745 = vld [vmem:[%s743 + $0x8] sm:$0xff]
      %v746 = vld [vmem:[%s743 + $0x10] sm:$0xff]
      %v747 = vld [vmem:[%s743 + $0x18] sm:$0xff]
      %v748 = vld [vmem:[%s743 + $0x20] sm:$0xff]
      %v749 = vld [vmem:[%s743 + $0x28] sm:$0xff]
      %v750 = vld [vmem:[%s743 + $0x30] sm:$0xff]
      %v751 = vld [vmem:[%s743 + $0x38] sm:$0xff]
      %v752 = vld [vmem:[%s743 + $0x40] sm:$0xff]
      %v753 = vld [vmem:[%s743 + $0x48] sm:$0xff]
      %v754 = vld [vmem:[%s743 + $0x50] sm:$0xff]
      %v755 = vld [vmem:[%s743 + $0x58] sm:$0xff]
      %v756 = vld [vmem:[%s743 + $0x60] sm:$0xff]
      %v757 = vld [vmem:[%s743 + $0x68] sm:$0xff]
      %v758 = vld [vmem:[%s743 + $0x70] sm:$0xff]
      %v759 = vld [vmem:[%s743 + $0x78] sm:$0xff]
      %v760 = vld [vmem:[%s743 + $0x80] sm:$0xff]
      %v761 = vld [vmem:[%s743 + $0x88] sm:$0xff]
      %v762 = vld [vmem:[%s743 + $0x90] sm:$0xff]
      %v763 = vld [vmem:[%s743 + $0x98] sm:$0xff]
      %v764 = vld [vmem:[%s743 + $0xa0] sm:$0xff]
      %v765 = vld [vmem:[%s743 + $0xa8] sm:$0xff]
      %v766 = vld [vmem:[%s743 + $0xb0] sm:$0xff]
      %v767 = vld [vmem:[%s743 + $0xb8] sm:$0xff]
      %768 = vrot.lane.b32.xlu0 %v592, 104
      %v769 = vpop.permute.xlu0 %768
      %770 = vrot.lane.b32.xlu0 %v595, 104
      %v771 = vpop.permute.xlu0 %770
      %772 = vrot.lane.b32.xlu0 %v597, 104
      %v773 = vpop.permute.xlu0 %772
      %774 = vrot.lane.b32.xlu0 %v599, 104
      %v775 = vpop.permute.xlu0 %774
      %v776 = vsel %vm505, %v769, %v771
      %v777 = vsel %vm505, %v773, %v775
      %v780 = vsel %vm371, %v771, 0
      %v782 = vsel %vm371, %v775, 0
      %784 = vmatpush.msra.mxu0 %v759
      %785 = vmatpush.msra.mxu0 %v758
      %786 = vmatpush.msra.mxu0 %v757
      %787 = vmatpush.msra.mxu0 %v756
      %788 = vmatpush.msra.mxu0 %v755
      %789 = vmatpush.msra.mxu0 %v754
      %790 = vmatpush.msra.mxu0 %v753
      %791 = vmatpush.msra.mxu0 %v752
      %792 = vmatpush.msra.mxu0 %v751
      %793 = vmatpush.msra.mxu0 %v750
      %794 = vmatpush.msra.mxu0 %v749
      %795 = vmatpush.msra.mxu0 %v748
      %796 = vmatpush.msra.mxu0 %v747
      %797 = vmatpush.msra.mxu0 %v746
      %798 = vmatpush.msra.mxu0 %v745
      %799 = vmatpush.msra.mxu0 %v744
      %800 = vmatmul.f32.gmra.mxu0 %v776
      %v801 = vpop.f32.mrf.mxu0
      %v802 = vadd.f32 0.0, %v801
      %803 = vmatmul.f32.gmra.mxu0 %v777
      %v804 = vpop.f32.mrf.mxu0
      %v805 = vadd.f32 0.0, %v804
      %806 = vdwg.mxu0
      %807 = vmatpush.msra.mxu0 0.0
      %808 = vmatpush.msra.mxu0 0.0
      %809 = vmatpush.msra.mxu0 0.0
      %810 = vmatpush.msra.mxu0 0.0
      %811 = vmatpush.msra.mxu0 0.0
      %812 = vmatpush.msra.mxu0 0.0
      %813 = vmatpush.msra.mxu0 0.0
      %814 = vmatpush.msra.mxu0 0.0
      %815 = vmatpush.msra.mxu0 %v767
      %816 = vmatpush.msra.mxu0 %v766
      %817 = vmatpush.msra.mxu0 %v765
      %818 = vmatpush.msra.mxu0 %v764
      %819 = vmatpush.msra.mxu0 %v763
      %820 = vmatpush.msra.mxu0 %v762
      %821 = vmatpush.msra.mxu0 %v761
      %822 = vmatpush.msra.mxu0 %v760
      %823 = vmatmul.f32.gmra.mxu0 %v780
      %v824 = vpop.f32.mrf.mxu0
      %v825 = vadd.f32 %v802, %v824
      %826 = vmatmul.f32.gmra.mxu0 %v782
      %v827 = vpop.f32.mrf.mxu0
      %v828 = vadd.f32 %v805, %v827
      %829 = vdwg.mxu0
      %v830 = vadd.f32 %v741, %v825
      %v831 = vadd.f32 %v742, %v828
      %s832 = scalar_lea.vmem %s3, 1152
      %v833 = vld [vmem:[%s832] sm:$0xff]
      %v834 = vld [vmem:[%s832 + $0x8] sm:$0xff]
      %v835 = vld [vmem:[%s832 + $0x10] sm:$0xff]
      %v836 = vld [vmem:[%s832 + $0x18] sm:$0xff]
      %v837 = vld [vmem:[%s832 + $0x20] sm:$0xff]
      %v838 = vld [vmem:[%s832 + $0x28] sm:$0xff]
      %v839 = vld [vmem:[%s832 + $0x30] sm:$0xff]
      %v840 = vld [vmem:[%s832 + $0x38] sm:$0xff]
      %v841 = vld [vmem:[%s832 + $0x40] sm:$0xff]
      %v842 = vld [vmem:[%s832 + $0x48] sm:$0xff]
      %v843 = vld [vmem:[%s832 + $0x50] sm:$0xff]
      %v844 = vld [vmem:[%s832 + $0x58] sm:$0xff]
      %v845 = vld [vmem:[%s832 + $0x60] sm:$0xff]
      %v846 = vld [vmem:[%s832 + $0x68] sm:$0xff]
      %v847 = vld [vmem:[%s832 + $0x70] sm:$0xff]
      %v848 = vld [vmem:[%s832 + $0x78] sm:$0xff]
      %v849 = vld [vmem:[%s832 + $0x80] sm:$0xff]
      %v850 = vld [vmem:[%s832 + $0x88] sm:$0xff]
      %v851 = vld [vmem:[%s832 + $0x90] sm:$0xff]
      %v852 = vld [vmem:[%s832 + $0x98] sm:$0xff]
      %v853 = vld [vmem:[%s832 + $0xa0] sm:$0xff]
      %v854 = vld [vmem:[%s832 + $0xa8] sm:$0xff]
      %v855 = vld [vmem:[%s832 + $0xb0] sm:$0xff]
      %v856 = vld [vmem:[%s832 + $0xb8] sm:$0xff]
      %vm857 = vcmask 1045504
      %v858 = vrot.slane %v299, 2
      %v859 = vrot.slane %v301, 2
      %v860 = vsel %vm857, %v858, %v859
      %v861 = vrot.slane %v300, 2
      %v862 = vrot.slane %v302, 2
      %v863 = vsel %vm857, %v861, %v862
      %v864 = vrot.slane %v303, 2
      %v865 = vsel %vm857, %v859, %v864
      %v866 = vrot.slane %v304, 2
      %v867 = vsel %vm857, %v862, %v866
      %v870 = vsel %vm371, %v863, 0
      %v872 = vsel %vm371, %v867, 0
      %874 = vmatpush.msra.mxu0 %v848
      %875 = vmatpush.msra.mxu0 %v847
      %876 = vmatpush.msra.mxu0 %v846
      %877 = vmatpush.msra.mxu0 %v845
      %878 = vmatpush.msra.mxu0 %v844
      %879 = vmatpush.msra.mxu0 %v843
      %880 = vmatpush.msra.mxu0 %v842
      %881 = vmatpush.msra.mxu0 %v841
      %882 = vmatpush.msra.mxu0 %v840
      %883 = vmatpush.msra.mxu0 %v839
      %884 = vmatpush.msra.mxu0 %v838
      %885 = vmatpush.msra.mxu0 %v837
      %886 = vmatpush.msra.mxu0 %v836
      %887 = vmatpush.msra.mxu0 %v835
      %888 = vmatpush.msra.mxu0 %v834
      %889 = vmatpush.msra.mxu0 %v833
      %890 = vmatmul.f32.gmra.mxu0 %v860
      %v891 = vpop.f32.mrf.mxu0
      %v892 = vadd.f32 0.0, %v891
      %893 = vmatmul.f32.gmra.mxu0 %v865
      %v894 = vpop.f32.mrf.mxu0
      %v895 = vadd.f32 0.0, %v894
      %896 = vdwg.mxu0
      %897 = vmatpush.msra.mxu0 0.0
      %898 = vmatpush.msra.mxu0 0.0
      %899 = vmatpush.msra.mxu0 0.0
      %900 = vmatpush.msra.mxu0 0.0
      %901 = vmatpush.msra.mxu0 0.0
      %902 = vmatpush.msra.mxu0 0.0
      %903 = vmatpush.msra.mxu0 0.0
      %904 = vmatpush.msra.mxu0 0.0
      %905 = vmatpush.msra.mxu0 %v856
      %906 = vmatpush.msra.mxu0 %v855
      %907 = vmatpush.msra.mxu0 %v854
      %908 = vmatpush.msra.mxu0 %v853
      %909 = vmatpush.msra.mxu0 %v852
      %910 = vmatpush.msra.mxu0 %v851
      %911 = vmatpush.msra.mxu0 %v850
      %912 = vmatpush.msra.mxu0 %v849
      %913 = vmatmul.f32.gmra.mxu0 %v870
      %v914 = vpop.f32.mrf.mxu0
      %v915 = vadd.f32 %v892, %v914
      %916 = vmatmul.f32.gmra.mxu0 %v872
      %v917 = vpop.f32.mrf.mxu0
      %v918 = vadd.f32 %v895, %v917
      %919 = vdwg.mxu0
      %v920 = vadd.f32 %v830, %v915
      %v921 = vadd.f32 %v831, %v918
      %s922 = scalar_lea.vmem %s3, 1344
      %v923 = vld [vmem:[%s922] sm:$0xff]
      %v924 = vld [vmem:[%s922 + $0x8] sm:$0xff]
      %v925 = vld [vmem:[%s922 + $0x10] sm:$0xff]
      %v926 = vld [vmem:[%s922 + $0x18] sm:$0xff]
      %v927 = vld [vmem:[%s922 + $0x20] sm:$0xff]
      %v928 = vld [vmem:[%s922 + $0x28] sm:$0xff]
      %v929 = vld [vmem:[%s922 + $0x30] sm:$0xff]
      %v930 = vld [vmem:[%s922 + $0x38] sm:$0xff]
      %v931 = vld [vmem:[%s922 + $0x40] sm:$0xff]
      %v932 = vld [vmem:[%s922 + $0x48] sm:$0xff]
      %v933 = vld [vmem:[%s922 + $0x50] sm:$0xff]
      %v934 = vld [vmem:[%s922 + $0x58] sm:$0xff]
      %v935 = vld [vmem:[%s922 + $0x60] sm:$0xff]
      %v936 = vld [vmem:[%s922 + $0x68] sm:$0xff]
      %v937 = vld [vmem:[%s922 + $0x70] sm:$0xff]
      %v938 = vld [vmem:[%s922 + $0x78] sm:$0xff]
      %v939 = vld [vmem:[%s922 + $0x80] sm:$0xff]
      %v940 = vld [vmem:[%s922 + $0x88] sm:$0xff]
      %v941 = vld [vmem:[%s922 + $0x90] sm:$0xff]
      %v942 = vld [vmem:[%s922 + $0x98] sm:$0xff]
      %v943 = vld [vmem:[%s922 + $0xa0] sm:$0xff]
      %v944 = vld [vmem:[%s922 + $0xa8] sm:$0xff]
      %v945 = vld [vmem:[%s922 + $0xb0] sm:$0xff]
      %v946 = vld [vmem:[%s922 + $0xb8] sm:$0xff]
      %947 = vrot.lane.b32.xlu0 %v860, 116
      %v948 = vpop.permute.xlu0 %947
      %949 = vrot.lane.b32.xlu0 %v863, 116
      %v950 = vpop.permute.xlu0 %949
      %951 = vrot.lane.b32.xlu0 %v865, 116
      %v952 = vpop.permute.xlu0 %951
      %953 = vrot.lane.b32.xlu0 %v867, 116
      %v954 = vpop.permute.xlu0 %953
      %v955 = vsel %vm366, %v948, %v950
      %v956 = vsel %vm366, %v952, %v954
      %v959 = vsel %vm371, %v950, 0
      %v961 = vsel %vm371, %v954, 0
      %963 = vmatpush.msra.mxu0 %v938
      %964 = vmatpush.msra.mxu0 %v937
      %965 = vmatpush.msra.mxu0 %v936
      %966 = vmatpush.msra.mxu0 %v935
      %967 = vmatpush.msra.mxu0 %v934
      %968 = vmatpush.msra.mxu0 %v933
      %969 = vmatpush.msra.mxu0 %v932
      %970 = vmatpush.msra.mxu0 %v931
      %971 = vmatpush.msra.mxu0 %v930
      %972 = vmatpush.msra.mxu0 %v929
      %973 = vmatpush.msra.mxu0 %v928
      %974 = vmatpush.msra.mxu0 %v927
      %975 = vmatpush.msra.mxu0 %v926
      %976 = vmatpush.msra.mxu0 %v925
      %977 = vmatpush.msra.mxu0 %v924
      %978 = vmatpush.msra.mxu0 %v923
      %979 = vmatmul.f32.gmra.mxu0 %v955
      %v980 = vpop.f32.mrf.mxu0
      %v981 = vadd.f32 0.0, %v980
      %982 = vmatmul.f32.gmra.mxu0 %v956
      %v983 = vpop.f32.mrf.mxu0
      %v984 = vadd.f32 0.0, %v983
      %985 = vdwg.mxu0
      %986 = vmatpush.msra.mxu0 0.0
      %987 = vmatpush.msra.mxu0 0.0
      %988 = vmatpush.msra.mxu0 0.0
      %989 = vmatpush.msra.mxu0 0.0
      %990 = vmatpush.msra.mxu0 0.0
      %991 = vmatpush.msra.mxu0 0.0
      %992 = vmatpush.msra.mxu0 0.0
      %993 = vmatpush.msra.mxu0 0.0
      %994 = vmatpush.msra.mxu0 %v946
      %995 = vmatpush.msra.mxu0 %v945
      %996 = vmatpush.msra.mxu0 %v944
      %997 = vmatpush.msra.mxu0 %v943
      %998 = vmatpush.msra.mxu0 %v942
      %999 = vmatpush.msra.mxu0 %v941
      %1000 = vmatpush.msra.mxu0 %v940
      %1001 = vmatpush.msra.mxu0 %v939
      %1002 = vmatmul.f32.gmra.mxu0 %v959
      %v1003 = vpop.f32.mrf.mxu0
      %v1004 = vadd.f32 %v981, %v1003
      %1005 = vmatmul.f32.gmra.mxu0 %v961
      %v1006 = vpop.f32.mrf.mxu0
      %v1007 = vadd.f32 %v984, %v1006
      %1008 = vdwg.mxu0
      %v1009 = vadd.f32 %v920, %v1004
      %v1010 = vadd.f32 %v921, %v1007
      %s1011 = scalar_lea.vmem %s3, 1536
      %v1012 = vld [vmem:[%s1011] sm:$0xff]
      %v1013 = vld [vmem:[%s1011 + $0x8] sm:$0xff]
      %v1014 = vld [vmem:[%s1011 + $0x10] sm:$0xff]
      %v1015 = vld [vmem:[%s1011 + $0x18] sm:$0xff]
      %v1016 = vld [vmem:[%s1011 + $0x20] sm:$0xff]
      %v1017 = vld [vmem:[%s1011 + $0x28] sm:$0xff]
      %v1018 = vld [vmem:[%s1011 + $0x30] sm:$0xff]
      %v1019 = vld [vmem:[%s1011 + $0x38] sm:$0xff]
      %v1020 = vld [vmem:[%s1011 + $0x40] sm:$0xff]
      %v1021 = vld [vmem:[%s1011 + $0x48] sm:$0xff]
      %v1022 = vld [vmem:[%s1011 + $0x50] sm:$0xff]
      %v1023 = vld [vmem:[%s1011 + $0x58] sm:$0xff]
      %v1024 = vld [vmem:[%s1011 + $0x60] sm:$0xff]
      %v1025 = vld [vmem:[%s1011 + $0x68] sm:$0xff]
      %v1026 = vld [vmem:[%s1011 + $0x70] sm:$0xff]
      %v1027 = vld [vmem:[%s1011 + $0x78] sm:$0xff]
      %v1028 = vld [vmem:[%s1011 + $0x80] sm:$0xff]
      %v1029 = vld [vmem:[%s1011 + $0x88] sm:$0xff]
      %v1030 = vld [vmem:[%s1011 + $0x90] sm:$0xff]
      %v1031 = vld [vmem:[%s1011 + $0x98] sm:$0xff]
      %v1032 = vld [vmem:[%s1011 + $0xa0] sm:$0xff]
      %v1033 = vld [vmem:[%s1011 + $0xa8] sm:$0xff]
      %v1034 = vld [vmem:[%s1011 + $0xb0] sm:$0xff]
      %v1035 = vld [vmem:[%s1011 + $0xb8] sm:$0xff]
      %1036 = vrot.lane.b32.xlu0 %v860, 104
      %v1037 = vpop.permute.xlu0 %1036
      %1038 = vrot.lane.b32.xlu0 %v863, 104
      %v1039 = vpop.permute.xlu0 %1038
      %1040 = vrot.lane.b32.xlu0 %v865, 104
      %v1041 = vpop.permute.xlu0 %1040
      %1042 = vrot.lane.b32.xlu0 %v867, 104
      %v1043 = vpop.permute.xlu0 %1042
      %v1044 = vsel %vm505, %v1037, %v1039
      %v1045 = vsel %vm505, %v1041, %v1043
      %v1048 = vsel %vm371, %v1039, 0
      %v1050 = vsel %vm371, %v1043, 0
      %1052 = vmatpush.msra.mxu0 %v1027
      %1053 = vmatpush.msra.mxu0 %v1026
      %1054 = vmatpush.msra.mxu0 %v1025
      %1055 = vmatpush.msra.mxu0 %v1024
      %1056 = vmatpush.msra.mxu0 %v1023
      %1057 = vmatpush.msra.mxu0 %v1022
      %1058 = vmatpush.msra.mxu0 %v1021
      %1059 = vmatpush.msra.mxu0 %v1020
      %1060 = vmatpush.msra.mxu0 %v1019
      %1061 = vmatpush.msra.mxu0 %v1018
      %1062 = vmatpush.msra.mxu0 %v1017
      %1063 = vmatpush.msra.mxu0 %v1016
      %1064 = vmatpush.msra.mxu0 %v1015
      %1065 = vmatpush.msra.mxu0 %v1014
      %1066 = vmatpush.msra.mxu0 %v1013
      %1067 = vmatpush.msra.mxu0 %v1012
      %1068 = vmatmul.f32.gmra.mxu0 %v1044
      %v1069 = vpop.f32.mrf.mxu0
      %v1070 = vadd.f32 0.0, %v1069
      %1071 = vmatmul.f32.gmra.mxu0 %v1045
      %v1072 = vpop.f32.mrf.mxu0
      %v1073 = vadd.f32 0.0, %v1072
      %1074 = vdwg.mxu0
      %1075 = vmatpush.msra.mxu0 0.0
      %1076 = vmatpush.msra.mxu0 0.0
      %1077 = vmatpush.msra.mxu0 0.0
      %1078 = vmatpush.msra.mxu0 0.0
      %1079 = vmatpush.msra.mxu0 0.0
      %1080 = vmatpush.msra.mxu0 0.0
      %1081 = vmatpush.msra.mxu0 0.0
      %1082 = vmatpush.msra.mxu0 0.0
      %1083 = vmatpush.msra.mxu0 %v1035
      %1084 = vmatpush.msra.mxu0 %v1034
      %1085 = vmatpush.msra.mxu0 %v1033
      %1086 = vmatpush.msra.mxu0 %v1032
      %1087 = vmatpush.msra.mxu0 %v1031
      %1088 = vmatpush.msra.mxu0 %v1030
      %1089 = vmatpush.msra.mxu0 %v1029
      %1090 = vmatpush.msra.mxu0 %v1028
      %1091 = vmatmul.f32.gmra.mxu0 %v1048
      %v1092 = vpop.f32.mrf.mxu0
      %v1093 = vadd.f32 %v1070, %v1092
      %1094 = vmatmul.f32.gmra.mxu0 %v1050
      %v1095 = vpop.f32.mrf.mxu0
      %v1096 = vadd.f32 %v1073, %v1095
      %1097 = vdwg.mxu0
      %v1098 = vadd.f32 %v1009, %v1093
      %v1099 = vadd.f32 %v1010, %v1096
      %1100 = vst [vmem:[%s262] sm:$0xff] %v1098
      %1101 = vst [vmem:[%s262 + $0x8] sm:$0xff] %v1099
      %v1102 = vadd.f32 %v1098, %v1099
      %v1103 = vrot.slane %v1102, 4
      %v1104 = vadd.f32 %v1102, %v1103
      %v1105 = vrot.slane %v1104, 2
      %v1106 = vadd.f32 %v1104, %v1105
      %v1107 = vrot.slane %v1106, 1
      %v1108 = vadd.f32 %v1106, %v1107
      %1109 = vst [vmem:[%s265] sm:$0x1] %v1108
      %v1110 = vmul.f32 %v1098, %v1098
      %v1111 = vmul.f32 %v1099, %v1099
      %v1112 = vadd.f32 %v1110, %v1111
      %v1113 = vrot.slane %v1112, 4
      %v1114 = vadd.f32 %v1112, %v1113
      %v1115 = vrot.slane %v1114, 2
      %v1116 = vadd.f32 %v1114, %v1115
      %v1117 = vrot.slane %v1116, 1
      %v1118 = vadd.f32 %v1116, %v1117
      %1119 = vst [vmem:[%s268] sm:$0x1] %v1118
      %p1120 = scmp.lt.s32.totalorder %s18, 1
      %s1121 = scalar_select %p1120, %s18, 1
      %s1122 = smul.addr %s1121, 2
      %s1123 = smul.addr %s1122, 8
      %s1124 = scalar_lea.vmem %s4, %s1123
      %p1125 = scmp.lt.s32.totalorder %s18, 1
      %s1126 = scalar_select %p1125, %s18, 1
      %s1127 = scalar_lea.vmem %s5, %s1126
      %p1128 = scmp.lt.s32.totalorder %s18, 1
      %s1129 = scalar_select %p1128, %s18, 1
      %s1130 = scalar_lea.vmem %s6, %s1129
      // Predicated region
      $region37: #{densenet_block.5} parent=35 // pred_check
        %p1131 = pneg %p125
      $region38: #{densenet_block.5} parent=35 // pred_check_branch
        %1133 = sbr.rel (%p1131) target = $region40
      $region39: #{densenet_block.5} parent=35 // pred_region
        _
      $region40: #{densenet_block.5} parent=35 // pred_fallthru
        _
      // Predicated region
      $region41: #{densenet_block.5} parent=35 // pred_check
        %p1134 = pneg %p151
      $region42: #{densenet_block.5} parent=35 // pred_check_branch
        %1136 = sbr.rel (%p1134) target = $region44
      $region43: #{densenet_block.5} parent=35 // pred_region
        _
      $region44: #{densenet_block.5} parent=35 // pred_fallthru
        _
      // Predicated region
      $region45: #{densenet_block.5} parent=35 // pred_check
        %p1137 = pneg %p177
      $region46: #{densenet_block.5} parent=35 // pred_check_branch
        %1139 = sbr.rel (%p1137) target = $region48
      $region47: #{densenet_block.5} parent=35 // pred_region
        _
      $region48: #{densenet_block.5} parent=35 // pred_fallthru
        _
    $region36: #{densenet_block.5} parent=5 // pred_fallthru
      _
    %p1140 = scmp.le.s32.totalorder 2, %s13
    // Predicated region
    $region49: #{densenet_block.5} parent=5 // pred_check
      %p1141 = pneg %p1140
    $region50: #{densenet_block.5} parent=5 // pred_check_branch
      %1143 = sbr.rel (%p1141) target = $region52
    $region51: #{densenet_block.5} parent=5 // pred_region
      %s1144 = ssub.s32 %s13, 2
      // Predicated region
      $region53: #{densenet_block.5} parent=51 // pred_check
        %p1145 = pneg %p131
      $region54: #{densenet_block.5} parent=51 // pred_check_branch
        %1147 = sbr.rel (%p1145) target = $region56
      $region55: #{densenet_block.5} parent=51 // pred_region
        %p1148 = scmp.lt.s32.totalorder %s19, 1
        %s1149 = scalar_select %p1148, %s19, 1
        %s1150 = smul.addr %s1149, 2
        %s1151 = smul.addr %s1150, 8
        %s1152 = scalar_lea.vmem %s4, %s1151
      $region56: #{densenet_block.5} parent=51 // pred_fallthru
        _
      // Predicated region
      $region57: #{densenet_block.5} parent=51 // pred_check
        %p1153 = pneg %p157
      $region58: #{densenet_block.5} parent=51 // pred_check_branch
        %1155 = sbr.rel (%p1153) target = $region60
      $region59: #{densenet_block.5} parent=51 // pred_region
        %p1156 = scmp.lt.s32.totalorder %s19, 1
        %s1157 = scalar_select %p1156, %s19, 1
        %s1158 = scalar_lea.vmem %s5, %s1157
      $region60: #{densenet_block.5} parent=51 // pred_fallthru
        _
      // Predicated region
      $region61: #{densenet_block.5} parent=51 // pred_check
        %p1159 = pneg %p183
      $region62: #{densenet_block.5} parent=51 // pred_check_branch
        %1161 = sbr.rel (%p1159) target = $region64
      $region63: #{densenet_block.5} parent=51 // pred_region
        %p1162 = scmp.lt.s32.totalorder %s19, 1
        %s1163 = scalar_select %p1162, %s19, 1
        %s1164 = scalar_lea.vmem %s6, %s1163
      $region64: #{densenet_block.5} parent=51 // pred_fallthru
        _
    $region52: #{densenet_block.5} parent=5 // pred_fallthru
      _
  $region6: #{densenet_block.5} parent=0 // loop_footer
    %s17 = sadd.s32 1, %s13
  $region7: #{densenet_block.5} parent=0 // loop_footer_branch
    %12 = sbr.rel target = $region3
  $region8: #{densenet_block.5} parent=0 // loop_exit
    _

// kernel: tile.63
$region0: #{tile.63}
  #allocation0 [shape = 's32[1]{0}', space=sflag, size = 0x4, scoped, tag = 'scoped memory for tile.63']
  %s0 = inlined_call_operand.vmem [shape: f32[20], index: 0, kind: input, shape index: {}]
  %s1 = inlined_call_operand.vmem [shape: f32[18,20], index: 1, kind: output, shape index: {}]
  // Predicated region
  $region2: #{tile.63} parent=0 // pred_check
    _
  $region3: #{tile.63} parent=0 // pred_check_branch
    %3 = sbr.rel (0) target = $region5
  $region4: #{tile.63} parent=0 // pred_region
    _
  $region5: #{tile.63} parent=0 // pred_fallthru
    _
  %v4 = vld [vmem:[%s0] ss:$0 sm:$0xff]
  %5 = vst [vmem:[%s1] sm:$0xff] %v4
  %s6 = scalar_lea.vmem %s1, 8
  %7 = vst [vmem:[%s6] sm:$0xff] %v4
  %s8 = scalar_lea.vmem %s1, 16
  %9 = vst [vmem:[%s8] sm:$0xff] %v4

// kernel: tile.64
$region0: #{tile.64}
  %s0 = inlined_call_operand.vmem [shape: f32[18,20], index: 0, kind: input, shape index: {}]
  %s1 = inlined_call_operand.vmem [shape: f32[1,360], index: 1, kind: output, shape index: {}]
  $region1: #{tile.64} parent=0
    #allocation0 [shape = 'u8[12288]{0}', space=vmem, size = 0x3000, scoped, tag = 'scoped mem for output reshape']
    %v2 = vld [vmem:[%s0] sm:$0x1]
    %vm3 = vcmask 162816
    %4 = vst.msk [vmem:[#allocation0] sm:$0x1] %vm3, %v2
    %s5 = scalar_lea.vmem %s0, 6
    %v6 = vld [vmem:[%s5] sm:$0x1]
    %s7 = scalar_lea.vmem %s0, 6
    %v8 = vld [vmem:[%s7] sm:$0x1]
    %vm9 = vcmask 64512
    %v10 = vsel %vm9, %v8, %v6
    %11 = vrot.lane.b32.xlu0 %v10, 120
    %v12 = vpop.permute.xlu0 %11
    %vm13 = vcmask 97280
    %s14 = scalar_lea.vmem [#allocation0], 8
    %15 = vst.msk [vmem:[%s14] sm:$0x1] %vm13, %v12
    %vm16 = vcmask 1048512
    %17 = vst.msk [vmem:[#allocation0] sm:$0x1] %vm16, %v12
    %s18 = scalar_lea.vmem %s0, 12
    %v19 = vld [vmem:[%s18] sm:$0x1]
    %s20 = scalar_lea.vmem %s0, 12
    %v21 = vld [vmem:[%s20] sm:$0x1]
    %vm22 = vcmask 130048
    %v23 = vsel %vm22, %v21, %v19
    %24 = vrot.lane.b32.xlu0 %v23, 112
    %v25 = vpop.permute.xlu0 %24
    %vm26 = vcmask 31744
    %s27 = scalar_lea.vmem [#allocation0], 16
    %28 = vst.msk [vmem:[%s27] sm:$0x1] %vm26, %v25
    %vm29 = vcmask 1048448
    %s30 = scalar_lea.vmem [#allocation0], 8
    %31 = vst.msk [vmem:[%s30] sm:$0x1] %vm29, %v25
    %s32 = scalar_lea.vmem %s0, 5
    %v33 = vld [vmem:[%s32] sm:$0x1]
    %34 = vrot.lane.b32.xlu0 %v33, 100
    %v35 = vpop.permute.xlu0 %34
    %vm36 = vcmask 982816
    %37 = vst.msk [vmem:[#allocation0] sm:$0x1] %vm36, %v35
    %s38 = scalar_lea.vmem %s0, 11
    %v39 = vld [vmem:[%s38] sm:$0x1]
    %40 = vrot.lane.b32.xlu0 %v39, 92
    %v41 = vpop.permute.xlu0 %40
    %vm42 = vcmask 917216
    %s43 = scalar_lea.vmem [#allocation0], 8
    %44 = vst.msk [vmem:[%s43] sm:$0x1] %vm42, %v41
    %s45 = scalar_lea.vmem %s0, 17
    %v46 = vld [vmem:[%s45] sm:$0x1]
    %47 = vrot.lane.b32.xlu0 %v46, 84
    %v48 = vpop.permute.xlu0 %47
    %vm49 = vcmask 851616
    %s50 = scalar_lea.vmem [#allocation0], 16
    %51 = vst.msk [vmem:[%s50] sm:$0x1] %vm49, %v48
    %s52 = scalar_lea.vmem %s0, 4
    %v53 = vld [vmem:[%s52] sm:$0x1]
    %54 = vrot.lane.b32.xlu0 %v53, 80
    %v55 = vpop.permute.xlu0 %54
    %vm56 = vcmask 818816
    %57 = vst.msk [vmem:[#allocation0] sm:$0x1] %vm56, %v55
    %s58 = scalar_lea.vmem %s0, 10
    %v59 = vld [vmem:[%s58] sm:$0x1]
    %60 = vrot.lane.b32.xlu0 %v59, 72
    %v61 = vpop.permute.xlu0 %60
    %vm62 = vcmask 753216
    %s63 = scalar_lea.vmem [#allocation0], 8
    %64 = vst.msk [vmem:[%s63] sm:$0x1] %vm62, %v61
    %s65 = scalar_lea.vmem %s0, 16
    %v66 = vld [vmem:[%s65] sm:$0x1]
    %67 = vrot.lane.b32.xlu0 %v66, 64
    %v68 = vpop.permute.xlu0 %67
    %vm69 = vcmask 687616
    %s70 = scalar_lea.vmem [#allocation0], 16
    %71 = vst.msk [vmem:[%s70] sm:$0x1] %vm69, %v68
    %s72 = scalar_lea.vmem %s0, 3
    %v73 = vld [vmem:[%s72] sm:$0x1]
    %74 = vrot.lane.b32.xlu0 %v73, 60
    %v75 = vpop.permute.xlu0 %74
    %vm76 = vcmask 654816
    %77 = vst.msk [vmem:[#allocation0] sm:$0x1] %vm76, %v75
    %s78 = scalar_lea.vmem %s0, 9
    %v79 = vld [vmem:[%s78] sm:$0x1]
    %80 = vrot.lane.b32.xlu0 %v79, 52
    %v81 = vpop.permute.xlu0 %80
    %vm82 = vcmask 589216
    %s83 = scalar_lea.vmem [#allocation0], 8
    %84 = vst.msk [vmem:[%s83] sm:$0x1] %vm82, %v81
    %s85 = scalar_lea.vmem %s0, 15
    %v86 = vld [vmem:[%s85] sm:$0x1]
    %87 = vrot.lane.b32.xlu0 %v86, 44
    %v88 = vpop.permute.xlu0 %87
    %vm89 = vcmask 523616
    %s90 = scalar_lea.vmem [#allocation0], 16
    %91 = vst.msk [vmem:[%s90] sm:$0x1] %vm89, %v88
    %s92 = scalar_lea.vmem %s0, 2
    %v93 = vld [vmem:[%s92] sm:$0x1]
    %94 = vrot.lane.b32.xlu0 %v93, 40
    %v95 = vpop.permute.xlu0 %94
    %vm96 = vcmask 490816
    %97 = vst.msk [vmem:[#allocation0] sm:$0x1] %vm96, %v95
    %s98 = scalar_lea.vmem %s0, 8
    %v99 = vld [vmem:[%s98] sm:$0x1]
    %100 = vrot.lane.b32.xlu0 %v99, 32
    %v101 = vpop.permute.xlu0 %100
    %vm102 = vcmask 425216
    %s103 = scalar_lea.vmem [#allocation0], 8
    %104 = vst.msk [vmem:[%s103] sm:$0x1] %vm102, %v101
    %s105 = scalar_lea.vmem %s0, 14
    %v106 = vld [vmem:[%s105] sm:$0x1]
    %107 = vrot.lane.b32.xlu0 %v106, 24
    %v108 = vpop.permute.xlu0 %107
    %vm109 = vcmask 359616
    %s110 = scalar_lea.vmem [#allocation0], 16
    %111 = vst.msk [vmem:[%s110] sm:$0x1] %vm109, %v108
    %s112 = scalar_lea.vmem %s0, 1
    %v113 = vld [vmem:[%s112] sm:$0x1]
    %114 = vrot.lane.b32.xlu0 %v113, 20
    %v115 = vpop.permute.xlu0 %114
    %vm116 = vcmask 326816
    %117 = vst.msk [vmem:[#allocation0] sm:$0x1] %vm116, %v115
    %s118 = scalar_lea.vmem %s0, 7
    %v119 = vld [vmem:[%s118] sm:$0x1]
    %120 = vrot.lane.b32.xlu0 %v119, 12
    %v121 = vpop.permute.xlu0 %120
    %vm122 = vcmask 261216
    %s123 = scalar_lea.vmem [#allocation0], 8
    %124 = vst.msk [vmem:[%s123] sm:$0x1] %vm122, %v121
    %s125 = scalar_lea.vmem %s0, 13
    %v126 = vld [vmem:[%s125] sm:$0x1]
    %127 = vrot.lane.b32.xlu0 %v126, 4
    %v128 = vpop.permute.xlu0 %127
    %vm129 = vcmask 195616
    %s130 = scalar_lea.vmem [#allocation0], 16
    %131 = vst.msk [vmem:[%s130] sm:$0x1] %vm129, %v128
    %s133 = ssub.s32 2, 1
    %v134 = vld [vmem:[#allocation0] sm:%s133]
    %s136 = ssub.s32 2, 1
    %137 = vst [vmem:[%s1] sm:%s136] %v134
    %s138 = scalar_lea.vmem [#allocation0], 8
    %v139 = vld [vmem:[%s138] sm:%s133]
    %s141 = ssub.s32 2, 1
    %s142 = scalar_lea.vmem %s1, 1
    %143 = vst [vmem:[%s142] sm:%s141] %v139
    %s144 = scalar_lea.vmem [#allocation0], 16
    %v145 = vld [vmem:[%s144] sm:%s133]
    %s147 = ssub.s32 2, 1
    %s148 = scalar_lea.vmem %s1, 2
    %149 = vst [vmem:[%s148] sm:%s147] %v145

// kernel: densenet_block.6
$region0: #{densenet_block.6}
  #allocation0 [shape = 'u32[]', space=smem, size = 0x4, offset = 0x4, fixed_abs, tag = 'smem constant byte address 0x4 - core index']
  #allocation1 [shape = 'u32[72,128]{1,0:T(1,128)}', space=vmem, size = 0x9000, scoped, tag = 'internal scratch']
  %s0 = inlined_call_operand.vmem [shape: f32[2,18,360], index: 0, kind: input, shape index: {}]
  %s1 = inlined_call_operand.vmem [shape: f32[1,360], index: 1, kind: input, shape index: {}]
  %s2 = inlined_call_operand.vmem [shape: f32[1,360], index: 2, kind: input, shape index: {}]
  %s3 = inlined_call_operand.vmem [shape: f32[9,320,128], index: 3, kind: input, shape index: {}]
  %s4 = inlined_call_operand.vmem [shape: f32[2,16,128], index: 4, kind: output, shape index: {0}]
  %s5 = inlined_call_operand.vmem [shape: f32[2,1,128], index: 5, kind: output, shape index: {1}]
  %s6 = inlined_call_operand.vmem [shape: f32[2,1,128], index: 6, kind: output, shape index: {2}]
  %7 = xla_tuple %s4, %s5, %s6
  %s8 = sld [smem:[#allocation0]]
  $region65: #{densenet_block.6} parent=0
    _
  %s10 = ssub.s32 1, %s8
  %s11 = scalar_select 0, %s10, %s8
  loop: start=0, step=1, limit=4
  $region2: #{densenet_block.6} parent=0 // loop_pre_header
    _
  $region3: #{densenet_block.6} parent=0 // loop_header
    %s13 = sphi 0, %s17
    %p14 = scmp.ge.s32.totalorder %s13, 4
    %s23 = sphi 0, %s25
    %s26 = sphi 0, %s23
    %s27 = sphi 0, %s26
    %s43 = sphi 0, %s27
    %s47 = sphi 0, %s47
    %s49 = sphi 0, %s47
    %s50 = sphi 0, %s49
    %s64 = sphi 0, %s50
    %s68 = sphi 0, %s68
    %s70 = sphi 0, %s68
    %s71 = sphi 0, %s70
    %s85 = sphi 0, %s71
    %s89 = sphi 0, %s89
    %s91 = sphi 0, %s89
    %s92 = sphi 0, %s91
    %s106 = sphi 0, %s92
    %s112 = sphi 0, %s114
    %s115 = sphi 0, %s112
    %s116 = sphi 0, %s115
    %s132 = sphi 0, %s116
    %s138 = sphi 0, %s140
    %s141 = sphi 0, %s138
    %s142 = sphi 0, %s141
    %s158 = sphi 0, %s142
    %s164 = sphi 0, %s166
    %s167 = sphi 0, %s164
    %s168 = sphi 0, %s167
    %s184 = sphi 0, %s168
  $region4: #{densenet_block.6} parent=0 // loop_header_branch
    %16 = sbr.rel (%p14) target = $region8
  $region5: #{densenet_block.6} parent=0 // loop_body
    %s18 = ssub.s32 %s13, 1
    %s19 = ssub.s32 %s13, 2
    %s20 = sadd.s32 %s13, 1
    %s21 = ssub.s32 %s13, %s20
    %p22 = scmp.eq.s32.totalorder %s21, 0
    %s24 = sadd.s32 %s23, 1
    %s25 = scalar_select %p22, %s23, %s24
    %p28 = pneg %p22
    %p29 = scmp.eq.s32.totalorder %s13, 1
    %p30 = por %p28, %p29
    %p31 = scmp.ne.s32.totalorder %s23, %s26
    %p32 = scmp.eq.s32.totalorder %s13, 0
    %p33 = por %p31, %p32
    %p34 = scmp.ne.s32.totalorder %s23, %s26
    %p35 = scmp.eq.s32.totalorder %s18, 1
    %p36 = por %p34, %p35
    %p37 = scmp.ne.s32.totalorder %s26, %s27
    %p38 = scmp.eq.s32.totalorder %s18, 0
    %p39 = por %p37, %p38
    %p40 = scmp.ne.s32.totalorder %s26, %s27
    %p41 = scmp.eq.s32.totalorder %s19, 1
    %p42 = por %p40, %p41
    %p44 = scmp.ne.s32.totalorder %s27, %s43
    %p45 = scmp.eq.s32.totalorder %s19, 0
    %p46 = por %p44, %p45
    %s48 = sadd.s32 %s47, 1
    %p51 = scmp.eq.s32.totalorder %s13, 1
    %p52 = scmp.ne.s32.totalorder %s47, %s49
    %p53 = scmp.eq.s32.totalorder %s13, 0
    %p54 = por %p52, %p53
    %p55 = scmp.ne.s32.totalorder %s47, %s49
    %p56 = scmp.eq.s32.totalorder %s18, 1
    %p57 = por %p55, %p56
    %p58 = scmp.ne.s32.totalorder %s49, %s50
    %p59 = scmp.eq.s32.totalorder %s18, 0
    %p60 = por %p58, %p59
    %p61 = scmp.ne.s32.totalorder %s49, %s50
    %p62 = scmp.eq.s32.totalorder %s19, 1
    %p63 = por %p61, %p62
    %p65 = scmp.ne.s32.totalorder %s50, %s64
    %p66 = scmp.eq.s32.totalorder %s19, 0
    %p67 = por %p65, %p66
    %s69 = sadd.s32 %s68, 1
    %p72 = scmp.eq.s32.totalorder %s13, 1
    %p73 = scmp.ne.s32.totalorder %s68, %s70
    %p74 = scmp.eq.s32.totalorder %s13, 0
    %p75 = por %p73, %p74
    %p76 = scmp.ne.s32.totalorder %s68, %s70
    %p77 = scmp.eq.s32.totalorder %s18, 1
    %p78 = por %p76, %p77
    %p79 = scmp.ne.s32.totalorder %s70, %s71
    %p80 = scmp.eq.s32.totalorder %s18, 0
    %p81 = por %p79, %p80
    %p82 = scmp.ne.s32.totalorder %s70, %s71
    %p83 = scmp.eq.s32.totalorder %s19, 1
    %p84 = por %p82, %p83
    %p86 = scmp.ne.s32.totalorder %s71, %s85
    %p87 = scmp.eq.s32.totalorder %s19, 0
    %p88 = por %p86, %p87
    %s90 = sadd.s32 %s89, 1
    %p93 = scmp.eq.s32.totalorder %s13, 1
    %p94 = scmp.ne.s32.totalorder %s89, %s91
    %p95 = scmp.eq.s32.totalorder %s13, 0
    %p96 = por %p94, %p95
    %p97 = scmp.ne.s32.totalorder %s89, %s91
    %p98 = scmp.eq.s32.totalorder %s18, 1
    %p99 = por %p97, %p98
    %p100 = scmp.ne.s32.totalorder %s91, %s92
    %p101 = scmp.eq.s32.totalorder %s18, 0
    %p102 = por %p100, %p101
    %p103 = scmp.ne.s32.totalorder %s91, %s92
    %p104 = scmp.eq.s32.totalorder %s19, 1
    %p105 = por %p103, %p104
    %p107 = scmp.ne.s32.totalorder %s92, %s106
    %p108 = scmp.eq.s32.totalorder %s19, 0
    %p109 = por %p107, %p108
    %s110 = ssub.s32 %s13, %s20
    %p111 = scmp.eq.s32.totalorder %s110, 0
    %s113 = sadd.s32 %s112, 1
    %s114 = scalar_select %p111, %s112, %s113
    %p117 = pneg %p111
    %p118 = scmp.eq.s32.totalorder %s13, 1
    %p119 = por %p117, %p118
    %p120 = scmp.ne.s32.totalorder %s112, %s115
    %p121 = scmp.eq.s32.totalorder %s13, 0
    %p122 = por %p120, %p121
    %p123 = scmp.ne.s32.totalorder %s112, %s115
    %p124 = scmp.eq.s32.totalorder %s18, 1
    %p125 = por %p123, %p124
    %p126 = scmp.ne.s32.totalorder %s115, %s116
    %p127 = scmp.eq.s32.totalorder %s18, 0
    %p128 = por %p126, %p127
    %p129 = scmp.ne.s32.totalorder %s115, %s116
    %p130 = scmp.eq.s32.totalorder %s19, 1
    %p131 = por %p129, %p130
    %p133 = scmp.ne.s32.totalorder %s116, %s132
    %p134 = scmp.eq.s32.totalorder %s19, 0
    %p135 = por %p133, %p134
    %s136 = ssub.s32 %s13, %s20
    %p137 = scmp.eq.s32.totalorder %s136, 0
    %s139 = sadd.s32 %s138, 1
    %s140 = scalar_select %p137, %s138, %s139
    %p143 = pneg %p137
    %p144 = scmp.eq.s32.totalorder %s13, 1
    %p145 = por %p143, %p144
    %p146 = scmp.ne.s32.totalorder %s138, %s141
    %p147 = scmp.eq.s32.totalorder %s13, 0
    %p148 = por %p146, %p147
    %p149 = scmp.ne.s32.totalorder %s138, %s141
    %p150 = scmp.eq.s32.totalorder %s18, 1
    %p151 = por %p149, %p150
    %p152 = scmp.ne.s32.totalorder %s141, %s142
    %p153 = scmp.eq.s32.totalorder %s18, 0
    %p154 = por %p152, %p153
    %p155 = scmp.ne.s32.totalorder %s141, %s142
    %p156 = scmp.eq.s32.totalorder %s19, 1
    %p157 = por %p155, %p156
    %p159 = scmp.ne.s32.totalorder %s142, %s158
    %p160 = scmp.eq.s32.totalorder %s19, 0
    %p161 = por %p159, %p160
    %s162 = ssub.s32 %s13, %s20
    %p163 = scmp.eq.s32.totalorder %s162, 0
    %s165 = sadd.s32 %s164, 1
    %s166 = scalar_select %p163, %s164, %s165
    %p169 = pneg %p163
    %p170 = scmp.eq.s32.totalorder %s13, 1
    %p171 = por %p169, %p170
    %p172 = scmp.ne.s32.totalorder %s164, %s167
    %p173 = scmp.eq.s32.totalorder %s13, 0
    %p174 = por %p172, %p173
    %p175 = scmp.ne.s32.totalorder %s164, %s167
    %p176 = scmp.eq.s32.totalorder %s18, 1
    %p177 = por %p175, %p176
    %p178 = scmp.ne.s32.totalorder %s167, %s168
    %p179 = scmp.eq.s32.totalorder %s18, 0
    %p180 = por %p178, %p179
    %p181 = scmp.ne.s32.totalorder %s167, %s168
    %p182 = scmp.eq.s32.totalorder %s19, 1
    %p183 = por %p181, %p182
    %p185 = scmp.ne.s32.totalorder %s168, %s184
    %p186 = scmp.eq.s32.totalorder %s19, 0
    %p187 = por %p185, %p186
    %p188 = scmp.le.s32.totalorder 1, %s13
    %p189 = scmp.lt.s32.totalorder %s13, 3
    %p190 = pnand %p188, %p189
    %p191 = pneg %p190
    // Predicated region
    $region9: #{densenet_block.6} parent=5 // pred_check
      _
    $region10: #{densenet_block.6} parent=5 // pred_check_branch
      %193 = sbr.rel (%p190) target = $region12
    $region11: #{densenet_block.6} parent=5 // pred_region
      %s194 = ssub.s32 %s13, 1
      // Predicated region
      $region13: #{densenet_block.6} parent=11 // pred_check
        %p195 = pneg %p60
      $region14: #{densenet_block.6} parent=11 // pred_check_branch
        %197 = sbr.rel (%p195) target = $region16
      $region15: #{densenet_block.6} parent=11 // pred_region
        _
      $region16: #{densenet_block.6} parent=11 // pred_fallthru
        _
      // Predicated region
      $region17: #{densenet_block.6} parent=11 // pred_check
        %p198 = pneg %p81
      $region18: #{densenet_block.6} parent=11 // pred_check_branch
        %200 = sbr.rel (%p198) target = $region20
      $region19: #{densenet_block.6} parent=11 // pred_region
        _
      $region20: #{densenet_block.6} parent=11 // pred_fallthru
        _
      // Predicated region
      $region21: #{densenet_block.6} parent=11 // pred_check
        %p201 = pneg %p102
      $region22: #{densenet_block.6} parent=11 // pred_check_branch
        %203 = sbr.rel (%p201) target = $region24
      $region23: #{densenet_block.6} parent=11 // pred_region
        _
      $region24: #{densenet_block.6} parent=11 // pred_fallthru
        _
    $region12: #{densenet_block.6} parent=5 // pred_fallthru
      _
    %p204 = scmp.lt.s32.totalorder %s13, 2
    // Predicated region
    $region25: #{densenet_block.6} parent=5 // pred_check
      %p205 = pneg %p204
    $region26: #{densenet_block.6} parent=5 // pred_check_branch
      %207 = sbr.rel (%p205) target = $region28
    $region27: #{densenet_block.6} parent=5 // pred_region
      // Predicated region
      $region29: #{densenet_block.6} parent=27 // pred_check
        %p208 = pneg %p33
      $region30: #{densenet_block.6} parent=27 // pred_check_branch
        %210 = sbr.rel (%p208) target = $region32
      $region31: #{densenet_block.6} parent=27 // pred_region
        %p211 = scmp.lt.s32.totalorder %s13, 1
        %s212 = scalar_select %p211, %s13, 1
        %s213 = smul.addr %s212, 9
        %s214 = smul.addr %s213, 8
        %s215 = scalar_lea.vmem %s0, %s214
      $region32: #{densenet_block.6} parent=27 // pred_fallthru
        _
    $region28: #{densenet_block.6} parent=5 // pred_fallthru
      _
    %p216 = scmp.le.s32.totalorder 1, %s13
    %p217 = scmp.lt.s32.totalorder %s13, 3
    %p218 = pnand %p216, %p217
    %p219 = pneg %p218
    // Predicated region
    $region33: #{densenet_block.6} parent=5 // pred_check
      _
    $region34: #{densenet_block.6} parent=5 // pred_check_branch
      %221 = sbr.rel (%p218) target = $region36
    $region35: #{densenet_block.6} parent=5 // pred_region
      %s222 = ssub.s32 %s13, 1
      %p223 = scmp.lt.s32.totalorder %s18, 1
      %s224 = scalar_select %p223, %s18, 1
      %s225 = smul.addr %s224, 9
      %s226 = smul.addr %s225, 8
      %s227 = scalar_lea.vmem %s0, %s226
      %p228 = pneg %p39
      %p229 = pneg %p36
      %p230 = pneg %p60
      %p231 = pneg %p57
      %p232 = pneg %p81
      %p233 = pneg %p78
      %p234 = pneg %p102
      %p235 = pneg %p99
      %p236 = pneg %p128
      %p237 = pneg %p125
      %p238 = scmp.lt.s32.totalorder %s18, 1
      %s239 = scalar_select %p238, %s18, 1
      %s240 = smul.addr %s239, 2
      %s241 = smul.addr %s240, 8
      %s242 = scalar_lea.vmem %s4, %s241
      %p243 = pneg %p154
      %p244 = pneg %p151
      %p245 = scmp.lt.s32.totalorder %s18, 1
      %s246 = scalar_select %p245, %s18, 1
      %s247 = scalar_lea.vmem %s5, %s246
      %p248 = pneg %p180
      %p249 = pneg %p177
      %p250 = scmp.lt.s32.totalorder %s18, 1
      %s251 = scalar_select %p250, %s18, 1
      %s252 = scalar_lea.vmem %s6, %s251
      %p253 = scmp.lt.s32.totalorder %s18, 1
      %s254 = scalar_select %p253, %s18, 1
      %s255 = smul.addr %s254, 9
      %s256 = smul.addr %s255, 8
      %s257 = scalar_lea.vmem %s0, %s256
      %p258 = scmp.lt.s32.totalorder %s18, 1
      %s259 = scalar_select %p258, %s18, 1
      %s260 = smul.addr %s259, 2
      %s261 = smul.addr %s260, 8
      %s262 = scalar_lea.vmem %s4, %s261
      %p263 = scmp.lt.s32.totalorder %s18, 1
      %s264 = scalar_select %p263, %s18, 1
      %s265 = scalar_lea.vmem %s5, %s264
      %p266 = scmp.lt.s32.totalorder %s18, 1
      %s267 = scalar_select %p266, %s18, 1
      %s268 = scalar_lea.vmem %s6, %s267
      %v269 = vld [vmem:[%s257] sm:$0xff]
      %v270 = vld [vmem:[%s257 + $0x8] sm:$0xff]
      %v271 = vld [vmem:[%s257 + $0x10] sm:$0xff]
      %v272 = vld [vmem:[%s257 + $0x18] sm:$0xff]
      %v273 = vld [vmem:[%s257 + $0x20] sm:$0xff]
      %v274 = vld [vmem:[%s257 + $0x28] sm:$0xff]
      %v275 = vld [vmem:[%s257 + $0x30] sm:$0x3]
      %v276 = vld [vmem:[%s257 + $0x38] sm:$0x3]
      %v277 = vld [vmem:[%s257 + $0x40] sm:$0x3]
      %v278 = vld [vmem:[%s1] sm:$0x7]
      %v280 = vperm.slane %v278, 0
      %v281 = vperm.slane %v278, 1
      %v282 = vperm.slane %v278, 2
      %v286 = vmul.f32 %v269, %v280
      %v287 = vmul.f32 %v270, %v281
      %v288 = vmul.f32 %v271, %v282
      %v289 = vmul.f32 %v272, %v280
      %v290 = vmul.f32 %v273, %v281
      %v291 = vmul.f32 %v274, %v282
      %v292 = vmul.f32 %v275, %v280
      %v293 = vmul.f32 %v276, %v281
      %v294 = vmul.f32 %v277, %v282
      %v295 = vld [vmem:[%s2] sm:$0x7]
      %v297 = vperm.slane %v295, 0
      %v298 = vperm.slane %v295, 1
      %v299 = vperm.slane %v295, 2
      %v303 = vadd.f32 %v286, %v297
      %v304 = vadd.f32 %v287, %v298
      %v305 = vadd.f32 %v288, %v299
      %v306 = vadd.f32 %v289, %v297
      %v307 = vadd.f32 %v290, %v298
      %v308 = vadd.f32 %v291, %v299
      %v309 = vadd.f32 %v292, %v297
      %v310 = vadd.f32 %v293, %v298
      %v311 = vadd.f32 %v294, %v299
      %v312 = vmax.f32 %v303, 0.0
      %v313 = vmax.f32 %v304, 0.0
      %v314 = vmax.f32 %v305, 0.0
      %v315 = vmax.f32 %v306, 0.0
      %v316 = vmax.f32 %v307, 0.0
      %v317 = vmax.f32 %v308, 0.0
      %v318 = vmax.f32 %v309, 0.0
      %v319 = vmax.f32 %v310, 0.0
      %v320 = vmax.f32 %v311, 0.0
      %v321 = vld [vmem:[%s3] sm:$0xff]
      %v322 = vld [vmem:[%s3 + $0x8] sm:$0xff]
      %v323 = vld [vmem:[%s3 + $0x10] sm:$0xff]
      %v324 = vld [vmem:[%s3 + $0x18] sm:$0xff]
      %v325 = vld [vmem:[%s3 + $0x20] sm:$0xff]
      %v326 = vld [vmem:[%s3 + $0x28] sm:$0xff]
      %v327 = vld [vmem:[%s3 + $0x30] sm:$0xff]
      %v328 = vld [vmem:[%s3 + $0x38] sm:$0xff]
      %v329 = vld [vmem:[%s3 + $0x40] sm:$0xff]
      %v330 = vld [vmem:[%s3 + $0x48] sm:$0xff]
      %v331 = vld [vmem:[%s3 + $0x50] sm:$0xff]
      %v332 = vld [vmem:[%s3 + $0x58] sm:$0xff]
      %v333 = vld [vmem:[%s3 + $0x60] sm:$0xff]
      %v334 = vld [vmem:[%s3 + $0x68] sm:$0xff]
      %v335 = vld [vmem:[%s3 + $0x70] sm:$0xff]
      %v336 = vld [vmem:[%s3 + $0x78] sm:$0xff]
      %v337 = vld [vmem:[%s3 + $0x80] sm:$0xff]
      %v338 = vld [vmem:[%s3 + $0x88] sm:$0xff]
      %v339 = vld [vmem:[%s3 + $0x90] sm:$0xff]
      %v340 = vld [vmem:[%s3 + $0x98] sm:$0xff]
      %v341 = vld [vmem:[%s3 + $0xa0] sm:$0xff]
      %v342 = vld [vmem:[%s3 + $0xa8] sm:$0xff]
      %v343 = vld [vmem:[%s3 + $0xb0] sm:$0xff]
      %v344 = vld [vmem:[%s3 + $0xb8] sm:$0xff]
      %v345 = vld [vmem:[%s3 + $0xc0] sm:$0xff]
      %v346 = vld [vmem:[%s3 + $0xc8] sm:$0xff]
      %v347 = vld [vmem:[%s3 + $0xd0] sm:$0xff]
      %v348 = vld [vmem:[%s3 + $0xd8] sm:$0xff]
      %v349 = vld [vmem:[%s3 + $0xe0] sm:$0xff]
      %v350 = vld [vmem:[%s3 + $0xe8] sm:$0xff]
      %v351 = vld [vmem:[%s3 + $0xf0] sm:$0xff]
      %v352 = vld [vmem:[%s3 + $0xf8] sm:$0xff]
      %v353 = vld [vmem:[%s3 + $0x100] sm:$0xff]
      %v354 = vld [vmem:[%s3 + $0x108] sm:$0xff]
      %v355 = vld [vmem:[%s3 + $0x110] sm:$0xff]
      %v356 = vld [vmem:[%s3 + $0x118] sm:$0xff]
      %v357 = vld [vmem:[%s3 + $0x120] sm:$0xff]
      %v358 = vld [vmem:[%s3 + $0x128] sm:$0xff]
      %v359 = vld [vmem:[%s3 + $0x130] sm:$0xff]
      %v360 = vld [vmem:[%s3 + $0x138] sm:$0xff]
      %s361 = scalar_lea.vmem %s3, 320
      %v362 = vld [vmem:[%s361] sm:$0xff]
      %v363 = vld [vmem:[%s361 + $0x8] sm:$0xff]
      %v364 = vld [vmem:[%s361 + $0x10] sm:$0xff]
      %v365 = vld [vmem:[%s361 + $0x18] sm:$0xff]
      %v366 = vld [vmem:[%s361 + $0x20] sm:$0xff]
      %v367 = vld [vmem:[%s361 + $0x28] sm:$0xff]
      %v368 = vld [vmem:[%s361 + $0x30] sm:$0xff]
      %v369 = vld [vmem:[%s361 + $0x38] sm:$0xff]
      %v370 = vld [vmem:[%s361 + $0x40] sm:$0xff]
      %v371 = vld [vmem:[%s361 + $0x48] sm:$0xff]
      %v372 = vld [vmem:[%s361 + $0x50] sm:$0xff]
      %v373 = vld [vmem:[%s361 + $0x58] sm:$0xff]
      %v374 = vld [vmem:[%s361 + $0x60] sm:$0xff]
      %v375 = vld [vmem:[%s361 + $0x68] sm:$0xff]
      %v376 = vld [vmem:[%s361 + $0x70] sm:$0xff]
      %v377 = vld [vmem:[%s361 + $0x78] sm:$0xff]
      %v378 = vld [vmem:[%s361 + $0x80] sm:$0xff]
      %v379 = vld [vmem:[%s361 + $0x88] sm:$0xff]
      %v380 = vld [vmem:[%s361 + $0x90] sm:$0xff]
      %v381 = vld [vmem:[%s361 + $0x98] sm:$0xff]
      %v382 = vld [vmem:[%s361 + $0xa0] sm:$0xff]
      %v383 = vld [vmem:[%s361 + $0xa8] sm:$0xff]
      %v384 = vld [vmem:[%s361 + $0xb0] sm:$0xff]
      %v385 = vld [vmem:[%s361 + $0xb8] sm:$0xff]
      %v386 = vld [vmem:[%s361 + $0xc0] sm:$0xff]
      %v387 = vld [vmem:[%s361 + $0xc8] sm:$0xff]
      %v388 = vld [vmem:[%s361 + $0xd0] sm:$0xff]
      %v389 = vld [vmem:[%s361 + $0xd8] sm:$0xff]
      %v390 = vld [vmem:[%s361 + $0xe0] sm:$0xff]
      %v391 = vld [vmem:[%s361 + $0xe8] sm:$0xff]
      %v392 = vld [vmem:[%s361 + $0xf0] sm:$0xff]
      %v393 = vld [vmem:[%s361 + $0xf8] sm:$0xff]
      %v394 = vld [vmem:[%s361 + $0x100] sm:$0xff]
      %v395 = vld [vmem:[%s361 + $0x108] sm:$0xff]
      %v396 = vld [vmem:[%s361 + $0x110] sm:$0xff]
      %v397 = vld [vmem:[%s361 + $0x118] sm:$0xff]
      %v398 = vld [vmem:[%s361 + $0x120] sm:$0xff]
      %v399 = vld [vmem:[%s361 + $0x128] sm:$0xff]
      %v400 = vld [vmem:[%s361 + $0x130] sm:$0xff]
      %v401 = vld [vmem:[%s361 + $0x138] sm:$0xff]
      %408 = vrot.lane.b32.xlu0 %v312, 108
      %v409 = vpop.permute.xlu0 %408
      %410 = vrot.lane.b32.xlu0 %v313, 108
      %v411 = vpop.permute.xlu0 %410
      %412 = vrot.lane.b32.xlu0 %v314, 108
      %v413 = vpop.permute.xlu0 %412
      %414 = vrot.lane.b32.xlu0 %v315, 108
      %v415 = vpop.permute.xlu0 %414
      %416 = vrot.lane.b32.xlu0 %v316, 108
      %v417 = vpop.permute.xlu0 %416
      %418 = vrot.lane.b32.xlu0 %v317, 108
      %v419 = vpop.permute.xlu0 %418
      %vm420 = vcmask 883712
      %v421 = vsel %vm420, %v409, %v411
      %v422 = vsel %vm420, %v411, %v413
      %v423 = vsel %vm420, %v415, %v417
      %v424 = vsel %vm420, %v417, %v419
      %vm429 = vcmask 523264
      %v430 = vsel %vm429, %v413, 0
      %v432 = vsel %vm429, %v419, 0
      %434 = vmatpush.msra.mxu0 %v377
      %435 = vmatpush.msra.mxu0 %v376
      %436 = vmatpush.msra.mxu0 %v375
      %437 = vmatpush.msra.mxu0 %v374
      %438 = vmatpush.msra.mxu0 %v373
      %439 = vmatpush.msra.mxu0 %v372
      %440 = vmatpush.msra.mxu0 %v371
      %441 = vmatpush.msra.mxu0 %v370
      %442 = vmatpush.msra.mxu0 %v369
      %443 = vmatpush.msra.mxu0 %v368
      %444 = vmatpush.msra.mxu0 %v367
      %445 = vmatpush.msra.mxu0 %v366
      %446 = vmatpush.msra.mxu0 %v365
      %447 = vmatpush.msra.mxu0 %v364
      %448 = vmatpush.msra.mxu0 %v363
      %449 = vmatpush.msra.mxu0 %v362
      %450 = vmatmul.f32.gmra.mxu0 %v421
      %v451 = vpop.f32.mrf.mxu0
      %v452 = vadd.f32 0.0, %v451
      %453 = vmatmul.f32.gmra.mxu0 %v423
      %v454 = vpop.f32.mrf.mxu0
      %v455 = vadd.f32 0.0, %v454
      %456 = vdwg.mxu0
      %457 = vmatpush.msra.mxu0 %v393
      %458 = vmatpush.msra.mxu0 %v392
      %459 = vmatpush.msra.mxu0 %v391
      %460 = vmatpush.msra.mxu0 %v390
      %461 = vmatpush.msra.mxu0 %v389
      %462 = vmatpush.msra.mxu0 %v388
      %463 = vmatpush.msra.mxu0 %v387
      %464 = vmatpush.msra.mxu0 %v386
      %465 = vmatpush.msra.mxu0 %v385
      %466 = vmatpush.msra.mxu0 %v384
      %467 = vmatpush.msra.mxu0 %v383
      %468 = vmatpush.msra.mxu0 %v382
      %469 = vmatpush.msra.mxu0 %v381
      %470 = vmatpush.msra.mxu0 %v380
      %471 = vmatpush.msra.mxu0 %v379
      %472 = vmatpush.msra.mxu0 %v378
      %473 = vmatmul.f32.gmra.mxu0 %v422
      %v474 = vpop.f32.mrf.mxu0
      %v475 = vadd.f32 %v452, %v474
      %476 = vmatmul.f32.gmra.mxu0 %v424
      %v477 = vpop.f32.mrf.mxu0
      %v478 = vadd.f32 %v455, %v477
      %479 = vdwg.mxu0
      %480 = vmatpush.msra.mxu0 0.0
      %481 = vmatpush.msra.mxu0 0.0
      %482 = vmatpush.msra.mxu0 0.0
      %483 = vmatpush.msra.mxu0 0.0
      %484 = vmatpush.msra.mxu0 0.0
      %485 = vmatpush.msra.mxu0 0.0
      %486 = vmatpush.msra.mxu0 0.0
      %487 = vmatpush.msra.mxu0 0.0
      %488 = vmatpush.msra.mxu0 %v401
      %489 = vmatpush.msra.mxu0 %v400
      %490 = vmatpush.msra.mxu0 %v399
      %491 = vmatpush.msra.mxu0 %v398
      %492 = vmatpush.msra.mxu0 %v397
      %493 = vmatpush.msra.mxu0 %v396
      %494 = vmatpush.msra.mxu0 %v395
      %495 = vmatpush.msra.mxu0 %v394
      %496 = vmatmul.f32.gmra.mxu0 %v430
      %v497 = vpop.f32.mrf.mxu0
      %v498 = vadd.f32 %v475, %v497
      %499 = vmatmul.f32.gmra.mxu0 %v432
      %v500 = vpop.f32.mrf.mxu0
      %v501 = vadd.f32 %v478, %v500
      %502 = vdwg.mxu0
      %v503 = vsel %vm429, %v314, 0
      %v505 = vsel %vm429, %v317, 0
      %507 = vmatpush.msra.mxu0 %v336
      %508 = vmatpush.msra.mxu0 %v335
      %509 = vmatpush.msra.mxu0 %v334
      %510 = vmatpush.msra.mxu0 %v333
      %511 = vmatpush.msra.mxu0 %v332
      %512 = vmatpush.msra.mxu0 %v331
      %513 = vmatpush.msra.mxu0 %v330
      %514 = vmatpush.msra.mxu0 %v329
      %515 = vmatpush.msra.mxu0 %v328
      %516 = vmatpush.msra.mxu0 %v327
      %517 = vmatpush.msra.mxu0 %v326
      %518 = vmatpush.msra.mxu0 %v325
      %519 = vmatpush.msra.mxu0 %v324
      %520 = vmatpush.msra.mxu0 %v323
      %521 = vmatpush.msra.mxu0 %v322
      %522 = vmatpush.msra.mxu0 %v321
      %523 = vmatmul.f32.gmra.mxu0 %v312
      %v524 = vpop.f32.mrf.mxu0
      %v525 = vadd.f32 %v498, %v524
      %526 = vmatmul.f32.gmra.mxu0 %v315
      %v527 = vpop.f32.mrf.mxu0
      %v528 = vadd.f32 %v501, %v527
      %529 = vdwg.mxu0
      %530 = vmatpush.msra.mxu0 %v352
      %531 = vmatpush.msra.mxu0 %v351
      %532 = vmatpush.msra.mxu0 %v350
      %533 = vmatpush.msra.mxu0 %v349
      %534 = vmatpush.msra.mxu0 %v348
      %535 = vmatpush.msra.mxu0 %v347
      %536 = vmatpush.msra.mxu0 %v346
      %537 = vmatpush.msra.mxu0 %v345
      %538 = vmatpush.msra.mxu0 %v344
      %539 = vmatpush.msra.mxu0 %v343
      %540 = vmatpush.msra.mxu0 %v342
      %541 = vmatpush.msra.mxu0 %v341
      %542 = vmatpush.msra.mxu0 %v340
      %543 = vmatpush.msra.mxu0 %v339
      %544 = vmatpush.msra.mxu0 %v338
      %545 = vmatpush.msra.mxu0 %v337
      %546 = vmatmul.f32.gmra.mxu0 %v313
      %v547 = vpop.f32.mrf.mxu0
      %v548 = vadd.f32 %v525, %v547
      %549 = vmatmul.f32.gmra.mxu0 %v316
      %v550 = vpop.f32.mrf.mxu0
      %v551 = vadd.f32 %v528, %v550
      %552 = vdwg.mxu0
      %553 = vmatpush.msra.mxu0 0.0
      %554 = vmatpush.msra.mxu0 0.0
      %555 = vmatpush.msra.mxu0 0.0
      %556 = vmatpush.msra.mxu0 0.0
      %557 = vmatpush.msra.mxu0 0.0
      %558 = vmatpush.msra.mxu0 0.0
      %559 = vmatpush.msra.mxu0 0.0
      %560 = vmatpush.msra.mxu0 0.0
      %561 = vmatpush.msra.mxu0 %v360
      %562 = vmatpush.msra.mxu0 %v359
      %563 = vmatpush.msra.mxu0 %v358
      %564 = vmatpush.msra.mxu0 %v357
      %565 = vmatpush.msra.mxu0 %v356
      %566 = vmatpush.msra.mxu0 %v355
      %567 = vmatpush.msra.mxu0 %v354
      %568 = vmatpush.msra.mxu0 %v353
      %569 = vmatmul.f32.gmra.mxu0 %v503
      %v570 = vpop.f32.mrf.mxu0
      %v571 = vadd.f32 %v548, %v570
      %572 = vmatmul.f32.gmra.mxu0 %v505
      %v573 = vpop.f32.mrf.mxu0
      %v574 = vadd.f32 %v551, %v573
      %575 = vdwg.mxu0
      %s576 = scalar_lea.vmem %s3, 640
      %v577 = vld [vmem:[%s576] sm:$0xff]
      %v578 = vld [vmem:[%s576 + $0x8] sm:$0xff]
      %v579 = vld [vmem:[%s576 + $0x10] sm:$0xff]
      %v580 = vld [vmem:[%s576 + $0x18] sm:$0xff]
      %v581 = vld [vmem:[%s576 + $0x20] sm:$0xff]
      %v582 = vld [vmem:[%s576 + $0x28] sm:$0xff]
      %v583 = vld [vmem:[%s576 + $0x30] sm:$0xff]
      %v584 = vld [vmem:[%s576 + $0x38] sm:$0xff]
      %v585 = vld [vmem:[%s576 + $0x40] sm:$0xff]
      %v586 = vld [vmem:[%s576 + $0x48] sm:$0xff]
      %v587 = vld [vmem:[%s576 + $0x50] sm:$0xff]
      %v588 = vld [vmem:[%s576 + $0x58] sm:$0xff]
      %v589 = vld [vmem:[%s576 + $0x60] sm:$0xff]
      %v590 = vld [vmem:[%s576 + $0x68] sm:$0xff]
      %v591 = vld [vmem:[%s576 + $0x70] sm:$0xff]
      %v592 = vld [vmem:[%s576 + $0x78] sm:$0xff]
      %v593 = vld [vmem:[%s576 + $0x80] sm:$0xff]
      %v594 = vld [vmem:[%s576 + $0x88] sm:$0xff]
      %v595 = vld [vmem:[%s576 + $0x90] sm:$0xff]
      %v596 = vld [vmem:[%s576 + $0x98] sm:$0xff]
      %v597 = vld [vmem:[%s576 + $0xa0] sm:$0xff]
      %v598 = vld [vmem:[%s576 + $0xa8] sm:$0xff]
      %v599 = vld [vmem:[%s576 + $0xb0] sm:$0xff]
      %v600 = vld [vmem:[%s576 + $0xb8] sm:$0xff]
      %v601 = vld [vmem:[%s576 + $0xc0] sm:$0xff]
      %v602 = vld [vmem:[%s576 + $0xc8] sm:$0xff]
      %v603 = vld [vmem:[%s576 + $0xd0] sm:$0xff]
      %v604 = vld [vmem:[%s576 + $0xd8] sm:$0xff]
      %v605 = vld [vmem:[%s576 + $0xe0] sm:$0xff]
      %v606 = vld [vmem:[%s576 + $0xe8] sm:$0xff]
      %v607 = vld [vmem:[%s576 + $0xf0] sm:$0xff]
      %v608 = vld [vmem:[%s576 + $0xf8] sm:$0xff]
      %v609 = vld [vmem:[%s576 + $0x100] sm:$0xff]
      %v610 = vld [vmem:[%s576 + $0x108] sm:$0xff]
      %v611 = vld [vmem:[%s576 + $0x110] sm:$0xff]
      %v612 = vld [vmem:[%s576 + $0x118] sm:$0xff]
      %v613 = vld [vmem:[%s576 + $0x120] sm:$0xff]
      %v614 = vld [vmem:[%s576 + $0x128] sm:$0xff]
      %v615 = vld [vmem:[%s576 + $0x130] sm:$0xff]
      %v616 = vld [vmem:[%s576 + $0x138] sm:$0xff]
      %617 = vrot.lane.b32.xlu0 %v312, 88
      %v618 = vpop.permute.xlu0 %617
      %619 = vrot.lane.b32.xlu0 %v313, 88
      %v620 = vpop.permute.xlu0 %619
      %621 = vrot.lane.b32.xlu0 %v314, 88
      %v622 = vpop.permute.xlu0 %621
      %623 = vrot.lane.b32.xlu0 %v315, 88
      %v624 = vpop.permute.xlu0 %623
      %625 = vrot.lane.b32.xlu0 %v316, 88
      %v626 = vpop.permute.xlu0 %625
      %627 = vrot.lane.b32.xlu0 %v317, 88
      %v628 = vpop.permute.xlu0 %627
      %vm629 = vcmask 719872
      %v630 = vsel %vm629, %v618, %v620
      %v631 = vsel %vm629, %v620, %v622
      %v632 = vsel %vm629, %v624, %v626
      %v633 = vsel %vm629, %v626, %v628
      %v638 = vsel %vm429, %v622, 0
      %v640 = vsel %vm429, %v628, 0
      %642 = vmatpush.msra.mxu0 %v592
      %643 = vmatpush.msra.mxu0 %v591
      %644 = vmatpush.msra.mxu0 %v590
      %645 = vmatpush.msra.mxu0 %v589
      %646 = vmatpush.msra.mxu0 %v588
      %647 = vmatpush.msra.mxu0 %v587
      %648 = vmatpush.msra.mxu0 %v586
      %649 = vmatpush.msra.mxu0 %v585
      %650 = vmatpush.msra.mxu0 %v584
      %651 = vmatpush.msra.mxu0 %v583
      %652 = vmatpush.msra.mxu0 %v582
      %653 = vmatpush.msra.mxu0 %v581
      %654 = vmatpush.msra.mxu0 %v580
      %655 = vmatpush.msra.mxu0 %v579
      %656 = vmatpush.msra.mxu0 %v578
      %657 = vmatpush.msra.mxu0 %v577
      %658 = vmatmul.f32.gmra.mxu0 %v630
      %v659 = vpop.f32.mrf.mxu0
      %v660 = vadd.f32 0.0, %v659
      %661 = vmatmul.f32.gmra.mxu0 %v632
      %v662 = vpop.f32.mrf.mxu0
      %v663 = vadd.f32 0.0, %v662
      %664 = vdwg.mxu0
      %665 = vmatpush.msra.mxu0 %v608
      %666 = vmatpush.msra.mxu0 %v607
      %667 = vmatpush.msra.mxu0 %v606
      %668 = vmatpush.msra.mxu0 %v605
      %669 = vmatpush.msra.mxu0 %v604
      %670 = vmatpush.msra.mxu0 %v603
      %671 = vmatpush.msra.mxu0 %v602
      %672 = vmatpush.msra.mxu0 %v601
      %673 = vmatpush.msra.mxu0 %v600
      %674 = vmatpush.msra.mxu0 %v599
      %675 = vmatpush.msra.mxu0 %v598
      %676 = vmatpush.msra.mxu0 %v597
      %677 = vmatpush.msra.mxu0 %v596
      %678 = vmatpush.msra.mxu0 %v595
      %679 = vmatpush.msra.mxu0 %v594
      %680 = vmatpush.msra.mxu0 %v593
      %681 = vmatmul.f32.gmra.mxu0 %v631
      %v682 = vpop.f32.mrf.mxu0
      %v683 = vadd.f32 %v660, %v682
      %684 = vmatmul.f32.gmra.mxu0 %v633
      %v685 = vpop.f32.mrf.mxu0
      %v686 = vadd.f32 %v663, %v685
      %687 = vdwg.mxu0
      %688 = vmatpush.msra.mxu0 0.0
      %689 = vmatpush.msra.mxu0 0.0
      %690 = vmatpush.msra.mxu0 0.0
      %691 = vmatpush.msra.mxu0 0.0
      %692 = vmatpush.msra.mxu0 0.0
      %693 = vmatpush.msra.mxu0 0.0
      %694 = vmatpush.msra.mxu0 0.0
      %695 = vmatpush.msra.mxu0 0.0
      %696 = vmatpush.msra.mxu0 %v616
      %697 = vmatpush.msra.mxu0 %v615
      %698 = vmatpush.msra.mxu0 %v614
      %699 = vmatpush.msra.mxu0 %v613
      %700 = vmatpush.msra.mxu0 %v612
      %701 = vmatpush.msra.mxu0 %v611
      %702 = vmatpush.msra.mxu0 %v610
      %703 = vmatpush.msra.mxu0 %v609
      %704 = vmatmul.f32.gmra.mxu0 %v638
      %v705 = vpop.f32.mrf.mxu0
      %v706 = vadd.f32 %v683, %v705
      %707 = vmatmul.f32.gmra.mxu0 %v640
      %v708 = vpop.f32.mrf.mxu0
      %v709 = vadd.f32 %v686, %v708
      %710 = vdwg.mxu0
      %v711 = vadd.f32 %v571, %v706
      %v712 = vadd.f32 %v574, %v709
      %s713 = scalar_lea.vmem %s3, 960
      %v714 = vld [vmem:[%s713] sm:$0xff]
      %v715 = vld [vmem:[%s713 + $0x8] sm:$0xff]
      %v716 = vld [vmem:[%s713 + $0x10] sm:$0xff]
      %v717 = vld [vmem:[%s713 + $0x18] sm:$0xff]
      %v718 = vld [vmem:[%s713 + $0x20] sm:$0xff]
      %v719 = vld [vmem:[%s713 + $0x28] sm:$0xff]
      %v720 = vld [vmem:[%s713 + $0x30] sm:$0xff]
      %v721 = vld [vmem:[%s713 + $0x38] sm:$0xff]
      %v722 = vld [vmem:[%s713 + $0x40] sm:$0xff]
      %v723 = vld [vmem:[%s713 + $0x48] sm:$0xff]
      %v724 = vld [vmem:[%s713 + $0x50] sm:$0xff]
      %v725 = vld [vmem:[%s713 + $0x58] sm:$0xff]
      %v726 = vld [vmem:[%s713 + $0x60] sm:$0xff]
      %v727 = vld [vmem:[%s713 + $0x68] sm:$0xff]
      %v728 = vld [vmem:[%s713 + $0x70] sm:$0xff]
      %v729 = vld [vmem:[%s713 + $0x78] sm:$0xff]
      %v730 = vld [vmem:[%s713 + $0x80] sm:$0xff]
      %v731 = vld [vmem:[%s713 + $0x88] sm:$0xff]
      %v732 = vld [vmem:[%s713 + $0x90] sm:$0xff]
      %v733 = vld [vmem:[%s713 + $0x98] sm:$0xff]
      %v734 = vld [vmem:[%s713 + $0xa0] sm:$0xff]
      %v735 = vld [vmem:[%s713 + $0xa8] sm:$0xff]
      %v736 = vld [vmem:[%s713 + $0xb0] sm:$0xff]
      %v737 = vld [vmem:[%s713 + $0xb8] sm:$0xff]
      %v738 = vld [vmem:[%s713 + $0xc0] sm:$0xff]
      %v739 = vld [vmem:[%s713 + $0xc8] sm:$0xff]
      %v740 = vld [vmem:[%s713 + $0xd0] sm:$0xff]
      %v741 = vld [vmem:[%s713 + $0xd8] sm:$0xff]
      %v742 = vld [vmem:[%s713 + $0xe0] sm:$0xff]
      %v743 = vld [vmem:[%s713 + $0xe8] sm:$0xff]
      %v744 = vld [vmem:[%s713 + $0xf0] sm:$0xff]
      %v745 = vld [vmem:[%s713 + $0xf8] sm:$0xff]
      %v746 = vld [vmem:[%s713 + $0x100] sm:$0xff]
      %v747 = vld [vmem:[%s713 + $0x108] sm:$0xff]
      %v748 = vld [vmem:[%s713 + $0x110] sm:$0xff]
      %v749 = vld [vmem:[%s713 + $0x118] sm:$0xff]
      %v750 = vld [vmem:[%s713 + $0x120] sm:$0xff]
      %v751 = vld [vmem:[%s713 + $0x128] sm:$0xff]
      %v752 = vld [vmem:[%s713 + $0x130] sm:$0xff]
      %v753 = vld [vmem:[%s713 + $0x138] sm:$0xff]
      %vm757 = vcmask 1046528
      %v758 = vrot.slane %v312, 1
      %v759 = vrot.slane %v315, 1
      %v760 = vsel %vm757, %v758, %v759
      %v761 = vrot.slane %v313, 1
      %v762 = vrot.slane %v316, 1
      %v763 = vsel %vm757, %v761, %v762
      %v764 = vrot.slane %v314, 1
      %v765 = vrot.slane %v317, 1
      %v766 = vsel %vm757, %v764, %v765
      %v767 = vrot.slane %v318, 1
      %v768 = vsel %vm757, %v759, %v767
      %v769 = vrot.slane %v319, 1
      %v770 = vsel %vm757, %v762, %v769
      %v771 = vrot.slane %v320, 1
      %v772 = vsel %vm757, %v765, %v771
      %v777 = vsel %vm429, %v766, 0
      %v779 = vsel %vm429, %v772, 0
      %781 = vmatpush.msra.mxu0 %v729
      %782 = vmatpush.msra.mxu0 %v728
      %783 = vmatpush.msra.mxu0 %v727
      %784 = vmatpush.msra.mxu0 %v726
      %785 = vmatpush.msra.mxu0 %v725
      %786 = vmatpush.msra.mxu0 %v724
      %787 = vmatpush.msra.mxu0 %v723
      %788 = vmatpush.msra.mxu0 %v722
      %789 = vmatpush.msra.mxu0 %v721
      %790 = vmatpush.msra.mxu0 %v720
      %791 = vmatpush.msra.mxu0 %v719
      %792 = vmatpush.msra.mxu0 %v718
      %793 = vmatpush.msra.mxu0 %v717
      %794 = vmatpush.msra.mxu0 %v716
      %795 = vmatpush.msra.mxu0 %v715
      %796 = vmatpush.msra.mxu0 %v714
      %797 = vmatmul.f32.gmra.mxu0 %v760
      %v798 = vpop.f32.mrf.mxu0
      %v799 = vadd.f32 0.0, %v798
      %800 = vmatmul.f32.gmra.mxu0 %v768
      %v801 = vpop.f32.mrf.mxu0
      %v802 = vadd.f32 0.0, %v801
      %803 = vdwg.mxu0
      %804 = vmatpush.msra.mxu0 %v745
      %805 = vmatpush.msra.mxu0 %v744
      %806 = vmatpush.msra.mxu0 %v743
      %807 = vmatpush.msra.mxu0 %v742
      %808 = vmatpush.msra.mxu0 %v741
      %809 = vmatpush.msra.mxu0 %v740
      %810 = vmatpush.msra.mxu0 %v739
      %811 = vmatpush.msra.mxu0 %v738
      %812 = vmatpush.msra.mxu0 %v737
      %813 = vmatpush.msra.mxu0 %v736
      %814 = vmatpush.msra.mxu0 %v735
      %815 = vmatpush.msra.mxu0 %v734
      %816 = vmatpush.msra.mxu0 %v733
      %817 = vmatpush.msra.mxu0 %v732
      %818 = vmatpush.msra.mxu0 %v731
      %819 = vmatpush.msra.mxu0 %v730
      %820 = vmatmul.f32.gmra.mxu0 %v763
      %v821 = vpop.f32.mrf.mxu0
      %v822 = vadd.f32 %v799, %v821
      %823 = vmatmul.f32.gmra.mxu0 %v770
      %v824 = vpop.f32.mrf.mxu0
      %v825 = vadd.f32 %v802, %v824
      %826 = vdwg.mxu0
      %827 = vmatpush.msra.mxu0 0.0
      %828 = vmatpush.msra.mxu0 0.0
      %829 = vmatpush.msra.mxu0 0.0
      %830 = vmatpush.msra.mxu0 0.0
      %831 = vmatpush.msra.mxu0 0.0
      %832 = vmatpush.msra.mxu0 0.0
      %833 = vmatpush.msra.mxu0 0.0
      %834 = vmatpush.msra.mxu0 0.0
      %835 = vmatpush.msra.mxu0 %v753
      %836 = vmatpush.msra.mxu0 %v752
      %837 = vmatpush.msra.mxu0 %v751
      %838 = vmatpush.msra.mxu0 %v750
      %839 = vmatpush.msra.mxu0 %v749
      %840 = vmatpush.msra.mxu0 %v748
      %841 = vmatpush.msra.mxu0 %v747
      %842 = vmatpush.msra.mxu0 %v746
      %843 = vmatmul.f32.gmra.mxu0 %v777
      %v844 = vpop.f32.mrf.mxu0
      %v845 = vadd.f32 %v822, %v844
      %846 = vmatmul.f32.gmra.mxu0 %v779
      %v847 = vpop.f32.mrf.mxu0
      %v848 = vadd.f32 %v825, %v847
      %849 = vdwg.mxu0
      %v850 = vadd.f32 %v711, %v845
      %v851 = vadd.f32 %v712, %v848
      %s852 = scalar_lea.vmem %s3, 1280
      %v853 = vld [vmem:[%s852] sm:$0xff]
      %v854 = vld [vmem:[%s852 + $0x8] sm:$0xff]
      %v855 = vld [vmem:[%s852 + $0x10] sm:$0xff]
      %v856 = vld [vmem:[%s852 + $0x18] sm:$0xff]
      %v857 = vld [vmem:[%s852 + $0x20] sm:$0xff]
      %v858 = vld [vmem:[%s852 + $0x28] sm:$0xff]
      %v859 = vld [vmem:[%s852 + $0x30] sm:$0xff]
      %v860 = vld [vmem:[%s852 + $0x38] sm:$0xff]
      %v861 = vld [vmem:[%s852 + $0x40] sm:$0xff]
      %v862 = vld [vmem:[%s852 + $0x48] sm:$0xff]
      %v863 = vld [vmem:[%s852 + $0x50] sm:$0xff]
      %v864 = vld [vmem:[%s852 + $0x58] sm:$0xff]
      %v865 = vld [vmem:[%s852 + $0x60] sm:$0xff]
      %v866 = vld [vmem:[%s852 + $0x68] sm:$0xff]
      %v867 = vld [vmem:[%s852 + $0x70] sm:$0xff]
      %v868 = vld [vmem:[%s852 + $0x78] sm:$0xff]
      %v869 = vld [vmem:[%s852 + $0x80] sm:$0xff]
      %v870 = vld [vmem:[%s852 + $0x88] sm:$0xff]
      %v871 = vld [vmem:[%s852 + $0x90] sm:$0xff]
      %v872 = vld [vmem:[%s852 + $0x98] sm:$0xff]
      %v873 = vld [vmem:[%s852 + $0xa0] sm:$0xff]
      %v874 = vld [vmem:[%s852 + $0xa8] sm:$0xff]
      %v875 = vld [vmem:[%s852 + $0xb0] sm:$0xff]
      %v876 = vld [vmem:[%s852 + $0xb8] sm:$0xff]
      %v877 = vld [vmem:[%s852 + $0xc0] sm:$0xff]
      %v878 = vld [vmem:[%s852 + $0xc8] sm:$0xff]
      %v879 = vld [vmem:[%s852 + $0xd0] sm:$0xff]
      %v880 = vld [vmem:[%s852 + $0xd8] sm:$0xff]
      %v881 = vld [vmem:[%s852 + $0xe0] sm:$0xff]
      %v882 = vld [vmem:[%s852 + $0xe8] sm:$0xff]
      %v883 = vld [vmem:[%s852 + $0xf0] sm:$0xff]
      %v884 = vld [vmem:[%s852 + $0xf8] sm:$0xff]
      %v885 = vld [vmem:[%s852 + $0x100] sm:$0xff]
      %v886 = vld [vmem:[%s852 + $0x108] sm:$0xff]
      %v887 = vld [vmem:[%s852 + $0x110] sm:$0xff]
      %v888 = vld [vmem:[%s852 + $0x118] sm:$0xff]
      %v889 = vld [vmem:[%s852 + $0x120] sm:$0xff]
      %v890 = vld [vmem:[%s852 + $0x128] sm:$0xff]
      %v891 = vld [vmem:[%s852 + $0x130] sm:$0xff]
      %v892 = vld [vmem:[%s852 + $0x138] sm:$0xff]
      %893 = vrot.lane.b32.xlu0 %v760, 108
      %v894 = vpop.permute.xlu0 %893
      %895 = vrot.lane.b32.xlu0 %v763, 108
      %v896 = vpop.permute.xlu0 %895
      %897 = vrot.lane.b32.xlu0 %v766, 108
      %v898 = vpop.permute.xlu0 %897
      %899 = vrot.lane.b32.xlu0 %v768, 108
      %v900 = vpop.permute.xlu0 %899
      %901 = vrot.lane.b32.xlu0 %v770, 108
      %v902 = vpop.permute.xlu0 %901
      %903 = vrot.lane.b32.xlu0 %v772, 108
      %v904 = vpop.permute.xlu0 %903
      %v905 = vsel %vm420, %v894, %v896
      %v906 = vsel %vm420, %v896, %v898
      %v907 = vsel %vm420, %v900, %v902
      %v908 = vsel %vm420, %v902, %v904
      %v913 = vsel %vm429, %v898, 0
      %v915 = vsel %vm429, %v904, 0
      %917 = vmatpush.msra.mxu0 %v868
      %918 = vmatpush.msra.mxu0 %v867
      %919 = vmatpush.msra.mxu0 %v866
      %920 = vmatpush.msra.mxu0 %v865
      %921 = vmatpush.msra.mxu0 %v864
      %922 = vmatpush.msra.mxu0 %v863
      %923 = vmatpush.msra.mxu0 %v862
      %924 = vmatpush.msra.mxu0 %v861
      %925 = vmatpush.msra.mxu0 %v860
      %926 = vmatpush.msra.mxu0 %v859
      %927 = vmatpush.msra.mxu0 %v858
      %928 = vmatpush.msra.mxu0 %v857
      %929 = vmatpush.msra.mxu0 %v856
      %930 = vmatpush.msra.mxu0 %v855
      %931 = vmatpush.msra.mxu0 %v854
      %932 = vmatpush.msra.mxu0 %v853
      %933 = vmatmul.f32.gmra.mxu0 %v905
      %v934 = vpop.f32.mrf.mxu0
      %v935 = vadd.f32 0.0, %v934
      %936 = vmatmul.f32.gmra.mxu0 %v907
      %v937 = vpop.f32.mrf.mxu0
      %v938 = vadd.f32 0.0, %v937
      %939 = vdwg.mxu0
      %940 = vmatpush.msra.mxu0 %v884
      %941 = vmatpush.msra.mxu0 %v883
      %942 = vmatpush.msra.mxu0 %v882
      %943 = vmatpush.msra.mxu0 %v881
      %944 = vmatpush.msra.mxu0 %v880
      %945 = vmatpush.msra.mxu0 %v879
      %946 = vmatpush.msra.mxu0 %v878
      %947 = vmatpush.msra.mxu0 %v877
      %948 = vmatpush.msra.mxu0 %v876
      %949 = vmatpush.msra.mxu0 %v875
      %950 = vmatpush.msra.mxu0 %v874
      %951 = vmatpush.msra.mxu0 %v873
      %952 = vmatpush.msra.mxu0 %v872
      %953 = vmatpush.msra.mxu0 %v871
      %954 = vmatpush.msra.mxu0 %v870
      %955 = vmatpush.msra.mxu0 %v869
      %956 = vmatmul.f32.gmra.mxu0 %v906
      %v957 = vpop.f32.mrf.mxu0
      %v958 = vadd.f32 %v935, %v957
      %959 = vmatmul.f32.gmra.mxu0 %v908
      %v960 = vpop.f32.mrf.mxu0
      %v961 = vadd.f32 %v938, %v960
      %962 = vdwg.mxu0
      %963 = vmatpush.msra.mxu0 0.0
      %964 = vmatpush.msra.mxu0 0.0
      %965 = vmatpush.msra.mxu0 0.0
      %966 = vmatpush.msra.mxu0 0.0
      %967 = vmatpush.msra.mxu0 0.0
      %968 = vmatpush.msra.mxu0 0.0
      %969 = vmatpush.msra.mxu0 0.0
      %970 = vmatpush.msra.mxu0 0.0
      %971 = vmatpush.msra.mxu0 %v892
      %972 = vmatpush.msra.mxu0 %v891
      %973 = vmatpush.msra.mxu0 %v890
      %974 = vmatpush.msra.mxu0 %v889
      %975 = vmatpush.msra.mxu0 %v888
      %976 = vmatpush.msra.mxu0 %v887
      %977 = vmatpush.msra.mxu0 %v886
      %978 = vmatpush.msra.mxu0 %v885
      %979 = vmatmul.f32.gmra.mxu0 %v913
      %v980 = vpop.f32.mrf.mxu0
      %v981 = vadd.f32 %v958, %v980
      %982 = vmatmul.f32.gmra.mxu0 %v915
      %v983 = vpop.f32.mrf.mxu0
      %v984 = vadd.f32 %v961, %v983
      %985 = vdwg.mxu0
      %v986 = vadd.f32 %v850, %v981
      %v987 = vadd.f32 %v851, %v984
      %s988 = scalar_lea.vmem %s3, 1600
      %v989 = vld [vmem:[%s988] sm:$0xff]
      %v990 = vld [vmem:[%s988 + $0x8] sm:$0xff]
      %v991 = vld [vmem:[%s988 + $0x10] sm:$0xff]
      %v992 = vld [vmem:[%s988 + $0x18] sm:$0xff]
      %v993 = vld [vmem:[%s988 + $0x20] sm:$0xff]
      %v994 = vld [vmem:[%s988 + $0x28] sm:$0xff]
      %v995 = vld [vmem:[%s988 + $0x30] sm:$0xff]
      %v996 = vld [vmem:[%s988 + $0x38] sm:$0xff]
      %v997 = vld [vmem:[%s988 + $0x40] sm:$0xff]
      %v998 = vld [vmem:[%s988 + $0x48] sm:$0xff]
      %v999 = vld [vmem:[%s988 + $0x50] sm:$0xff]
      %v1000 = vld [vmem:[%s988 + $0x58] sm:$0xff]
      %v1001 = vld [vmem:[%s988 + $0x60] sm:$0xff]
      %v1002 = vld [vmem:[%s988 + $0x68] sm:$0xff]
      %v1003 = vld [vmem:[%s988 + $0x70] sm:$0xff]
      %v1004 = vld [vmem:[%s988 + $0x78] sm:$0xff]
      %v1005 = vld [vmem:[%s988 + $0x80] sm:$0xff]
      %v1006 = vld [vmem:[%s988 + $0x88] sm:$0xff]
      %v1007 = vld [vmem:[%s988 + $0x90] sm:$0xff]
      %v1008 = vld [vmem:[%s988 + $0x98] sm:$0xff]
      %v1009 = vld [vmem:[%s988 + $0xa0] sm:$0xff]
      %v1010 = vld [vmem:[%s988 + $0xa8] sm:$0xff]
      %v1011 = vld [vmem:[%s988 + $0xb0] sm:$0xff]
      %v1012 = vld [vmem:[%s988 + $0xb8] sm:$0xff]
      %v1013 = vld [vmem:[%s988 + $0xc0] sm:$0xff]
      %v1014 = vld [vmem:[%s988 + $0xc8] sm:$0xff]
      %v1015 = vld [vmem:[%s988 + $0xd0] sm:$0xff]
      %v1016 = vld [vmem:[%s988 + $0xd8] sm:$0xff]
      %v1017 = vld [vmem:[%s988 + $0xe0] sm:$0xff]
      %v1018 = vld [vmem:[%s988 + $0xe8] sm:$0xff]
      %v1019 = vld [vmem:[%s988 + $0xf0] sm:$0xff]
      %v1020 = vld [vmem:[%s988 + $0xf8] sm:$0xff]
      %v1021 = vld [vmem:[%s988 + $0x100] sm:$0xff]
      %v1022 = vld [vmem:[%s988 + $0x108] sm:$0xff]
      %v1023 = vld [vmem:[%s988 + $0x110] sm:$0xff]
      %v1024 = vld [vmem:[%s988 + $0x118] sm:$0xff]
      %v1025 = vld [vmem:[%s988 + $0x120] sm:$0xff]
      %v1026 = vld [vmem:[%s988 + $0x128] sm:$0xff]
      %v1027 = vld [vmem:[%s988 + $0x130] sm:$0xff]
      %v1028 = vld [vmem:[%s988 + $0x138] sm:$0xff]
      %1029 = vrot.lane.b32.xlu0 %v760, 88
      %v1030 = vpop.permute.xlu0 %1029
      %1031 = vrot.lane.b32.xlu0 %v763, 88
      %v1032 = vpop.permute.xlu0 %1031
      %1033 = vrot.lane.b32.xlu0 %v766, 88
      %v1034 = vpop.permute.xlu0 %1033
      %1035 = vrot.lane.b32.xlu0 %v768, 88
      %v1036 = vpop.permute.xlu0 %1035
      %1037 = vrot.lane.b32.xlu0 %v770, 88
      %v1038 = vpop.permute.xlu0 %1037
      %1039 = vrot.lane.b32.xlu0 %v772, 88
      %v1040 = vpop.permute.xlu0 %1039
      %v1041 = vsel %vm629, %v1030, %v1032
      %v1042 = vsel %vm629, %v1032, %v1034
      %v1043 = vsel %vm629, %v1036, %v1038
      %v1044 = vsel %vm629, %v1038, %v1040
      %v1049 = vsel %vm429, %v1034, 0
      %v1051 = vsel %vm429, %v1040, 0
      %1053 = vmatpush.msra.mxu0 %v1004
      %1054 = vmatpush.msra.mxu0 %v1003
      %1055 = vmatpush.msra.mxu0 %v1002
      %1056 = vmatpush.msra.mxu0 %v1001
      %1057 = vmatpush.msra.mxu0 %v1000
      %1058 = vmatpush.msra.mxu0 %v999
      %1059 = vmatpush.msra.mxu0 %v998
      %1060 = vmatpush.msra.mxu0 %v997
      %1061 = vmatpush.msra.mxu0 %v996
      %1062 = vmatpush.msra.mxu0 %v995
      %1063 = vmatpush.msra.mxu0 %v994
      %1064 = vmatpush.msra.mxu0 %v993
      %1065 = vmatpush.msra.mxu0 %v992
      %1066 = vmatpush.msra.mxu0 %v991
      %1067 = vmatpush.msra.mxu0 %v990
      %1068 = vmatpush.msra.mxu0 %v989
      %1069 = vmatmul.f32.gmra.mxu0 %v1041
      %v1070 = vpop.f32.mrf.mxu0
      %v1071 = vadd.f32 0.0, %v1070
      %1072 = vmatmul.f32.gmra.mxu0 %v1043
      %v1073 = vpop.f32.mrf.mxu0
      %v1074 = vadd.f32 0.0, %v1073
      %1075 = vdwg.mxu0
      %1076 = vmatpush.msra.mxu0 %v1020
      %1077 = vmatpush.msra.mxu0 %v1019
      %1078 = vmatpush.msra.mxu0 %v1018
      %1079 = vmatpush.msra.mxu0 %v1017
      %1080 = vmatpush.msra.mxu0 %v1016
      %1081 = vmatpush.msra.mxu0 %v1015
      %1082 = vmatpush.msra.mxu0 %v1014
      %1083 = vmatpush.msra.mxu0 %v1013
      %1084 = vmatpush.msra.mxu0 %v1012
      %1085 = vmatpush.msra.mxu0 %v1011
      %1086 = vmatpush.msra.mxu0 %v1010
      %1087 = vmatpush.msra.mxu0 %v1009
      %1088 = vmatpush.msra.mxu0 %v1008
      %1089 = vmatpush.msra.mxu0 %v1007
      %1090 = vmatpush.msra.mxu0 %v1006
      %1091 = vmatpush.msra.mxu0 %v1005
      %1092 = vmatmul.f32.gmra.mxu0 %v1042
      %v1093 = vpop.f32.mrf.mxu0
      %v1094 = vadd.f32 %v1071, %v1093
      %1095 = vmatmul.f32.gmra.mxu0 %v1044
      %v1096 = vpop.f32.mrf.mxu0
      %v1097 = vadd.f32 %v1074, %v1096
      %1098 = vdwg.mxu0
      %1099 = vmatpush.msra.mxu0 0.0
      %1100 = vmatpush.msra.mxu0 0.0
      %1101 = vmatpush.msra.mxu0 0.0
      %1102 = vmatpush.msra.mxu0 0.0
      %1103 = vmatpush.msra.mxu0 0.0
      %1104 = vmatpush.msra.mxu0 0.0
      %1105 = vmatpush.msra.mxu0 0.0
      %1106 = vmatpush.msra.mxu0 0.0
      %1107 = vmatpush.msra.mxu0 %v1028
      %1108 = vmatpush.msra.mxu0 %v1027
      %1109 = vmatpush.msra.mxu0 %v1026
      %1110 = vmatpush.msra.mxu0 %v1025
      %1111 = vmatpush.msra.mxu0 %v1024
      %1112 = vmatpush.msra.mxu0 %v1023
      %1113 = vmatpush.msra.mxu0 %v1022
      %1114 = vmatpush.msra.mxu0 %v1021
      %1115 = vmatmul.f32.gmra.mxu0 %v1049
      %v1116 = vpop.f32.mrf.mxu0
      %v1117 = vadd.f32 %v1094, %v1116
      %1118 = vmatmul.f32.gmra.mxu0 %v1051
      %v1119 = vpop.f32.mrf.mxu0
      %v1120 = vadd.f32 %v1097, %v1119
      %1121 = vdwg.mxu0
      %v1122 = vadd.f32 %v986, %v1117
      %v1123 = vadd.f32 %v987, %v1120
      %s1124 = scalar_lea.vmem %s3, 1920
      %v1125 = vld [vmem:[%s1124] sm:$0xff]
      %v1126 = vld [vmem:[%s1124 + $0x8] sm:$0xff]
      %v1127 = vld [vmem:[%s1124 + $0x10] sm:$0xff]
      %v1128 = vld [vmem:[%s1124 + $0x18] sm:$0xff]
      %v1129 = vld [vmem:[%s1124 + $0x20] sm:$0xff]
      %v1130 = vld [vmem:[%s1124 + $0x28] sm:$0xff]
      %v1131 = vld [vmem:[%s1124 + $0x30] sm:$0xff]
      %v1132 = vld [vmem:[%s1124 + $0x38] sm:$0xff]
      %v1133 = vld [vmem:[%s1124 + $0x40] sm:$0xff]
      %v1134 = vld [vmem:[%s1124 + $0x48] sm:$0xff]
      %v1135 = vld [vmem:[%s1124 + $0x50] sm:$0xff]
      %v1136 = vld [vmem:[%s1124 + $0x58] sm:$0xff]
      %v1137 = vld [vmem:[%s1124 + $0x60] sm:$0xff]
      %v1138 = vld [vmem:[%s1124 + $0x68] sm:$0xff]
      %v1139 = vld [vmem:[%s1124 + $0x70] sm:$0xff]
      %v1140 = vld [vmem:[%s1124 + $0x78] sm:$0xff]
      %v1141 = vld [vmem:[%s1124 + $0x80] sm:$0xff]
      %v1142 = vld [vmem:[%s1124 + $0x88] sm:$0xff]
      %v1143 = vld [vmem:[%s1124 + $0x90] sm:$0xff]
      %v1144 = vld [vmem:[%s1124 + $0x98] sm:$0xff]
      %v1145 = vld [vmem:[%s1124 + $0xa0] sm:$0xff]
      %v1146 = vld [vmem:[%s1124 + $0xa8] sm:$0xff]
      %v1147 = vld [vmem:[%s1124 + $0xb0] sm:$0xff]
      %v1148 = vld [vmem:[%s1124 + $0xb8] sm:$0xff]
      %v1149 = vld [vmem:[%s1124 + $0xc0] sm:$0xff]
      %v1150 = vld [vmem:[%s1124 + $0xc8] sm:$0xff]
      %v1151 = vld [vmem:[%s1124 + $0xd0] sm:$0xff]
      %v1152 = vld [vmem:[%s1124 + $0xd8] sm:$0xff]
      %v1153 = vld [vmem:[%s1124 + $0xe0] sm:$0xff]
      %v1154 = vld [vmem:[%s1124 + $0xe8] sm:$0xff]
      %v1155 = vld [vmem:[%s1124 + $0xf0] sm:$0xff]
      %v1156 = vld [vmem:[%s1124 + $0xf8] sm:$0xff]
      %v1157 = vld [vmem:[%s1124 + $0x100] sm:$0xff]
      %v1158 = vld [vmem:[%s1124 + $0x108] sm:$0xff]
      %v1159 = vld [vmem:[%s1124 + $0x110] sm:$0xff]
      %v1160 = vld [vmem:[%s1124 + $0x118] sm:$0xff]
      %v1161 = vld [vmem:[%s1124 + $0x120] sm:$0xff]
      %v1162 = vld [vmem:[%s1124 + $0x128] sm:$0xff]
      %v1163 = vld [vmem:[%s1124 + $0x130] sm:$0xff]
      %v1164 = vld [vmem:[%s1124 + $0x138] sm:$0xff]
      %vm1165 = vcmask 1045504
      %v1166 = vrot.slane %v312, 2
      %v1167 = vrot.slane %v315, 2
      %v1168 = vsel %vm1165, %v1166, %v1167
      %v1169 = vrot.slane %v313, 2
      %v1170 = vrot.slane %v316, 2
      %v1171 = vsel %vm1165, %v1169, %v1170
      %v1172 = vrot.slane %v314, 2
      %v1173 = vrot.slane %v317, 2
      %v1174 = vsel %vm1165, %v1172, %v1173
      %v1175 = vrot.slane %v318, 2
      %v1176 = vsel %vm1165, %v1167, %v1175
      %v1177 = vrot.slane %v319, 2
      %v1178 = vsel %vm1165, %v1170, %v1177
      %v1179 = vrot.slane %v320, 2
      %v1180 = vsel %vm1165, %v1173, %v1179
      %v1185 = vsel %vm429, %v1174, 0
      %v1187 = vsel %vm429, %v1180, 0
      %1189 = vmatpush.msra.mxu0 %v1140
      %1190 = vmatpush.msra.mxu0 %v1139
      %1191 = vmatpush.msra.mxu0 %v1138
      %1192 = vmatpush.msra.mxu0 %v1137
      %1193 = vmatpush.msra.mxu0 %v1136
      %1194 = vmatpush.msra.mxu0 %v1135
      %1195 = vmatpush.msra.mxu0 %v1134
      %1196 = vmatpush.msra.mxu0 %v1133
      %1197 = vmatpush.msra.mxu0 %v1132
      %1198 = vmatpush.msra.mxu0 %v1131
      %1199 = vmatpush.msra.mxu0 %v1130
      %1200 = vmatpush.msra.mxu0 %v1129
      %1201 = vmatpush.msra.mxu0 %v1128
      %1202 = vmatpush.msra.mxu0 %v1127
      %1203 = vmatpush.msra.mxu0 %v1126
      %1204 = vmatpush.msra.mxu0 %v1125
      %1205 = vmatmul.f32.gmra.mxu0 %v1168
      %v1206 = vpop.f32.mrf.mxu0
      %v1207 = vadd.f32 0.0, %v1206
      %1208 = vmatmul.f32.gmra.mxu0 %v1176
      %v1209 = vpop.f32.mrf.mxu0
      %v1210 = vadd.f32 0.0, %v1209
      %1211 = vdwg.mxu0
      %1212 = vmatpush.msra.mxu0 %v1156
      %1213 = vmatpush.msra.mxu0 %v1155
      %1214 = vmatpush.msra.mxu0 %v1154
      %1215 = vmatpush.msra.mxu0 %v1153
      %1216 = vmatpush.msra.mxu0 %v1152
      %1217 = vmatpush.msra.mxu0 %v1151
      %1218 = vmatpush.msra.mxu0 %v1150
      %1219 = vmatpush.msra.mxu0 %v1149
      %1220 = vmatpush.msra.mxu0 %v1148
      %1221 = vmatpush.msra.mxu0 %v1147
      %1222 = vmatpush.msra.mxu0 %v1146
      %1223 = vmatpush.msra.mxu0 %v1145
      %1224 = vmatpush.msra.mxu0 %v1144
      %1225 = vmatpush.msra.mxu0 %v1143
      %1226 = vmatpush.msra.mxu0 %v1142
      %1227 = vmatpush.msra.mxu0 %v1141
      %1228 = vmatmul.f32.gmra.mxu0 %v1171
      %v1229 = vpop.f32.mrf.mxu0
      %v1230 = vadd.f32 %v1207, %v1229
      %1231 = vmatmul.f32.gmra.mxu0 %v1178
      %v1232 = vpop.f32.mrf.mxu0
      %v1233 = vadd.f32 %v1210, %v1232
      %1234 = vdwg.mxu0
      %1235 = vmatpush.msra.mxu0 0.0
      %1236 = vmatpush.msra.mxu0 0.0
      %1237 = vmatpush.msra.mxu0 0.0
      %1238 = vmatpush.msra.mxu0 0.0
      %1239 = vmatpush.msra.mxu0 0.0
      %1240 = vmatpush.msra.mxu0 0.0
      %1241 = vmatpush.msra.mxu0 0.0
      %1242 = vmatpush.msra.mxu0 0.0
      %1243 = vmatpush.msra.mxu0 %v1164
      %1244 = vmatpush.msra.mxu0 %v1163
      %1245 = vmatpush.msra.mxu0 %v1162
      %1246 = vmatpush.msra.mxu0 %v1161
      %1247 = vmatpush.msra.mxu0 %v1160
      %1248 = vmatpush.msra.mxu0 %v1159
      %1249 = vmatpush.msra.mxu0 %v1158
      %1250 = vmatpush.msra.mxu0 %v1157
      %1251 = vmatmul.f32.gmra.mxu0 %v1185
      %v1252 = vpop.f32.mrf.mxu0
      %v1253 = vadd.f32 %v1230, %v1252
      %1254 = vmatmul.f32.gmra.mxu0 %v1187
      %v1255 = vpop.f32.mrf.mxu0
      %v1256 = vadd.f32 %v1233, %v1255
      %1257 = vdwg.mxu0
      %v1258 = vadd.f32 %v1122, %v1253
      %v1259 = vadd.f32 %v1123, %v1256
      %s1260 = scalar_lea.vmem %s3, 2240
      %v1261 = vld [vmem:[%s1260] sm:$0xff]
      %v1262 = vld [vmem:[%s1260 + $0x8] sm:$0xff]
      %v1263 = vld [vmem:[%s1260 + $0x10] sm:$0xff]
      %v1264 = vld [vmem:[%s1260 + $0x18] sm:$0xff]
      %v1265 = vld [vmem:[%s1260 + $0x20] sm:$0xff]
      %v1266 = vld [vmem:[%s1260 + $0x28] sm:$0xff]
      %v1267 = vld [vmem:[%s1260 + $0x30] sm:$0xff]
      %v1268 = vld [vmem:[%s1260 + $0x38] sm:$0xff]
      %v1269 = vld [vmem:[%s1260 + $0x40] sm:$0xff]
      %v1270 = vld [vmem:[%s1260 + $0x48] sm:$0xff]
      %v1271 = vld [vmem:[%s1260 + $0x50] sm:$0xff]
      %v1272 = vld [vmem:[%s1260 + $0x58] sm:$0xff]
      %v1273 = vld [vmem:[%s1260 + $0x60] sm:$0xff]
      %v1274 = vld [vmem:[%s1260 + $0x68] sm:$0xff]
      %v1275 = vld [vmem:[%s1260 + $0x70] sm:$0xff]
      %v1276 = vld [vmem:[%s1260 + $0x78] sm:$0xff]
      %v1277 = vld [vmem:[%s1260 + $0x80] sm:$0xff]
      %v1278 = vld [vmem:[%s1260 + $0x88] sm:$0xff]
      %v1279 = vld [vmem:[%s1260 + $0x90] sm:$0xff]
      %v1280 = vld [vmem:[%s1260 + $0x98] sm:$0xff]
      %v1281 = vld [vmem:[%s1260 + $0xa0] sm:$0xff]
      %v1282 = vld [vmem:[%s1260 + $0xa8] sm:$0xff]
      %v1283 = vld [vmem:[%s1260 + $0xb0] sm:$0xff]
      %v1284 = vld [vmem:[%s1260 + $0xb8] sm:$0xff]
      %v1285 = vld [vmem:[%s1260 + $0xc0] sm:$0xff]
      %v1286 = vld [vmem:[%s1260 + $0xc8] sm:$0xff]
      %v1287 = vld [vmem:[%s1260 + $0xd0] sm:$0xff]
      %v1288 = vld [vmem:[%s1260 + $0xd8] sm:$0xff]
      %v1289 = vld [vmem:[%s1260 + $0xe0] sm:$0xff]
      %v1290 = vld [vmem:[%s1260 + $0xe8] sm:$0xff]
      %v1291 = vld [vmem:[%s1260 + $0xf0] sm:$0xff]
      %v1292 = vld [vmem:[%s1260 + $0xf8] sm:$0xff]
      %v1293 = vld [vmem:[%s1260 + $0x100] sm:$0xff]
      %v1294 = vld [vmem:[%s1260 + $0x108] sm:$0xff]
      %v1295 = vld [vmem:[%s1260 + $0x110] sm:$0xff]
      %v1296 = vld [vmem:[%s1260 + $0x118] sm:$0xff]
      %v1297 = vld [vmem:[%s1260 + $0x120] sm:$0xff]
      %v1298 = vld [vmem:[%s1260 + $0x128] sm:$0xff]
      %v1299 = vld [vmem:[%s1260 + $0x130] sm:$0xff]
      %v1300 = vld [vmem:[%s1260 + $0x138] sm:$0xff]
      %1301 = vrot.lane.b32.xlu0 %v1168, 108
      %v1302 = vpop.permute.xlu0 %1301
      %1303 = vrot.lane.b32.xlu0 %v1171, 108
      %v1304 = vpop.permute.xlu0 %1303
      %1305 = vrot.lane.b32.xlu0 %v1174, 108
      %v1306 = vpop.permute.xlu0 %1305
      %1307 = vrot.lane.b32.xlu0 %v1176, 108
      %v1308 = vpop.permute.xlu0 %1307
      %1309 = vrot.lane.b32.xlu0 %v1178, 108
      %v1310 = vpop.permute.xlu0 %1309
      %1311 = vrot.lane.b32.xlu0 %v1180, 108
      %v1312 = vpop.permute.xlu0 %1311
      %v1313 = vsel %vm420, %v1302, %v1304
      %v1314 = vsel %vm420, %v1304, %v1306
      %v1315 = vsel %vm420, %v1308, %v1310
      %v1316 = vsel %vm420, %v1310, %v1312
      %v1321 = vsel %vm429, %v1306, 0
      %v1323 = vsel %vm429, %v1312, 0
      %1325 = vmatpush.msra.mxu0 %v1276
      %1326 = vmatpush.msra.mxu0 %v1275
      %1327 = vmatpush.msra.mxu0 %v1274
      %1328 = vmatpush.msra.mxu0 %v1273
      %1329 = vmatpush.msra.mxu0 %v1272
      %1330 = vmatpush.msra.mxu0 %v1271
      %1331 = vmatpush.msra.mxu0 %v1270
      %1332 = vmatpush.msra.mxu0 %v1269
      %1333 = vmatpush.msra.mxu0 %v1268
      %1334 = vmatpush.msra.mxu0 %v1267
      %1335 = vmatpush.msra.mxu0 %v1266
      %1336 = vmatpush.msra.mxu0 %v1265
      %1337 = vmatpush.msra.mxu0 %v1264
      %1338 = vmatpush.msra.mxu0 %v1263
      %1339 = vmatpush.msra.mxu0 %v1262
      %1340 = vmatpush.msra.mxu0 %v1261
      %1341 = vmatmul.f32.gmra.mxu0 %v1313
      %v1342 = vpop.f32.mrf.mxu0
      %v1343 = vadd.f32 0.0, %v1342
      %1344 = vmatmul.f32.gmra.mxu0 %v1315
      %v1345 = vpop.f32.mrf.mxu0
      %v1346 = vadd.f32 0.0, %v1345
      %1347 = vdwg.mxu0
      %1348 = vmatpush.msra.mxu0 %v1292
      %1349 = vmatpush.msra.mxu0 %v1291
      %1350 = vmatpush.msra.mxu0 %v1290
      %1351 = vmatpush.msra.mxu0 %v1289
      %1352 = vmatpush.msra.mxu0 %v1288
      %1353 = vmatpush.msra.mxu0 %v1287
      %1354 = vmatpush.msra.mxu0 %v1286
      %1355 = vmatpush.msra.mxu0 %v1285
      %1356 = vmatpush.msra.mxu0 %v1284
      %1357 = vmatpush.msra.mxu0 %v1283
      %1358 = vmatpush.msra.mxu0 %v1282
      %1359 = vmatpush.msra.mxu0 %v1281
      %1360 = vmatpush.msra.mxu0 %v1280
      %1361 = vmatpush.msra.mxu0 %v1279
      %1362 = vmatpush.msra.mxu0 %v1278
      %1363 = vmatpush.msra.mxu0 %v1277
      %1364 = vmatmul.f32.gmra.mxu0 %v1314
      %v1365 = vpop.f32.mrf.mxu0
      %v1366 = vadd.f32 %v1343, %v1365
      %1367 = vmatmul.f32.gmra.mxu0 %v1316
      %v1368 = vpop.f32.mrf.mxu0
      %v1369 = vadd.f32 %v1346, %v1368
      %1370 = vdwg.mxu0
      %1371 = vmatpush.msra.mxu0 0.0
      %1372 = vmatpush.msra.mxu0 0.0
      %1373 = vmatpush.msra.mxu0 0.0
      %1374 = vmatpush.msra.mxu0 0.0
      %1375 = vmatpush.msra.mxu0 0.0
      %1376 = vmatpush.msra.mxu0 0.0
      %1377 = vmatpush.msra.mxu0 0.0
      %1378 = vmatpush.msra.mxu0 0.0
      %1379 = vmatpush.msra.mxu0 %v1300
      %1380 = vmatpush.msra.mxu0 %v1299
      %1381 = vmatpush.msra.mxu0 %v1298
      %1382 = vmatpush.msra.mxu0 %v1297
      %1383 = vmatpush.msra.mxu0 %v1296
      %1384 = vmatpush.msra.mxu0 %v1295
      %1385 = vmatpush.msra.mxu0 %v1294
      %1386 = vmatpush.msra.mxu0 %v1293
      %1387 = vmatmul.f32.gmra.mxu0 %v1321
      %v1388 = vpop.f32.mrf.mxu0
      %v1389 = vadd.f32 %v1366, %v1388
      %1390 = vmatmul.f32.gmra.mxu0 %v1323
      %v1391 = vpop.f32.mrf.mxu0
      %v1392 = vadd.f32 %v1369, %v1391
      %1393 = vdwg.mxu0
      %v1394 = vadd.f32 %v1258, %v1389
      %v1395 = vadd.f32 %v1259, %v1392
      %s1396 = scalar_lea.vmem %s3, 2560
      %v1397 = vld [vmem:[%s1396] sm:$0xff]
      %v1398 = vld [vmem:[%s1396 + $0x8] sm:$0xff]
      %v1399 = vld [vmem:[%s1396 + $0x10] sm:$0xff]
      %v1400 = vld [vmem:[%s1396 + $0x18] sm:$0xff]
      %v1401 = vld [vmem:[%s1396 + $0x20] sm:$0xff]
      %v1402 = vld [vmem:[%s1396 + $0x28] sm:$0xff]
      %v1403 = vld [vmem:[%s1396 + $0x30] sm:$0xff]
      %v1404 = vld [vmem:[%s1396 + $0x38] sm:$0xff]
      %v1405 = vld [vmem:[%s1396 + $0x40] sm:$0xff]
      %v1406 = vld [vmem:[%s1396 + $0x48] sm:$0xff]
      %v1407 = vld [vmem:[%s1396 + $0x50] sm:$0xff]
      %v1408 = vld [vmem:[%s1396 + $0x58] sm:$0xff]
      %v1409 = vld [vmem:[%s1396 + $0x60] sm:$0xff]
      %v1410 = vld [vmem:[%s1396 + $0x68] sm:$0xff]
      %v1411 = vld [vmem:[%s1396 + $0x70] sm:$0xff]
      %v1412 = vld [vmem:[%s1396 + $0x78] sm:$0xff]
      %v1413 = vld [vmem:[%s1396 + $0x80] sm:$0xff]
      %v1414 = vld [vmem:[%s1396 + $0x88] sm:$0xff]
      %v1415 = vld [vmem:[%s1396 + $0x90] sm:$0xff]
      %v1416 = vld [vmem:[%s1396 + $0x98] sm:$0xff]
      %v1417 = vld [vmem:[%s1396 + $0xa0] sm:$0xff]
      %v1418 = vld [vmem:[%s1396 + $0xa8] sm:$0xff]
      %v1419 = vld [vmem:[%s1396 + $0xb0] sm:$0xff]
      %v1420 = vld [vmem:[%s1396 + $0xb8] sm:$0xff]
      %v1421 = vld [vmem:[%s1396 + $0xc0] sm:$0xff]
      %v1422 = vld [vmem:[%s1396 + $0xc8] sm:$0xff]
      %v1423 = vld [vmem:[%s1396 + $0xd0] sm:$0xff]
      %v1424 = vld [vmem:[%s1396 + $0xd8] sm:$0xff]
      %v1425 = vld [vmem:[%s1396 + $0xe0] sm:$0xff]
      %v1426 = vld [vmem:[%s1396 + $0xe8] sm:$0xff]
      %v1427 = vld [vmem:[%s1396 + $0xf0] sm:$0xff]
      %v1428 = vld [vmem:[%s1396 + $0xf8] sm:$0xff]
      %v1429 = vld [vmem:[%s1396 + $0x100] sm:$0xff]
      %v1430 = vld [vmem:[%s1396 + $0x108] sm:$0xff]
      %v1431 = vld [vmem:[%s1396 + $0x110] sm:$0xff]
      %v1432 = vld [vmem:[%s1396 + $0x118] sm:$0xff]
      %v1433 = vld [vmem:[%s1396 + $0x120] sm:$0xff]
      %v1434 = vld [vmem:[%s1396 + $0x128] sm:$0xff]
      %v1435 = vld [vmem:[%s1396 + $0x130] sm:$0xff]
      %v1436 = vld [vmem:[%s1396 + $0x138] sm:$0xff]
      %1437 = vrot.lane.b32.xlu0 %v1168, 88
      %v1438 = vpop.permute.xlu0 %1437
      %1439 = vrot.lane.b32.xlu0 %v1171, 88
      %v1440 = vpop.permute.xlu0 %1439
      %1441 = vrot.lane.b32.xlu0 %v1174, 88
      %v1442 = vpop.permute.xlu0 %1441
      %1443 = vrot.lane.b32.xlu0 %v1176, 88
      %v1444 = vpop.permute.xlu0 %1443
      %1445 = vrot.lane.b32.xlu0 %v1178, 88
      %v1446 = vpop.permute.xlu0 %1445
      %1447 = vrot.lane.b32.xlu0 %v1180, 88
      %v1448 = vpop.permute.xlu0 %1447
      %v1449 = vsel %vm629, %v1438, %v1440
      %v1450 = vsel %vm629, %v1440, %v1442
      %v1451 = vsel %vm629, %v1444, %v1446
      %v1452 = vsel %vm629, %v1446, %v1448
      %v1457 = vsel %vm429, %v1442, 0
      %v1459 = vsel %vm429, %v1448, 0
      %1461 = vmatpush.msra.mxu0 %v1412
      %1462 = vmatpush.msra.mxu0 %v1411
      %1463 = vmatpush.msra.mxu0 %v1410
      %1464 = vmatpush.msra.mxu0 %v1409
      %1465 = vmatpush.msra.mxu0 %v1408
      %1466 = vmatpush.msra.mxu0 %v1407
      %1467 = vmatpush.msra.mxu0 %v1406
      %1468 = vmatpush.msra.mxu0 %v1405
      %1469 = vmatpush.msra.mxu0 %v1404
      %1470 = vmatpush.msra.mxu0 %v1403
      %1471 = vmatpush.msra.mxu0 %v1402
      %1472 = vmatpush.msra.mxu0 %v1401
      %1473 = vmatpush.msra.mxu0 %v1400
      %1474 = vmatpush.msra.mxu0 %v1399
      %1475 = vmatpush.msra.mxu0 %v1398
      %1476 = vmatpush.msra.mxu0 %v1397
      %1477 = vmatmul.f32.gmra.mxu0 %v1449
      %v1478 = vpop.f32.mrf.mxu0
      %v1479 = vadd.f32 0.0, %v1478
      %1480 = vmatmul.f32.gmra.mxu0 %v1451
      %v1481 = vpop.f32.mrf.mxu0
      %v1482 = vadd.f32 0.0, %v1481
      %1483 = vdwg.mxu0
      %1484 = vmatpush.msra.mxu0 %v1428
      %1485 = vmatpush.msra.mxu0 %v1427
      %1486 = vmatpush.msra.mxu0 %v1426
      %1487 = vmatpush.msra.mxu0 %v1425
      %1488 = vmatpush.msra.mxu0 %v1424
      %1489 = vmatpush.msra.mxu0 %v1423
      %1490 = vmatpush.msra.mxu0 %v1422
      %1491 = vmatpush.msra.mxu0 %v1421
      %1492 = vmatpush.msra.mxu0 %v1420
      %1493 = vmatpush.msra.mxu0 %v1419
      %1494 = vmatpush.msra.mxu0 %v1418
      %1495 = vmatpush.msra.mxu0 %v1417
      %1496 = vmatpush.msra.mxu0 %v1416
      %1497 = vmatpush.msra.mxu0 %v1415
      %1498 = vmatpush.msra.mxu0 %v1414
      %1499 = vmatpush.msra.mxu0 %v1413
      %1500 = vmatmul.f32.gmra.mxu0 %v1450
      %v1501 = vpop.f32.mrf.mxu0
      %v1502 = vadd.f32 %v1479, %v1501
      %1503 = vmatmul.f32.gmra.mxu0 %v1452
      %v1504 = vpop.f32.mrf.mxu0
      %v1505 = vadd.f32 %v1482, %v1504
      %1506 = vdwg.mxu0
      %1507 = vmatpush.msra.mxu0 0.0
      %1508 = vmatpush.msra.mxu0 0.0
      %1509 = vmatpush.msra.mxu0 0.0
      %1510 = vmatpush.msra.mxu0 0.0
      %1511 = vmatpush.msra.mxu0 0.0
      %1512 = vmatpush.msra.mxu0 0.0
      %1513 = vmatpush.msra.mxu0 0.0
      %1514 = vmatpush.msra.mxu0 0.0
      %1515 = vmatpush.msra.mxu0 %v1436
      %1516 = vmatpush.msra.mxu0 %v1435
      %1517 = vmatpush.msra.mxu0 %v1434
      %1518 = vmatpush.msra.mxu0 %v1433
      %1519 = vmatpush.msra.mxu0 %v1432
      %1520 = vmatpush.msra.mxu0 %v1431
      %1521 = vmatpush.msra.mxu0 %v1430
      %1522 = vmatpush.msra.mxu0 %v1429
      %1523 = vmatmul.f32.gmra.mxu0 %v1457
      %v1524 = vpop.f32.mrf.mxu0
      %v1525 = vadd.f32 %v1502, %v1524
      %1526 = vmatmul.f32.gmra.mxu0 %v1459
      %v1527 = vpop.f32.mrf.mxu0
      %v1528 = vadd.f32 %v1505, %v1527
      %1529 = vdwg.mxu0
      %v1530 = vadd.f32 %v1394, %v1525
      %v1531 = vadd.f32 %v1395, %v1528
      %1532 = vst [vmem:[%s262] sm:$0xff] %v1530
      %1533 = vst [vmem:[%s262 + $0x8] sm:$0xff] %v1531
      %v1534 = vadd.f32 %v1530, %v1531
      %v1535 = vrot.slane %v1534, 4
      %v1536 = vadd.f32 %v1534, %v1535
      %v1537 = vrot.slane %v1536, 2
      %v1538 = vadd.f32 %v1536, %v1537
      %v1539 = vrot.slane %v1538, 1
      %v1540 = vadd.f32 %v1538, %v1539
      %1541 = vst [vmem:[%s265] sm:$0x1] %v1540
      %v1542 = vmul.f32 %v1530, %v1530
      %v1543 = vmul.f32 %v1531, %v1531
      %v1544 = vadd.f32 %v1542, %v1543
      %v1545 = vrot.slane %v1544, 4
      %v1546 = vadd.f32 %v1544, %v1545
      %v1547 = vrot.slane %v1546, 2
      %v1548 = vadd.f32 %v1546, %v1547
      %v1549 = vrot.slane %v1548, 1
      %v1550 = vadd.f32 %v1548, %v1549
      %1551 = vst [vmem:[%s268] sm:$0x1] %v1550
      %p1552 = scmp.lt.s32.totalorder %s18, 1
      %s1553 = scalar_select %p1552, %s18, 1
      %s1554 = smul.addr %s1553, 2
      %s1555 = smul.addr %s1554, 8
      %s1556 = scalar_lea.vmem %s4, %s1555
      %p1557 = scmp.lt.s32.totalorder %s18, 1
      %s1558 = scalar_select %p1557, %s18, 1
      %s1559 = scalar_lea.vmem %s5, %s1558
      %p1560 = scmp.lt.s32.totalorder %s18, 1
      %s1561 = scalar_select %p1560, %s18, 1
      %s1562 = scalar_lea.vmem %s6, %s1561
      // Predicated region
      $region37: #{densenet_block.6} parent=35 // pred_check
        %p1563 = pneg %p125
      $region38: #{densenet_block.6} parent=35 // pred_check_branch
        %1565 = sbr.rel (%p1563) target = $region40
      $region39: #{densenet_block.6} parent=35 // pred_region
        _
      $region40: #{densenet_block.6} parent=35 // pred_fallthru
        _
      // Predicated region
      $region41: #{densenet_block.6} parent=35 // pred_check
        %p1566 = pneg %p151
      $region42: #{densenet_block.6} parent=35 // pred_check_branch
        %1568 = sbr.rel (%p1566) target = $region44
      $region43: #{densenet_block.6} parent=35 // pred_region
        _
      $region44: #{densenet_block.6} parent=35 // pred_fallthru
        _
      // Predicated region
      $region45: #{densenet_block.6} parent=35 // pred_check
        %p1569 = pneg %p177
      $region46: #{densenet_block.6} parent=35 // pred_check_branch
        %1571 = sbr.rel (%p1569) target = $region48
      $region47: #{densenet_block.6} parent=35 // pred_region
        _
      $region48: #{densenet_block.6} parent=35 // pred_fallthru
        _
    $region36: #{densenet_block.6} parent=5 // pred_fallthru
      _
    %p1572 = scmp.le.s32.totalorder 2, %s13
    // Predicated region
    $region49: #{densenet_block.6} parent=5 // pred_check
      %p1573 = pneg %p1572
    $region50: #{densenet_block.6} parent=5 // pred_check_branch
      %1575 = sbr.rel (%p1573) target = $region52
    $region51: #{densenet_block.6} parent=5 // pred_region
      %s1576 = ssub.s32 %s13, 2
      // Predicated region
      $region53: #{densenet_block.6} parent=51 // pred_check
        %p1577 = pneg %p131
      $region54: #{densenet_block.6} parent=51 // pred_check_branch
        %1579 = sbr.rel (%p1577) target = $region56
      $region55: #{densenet_block.6} parent=51 // pred_region
        %p1580 = scmp.lt.s32.totalorder %s19, 1
        %s1581 = scalar_select %p1580, %s19, 1
        %s1582 = smul.addr %s1581, 2
        %s1583 = smul.addr %s1582, 8
        %s1584 = scalar_lea.vmem %s4, %s1583
      $region56: #{densenet_block.6} parent=51 // pred_fallthru
        _
      // Predicated region
      $region57: #{densenet_block.6} parent=51 // pred_check
        %p1585 = pneg %p157
      $region58: #{densenet_block.6} parent=51 // pred_check_branch
        %1587 = sbr.rel (%p1585) target = $region60
      $region59: #{densenet_block.6} parent=51 // pred_region
        %p1588 = scmp.lt.s32.totalorder %s19, 1
        %s1589 = scalar_select %p1588, %s19, 1
        %s1590 = scalar_lea.vmem %s5, %s1589
      $region60: #{densenet_block.6} parent=51 // pred_fallthru
        _
      // Predicated region
      $region61: #{densenet_block.6} parent=51 // pred_check
        %p1591 = pneg %p183
      $region62: #{densenet_block.6} parent=51 // pred_check_branch
        %1593 = sbr.rel (%p1591) target = $region64
      $region63: #{densenet_block.6} parent=51 // pred_region
        %p1594 = scmp.lt.s32.totalorder %s19, 1
        %s1595 = scalar_select %p1594, %s19, 1
        %s1596 = scalar_lea.vmem %s6, %s1595
      $region64: #{densenet_block.6} parent=51 // pred_fallthru
        _
    $region52: #{densenet_block.6} parent=5 // pred_fallthru
      _
  $region6: #{densenet_block.6} parent=0 // loop_footer
    %s17 = sadd.s32 1, %s13
  $region7: #{densenet_block.6} parent=0 // loop_footer_branch
    %12 = sbr.rel target = $region3
  $region8: #{densenet_block.6} parent=0 // loop_exit
    _

// kernel: tile.73
$region0: #{tile.73}
  #allocation0 [shape = 's32[1]{0}', space=sflag, size = 0x4, scoped, tag = 'scoped memory for tile.73']
  %s0 = inlined_call_operand.vmem [shape: f32[28], index: 0, kind: input, shape index: {}]
  %s1 = inlined_call_operand.vmem [shape: f32[18,28], index: 1, kind: output, shape index: {}]
  // Predicated region
  $region2: #{tile.73} parent=0 // pred_check
    _
  $region3: #{tile.73} parent=0 // pred_check_branch
    %3 = sbr.rel (0) target = $region5
  $region4: #{tile.73} parent=0 // pred_region
    _
  $region5: #{tile.73} parent=0 // pred_fallthru
    _
  %v4 = vld [vmem:[%s0] ss:$0 sm:$0xff]
  %5 = vst [vmem:[%s1] sm:$0xff] %v4
  %s6 = scalar_lea.vmem %s1, 8
  %7 = vst [vmem:[%s6] sm:$0xff] %v4
  %s8 = scalar_lea.vmem %s1, 16
  %9 = vst [vmem:[%s8] sm:$0xff] %v4

// kernel: tile.74
$region0: #{tile.74}
  %s0 = inlined_call_operand.vmem [shape: f32[18,28], index: 0, kind: input, shape index: {}]
  %s1 = inlined_call_operand.vmem [shape: f32[1,504], index: 1, kind: output, shape index: {}]
  $region1: #{tile.74} parent=0
    #allocation0 [shape = 'u8[16384]{0}', space=vmem, size = 0x4000, scoped, tag = 'scoped mem for output reshape']
    %v2 = vld [vmem:[%s0] sm:$0x1]
    %vm3 = vcmask 228352
    %4 = vst.msk [vmem:[#allocation0] sm:$0x1] %vm3, %v2
    %s5 = scalar_lea.vmem %s0, 9
    %v6 = vld [vmem:[%s5] sm:$0x1]
    %s7 = scalar_lea.vmem %s0, 9
    %v8 = vld [vmem:[%s7] sm:$0x1]
    %vm9 = vcmask 31744
    %v10 = vsel %vm9, %v8, %v6
    %11 = vrot.lane.b32.xlu0 %v10, 124
    %v12 = vpop.permute.xlu0 %11
    %vm13 = vcmask 195584
    %s14 = scalar_lea.vmem [#allocation0], 16
    %15 = vst.msk [vmem:[%s14] sm:$0x1] %vm13, %v12
    %vm16 = vcmask 1048544
    %s17 = scalar_lea.vmem [#allocation0], 8
    %18 = vst.msk [vmem:[%s17] sm:$0x1] %vm16, %v12
    %s19 = scalar_lea.vmem %s0, 4
    %v20 = vld [vmem:[%s19] sm:$0x1]
    %s21 = scalar_lea.vmem %s0, 4
    %v22 = vld [vmem:[%s21] sm:$0x1]
    %vm23 = vcmask 130048
    %v24 = vsel %vm23, %v22, %v20
    %25 = vrot.lane.b32.xlu0 %v24, 112
    %v26 = vpop.permute.xlu0 %25
    %vm27 = vcmask 97280
    %s28 = scalar_lea.vmem [#allocation0], 8
    %29 = vst.msk [vmem:[%s28] sm:$0x1] %vm27, %v26
    %vm30 = vcmask 1048448
    %31 = vst.msk [vmem:[#allocation0] sm:$0x1] %vm30, %v26
    %s32 = scalar_lea.vmem %s0, 13
    %v33 = vld [vmem:[%s32] sm:$0x1]
    %s34 = scalar_lea.vmem %s0, 13
    %v35 = vld [vmem:[%s34] sm:$0x1]
    %vm36 = vcmask 162816
    %v37 = vsel %vm36, %v35, %v33
    %38 = vrot.lane.b32.xlu0 %v37, 108
    %v39 = vpop.permute.xlu0 %38
    %vm40 = vcmask 64512
    %s41 = scalar_lea.vmem [#allocation0], 24
    %42 = vst.msk [vmem:[%s41] sm:$0x1] %vm40, %v39
    %vm43 = vcmask 1048416
    %s44 = scalar_lea.vmem [#allocation0], 16
    %45 = vst.msk [vmem:[%s44] sm:$0x1] %vm43, %v39
    %s46 = scalar_lea.vmem %s0, 8
    %v47 = vld [vmem:[%s46] sm:$0x1]
    %48 = vrot.lane.b32.xlu0 %v47, 96
    %v49 = vpop.permute.xlu0 %48
    %vm50 = vcmask 1015552
    %s51 = scalar_lea.vmem [#allocation0], 8
    %52 = vst.msk [vmem:[%s51] sm:$0x1] %vm50, %v49
    %s53 = scalar_lea.vmem %s0, 17
    %v54 = vld [vmem:[%s53] sm:$0x1]
    %55 = vrot.lane.b32.xlu0 %v54, 92
    %v56 = vpop.permute.xlu0 %55
    %vm57 = vcmask 982752
    %s58 = scalar_lea.vmem [#allocation0], 24
    %59 = vst.msk [vmem:[%s58] sm:$0x1] %vm57, %v56
    %s60 = scalar_lea.vmem %s0, 3
    %v61 = vld [vmem:[%s60] sm:$0x1]
    %62 = vrot.lane.b32.xlu0 %v61, 84
    %v63 = vpop.permute.xlu0 %62
    %vm64 = vcmask 917152
    %65 = vst.msk [vmem:[#allocation0] sm:$0x1] %vm64, %v63
    %s66 = scalar_lea.vmem %s0, 12
    %v67 = vld [vmem:[%s66] sm:$0x1]
    %68 = vrot.lane.b32.xlu0 %v67, 80
    %v69 = vpop.permute.xlu0 %68
    %vm70 = vcmask 884352
    %s71 = scalar_lea.vmem [#allocation0], 16
    %72 = vst.msk [vmem:[%s71] sm:$0x1] %vm70, %v69
    %s73 = scalar_lea.vmem %s0, 7
    %v74 = vld [vmem:[%s73] sm:$0x1]
    %75 = vrot.lane.b32.xlu0 %v74, 68
    %v76 = vpop.permute.xlu0 %75
    %vm77 = vcmask 785952
    %s78 = scalar_lea.vmem [#allocation0], 8
    %79 = vst.msk [vmem:[%s78] sm:$0x1] %vm77, %v76
    %s80 = scalar_lea.vmem %s0, 16
    %v81 = vld [vmem:[%s80] sm:$0x1]
    %82 = vrot.lane.b32.xlu0 %v81, 64
    %v83 = vpop.permute.xlu0 %82
    %vm84 = vcmask 753152
    %s85 = scalar_lea.vmem [#allocation0], 24
    %86 = vst.msk [vmem:[%s85] sm:$0x1] %vm84, %v83
    %s87 = scalar_lea.vmem %s0, 2
    %v88 = vld [vmem:[%s87] sm:$0x1]
    %89 = vrot.lane.b32.xlu0 %v88, 56
    %v90 = vpop.permute.xlu0 %89
    %vm91 = vcmask 687552
    %92 = vst.msk [vmem:[#allocation0] sm:$0x1] %vm91, %v90
    %s93 = scalar_lea.vmem %s0, 11
    %v94 = vld [vmem:[%s93] sm:$0x1]
    %95 = vrot.lane.b32.xlu0 %v94, 52
    %v96 = vpop.permute.xlu0 %95
    %vm97 = vcmask 654752
    %s98 = scalar_lea.vmem [#allocation0], 16
    %99 = vst.msk [vmem:[%s98] sm:$0x1] %vm97, %v96
    %s100 = scalar_lea.vmem %s0, 6
    %v101 = vld [vmem:[%s100] sm:$0x1]
    %102 = vrot.lane.b32.xlu0 %v101, 40
    %v103 = vpop.permute.xlu0 %102
    %vm104 = vcmask 556352
    %s105 = scalar_lea.vmem [#allocation0], 8
    %106 = vst.msk [vmem:[%s105] sm:$0x1] %vm104, %v103
    %s107 = scalar_lea.vmem %s0, 15
    %v108 = vld [vmem:[%s107] sm:$0x1]
    %109 = vrot.lane.b32.xlu0 %v108, 36
    %v110 = vpop.permute.xlu0 %109
    %vm111 = vcmask 523552
    %s112 = scalar_lea.vmem [#allocation0], 24
    %113 = vst.msk [vmem:[%s112] sm:$0x1] %vm111, %v110
    %s114 = scalar_lea.vmem %s0, 1
    %v115 = vld [vmem:[%s114] sm:$0x1]
    %116 = vrot.lane.b32.xlu0 %v115, 28
    %v117 = vpop.permute.xlu0 %116
    %vm118 = vcmask 457952
    %119 = vst.msk [vmem:[#allocation0] sm:$0x1] %vm118, %v117
    %s120 = scalar_lea.vmem %s0, 10
    %v121 = vld [vmem:[%s120] sm:$0x1]
    %122 = vrot.lane.b32.xlu0 %v121, 24
    %v123 = vpop.permute.xlu0 %122
    %vm124 = vcmask 425152
    %s125 = scalar_lea.vmem [#allocation0], 16
    %126 = vst.msk [vmem:[%s125] sm:$0x1] %vm124, %v123
    %s127 = scalar_lea.vmem %s0, 5
    %v128 = vld [vmem:[%s127] sm:$0x1]
    %129 = vrot.lane.b32.xlu0 %v128, 12
    %v130 = vpop.permute.xlu0 %129
    %vm131 = vcmask 326752
    %s132 = scalar_lea.vmem [#allocation0], 8
    %133 = vst.msk [vmem:[%s132] sm:$0x1] %vm131, %v130
    %s134 = scalar_lea.vmem %s0, 14
    %v135 = vld [vmem:[%s134] sm:$0x1]
    %136 = vrot.lane.b32.xlu0 %v135, 8
    %v137 = vpop.permute.xlu0 %136
    %vm138 = vcmask 293952
    %s139 = scalar_lea.vmem [#allocation0], 24
    %140 = vst.msk [vmem:[%s139] sm:$0x1] %vm138, %v137
    %s142 = ssub.s32 2, 1
    %v143 = vld [vmem:[#allocation0] sm:%s142]
    %s145 = ssub.s32 2, 1
    %146 = vst [vmem:[%s1] sm:%s145] %v143
    %s147 = scalar_lea.vmem [#allocation0], 8
    %v148 = vld [vmem:[%s147] sm:%s142]
    %s150 = ssub.s32 2, 1
    %s151 = scalar_lea.vmem %s1, 1
    %152 = vst [vmem:[%s151] sm:%s150] %v148
    %s153 = scalar_lea.vmem [#allocation0], 16
    %v154 = vld [vmem:[%s153] sm:%s142]
    %s156 = ssub.s32 2, 1
    %s157 = scalar_lea.vmem %s1, 2
    %158 = vst [vmem:[%s157] sm:%s156] %v154
    %s159 = scalar_lea.vmem [#allocation0], 24
    %v160 = vld [vmem:[%s159] sm:%s142]
    %s162 = ssub.s32 2, 1
    %s163 = scalar_lea.vmem %s1, 3
    %164 = vst [vmem:[%s163] sm:%s162] %v160

// kernel: densenet_block.7
$region0: #{densenet_block.7}
  #allocation0 [shape = 'u32[]', space=smem, size = 0x4, offset = 0x4, fixed_abs, tag = 'smem constant byte address 0x4 - core index']
  #allocation1 [shape = 'u32[72,128]{1,0:T(1,128)}', space=vmem, size = 0x9000, scoped, tag = 'internal scratch']
  %s0 = inlined_call_operand.vmem [shape: f32[2,18,504], index: 0, kind: input, shape index: {}]
  %s1 = inlined_call_operand.vmem [shape: f32[1,504], index: 1, kind: input, shape index: {}]
  %s2 = inlined_call_operand.vmem [shape: f32[1,504], index: 2, kind: input, shape index: {}]
  %s3 = inlined_call_operand.vmem [shape: f32[9,448,128], index: 3, kind: input, shape index: {}]
  %s4 = inlined_call_operand.vmem [shape: f32[2,16,128], index: 4, kind: output, shape index: {0}]
  %s5 = inlined_call_operand.hbm [shape: f32[2,1,128], index: 5, kind: output, shape index: {1}]
  %s6 = inlined_call_operand.hbm [shape: f32[2,1,128], index: 6, kind: output, shape index: {2}]
  %7 = xla_tuple %s4, %s5, %s6
  %s8 = sld [smem:[#allocation0]]
  $region65: #{densenet_block.7} parent=0
    _
  %s10 = ssub.s32 1, %s8
  %s11 = scalar_select 0, %s10, %s8
  $region1: #{densenet_block.7} parent=0
    #allocation2 [shape = 'u8[1024]{0}', space=vmem, size = 0x400, scoped, tag = 'output window, operand 1']
    #allocation3 [shape = 's32[2]{0}', space=sflag, size = 0x8, scoped, tag = 'scoped memory for densenet_block.7']
    #allocation4 [shape = 'u8[1024]{0}', space=vmem, size = 0x400, scoped, tag = 'output window, operand 2']
    #allocation5 [shape = 's32[2]{0}', space=sflag, size = 0x8, scoped, tag = 'scoped memory for densenet_block.7']
    %12 = vsyncpa [#allocation3], 0
    %s13 = scalar_lea.sflag [#allocation3], 1
    %14 = vsyncpa %s13, 0
    %15 = vsyncpa [#allocation5], 0
    %s16 = scalar_lea.sflag [#allocation5], 1
    %17 = vsyncpa %s16, 0
    loop: start=0, step=1, limit=4
    $region2: #{densenet_block.7} parent=1 // loop_pre_header
      _
    $region3: #{densenet_block.7} parent=1 // loop_header
      %s19 = sphi 0, %s23
      %p20 = scmp.ge.s32.totalorder %s19, 4
      %s29 = sphi 0, %s31
      %s32 = sphi 0, %s29
      %s33 = sphi 0, %s32
      %s49 = sphi 0, %s33
      %s53 = sphi 0, %s53
      %s55 = sphi 0, %s53
      %s56 = sphi 0, %s55
      %s70 = sphi 0, %s56
      %s74 = sphi 0, %s74
      %s76 = sphi 0, %s74
      %s77 = sphi 0, %s76
      %s91 = sphi 0, %s77
      %s95 = sphi 0, %s95
      %s97 = sphi 0, %s95
      %s98 = sphi 0, %s97
      %s112 = sphi 0, %s98
      %s118 = sphi 0, %s120
      %s121 = sphi 0, %s118
      %s122 = sphi 0, %s121
      %s138 = sphi 0, %s122
      %s144 = sphi 0, %s146
      %s147 = sphi 0, %s144
      %s148 = sphi 0, %s147
      %s164 = sphi 0, %s148
      %s170 = sphi 0, %s172
      %s173 = sphi 0, %s170
      %s174 = sphi 0, %s173
      %s190 = sphi 0, %s174
    $region4: #{densenet_block.7} parent=1 // loop_header_branch
      %22 = sbr.rel (%p20) target = $region8
    $region5: #{densenet_block.7} parent=1 // loop_body
      %s24 = ssub.s32 %s19, 1
      %s25 = ssub.s32 %s19, 2
      %s26 = sadd.s32 %s19, 1
      %s27 = ssub.s32 %s19, %s26
      %p28 = scmp.eq.s32.totalorder %s27, 0
      %s30 = sadd.s32 %s29, 1
      %s31 = scalar_select %p28, %s29, %s30
      %p34 = pneg %p28
      %p35 = scmp.eq.s32.totalorder %s19, 1
      %p36 = por %p34, %p35
      %p37 = scmp.ne.s32.totalorder %s29, %s32
      %p38 = scmp.eq.s32.totalorder %s19, 0
      %p39 = por %p37, %p38
      %p40 = scmp.ne.s32.totalorder %s29, %s32
      %p41 = scmp.eq.s32.totalorder %s24, 1
      %p42 = por %p40, %p41
      %p43 = scmp.ne.s32.totalorder %s32, %s33
      %p44 = scmp.eq.s32.totalorder %s24, 0
      %p45 = por %p43, %p44
      %p46 = scmp.ne.s32.totalorder %s32, %s33
      %p47 = scmp.eq.s32.totalorder %s25, 1
      %p48 = por %p46, %p47
      %p50 = scmp.ne.s32.totalorder %s33, %s49
      %p51 = scmp.eq.s32.totalorder %s25, 0
      %p52 = por %p50, %p51
      %s54 = sadd.s32 %s53, 1
      %p57 = scmp.eq.s32.totalorder %s19, 1
      %p58 = scmp.ne.s32.totalorder %s53, %s55
      %p59 = scmp.eq.s32.totalorder %s19, 0
      %p60 = por %p58, %p59
      %p61 = scmp.ne.s32.totalorder %s53, %s55
      %p62 = scmp.eq.s32.totalorder %s24, 1
      %p63 = por %p61, %p62
      %p64 = scmp.ne.s32.totalorder %s55, %s56
      %p65 = scmp.eq.s32.totalorder %s24, 0
      %p66 = por %p64, %p65
      %p67 = scmp.ne.s32.totalorder %s55, %s56
      %p68 = scmp.eq.s32.totalorder %s25, 1
      %p69 = por %p67, %p68
      %p71 = scmp.ne.s32.totalorder %s56, %s70
      %p72 = scmp.eq.s32.totalorder %s25, 0
      %p73 = por %p71, %p72
      %s75 = sadd.s32 %s74, 1
      %p78 = scmp.eq.s32.totalorder %s19, 1
      %p79 = scmp.ne.s32.totalorder %s74, %s76
      %p80 = scmp.eq.s32.totalorder %s19, 0
      %p81 = por %p79, %p80
      %p82 = scmp.ne.s32.totalorder %s74, %s76
      %p83 = scmp.eq.s32.totalorder %s24, 1
      %p84 = por %p82, %p83
      %p85 = scmp.ne.s32.totalorder %s76, %s77
      %p86 = scmp.eq.s32.totalorder %s24, 0
      %p87 = por %p85, %p86
      %p88 = scmp.ne.s32.totalorder %s76, %s77
      %p89 = scmp.eq.s32.totalorder %s25, 1
      %p90 = por %p88, %p89
      %p92 = scmp.ne.s32.totalorder %s77, %s91
      %p93 = scmp.eq.s32.totalorder %s25, 0
      %p94 = por %p92, %p93
      %s96 = sadd.s32 %s95, 1
      %p99 = scmp.eq.s32.totalorder %s19, 1
      %p100 = scmp.ne.s32.totalorder %s95, %s97
      %p101 = scmp.eq.s32.totalorder %s19, 0
      %p102 = por %p100, %p101
      %p103 = scmp.ne.s32.totalorder %s95, %s97
      %p104 = scmp.eq.s32.totalorder %s24, 1
      %p105 = por %p103, %p104
      %p106 = scmp.ne.s32.totalorder %s97, %s98
      %p107 = scmp.eq.s32.totalorder %s24, 0
      %p108 = por %p106, %p107
      %p109 = scmp.ne.s32.totalorder %s97, %s98
      %p110 = scmp.eq.s32.totalorder %s25, 1
      %p111 = por %p109, %p110
      %p113 = scmp.ne.s32.totalorder %s98, %s112
      %p114 = scmp.eq.s32.totalorder %s25, 0
      %p115 = por %p113, %p114
      %s116 = ssub.s32 %s19, %s26
      %p117 = scmp.eq.s32.totalorder %s116, 0
      %s119 = sadd.s32 %s118, 1
      %s120 = scalar_select %p117, %s118, %s119
      %p123 = pneg %p117
      %p124 = scmp.eq.s32.totalorder %s19, 1
      %p125 = por %p123, %p124
      %p126 = scmp.ne.s32.totalorder %s118, %s121
      %p127 = scmp.eq.s32.totalorder %s19, 0
      %p128 = por %p126, %p127
      %p129 = scmp.ne.s32.totalorder %s118, %s121
      %p130 = scmp.eq.s32.totalorder %s24, 1
      %p131 = por %p129, %p130
      %p132 = scmp.ne.s32.totalorder %s121, %s122
      %p133 = scmp.eq.s32.totalorder %s24, 0
      %p134 = por %p132, %p133
      %p135 = scmp.ne.s32.totalorder %s121, %s122
      %p136 = scmp.eq.s32.totalorder %s25, 1
      %p137 = por %p135, %p136
      %p139 = scmp.ne.s32.totalorder %s122, %s138
      %p140 = scmp.eq.s32.totalorder %s25, 0
      %p141 = por %p139, %p140
      %s142 = ssub.s32 %s19, %s26
      %p143 = scmp.eq.s32.totalorder %s142, 0
      %s145 = sadd.s32 %s144, 1
      %s146 = scalar_select %p143, %s144, %s145
      %p149 = pneg %p143
      %p150 = scmp.eq.s32.totalorder %s19, 1
      %p151 = por %p149, %p150
      %p152 = scmp.ne.s32.totalorder %s144, %s147
      %p153 = scmp.eq.s32.totalorder %s19, 0
      %p154 = por %p152, %p153
      %p155 = scmp.ne.s32.totalorder %s144, %s147
      %p156 = scmp.eq.s32.totalorder %s24, 1
      %p157 = por %p155, %p156
      %p158 = scmp.ne.s32.totalorder %s147, %s148
      %p159 = scmp.eq.s32.totalorder %s24, 0
      %p160 = por %p158, %p159
      %p161 = scmp.ne.s32.totalorder %s147, %s148
      %p162 = scmp.eq.s32.totalorder %s25, 1
      %p163 = por %p161, %p162
      %p165 = scmp.ne.s32.totalorder %s148, %s164
      %p166 = scmp.eq.s32.totalorder %s25, 0
      %p167 = por %p165, %p166
      %s168 = ssub.s32 %s19, %s26
      %p169 = scmp.eq.s32.totalorder %s168, 0
      %s171 = sadd.s32 %s170, 1
      %s172 = scalar_select %p169, %s170, %s171
      %p175 = pneg %p169
      %p176 = scmp.eq.s32.totalorder %s19, 1
      %p177 = por %p175, %p176
      %p178 = scmp.ne.s32.totalorder %s170, %s173
      %p179 = scmp.eq.s32.totalorder %s19, 0
      %p180 = por %p178, %p179
      %p181 = scmp.ne.s32.totalorder %s170, %s173
      %p182 = scmp.eq.s32.totalorder %s24, 1
      %p183 = por %p181, %p182
      %p184 = scmp.ne.s32.totalorder %s173, %s174
      %p185 = scmp.eq.s32.totalorder %s24, 0
      %p186 = por %p184, %p185
      %p187 = scmp.ne.s32.totalorder %s173, %s174
      %p188 = scmp.eq.s32.totalorder %s25, 1
      %p189 = por %p187, %p188
      %p191 = scmp.ne.s32.totalorder %s174, %s190
      %p192 = scmp.eq.s32.totalorder %s25, 0
      %p193 = por %p191, %p192
      %p194 = scmp.le.s32.totalorder 1, %s19
      %p195 = scmp.lt.s32.totalorder %s19, 3
      %p196 = pnand %p194, %p195
      %p197 = pneg %p196
      // Predicated region
      $region9: #{densenet_block.7} parent=5 // pred_check
        _
      $region10: #{densenet_block.7} parent=5 // pred_check_branch
        %199 = sbr.rel (%p196) target = $region12
      $region11: #{densenet_block.7} parent=5 // pred_region
        %s200 = ssub.s32 %s19, 1
        // Predicated region
        $region13: #{densenet_block.7} parent=11 // pred_check
          %p201 = pneg %p66
        $region14: #{densenet_block.7} parent=11 // pred_check_branch
          %203 = sbr.rel (%p201) target = $region16
        $region15: #{densenet_block.7} parent=11 // pred_region
          _
        $region16: #{densenet_block.7} parent=11 // pred_fallthru
          _
        // Predicated region
        $region17: #{densenet_block.7} parent=11 // pred_check
          %p204 = pneg %p87
        $region18: #{densenet_block.7} parent=11 // pred_check_branch
          %206 = sbr.rel (%p204) target = $region20
        $region19: #{densenet_block.7} parent=11 // pred_region
          _
        $region20: #{densenet_block.7} parent=11 // pred_fallthru
          _
        // Predicated region
        $region21: #{densenet_block.7} parent=11 // pred_check
          %p207 = pneg %p108
        $region22: #{densenet_block.7} parent=11 // pred_check_branch
          %209 = sbr.rel (%p207) target = $region24
        $region23: #{densenet_block.7} parent=11 // pred_region
          _
        $region24: #{densenet_block.7} parent=11 // pred_fallthru
          _
      $region12: #{densenet_block.7} parent=5 // pred_fallthru
        _
      %p210 = scmp.lt.s32.totalorder %s19, 2
      // Predicated region
      $region25: #{densenet_block.7} parent=5 // pred_check
        %p211 = pneg %p210
      $region26: #{densenet_block.7} parent=5 // pred_check_branch
        %213 = sbr.rel (%p211) target = $region28
      $region27: #{densenet_block.7} parent=5 // pred_region
        // Predicated region
        $region29: #{densenet_block.7} parent=27 // pred_check
          %p214 = pneg %p39
        $region30: #{densenet_block.7} parent=27 // pred_check_branch
          %216 = sbr.rel (%p214) target = $region32
        $region31: #{densenet_block.7} parent=27 // pred_region
          %p217 = scmp.lt.s32.totalorder %s19, 1
          %s218 = scalar_select %p217, %s19, 1
          %s219 = smul.addr %s218, 12
          %s220 = smul.addr %s219, 8
          %s221 = scalar_lea.vmem %s0, %s220
        $region32: #{densenet_block.7} parent=27 // pred_fallthru
          _
      $region28: #{densenet_block.7} parent=5 // pred_fallthru
        _
      %p222 = scmp.le.s32.totalorder 1, %s19
      %p223 = scmp.lt.s32.totalorder %s19, 3
      %p224 = pnand %p222, %p223
      %p225 = pneg %p224
      // Predicated region
      $region33: #{densenet_block.7} parent=5 // pred_check
        _
      $region34: #{densenet_block.7} parent=5 // pred_check_branch
        %227 = sbr.rel (%p224) target = $region36
      $region35: #{densenet_block.7} parent=5 // pred_region
        %s228 = ssub.s32 %s19, 1
        %p229 = scmp.lt.s32.totalorder %s24, 1
        %s230 = scalar_select %p229, %s24, 1
        %s231 = smul.addr %s230, 12
        %s232 = smul.addr %s231, 8
        %s233 = scalar_lea.vmem %s0, %s232
        %p234 = pneg %p45
        %p235 = pneg %p42
        %p236 = pneg %p66
        %p237 = pneg %p63
        %p238 = pneg %p87
        %p239 = pneg %p84
        %p240 = pneg %p108
        %p241 = pneg %p105
        %p242 = pneg %p134
        %p243 = pneg %p131
        %p244 = scmp.lt.s32.totalorder %s24, 1
        %s245 = scalar_select %p244, %s24, 1
        %s246 = smul.addr %s245, 2
        %s247 = smul.addr %s246, 8
        %s248 = scalar_lea.vmem %s4, %s247
        %p249 = pneg %p160
        %p250 = pneg %p157
        %s251 = sand.u32 %s147, 1
        %s252 = scalar_lea.sflag [#allocation3], %s251
        %s253 = sand.u32 %s147, 1
        %s254 = scalar_lea.vmem [#allocation2], %s253
        %p255 = pneg %p186
        %p256 = pneg %p183
        %s257 = sand.u32 %s173, 1
        %s258 = scalar_lea.sflag [#allocation5], %s257
        %s259 = sand.u32 %s173, 1
        %s260 = scalar_lea.vmem [#allocation4], %s259
        %p261 = scmp.lt.s32.totalorder %s24, 1
        %s262 = scalar_select %p261, %s24, 1
        %s263 = smul.addr %s262, 12
        %s264 = smul.addr %s263, 8
        %s265 = scalar_lea.vmem %s0, %s264
        %p266 = scmp.lt.s32.totalorder %s24, 1
        %s267 = scalar_select %p266, %s24, 1
        %s268 = smul.addr %s267, 2
        %s269 = smul.addr %s268, 8
        %s270 = scalar_lea.vmem %s4, %s269
        %v271 = vld [vmem:[%s265] sm:$0xff]
        %v272 = vld [vmem:[%s265 + $0x8] sm:$0xff]
        %v273 = vld [vmem:[%s265 + $0x10] sm:$0xff]
        %v274 = vld [vmem:[%s265 + $0x18] sm:$0xff]
        %v275 = vld [vmem:[%s265 + $0x20] sm:$0xff]
        %v276 = vld [vmem:[%s265 + $0x28] sm:$0xff]
        %v277 = vld [vmem:[%s265 + $0x30] sm:$0xff]
        %v278 = vld [vmem:[%s265 + $0x38] sm:$0xff]
        %v279 = vld [vmem:[%s265 + $0x40] sm:$0x3]
        %v280 = vld [vmem:[%s265 + $0x48] sm:$0x3]
        %v281 = vld [vmem:[%s265 + $0x50] sm:$0x3]
        %v282 = vld [vmem:[%s265 + $0x58] sm:$0x3]
        %v283 = vld [vmem:[%s1] sm:$0xf]
        %v285 = vperm.slane %v283, 0
        %v286 = vperm.slane %v283, 1
        %v287 = vperm.slane %v283, 2
        %v288 = vperm.slane %v283, 3
        %v293 = vmul.f32 %v271, %v285
        %v294 = vmul.f32 %v272, %v286
        %v295 = vmul.f32 %v273, %v287
        %v296 = vmul.f32 %v274, %v288
        %v297 = vmul.f32 %v275, %v285
        %v298 = vmul.f32 %v276, %v286
        %v299 = vmul.f32 %v277, %v287
        %v300 = vmul.f32 %v278, %v288
        %v301 = vmul.f32 %v279, %v285
        %v302 = vmul.f32 %v280, %v286
        %v303 = vmul.f32 %v281, %v287
        %v304 = vmul.f32 %v282, %v288
        %v305 = vld [vmem:[%s2] sm:$0xf]
        %v307 = vperm.slane %v305, 0
        %v308 = vperm.slane %v305, 1
        %v309 = vperm.slane %v305, 2
        %v310 = vperm.slane %v305, 3
        %v315 = vadd.f32 %v293, %v307
        %v316 = vadd.f32 %v294, %v308
        %v317 = vadd.f32 %v295, %v309
        %v318 = vadd.f32 %v296, %v310
        %v319 = vadd.f32 %v297, %v307
        %v320 = vadd.f32 %v298, %v308
        %v321 = vadd.f32 %v299, %v309
        %v322 = vadd.f32 %v300, %v310
        %v323 = vadd.f32 %v301, %v307
        %v324 = vadd.f32 %v302, %v308
        %v325 = vadd.f32 %v303, %v309
        %v326 = vadd.f32 %v304, %v310
        %v327 = vmax.f32 %v315, 0.0
        %v328 = vmax.f32 %v316, 0.0
        %v329 = vmax.f32 %v317, 0.0
        %v330 = vmax.f32 %v318, 0.0
        %v331 = vmax.f32 %v319, 0.0
        %v332 = vmax.f32 %v320, 0.0
        %v333 = vmax.f32 %v321, 0.0
        %v334 = vmax.f32 %v322, 0.0
        %v335 = vmax.f32 %v323, 0.0
        %v336 = vmax.f32 %v324, 0.0
        %v337 = vmax.f32 %v325, 0.0
        %v338 = vmax.f32 %v326, 0.0
        %v339 = vld [vmem:[%s3] sm:$0xff]
        %v340 = vld [vmem:[%s3 + $0x8] sm:$0xff]
        %v341 = vld [vmem:[%s3 + $0x10] sm:$0xff]
        %v342 = vld [vmem:[%s3 + $0x18] sm:$0xff]
        %v343 = vld [vmem:[%s3 + $0x20] sm:$0xff]
        %v344 = vld [vmem:[%s3 + $0x28] sm:$0xff]
        %v345 = vld [vmem:[%s3 + $0x30] sm:$0xff]
        %v346 = vld [vmem:[%s3 + $0x38] sm:$0xff]
        %v347 = vld [vmem:[%s3 + $0x40] sm:$0xff]
        %v348 = vld [vmem:[%s3 + $0x48] sm:$0xff]
        %v349 = vld [vmem:[%s3 + $0x50] sm:$0xff]
        %v350 = vld [vmem:[%s3 + $0x58] sm:$0xff]
        %v351 = vld [vmem:[%s3 + $0x60] sm:$0xff]
        %v352 = vld [vmem:[%s3 + $0x68] sm:$0xff]
        %v353 = vld [vmem:[%s3 + $0x70] sm:$0xff]
        %v354 = vld [vmem:[%s3 + $0x78] sm:$0xff]
        %v355 = vld [vmem:[%s3 + $0x80] sm:$0xff]
        %v356 = vld [vmem:[%s3 + $0x88] sm:$0xff]
        %v357 = vld [vmem:[%s3 + $0x90] sm:$0xff]
        %v358 = vld [vmem:[%s3 + $0x98] sm:$0xff]
        %v359 = vld [vmem:[%s3 + $0xa0] sm:$0xff]
        %v360 = vld [vmem:[%s3 + $0xa8] sm:$0xff]
        %v361 = vld [vmem:[%s3 + $0xb0] sm:$0xff]
        %v362 = vld [vmem:[%s3 + $0xb8] sm:$0xff]
        %v363 = vld [vmem:[%s3 + $0xc0] sm:$0xff]
        %v364 = vld [vmem:[%s3 + $0xc8] sm:$0xff]
        %v365 = vld [vmem:[%s3 + $0xd0] sm:$0xff]
        %v366 = vld [vmem:[%s3 + $0xd8] sm:$0xff]
        %v367 = vld [vmem:[%s3 + $0xe0] sm:$0xff]
        %v368 = vld [vmem:[%s3 + $0xe8] sm:$0xff]
        %v369 = vld [vmem:[%s3 + $0xf0] sm:$0xff]
        %v370 = vld [vmem:[%s3 + $0xf8] sm:$0xff]
        %v371 = vld [vmem:[%s3 + $0x100] sm:$0xff]
        %v372 = vld [vmem:[%s3 + $0x108] sm:$0xff]
        %v373 = vld [vmem:[%s3 + $0x110] sm:$0xff]
        %v374 = vld [vmem:[%s3 + $0x118] sm:$0xff]
        %v375 = vld [vmem:[%s3 + $0x120] sm:$0xff]
        %v376 = vld [vmem:[%s3 + $0x128] sm:$0xff]
        %v377 = vld [vmem:[%s3 + $0x130] sm:$0xff]
        %v378 = vld [vmem:[%s3 + $0x138] sm:$0xff]
        %v379 = vld [vmem:[%s3 + $0x140] sm:$0xff]
        %v380 = vld [vmem:[%s3 + $0x148] sm:$0xff]
        %v381 = vld [vmem:[%s3 + $0x150] sm:$0xff]
        %v382 = vld [vmem:[%s3 + $0x158] sm:$0xff]
        %v383 = vld [vmem:[%s3 + $0x160] sm:$0xff]
        %v384 = vld [vmem:[%s3 + $0x168] sm:$0xff]
        %v385 = vld [vmem:[%s3 + $0x170] sm:$0xff]
        %v386 = vld [vmem:[%s3 + $0x178] sm:$0xff]
        %v387 = vld [vmem:[%s3 + $0x180] sm:$0xff]
        %v388 = vld [vmem:[%s3 + $0x188] sm:$0xff]
        %v389 = vld [vmem:[%s3 + $0x190] sm:$0xff]
        %v390 = vld [vmem:[%s3 + $0x198] sm:$0xff]
        %v391 = vld [vmem:[%s3 + $0x1a0] sm:$0xff]
        %v392 = vld [vmem:[%s3 + $0x1a8] sm:$0xff]
        %v393 = vld [vmem:[%s3 + $0x1b0] sm:$0xff]
        %v394 = vld [vmem:[%s3 + $0x1b8] sm:$0xff]
        %s395 = scalar_lea.vmem %s3, 448
        %v396 = vld [vmem:[%s395] sm:$0xff]
        %v397 = vld [vmem:[%s395 + $0x8] sm:$0xff]
        %v398 = vld [vmem:[%s395 + $0x10] sm:$0xff]
        %v399 = vld [vmem:[%s395 + $0x18] sm:$0xff]
        %v400 = vld [vmem:[%s395 + $0x20] sm:$0xff]
        %v401 = vld [vmem:[%s395 + $0x28] sm:$0xff]
        %v402 = vld [vmem:[%s395 + $0x30] sm:$0xff]
        %v403 = vld [vmem:[%s395 + $0x38] sm:$0xff]
        %v404 = vld [vmem:[%s395 + $0x40] sm:$0xff]
        %v405 = vld [vmem:[%s395 + $0x48] sm:$0xff]
        %v406 = vld [vmem:[%s395 + $0x50] sm:$0xff]
        %v407 = vld [vmem:[%s395 + $0x58] sm:$0xff]
        %v408 = vld [vmem:[%s395 + $0x60] sm:$0xff]
        %v409 = vld [vmem:[%s395 + $0x68] sm:$0xff]
        %v410 = vld [vmem:[%s395 + $0x70] sm:$0xff]
        %v411 = vld [vmem:[%s395 + $0x78] sm:$0xff]
        %v412 = vld [vmem:[%s395 + $0x80] sm:$0xff]
        %v413 = vld [vmem:[%s395 + $0x88] sm:$0xff]
        %v414 = vld [vmem:[%s395 + $0x90] sm:$0xff]
        %v415 = vld [vmem:[%s395 + $0x98] sm:$0xff]
        %v416 = vld [vmem:[%s395 + $0xa0] sm:$0xff]
        %v417 = vld [vmem:[%s395 + $0xa8] sm:$0xff]
        %v418 = vld [vmem:[%s395 + $0xb0] sm:$0xff]
        %v419 = vld [vmem:[%s395 + $0xb8] sm:$0xff]
        %v420 = vld [vmem:[%s395 + $0xc0] sm:$0xff]
        %v421 = vld [vmem:[%s395 + $0xc8] sm:$0xff]
        %v422 = vld [vmem:[%s395 + $0xd0] sm:$0xff]
        %v423 = vld [vmem:[%s395 + $0xd8] sm:$0xff]
        %v424 = vld [vmem:[%s395 + $0xe0] sm:$0xff]
        %v425 = vld [vmem:[%s395 + $0xe8] sm:$0xff]
        %v426 = vld [vmem:[%s395 + $0xf0] sm:$0xff]
        %v427 = vld [vmem:[%s395 + $0xf8] sm:$0xff]
        %v428 = vld [vmem:[%s395 + $0x100] sm:$0xff]
        %v429 = vld [vmem:[%s395 + $0x108] sm:$0xff]
        %v430 = vld [vmem:[%s395 + $0x110] sm:$0xff]
        %v431 = vld [vmem:[%s395 + $0x118] sm:$0xff]
        %v432 = vld [vmem:[%s395 + $0x120] sm:$0xff]
        %v433 = vld [vmem:[%s395 + $0x128] sm:$0xff]
        %v434 = vld [vmem:[%s395 + $0x130] sm:$0xff]
        %v435 = vld [vmem:[%s395 + $0x138] sm:$0xff]
        %v436 = vld [vmem:[%s395 + $0x140] sm:$0xff]
        %v437 = vld [vmem:[%s395 + $0x148] sm:$0xff]
        %v438 = vld [vmem:[%s395 + $0x150] sm:$0xff]
        %v439 = vld [vmem:[%s395 + $0x158] sm:$0xff]
        %v440 = vld [vmem:[%s395 + $0x160] sm:$0xff]
        %v441 = vld [vmem:[%s395 + $0x168] sm:$0xff]
        %v442 = vld [vmem:[%s395 + $0x170] sm:$0xff]
        %v443 = vld [vmem:[%s395 + $0x178] sm:$0xff]
        %v444 = vld [vmem:[%s395 + $0x180] sm:$0xff]
        %v445 = vld [vmem:[%s395 + $0x188] sm:$0xff]
        %v446 = vld [vmem:[%s395 + $0x190] sm:$0xff]
        %v447 = vld [vmem:[%s395 + $0x198] sm:$0xff]
        %v448 = vld [vmem:[%s395 + $0x1a0] sm:$0xff]
        %v449 = vld [vmem:[%s395 + $0x1a8] sm:$0xff]
        %v450 = vld [vmem:[%s395 + $0x1b0] sm:$0xff]
        %v451 = vld [vmem:[%s395 + $0x1b8] sm:$0xff]
        %460 = vrot.lane.b32.xlu0 %v327, 100
        %v461 = vpop.permute.xlu0 %460
        %462 = vrot.lane.b32.xlu0 %v328, 100
        %v463 = vpop.permute.xlu0 %462
        %464 = vrot.lane.b32.xlu0 %v329, 100
        %v465 = vpop.permute.xlu0 %464
        %466 = vrot.lane.b32.xlu0 %v330, 100
        %v467 = vpop.permute.xlu0 %466
        %468 = vrot.lane.b32.xlu0 %v331, 100
        %v469 = vpop.permute.xlu0 %468
        %470 = vrot.lane.b32.xlu0 %v332, 100
        %v471 = vpop.permute.xlu0 %470
        %472 = vrot.lane.b32.xlu0 %v333, 100
        %v473 = vpop.permute.xlu0 %472
        %474 = vrot.lane.b32.xlu0 %v334, 100
        %v475 = vpop.permute.xlu0 %474
        %vm476 = vcmask 818176
        %v477 = vsel %vm476, %v461, %v463
        %v478 = vsel %vm476, %v463, %v465
        %v479 = vsel %vm476, %v465, %v467
        %v480 = vsel %vm476, %v469, %v471
        %v481 = vsel %vm476, %v471, %v473
        %v482 = vsel %vm476, %v473, %v475
        %vm489 = vcmask 523264
        %v490 = vsel %vm489, %v467, 0
        %v492 = vsel %vm489, %v475, 0
        %494 = vmatpush.msra.mxu0 %v411
        %495 = vmatpush.msra.mxu0 %v410
        %496 = vmatpush.msra.mxu0 %v409
        %497 = vmatpush.msra.mxu0 %v408
        %498 = vmatpush.msra.mxu0 %v407
        %499 = vmatpush.msra.mxu0 %v406
        %500 = vmatpush.msra.mxu0 %v405
        %501 = vmatpush.msra.mxu0 %v404
        %502 = vmatpush.msra.mxu0 %v403
        %503 = vmatpush.msra.mxu0 %v402
        %504 = vmatpush.msra.mxu0 %v401
        %505 = vmatpush.msra.mxu0 %v400
        %506 = vmatpush.msra.mxu0 %v399
        %507 = vmatpush.msra.mxu0 %v398
        %508 = vmatpush.msra.mxu0 %v397
        %509 = vmatpush.msra.mxu0 %v396
        %510 = vmatmul.f32.gmra.mxu0 %v477
        %v511 = vpop.f32.mrf.mxu0
        %v512 = vadd.f32 0.0, %v511
        %513 = vmatmul.f32.gmra.mxu0 %v480
        %v514 = vpop.f32.mrf.mxu0
        %v515 = vadd.f32 0.0, %v514
        %516 = vdwg.mxu0
        %517 = vmatpush.msra.mxu0 %v427
        %518 = vmatpush.msra.mxu0 %v426
        %519 = vmatpush.msra.mxu0 %v425
        %520 = vmatpush.msra.mxu0 %v424
        %521 = vmatpush.msra.mxu0 %v423
        %522 = vmatpush.msra.mxu0 %v422
        %523 = vmatpush.msra.mxu0 %v421
        %524 = vmatpush.msra.mxu0 %v420
        %525 = vmatpush.msra.mxu0 %v419
        %526 = vmatpush.msra.mxu0 %v418
        %527 = vmatpush.msra.mxu0 %v417
        %528 = vmatpush.msra.mxu0 %v416
        %529 = vmatpush.msra.mxu0 %v415
        %530 = vmatpush.msra.mxu0 %v414
        %531 = vmatpush.msra.mxu0 %v413
        %532 = vmatpush.msra.mxu0 %v412
        %533 = vmatmul.f32.gmra.mxu0 %v478
        %v534 = vpop.f32.mrf.mxu0
        %v535 = vadd.f32 %v512, %v534
        %536 = vmatmul.f32.gmra.mxu0 %v481
        %v537 = vpop.f32.mrf.mxu0
        %v538 = vadd.f32 %v515, %v537
        %539 = vdwg.mxu0
        %540 = vmatpush.msra.mxu0 %v443
        %541 = vmatpush.msra.mxu0 %v442
        %542 = vmatpush.msra.mxu0 %v441
        %543 = vmatpush.msra.mxu0 %v440
        %544 = vmatpush.msra.mxu0 %v439
        %545 = vmatpush.msra.mxu0 %v438
        %546 = vmatpush.msra.mxu0 %v437
        %547 = vmatpush.msra.mxu0 %v436
        %548 = vmatpush.msra.mxu0 %v435
        %549 = vmatpush.msra.mxu0 %v434
        %550 = vmatpush.msra.mxu0 %v433
        %551 = vmatpush.msra.mxu0 %v432
        %552 = vmatpush.msra.mxu0 %v431
        %553 = vmatpush.msra.mxu0 %v430
        %554 = vmatpush.msra.mxu0 %v429
        %555 = vmatpush.msra.mxu0 %v428
        %556 = vmatmul.f32.gmra.mxu0 %v479
        %v557 = vpop.f32.mrf.mxu0
        %v558 = vadd.f32 %v535, %v557
        %559 = vmatmul.f32.gmra.mxu0 %v482
        %v560 = vpop.f32.mrf.mxu0
        %v561 = vadd.f32 %v538, %v560
        %562 = vdwg.mxu0
        %563 = vmatpush.msra.mxu0 0.0
        %564 = vmatpush.msra.mxu0 0.0
        %565 = vmatpush.msra.mxu0 0.0
        %566 = vmatpush.msra.mxu0 0.0
        %567 = vmatpush.msra.mxu0 0.0
        %568 = vmatpush.msra.mxu0 0.0
        %569 = vmatpush.msra.mxu0 0.0
        %570 = vmatpush.msra.mxu0 0.0
        %571 = vmatpush.msra.mxu0 %v451
        %572 = vmatpush.msra.mxu0 %v450
        %573 = vmatpush.msra.mxu0 %v449
        %574 = vmatpush.msra.mxu0 %v448
        %575 = vmatpush.msra.mxu0 %v447
        %576 = vmatpush.msra.mxu0 %v446
        %577 = vmatpush.msra.mxu0 %v445
        %578 = vmatpush.msra.mxu0 %v444
        %579 = vmatmul.f32.gmra.mxu0 %v490
        %v580 = vpop.f32.mrf.mxu0
        %v581 = vadd.f32 %v558, %v580
        %582 = vmatmul.f32.gmra.mxu0 %v492
        %v583 = vpop.f32.mrf.mxu0
        %v584 = vadd.f32 %v561, %v583
        %585 = vdwg.mxu0
        %v586 = vsel %vm489, %v330, 0
        %v588 = vsel %vm489, %v334, 0
        %590 = vmatpush.msra.mxu0 %v354
        %591 = vmatpush.msra.mxu0 %v353
        %592 = vmatpush.msra.mxu0 %v352
        %593 = vmatpush.msra.mxu0 %v351
        %594 = vmatpush.msra.mxu0 %v350
        %595 = vmatpush.msra.mxu0 %v349
        %596 = vmatpush.msra.mxu0 %v348
        %597 = vmatpush.msra.mxu0 %v347
        %598 = vmatpush.msra.mxu0 %v346
        %599 = vmatpush.msra.mxu0 %v345
        %600 = vmatpush.msra.mxu0 %v344
        %601 = vmatpush.msra.mxu0 %v343
        %602 = vmatpush.msra.mxu0 %v342
        %603 = vmatpush.msra.mxu0 %v341
        %604 = vmatpush.msra.mxu0 %v340
        %605 = vmatpush.msra.mxu0 %v339
        %606 = vmatmul.f32.gmra.mxu0 %v327
        %v607 = vpop.f32.mrf.mxu0
        %v608 = vadd.f32 %v581, %v607
        %609 = vmatmul.f32.gmra.mxu0 %v331
        %v610 = vpop.f32.mrf.mxu0
        %v611 = vadd.f32 %v584, %v610
        %612 = vdwg.mxu0
        %613 = vmatpush.msra.mxu0 %v370
        %614 = vmatpush.msra.mxu0 %v369
        %615 = vmatpush.msra.mxu0 %v368
        %616 = vmatpush.msra.mxu0 %v367
        %617 = vmatpush.msra.mxu0 %v366
        %618 = vmatpush.msra.mxu0 %v365
        %619 = vmatpush.msra.mxu0 %v364
        %620 = vmatpush.msra.mxu0 %v363
        %621 = vmatpush.msra.mxu0 %v362
        %622 = vmatpush.msra.mxu0 %v361
        %623 = vmatpush.msra.mxu0 %v360
        %624 = vmatpush.msra.mxu0 %v359
        %625 = vmatpush.msra.mxu0 %v358
        %626 = vmatpush.msra.mxu0 %v357
        %627 = vmatpush.msra.mxu0 %v356
        %628 = vmatpush.msra.mxu0 %v355
        %629 = vmatmul.f32.gmra.mxu0 %v328
        %v630 = vpop.f32.mrf.mxu0
        %v631 = vadd.f32 %v608, %v630
        %632 = vmatmul.f32.gmra.mxu0 %v332
        %v633 = vpop.f32.mrf.mxu0
        %v634 = vadd.f32 %v611, %v633
        %635 = vdwg.mxu0
        %636 = vmatpush.msra.mxu0 %v386
        %637 = vmatpush.msra.mxu0 %v385
        %638 = vmatpush.msra.mxu0 %v384
        %639 = vmatpush.msra.mxu0 %v383
        %640 = vmatpush.msra.mxu0 %v382
        %641 = vmatpush.msra.mxu0 %v381
        %642 = vmatpush.msra.mxu0 %v380
        %643 = vmatpush.msra.mxu0 %v379
        %644 = vmatpush.msra.mxu0 %v378
        %645 = vmatpush.msra.mxu0 %v377
        %646 = vmatpush.msra.mxu0 %v376
        %647 = vmatpush.msra.mxu0 %v375
        %648 = vmatpush.msra.mxu0 %v374
        %649 = vmatpush.msra.mxu0 %v373
        %650 = vmatpush.msra.mxu0 %v372
        %651 = vmatpush.msra.mxu0 %v371
        %652 = vmatmul.f32.gmra.mxu0 %v329
        %v653 = vpop.f32.mrf.mxu0
        %v654 = vadd.f32 %v631, %v653
        %655 = vmatmul.f32.gmra.mxu0 %v333
        %v656 = vpop.f32.mrf.mxu0
        %v657 = vadd.f32 %v634, %v656
        %658 = vdwg.mxu0
        %659 = vmatpush.msra.mxu0 0.0
        %660 = vmatpush.msra.mxu0 0.0
        %661 = vmatpush.msra.mxu0 0.0
        %662 = vmatpush.msra.mxu0 0.0
        %663 = vmatpush.msra.mxu0 0.0
        %664 = vmatpush.msra.mxu0 0.0
        %665 = vmatpush.msra.mxu0 0.0
        %666 = vmatpush.msra.mxu0 0.0
        %667 = vmatpush.msra.mxu0 %v394
        %668 = vmatpush.msra.mxu0 %v393
        %669 = vmatpush.msra.mxu0 %v392
        %670 = vmatpush.msra.mxu0 %v391
        %671 = vmatpush.msra.mxu0 %v390
        %672 = vmatpush.msra.mxu0 %v389
        %673 = vmatpush.msra.mxu0 %v388
        %674 = vmatpush.msra.mxu0 %v387
        %675 = vmatmul.f32.gmra.mxu0 %v586
        %v676 = vpop.f32.mrf.mxu0
        %v677 = vadd.f32 %v654, %v676
        %678 = vmatmul.f32.gmra.mxu0 %v588
        %v679 = vpop.f32.mrf.mxu0
        %v680 = vadd.f32 %v657, %v679
        %681 = vdwg.mxu0
        %s682 = scalar_lea.vmem %s3, 896
        %v683 = vld [vmem:[%s682] sm:$0xff]
        %v684 = vld [vmem:[%s682 + $0x8] sm:$0xff]
        %v685 = vld [vmem:[%s682 + $0x10] sm:$0xff]
        %v686 = vld [vmem:[%s682 + $0x18] sm:$0xff]
        %v687 = vld [vmem:[%s682 + $0x20] sm:$0xff]
        %v688 = vld [vmem:[%s682 + $0x28] sm:$0xff]
        %v689 = vld [vmem:[%s682 + $0x30] sm:$0xff]
        %v690 = vld [vmem:[%s682 + $0x38] sm:$0xff]
        %v691 = vld [vmem:[%s682 + $0x40] sm:$0xff]
        %v692 = vld [vmem:[%s682 + $0x48] sm:$0xff]
        %v693 = vld [vmem:[%s682 + $0x50] sm:$0xff]
        %v694 = vld [vmem:[%s682 + $0x58] sm:$0xff]
        %v695 = vld [vmem:[%s682 + $0x60] sm:$0xff]
        %v696 = vld [vmem:[%s682 + $0x68] sm:$0xff]
        %v697 = vld [vmem:[%s682 + $0x70] sm:$0xff]
        %v698 = vld [vmem:[%s682 + $0x78] sm:$0xff]
        %v699 = vld [vmem:[%s682 + $0x80] sm:$0xff]
        %v700 = vld [vmem:[%s682 + $0x88] sm:$0xff]
        %v701 = vld [vmem:[%s682 + $0x90] sm:$0xff]
        %v702 = vld [vmem:[%s682 + $0x98] sm:$0xff]
        %v703 = vld [vmem:[%s682 + $0xa0] sm:$0xff]
        %v704 = vld [vmem:[%s682 + $0xa8] sm:$0xff]
        %v705 = vld [vmem:[%s682 + $0xb0] sm:$0xff]
        %v706 = vld [vmem:[%s682 + $0xb8] sm:$0xff]
        %v707 = vld [vmem:[%s682 + $0xc0] sm:$0xff]
        %v708 = vld [vmem:[%s682 + $0xc8] sm:$0xff]
        %v709 = vld [vmem:[%s682 + $0xd0] sm:$0xff]
        %v710 = vld [vmem:[%s682 + $0xd8] sm:$0xff]
        %v711 = vld [vmem:[%s682 + $0xe0] sm:$0xff]
        %v712 = vld [vmem:[%s682 + $0xe8] sm:$0xff]
        %v713 = vld [vmem:[%s682 + $0xf0] sm:$0xff]
        %v714 = vld [vmem:[%s682 + $0xf8] sm:$0xff]
        %v715 = vld [vmem:[%s682 + $0x100] sm:$0xff]
        %v716 = vld [vmem:[%s682 + $0x108] sm:$0xff]
        %v717 = vld [vmem:[%s682 + $0x110] sm:$0xff]
        %v718 = vld [vmem:[%s682 + $0x118] sm:$0xff]
        %v719 = vld [vmem:[%s682 + $0x120] sm:$0xff]
        %v720 = vld [vmem:[%s682 + $0x128] sm:$0xff]
        %v721 = vld [vmem:[%s682 + $0x130] sm:$0xff]
        %v722 = vld [vmem:[%s682 + $0x138] sm:$0xff]
        %v723 = vld [vmem:[%s682 + $0x140] sm:$0xff]
        %v724 = vld [vmem:[%s682 + $0x148] sm:$0xff]
        %v725 = vld [vmem:[%s682 + $0x150] sm:$0xff]
        %v726 = vld [vmem:[%s682 + $0x158] sm:$0xff]
        %v727 = vld [vmem:[%s682 + $0x160] sm:$0xff]
        %v728 = vld [vmem:[%s682 + $0x168] sm:$0xff]
        %v729 = vld [vmem:[%s682 + $0x170] sm:$0xff]
        %v730 = vld [vmem:[%s682 + $0x178] sm:$0xff]
        %v731 = vld [vmem:[%s682 + $0x180] sm:$0xff]
        %v732 = vld [vmem:[%s682 + $0x188] sm:$0xff]
        %v733 = vld [vmem:[%s682 + $0x190] sm:$0xff]
        %v734 = vld [vmem:[%s682 + $0x198] sm:$0xff]
        %v735 = vld [vmem:[%s682 + $0x1a0] sm:$0xff]
        %v736 = vld [vmem:[%s682 + $0x1a8] sm:$0xff]
        %v737 = vld [vmem:[%s682 + $0x1b0] sm:$0xff]
        %v738 = vld [vmem:[%s682 + $0x1b8] sm:$0xff]
        %739 = vrot.lane.b32.xlu0 %v327, 72
        %v740 = vpop.permute.xlu0 %739
        %741 = vrot.lane.b32.xlu0 %v328, 72
        %v742 = vpop.permute.xlu0 %741
        %743 = vrot.lane.b32.xlu0 %v329, 72
        %v744 = vpop.permute.xlu0 %743
        %745 = vrot.lane.b32.xlu0 %v330, 72
        %v746 = vpop.permute.xlu0 %745
        %747 = vrot.lane.b32.xlu0 %v331, 72
        %v748 = vpop.permute.xlu0 %747
        %749 = vrot.lane.b32.xlu0 %v332, 72
        %v750 = vpop.permute.xlu0 %749
        %751 = vrot.lane.b32.xlu0 %v333, 72
        %v752 = vpop.permute.xlu0 %751
        %753 = vrot.lane.b32.xlu0 %v334, 72
        %v754 = vpop.permute.xlu0 %753
        %vm755 = vcmask 588800
        %v756 = vsel %vm755, %v740, %v742
        %v757 = vsel %vm755, %v742, %v744
        %v758 = vsel %vm755, %v744, %v746
        %v759 = vsel %vm755, %v748, %v750
        %v760 = vsel %vm755, %v750, %v752
        %v761 = vsel %vm755, %v752, %v754
        %v768 = vsel %vm489, %v746, 0
        %v770 = vsel %vm489, %v754, 0
        %772 = vmatpush.msra.mxu0 %v698
        %773 = vmatpush.msra.mxu0 %v697
        %774 = vmatpush.msra.mxu0 %v696
        %775 = vmatpush.msra.mxu0 %v695
        %776 = vmatpush.msra.mxu0 %v694
        %777 = vmatpush.msra.mxu0 %v693
        %778 = vmatpush.msra.mxu0 %v692
        %779 = vmatpush.msra.mxu0 %v691
        %780 = vmatpush.msra.mxu0 %v690
        %781 = vmatpush.msra.mxu0 %v689
        %782 = vmatpush.msra.mxu0 %v688
        %783 = vmatpush.msra.mxu0 %v687
        %784 = vmatpush.msra.mxu0 %v686
        %785 = vmatpush.msra.mxu0 %v685
        %786 = vmatpush.msra.mxu0 %v684
        %787 = vmatpush.msra.mxu0 %v683
        %788 = vmatmul.f32.gmra.mxu0 %v756
        %v789 = vpop.f32.mrf.mxu0
        %v790 = vadd.f32 0.0, %v789
        %791 = vmatmul.f32.gmra.mxu0 %v759
        %v792 = vpop.f32.mrf.mxu0
        %v793 = vadd.f32 0.0, %v792
        %794 = vdwg.mxu0
        %795 = vmatpush.msra.mxu0 %v714
        %796 = vmatpush.msra.mxu0 %v713
        %797 = vmatpush.msra.mxu0 %v712
        %798 = vmatpush.msra.mxu0 %v711
        %799 = vmatpush.msra.mxu0 %v710
        %800 = vmatpush.msra.mxu0 %v709
        %801 = vmatpush.msra.mxu0 %v708
        %802 = vmatpush.msra.mxu0 %v707
        %803 = vmatpush.msra.mxu0 %v706
        %804 = vmatpush.msra.mxu0 %v705
        %805 = vmatpush.msra.mxu0 %v704
        %806 = vmatpush.msra.mxu0 %v703
        %807 = vmatpush.msra.mxu0 %v702
        %808 = vmatpush.msra.mxu0 %v701
        %809 = vmatpush.msra.mxu0 %v700
        %810 = vmatpush.msra.mxu0 %v699
        %811 = vmatmul.f32.gmra.mxu0 %v757
        %v812 = vpop.f32.mrf.mxu0
        %v813 = vadd.f32 %v790, %v812
        %814 = vmatmul.f32.gmra.mxu0 %v760
        %v815 = vpop.f32.mrf.mxu0
        %v816 = vadd.f32 %v793, %v815
        %817 = vdwg.mxu0
        %818 = vmatpush.msra.mxu0 %v730
        %819 = vmatpush.msra.mxu0 %v729
        %820 = vmatpush.msra.mxu0 %v728
        %821 = vmatpush.msra.mxu0 %v727
        %822 = vmatpush.msra.mxu0 %v726
        %823 = vmatpush.msra.mxu0 %v725
        %824 = vmatpush.msra.mxu0 %v724
        %825 = vmatpush.msra.mxu0 %v723
        %826 = vmatpush.msra.mxu0 %v722
        %827 = vmatpush.msra.mxu0 %v721
        %828 = vmatpush.msra.mxu0 %v720
        %829 = vmatpush.msra.mxu0 %v719
        %830 = vmatpush.msra.mxu0 %v718
        %831 = vmatpush.msra.mxu0 %v717
        %832 = vmatpush.msra.mxu0 %v716
        %833 = vmatpush.msra.mxu0 %v715
        %834 = vmatmul.f32.gmra.mxu0 %v758
        %v835 = vpop.f32.mrf.mxu0
        %v836 = vadd.f32 %v813, %v835
        %837 = vmatmul.f32.gmra.mxu0 %v761
        %v838 = vpop.f32.mrf.mxu0
        %v839 = vadd.f32 %v816, %v838
        %840 = vdwg.mxu0
        %841 = vmatpush.msra.mxu0 0.0
        %842 = vmatpush.msra.mxu0 0.0
        %843 = vmatpush.msra.mxu0 0.0
        %844 = vmatpush.msra.mxu0 0.0
        %845 = vmatpush.msra.mxu0 0.0
        %846 = vmatpush.msra.mxu0 0.0
        %847 = vmatpush.msra.mxu0 0.0
        %848 = vmatpush.msra.mxu0 0.0
        %849 = vmatpush.msra.mxu0 %v738
        %850 = vmatpush.msra.mxu0 %v737
        %851 = vmatpush.msra.mxu0 %v736
        %852 = vmatpush.msra.mxu0 %v735
        %853 = vmatpush.msra.mxu0 %v734
        %854 = vmatpush.msra.mxu0 %v733
        %855 = vmatpush.msra.mxu0 %v732
        %856 = vmatpush.msra.mxu0 %v731
        %857 = vmatmul.f32.gmra.mxu0 %v768
        %v858 = vpop.f32.mrf.mxu0
        %v859 = vadd.f32 %v836, %v858
        %860 = vmatmul.f32.gmra.mxu0 %v770
        %v861 = vpop.f32.mrf.mxu0
        %v862 = vadd.f32 %v839, %v861
        %863 = vdwg.mxu0
        %v864 = vadd.f32 %v677, %v859
        %v865 = vadd.f32 %v680, %v862
        %s866 = scalar_lea.vmem %s3, 1344
        %v867 = vld [vmem:[%s866] sm:$0xff]
        %v868 = vld [vmem:[%s866 + $0x8] sm:$0xff]
        %v869 = vld [vmem:[%s866 + $0x10] sm:$0xff]
        %v870 = vld [vmem:[%s866 + $0x18] sm:$0xff]
        %v871 = vld [vmem:[%s866 + $0x20] sm:$0xff]
        %v872 = vld [vmem:[%s866 + $0x28] sm:$0xff]
        %v873 = vld [vmem:[%s866 + $0x30] sm:$0xff]
        %v874 = vld [vmem:[%s866 + $0x38] sm:$0xff]
        %v875 = vld [vmem:[%s866 + $0x40] sm:$0xff]
        %v876 = vld [vmem:[%s866 + $0x48] sm:$0xff]
        %v877 = vld [vmem:[%s866 + $0x50] sm:$0xff]
        %v878 = vld [vmem:[%s866 + $0x58] sm:$0xff]
        %v879 = vld [vmem:[%s866 + $0x60] sm:$0xff]
        %v880 = vld [vmem:[%s866 + $0x68] sm:$0xff]
        %v881 = vld [vmem:[%s866 + $0x70] sm:$0xff]
        %v882 = vld [vmem:[%s866 + $0x78] sm:$0xff]
        %v883 = vld [vmem:[%s866 + $0x80] sm:$0xff]
        %v884 = vld [vmem:[%s866 + $0x88] sm:$0xff]
        %v885 = vld [vmem:[%s866 + $0x90] sm:$0xff]
        %v886 = vld [vmem:[%s866 + $0x98] sm:$0xff]
        %v887 = vld [vmem:[%s866 + $0xa0] sm:$0xff]
        %v888 = vld [vmem:[%s866 + $0xa8] sm:$0xff]
        %v889 = vld [vmem:[%s866 + $0xb0] sm:$0xff]
        %v890 = vld [vmem:[%s866 + $0xb8] sm:$0xff]
        %v891 = vld [vmem:[%s866 + $0xc0] sm:$0xff]
        %v892 = vld [vmem:[%s866 + $0xc8] sm:$0xff]
        %v893 = vld [vmem:[%s866 + $0xd0] sm:$0xff]
        %v894 = vld [vmem:[%s866 + $0xd8] sm:$0xff]
        %v895 = vld [vmem:[%s866 + $0xe0] sm:$0xff]
        %v896 = vld [vmem:[%s866 + $0xe8] sm:$0xff]
        %v897 = vld [vmem:[%s866 + $0xf0] sm:$0xff]
        %v898 = vld [vmem:[%s866 + $0xf8] sm:$0xff]
        %v899 = vld [vmem:[%s866 + $0x100] sm:$0xff]
        %v900 = vld [vmem:[%s866 + $0x108] sm:$0xff]
        %v901 = vld [vmem:[%s866 + $0x110] sm:$0xff]
        %v902 = vld [vmem:[%s866 + $0x118] sm:$0xff]
        %v903 = vld [vmem:[%s866 + $0x120] sm:$0xff]
        %v904 = vld [vmem:[%s866 + $0x128] sm:$0xff]
        %v905 = vld [vmem:[%s866 + $0x130] sm:$0xff]
        %v906 = vld [vmem:[%s866 + $0x138] sm:$0xff]
        %v907 = vld [vmem:[%s866 + $0x140] sm:$0xff]
        %v908 = vld [vmem:[%s866 + $0x148] sm:$0xff]
        %v909 = vld [vmem:[%s866 + $0x150] sm:$0xff]
        %v910 = vld [vmem:[%s866 + $0x158] sm:$0xff]
        %v911 = vld [vmem:[%s866 + $0x160] sm:$0xff]
        %v912 = vld [vmem:[%s866 + $0x168] sm:$0xff]
        %v913 = vld [vmem:[%s866 + $0x170] sm:$0xff]
        %v914 = vld [vmem:[%s866 + $0x178] sm:$0xff]
        %v915 = vld [vmem:[%s866 + $0x180] sm:$0xff]
        %v916 = vld [vmem:[%s866 + $0x188] sm:$0xff]
        %v917 = vld [vmem:[%s866 + $0x190] sm:$0xff]
        %v918 = vld [vmem:[%s866 + $0x198] sm:$0xff]
        %v919 = vld [vmem:[%s866 + $0x1a0] sm:$0xff]
        %v920 = vld [vmem:[%s866 + $0x1a8] sm:$0xff]
        %v921 = vld [vmem:[%s866 + $0x1b0] sm:$0xff]
        %v922 = vld [vmem:[%s866 + $0x1b8] sm:$0xff]
        %vm927 = vcmask 1046528
        %v928 = vrot.slane %v327, 1
        %v929 = vrot.slane %v331, 1
        %v930 = vsel %vm927, %v928, %v929
        %v931 = vrot.slane %v328, 1
        %v932 = vrot.slane %v332, 1
        %v933 = vsel %vm927, %v931, %v932
        %v934 = vrot.slane %v329, 1
        %v935 = vrot.slane %v333, 1
        %v936 = vsel %vm927, %v934, %v935
        %v937 = vrot.slane %v330, 1
        %v938 = vrot.slane %v334, 1
        %v939 = vsel %vm927, %v937, %v938
        %v940 = vrot.slane %v335, 1
        %v941 = vsel %vm927, %v929, %v940
        %v942 = vrot.slane %v336, 1
        %v943 = vsel %vm927, %v932, %v942
        %v944 = vrot.slane %v337, 1
        %v945 = vsel %vm927, %v935, %v944
        %v946 = vrot.slane %v338, 1
        %v947 = vsel %vm927, %v938, %v946
        %v954 = vsel %vm489, %v939, 0
        %v956 = vsel %vm489, %v947, 0
        %958 = vmatpush.msra.mxu0 %v882
        %959 = vmatpush.msra.mxu0 %v881
        %960 = vmatpush.msra.mxu0 %v880
        %961 = vmatpush.msra.mxu0 %v879
        %962 = vmatpush.msra.mxu0 %v878
        %963 = vmatpush.msra.mxu0 %v877
        %964 = vmatpush.msra.mxu0 %v876
        %965 = vmatpush.msra.mxu0 %v875
        %966 = vmatpush.msra.mxu0 %v874
        %967 = vmatpush.msra.mxu0 %v873
        %968 = vmatpush.msra.mxu0 %v872
        %969 = vmatpush.msra.mxu0 %v871
        %970 = vmatpush.msra.mxu0 %v870
        %971 = vmatpush.msra.mxu0 %v869
        %972 = vmatpush.msra.mxu0 %v868
        %973 = vmatpush.msra.mxu0 %v867
        %974 = vmatmul.f32.gmra.mxu0 %v930
        %v975 = vpop.f32.mrf.mxu0
        %v976 = vadd.f32 0.0, %v975
        %977 = vmatmul.f32.gmra.mxu0 %v941
        %v978 = vpop.f32.mrf.mxu0
        %v979 = vadd.f32 0.0, %v978
        %980 = vdwg.mxu0
        %981 = vmatpush.msra.mxu0 %v898
        %982 = vmatpush.msra.mxu0 %v897
        %983 = vmatpush.msra.mxu0 %v896
        %984 = vmatpush.msra.mxu0 %v895
        %985 = vmatpush.msra.mxu0 %v894
        %986 = vmatpush.msra.mxu0 %v893
        %987 = vmatpush.msra.mxu0 %v892
        %988 = vmatpush.msra.mxu0 %v891
        %989 = vmatpush.msra.mxu0 %v890
        %990 = vmatpush.msra.mxu0 %v889
        %991 = vmatpush.msra.mxu0 %v888
        %992 = vmatpush.msra.mxu0 %v887
        %993 = vmatpush.msra.mxu0 %v886
        %994 = vmatpush.msra.mxu0 %v885
        %995 = vmatpush.msra.mxu0 %v884
        %996 = vmatpush.msra.mxu0 %v883
        %997 = vmatmul.f32.gmra.mxu0 %v933
        %v998 = vpop.f32.mrf.mxu0
        %v999 = vadd.f32 %v976, %v998
        %1000 = vmatmul.f32.gmra.mxu0 %v943
        %v1001 = vpop.f32.mrf.mxu0
        %v1002 = vadd.f32 %v979, %v1001
        %1003 = vdwg.mxu0
        %1004 = vmatpush.msra.mxu0 %v914
        %1005 = vmatpush.msra.mxu0 %v913
        %1006 = vmatpush.msra.mxu0 %v912
        %1007 = vmatpush.msra.mxu0 %v911
        %1008 = vmatpush.msra.mxu0 %v910
        %1009 = vmatpush.msra.mxu0 %v909
        %1010 = vmatpush.msra.mxu0 %v908
        %1011 = vmatpush.msra.mxu0 %v907
        %1012 = vmatpush.msra.mxu0 %v906
        %1013 = vmatpush.msra.mxu0 %v905
        %1014 = vmatpush.msra.mxu0 %v904
        %1015 = vmatpush.msra.mxu0 %v903
        %1016 = vmatpush.msra.mxu0 %v902
        %1017 = vmatpush.msra.mxu0 %v901
        %1018 = vmatpush.msra.mxu0 %v900
        %1019 = vmatpush.msra.mxu0 %v899
        %1020 = vmatmul.f32.gmra.mxu0 %v936
        %v1021 = vpop.f32.mrf.mxu0
        %v1022 = vadd.f32 %v999, %v1021
        %1023 = vmatmul.f32.gmra.mxu0 %v945
        %v1024 = vpop.f32.mrf.mxu0
        %v1025 = vadd.f32 %v1002, %v1024
        %1026 = vdwg.mxu0
        %1027 = vmatpush.msra.mxu0 0.0
        %1028 = vmatpush.msra.mxu0 0.0
        %1029 = vmatpush.msra.mxu0 0.0
        %1030 = vmatpush.msra.mxu0 0.0
        %1031 = vmatpush.msra.mxu0 0.0
        %1032 = vmatpush.msra.mxu0 0.0
        %1033 = vmatpush.msra.mxu0 0.0
        %1034 = vmatpush.msra.mxu0 0.0
        %1035 = vmatpush.msra.mxu0 %v922
        %1036 = vmatpush.msra.mxu0 %v921
        %1037 = vmatpush.msra.mxu0 %v920
        %1038 = vmatpush.msra.mxu0 %v919
        %1039 = vmatpush.msra.mxu0 %v918
        %1040 = vmatpush.msra.mxu0 %v917
        %1041 = vmatpush.msra.mxu0 %v916
        %1042 = vmatpush.msra.mxu0 %v915
        %1043 = vmatmul.f32.gmra.mxu0 %v954
        %v1044 = vpop.f32.mrf.mxu0
        %v1045 = vadd.f32 %v1022, %v1044
        %1046 = vmatmul.f32.gmra.mxu0 %v956
        %v1047 = vpop.f32.mrf.mxu0
        %v1048 = vadd.f32 %v1025, %v1047
        %1049 = vdwg.mxu0
        %v1050 = vadd.f32 %v864, %v1045
        %v1051 = vadd.f32 %v865, %v1048
        %s1052 = scalar_lea.vmem %s3, 1792
        %v1053 = vld [vmem:[%s1052] sm:$0xff]
        %v1054 = vld [vmem:[%s1052 + $0x8] sm:$0xff]
        %v1055 = vld [vmem:[%s1052 + $0x10] sm:$0xff]
        %v1056 = vld [vmem:[%s1052 + $0x18] sm:$0xff]
        %v1057 = vld [vmem:[%s1052 + $0x20] sm:$0xff]
        %v1058 = vld [vmem:[%s1052 + $0x28] sm:$0xff]
        %v1059 = vld [vmem:[%s1052 + $0x30] sm:$0xff]
        %v1060 = vld [vmem:[%s1052 + $0x38] sm:$0xff]
        %v1061 = vld [vmem:[%s1052 + $0x40] sm:$0xff]
        %v1062 = vld [vmem:[%s1052 + $0x48] sm:$0xff]
        %v1063 = vld [vmem:[%s1052 + $0x50] sm:$0xff]
        %v1064 = vld [vmem:[%s1052 + $0x58] sm:$0xff]
        %v1065 = vld [vmem:[%s1052 + $0x60] sm:$0xff]
        %v1066 = vld [vmem:[%s1052 + $0x68] sm:$0xff]
        %v1067 = vld [vmem:[%s1052 + $0x70] sm:$0xff]
        %v1068 = vld [vmem:[%s1052 + $0x78] sm:$0xff]
        %v1069 = vld [vmem:[%s1052 + $0x80] sm:$0xff]
        %v1070 = vld [vmem:[%s1052 + $0x88] sm:$0xff]
        %v1071 = vld [vmem:[%s1052 + $0x90] sm:$0xff]
        %v1072 = vld [vmem:[%s1052 + $0x98] sm:$0xff]
        %v1073 = vld [vmem:[%s1052 + $0xa0] sm:$0xff]
        %v1074 = vld [vmem:[%s1052 + $0xa8] sm:$0xff]
        %v1075 = vld [vmem:[%s1052 + $0xb0] sm:$0xff]
        %v1076 = vld [vmem:[%s1052 + $0xb8] sm:$0xff]
        %v1077 = vld [vmem:[%s1052 + $0xc0] sm:$0xff]
        %v1078 = vld [vmem:[%s1052 + $0xc8] sm:$0xff]
        %v1079 = vld [vmem:[%s1052 + $0xd0] sm:$0xff]
        %v1080 = vld [vmem:[%s1052 + $0xd8] sm:$0xff]
        %v1081 = vld [vmem:[%s1052 + $0xe0] sm:$0xff]
        %v1082 = vld [vmem:[%s1052 + $0xe8] sm:$0xff]
        %v1083 = vld [vmem:[%s1052 + $0xf0] sm:$0xff]
        %v1084 = vld [vmem:[%s1052 + $0xf8] sm:$0xff]
        %v1085 = vld [vmem:[%s1052 + $0x100] sm:$0xff]
        %v1086 = vld [vmem:[%s1052 + $0x108] sm:$0xff]
        %v1087 = vld [vmem:[%s1052 + $0x110] sm:$0xff]
        %v1088 = vld [vmem:[%s1052 + $0x118] sm:$0xff]
        %v1089 = vld [vmem:[%s1052 + $0x120] sm:$0xff]
        %v1090 = vld [vmem:[%s1052 + $0x128] sm:$0xff]
        %v1091 = vld [vmem:[%s1052 + $0x130] sm:$0xff]
        %v1092 = vld [vmem:[%s1052 + $0x138] sm:$0xff]
        %v1093 = vld [vmem:[%s1052 + $0x140] sm:$0xff]
        %v1094 = vld [vmem:[%s1052 + $0x148] sm:$0xff]
        %v1095 = vld [vmem:[%s1052 + $0x150] sm:$0xff]
        %v1096 = vld [vmem:[%s1052 + $0x158] sm:$0xff]
        %v1097 = vld [vmem:[%s1052 + $0x160] sm:$0xff]
        %v1098 = vld [vmem:[%s1052 + $0x168] sm:$0xff]
        %v1099 = vld [vmem:[%s1052 + $0x170] sm:$0xff]
        %v1100 = vld [vmem:[%s1052 + $0x178] sm:$0xff]
        %v1101 = vld [vmem:[%s1052 + $0x180] sm:$0xff]
        %v1102 = vld [vmem:[%s1052 + $0x188] sm:$0xff]
        %v1103 = vld [vmem:[%s1052 + $0x190] sm:$0xff]
        %v1104 = vld [vmem:[%s1052 + $0x198] sm:$0xff]
        %v1105 = vld [vmem:[%s1052 + $0x1a0] sm:$0xff]
        %v1106 = vld [vmem:[%s1052 + $0x1a8] sm:$0xff]
        %v1107 = vld [vmem:[%s1052 + $0x1b0] sm:$0xff]
        %v1108 = vld [vmem:[%s1052 + $0x1b8] sm:$0xff]
        %1109 = vrot.lane.b32.xlu0 %v930, 100
        %v1110 = vpop.permute.xlu0 %1109
        %1111 = vrot.lane.b32.xlu0 %v933, 100
        %v1112 = vpop.permute.xlu0 %1111
        %1113 = vrot.lane.b32.xlu0 %v936, 100
        %v1114 = vpop.permute.xlu0 %1113
        %1115 = vrot.lane.b32.xlu0 %v939, 100
        %v1116 = vpop.permute.xlu0 %1115
        %1117 = vrot.lane.b32.xlu0 %v941, 100
        %v1118 = vpop.permute.xlu0 %1117
        %1119 = vrot.lane.b32.xlu0 %v943, 100
        %v1120 = vpop.permute.xlu0 %1119
        %1121 = vrot.lane.b32.xlu0 %v945, 100
        %v1122 = vpop.permute.xlu0 %1121
        %1123 = vrot.lane.b32.xlu0 %v947, 100
        %v1124 = vpop.permute.xlu0 %1123
        %v1125 = vsel %vm476, %v1110, %v1112
        %v1126 = vsel %vm476, %v1112, %v1114
        %v1127 = vsel %vm476, %v1114, %v1116
        %v1128 = vsel %vm476, %v1118, %v1120
        %v1129 = vsel %vm476, %v1120, %v1122
        %v1130 = vsel %vm476, %v1122, %v1124
        %v1137 = vsel %vm489, %v1116, 0
        %v1139 = vsel %vm489, %v1124, 0
        %1141 = vmatpush.msra.mxu0 %v1068
        %1142 = vmatpush.msra.mxu0 %v1067
        %1143 = vmatpush.msra.mxu0 %v1066
        %1144 = vmatpush.msra.mxu0 %v1065
        %1145 = vmatpush.msra.mxu0 %v1064
        %1146 = vmatpush.msra.mxu0 %v1063
        %1147 = vmatpush.msra.mxu0 %v1062
        %1148 = vmatpush.msra.mxu0 %v1061
        %1149 = vmatpush.msra.mxu0 %v1060
        %1150 = vmatpush.msra.mxu0 %v1059
        %1151 = vmatpush.msra.mxu0 %v1058
        %1152 = vmatpush.msra.mxu0 %v1057
        %1153 = vmatpush.msra.mxu0 %v1056
        %1154 = vmatpush.msra.mxu0 %v1055
        %1155 = vmatpush.msra.mxu0 %v1054
        %1156 = vmatpush.msra.mxu0 %v1053
        %1157 = vmatmul.f32.gmra.mxu0 %v1125
        %v1158 = vpop.f32.mrf.mxu0
        %v1159 = vadd.f32 0.0, %v1158
        %1160 = vmatmul.f32.gmra.mxu0 %v1128
        %v1161 = vpop.f32.mrf.mxu0
        %v1162 = vadd.f32 0.0, %v1161
        %1163 = vdwg.mxu0
        %1164 = vmatpush.msra.mxu0 %v1084
        %1165 = vmatpush.msra.mxu0 %v1083
        %1166 = vmatpush.msra.mxu0 %v1082
        %1167 = vmatpush.msra.mxu0 %v1081
        %1168 = vmatpush.msra.mxu0 %v1080
        %1169 = vmatpush.msra.mxu0 %v1079
        %1170 = vmatpush.msra.mxu0 %v1078
        %1171 = vmatpush.msra.mxu0 %v1077
        %1172 = vmatpush.msra.mxu0 %v1076
        %1173 = vmatpush.msra.mxu0 %v1075
        %1174 = vmatpush.msra.mxu0 %v1074
        %1175 = vmatpush.msra.mxu0 %v1073
        %1176 = vmatpush.msra.mxu0 %v1072
        %1177 = vmatpush.msra.mxu0 %v1071
        %1178 = vmatpush.msra.mxu0 %v1070
        %1179 = vmatpush.msra.mxu0 %v1069
        %1180 = vmatmul.f32.gmra.mxu0 %v1126
        %v1181 = vpop.f32.mrf.mxu0
        %v1182 = vadd.f32 %v1159, %v1181
        %1183 = vmatmul.f32.gmra.mxu0 %v1129
        %v1184 = vpop.f32.mrf.mxu0
        %v1185 = vadd.f32 %v1162, %v1184
        %1186 = vdwg.mxu0
        %1187 = vmatpush.msra.mxu0 %v1100
        %1188 = vmatpush.msra.mxu0 %v1099
        %1189 = vmatpush.msra.mxu0 %v1098
        %1190 = vmatpush.msra.mxu0 %v1097
        %1191 = vmatpush.msra.mxu0 %v1096
        %1192 = vmatpush.msra.mxu0 %v1095
        %1193 = vmatpush.msra.mxu0 %v1094
        %1194 = vmatpush.msra.mxu0 %v1093
        %1195 = vmatpush.msra.mxu0 %v1092
        %1196 = vmatpush.msra.mxu0 %v1091
        %1197 = vmatpush.msra.mxu0 %v1090
        %1198 = vmatpush.msra.mxu0 %v1089
        %1199 = vmatpush.msra.mxu0 %v1088
        %1200 = vmatpush.msra.mxu0 %v1087
        %1201 = vmatpush.msra.mxu0 %v1086
        %1202 = vmatpush.msra.mxu0 %v1085
        %1203 = vmatmul.f32.gmra.mxu0 %v1127
        %v1204 = vpop.f32.mrf.mxu0
        %v1205 = vadd.f32 %v1182, %v1204
        %1206 = vmatmul.f32.gmra.mxu0 %v1130
        %v1207 = vpop.f32.mrf.mxu0
        %v1208 = vadd.f32 %v1185, %v1207
        %1209 = vdwg.mxu0
        %1210 = vmatpush.msra.mxu0 0.0
        %1211 = vmatpush.msra.mxu0 0.0
        %1212 = vmatpush.msra.mxu0 0.0
        %1213 = vmatpush.msra.mxu0 0.0
        %1214 = vmatpush.msra.mxu0 0.0
        %1215 = vmatpush.msra.mxu0 0.0
        %1216 = vmatpush.msra.mxu0 0.0
        %1217 = vmatpush.msra.mxu0 0.0
        %1218 = vmatpush.msra.mxu0 %v1108
        %1219 = vmatpush.msra.mxu0 %v1107
        %1220 = vmatpush.msra.mxu0 %v1106
        %1221 = vmatpush.msra.mxu0 %v1105
        %1222 = vmatpush.msra.mxu0 %v1104
        %1223 = vmatpush.msra.mxu0 %v1103
        %1224 = vmatpush.msra.mxu0 %v1102
        %1225 = vmatpush.msra.mxu0 %v1101
        %1226 = vmatmul.f32.gmra.mxu0 %v1137
        %v1227 = vpop.f32.mrf.mxu0
        %v1228 = vadd.f32 %v1205, %v1227
        %1229 = vmatmul.f32.gmra.mxu0 %v1139
        %v1230 = vpop.f32.mrf.mxu0
        %v1231 = vadd.f32 %v1208, %v1230
        %1232 = vdwg.mxu0
        %v1233 = vadd.f32 %v1050, %v1228
        %v1234 = vadd.f32 %v1051, %v1231
        %s1235 = scalar_lea.vmem %s3, 2240
        %v1236 = vld [vmem:[%s1235] sm:$0xff]
        %v1237 = vld [vmem:[%s1235 + $0x8] sm:$0xff]
        %v1238 = vld [vmem:[%s1235 + $0x10] sm:$0xff]
        %v1239 = vld [vmem:[%s1235 + $0x18] sm:$0xff]
        %v1240 = vld [vmem:[%s1235 + $0x20] sm:$0xff]
        %v1241 = vld [vmem:[%s1235 + $0x28] sm:$0xff]
        %v1242 = vld [vmem:[%s1235 + $0x30] sm:$0xff]
        %v1243 = vld [vmem:[%s1235 + $0x38] sm:$0xff]
        %v1244 = vld [vmem:[%s1235 + $0x40] sm:$0xff]
        %v1245 = vld [vmem:[%s1235 + $0x48] sm:$0xff]
        %v1246 = vld [vmem:[%s1235 + $0x50] sm:$0xff]
        %v1247 = vld [vmem:[%s1235 + $0x58] sm:$0xff]
        %v1248 = vld [vmem:[%s1235 + $0x60] sm:$0xff]
        %v1249 = vld [vmem:[%s1235 + $0x68] sm:$0xff]
        %v1250 = vld [vmem:[%s1235 + $0x70] sm:$0xff]
        %v1251 = vld [vmem:[%s1235 + $0x78] sm:$0xff]
        %v1252 = vld [vmem:[%s1235 + $0x80] sm:$0xff]
        %v1253 = vld [vmem:[%s1235 + $0x88] sm:$0xff]
        %v1254 = vld [vmem:[%s1235 + $0x90] sm:$0xff]
        %v1255 = vld [vmem:[%s1235 + $0x98] sm:$0xff]
        %v1256 = vld [vmem:[%s1235 + $0xa0] sm:$0xff]
        %v1257 = vld [vmem:[%s1235 + $0xa8] sm:$0xff]
        %v1258 = vld [vmem:[%s1235 + $0xb0] sm:$0xff]
        %v1259 = vld [vmem:[%s1235 + $0xb8] sm:$0xff]
        %v1260 = vld [vmem:[%s1235 + $0xc0] sm:$0xff]
        %v1261 = vld [vmem:[%s1235 + $0xc8] sm:$0xff]
        %v1262 = vld [vmem:[%s1235 + $0xd0] sm:$0xff]
        %v1263 = vld [vmem:[%s1235 + $0xd8] sm:$0xff]
        %v1264 = vld [vmem:[%s1235 + $0xe0] sm:$0xff]
        %v1265 = vld [vmem:[%s1235 + $0xe8] sm:$0xff]
        %v1266 = vld [vmem:[%s1235 + $0xf0] sm:$0xff]
        %v1267 = vld [vmem:[%s1235 + $0xf8] sm:$0xff]
        %v1268 = vld [vmem:[%s1235 + $0x100] sm:$0xff]
        %v1269 = vld [vmem:[%s1235 + $0x108] sm:$0xff]
        %v1270 = vld [vmem:[%s1235 + $0x110] sm:$0xff]
        %v1271 = vld [vmem:[%s1235 + $0x118] sm:$0xff]
        %v1272 = vld [vmem:[%s1235 + $0x120] sm:$0xff]
        %v1273 = vld [vmem:[%s1235 + $0x128] sm:$0xff]
        %v1274 = vld [vmem:[%s1235 + $0x130] sm:$0xff]
        %v1275 = vld [vmem:[%s1235 + $0x138] sm:$0xff]
        %v1276 = vld [vmem:[%s1235 + $0x140] sm:$0xff]
        %v1277 = vld [vmem:[%s1235 + $0x148] sm:$0xff]
        %v1278 = vld [vmem:[%s1235 + $0x150] sm:$0xff]
        %v1279 = vld [vmem:[%s1235 + $0x158] sm:$0xff]
        %v1280 = vld [vmem:[%s1235 + $0x160] sm:$0xff]
        %v1281 = vld [vmem:[%s1235 + $0x168] sm:$0xff]
        %v1282 = vld [vmem:[%s1235 + $0x170] sm:$0xff]
        %v1283 = vld [vmem:[%s1235 + $0x178] sm:$0xff]
        %v1284 = vld [vmem:[%s1235 + $0x180] sm:$0xff]
        %v1285 = vld [vmem:[%s1235 + $0x188] sm:$0xff]
        %v1286 = vld [vmem:[%s1235 + $0x190] sm:$0xff]
        %v1287 = vld [vmem:[%s1235 + $0x198] sm:$0xff]
        %v1288 = vld [vmem:[%s1235 + $0x1a0] sm:$0xff]
        %v1289 = vld [vmem:[%s1235 + $0x1a8] sm:$0xff]
        %v1290 = vld [vmem:[%s1235 + $0x1b0] sm:$0xff]
        %v1291 = vld [vmem:[%s1235 + $0x1b8] sm:$0xff]
        %1292 = vrot.lane.b32.xlu0 %v930, 72
        %v1293 = vpop.permute.xlu0 %1292
        %1294 = vrot.lane.b32.xlu0 %v933, 72
        %v1295 = vpop.permute.xlu0 %1294
        %1296 = vrot.lane.b32.xlu0 %v936, 72
        %v1297 = vpop.permute.xlu0 %1296
        %1298 = vrot.lane.b32.xlu0 %v939, 72
        %v1299 = vpop.permute.xlu0 %1298
        %1300 = vrot.lane.b32.xlu0 %v941, 72
        %v1301 = vpop.permute.xlu0 %1300
        %1302 = vrot.lane.b32.xlu0 %v943, 72
        %v1303 = vpop.permute.xlu0 %1302
        %1304 = vrot.lane.b32.xlu0 %v945, 72
        %v1305 = vpop.permute.xlu0 %1304
        %1306 = vrot.lane.b32.xlu0 %v947, 72
        %v1307 = vpop.permute.xlu0 %1306
        %v1308 = vsel %vm755, %v1293, %v1295
        %v1309 = vsel %vm755, %v1295, %v1297
        %v1310 = vsel %vm755, %v1297, %v1299
        %v1311 = vsel %vm755, %v1301, %v1303
        %v1312 = vsel %vm755, %v1303, %v1305
        %v1313 = vsel %vm755, %v1305, %v1307
        %v1320 = vsel %vm489, %v1299, 0
        %v1322 = vsel %vm489, %v1307, 0
        %1324 = vmatpush.msra.mxu0 %v1251
        %1325 = vmatpush.msra.mxu0 %v1250
        %1326 = vmatpush.msra.mxu0 %v1249
        %1327 = vmatpush.msra.mxu0 %v1248
        %1328 = vmatpush.msra.mxu0 %v1247
        %1329 = vmatpush.msra.mxu0 %v1246
        %1330 = vmatpush.msra.mxu0 %v1245
        %1331 = vmatpush.msra.mxu0 %v1244
        %1332 = vmatpush.msra.mxu0 %v1243
        %1333 = vmatpush.msra.mxu0 %v1242
        %1334 = vmatpush.msra.mxu0 %v1241
        %1335 = vmatpush.msra.mxu0 %v1240
        %1336 = vmatpush.msra.mxu0 %v1239
        %1337 = vmatpush.msra.mxu0 %v1238
        %1338 = vmatpush.msra.mxu0 %v1237
        %1339 = vmatpush.msra.mxu0 %v1236
        %1340 = vmatmul.f32.gmra.mxu0 %v1308
        %v1341 = vpop.f32.mrf.mxu0
        %v1342 = vadd.f32 0.0, %v1341
        %1343 = vmatmul.f32.gmra.mxu0 %v1311
        %v1344 = vpop.f32.mrf.mxu0
        %v1345 = vadd.f32 0.0, %v1344
        %1346 = vdwg.mxu0
        %1347 = vmatpush.msra.mxu0 %v1267
        %1348 = vmatpush.msra.mxu0 %v1266
        %1349 = vmatpush.msra.mxu0 %v1265
        %1350 = vmatpush.msra.mxu0 %v1264
        %1351 = vmatpush.msra.mxu0 %v1263
        %1352 = vmatpush.msra.mxu0 %v1262
        %1353 = vmatpush.msra.mxu0 %v1261
        %1354 = vmatpush.msra.mxu0 %v1260
        %1355 = vmatpush.msra.mxu0 %v1259
        %1356 = vmatpush.msra.mxu0 %v1258
        %1357 = vmatpush.msra.mxu0 %v1257
        %1358 = vmatpush.msra.mxu0 %v1256
        %1359 = vmatpush.msra.mxu0 %v1255
        %1360 = vmatpush.msra.mxu0 %v1254
        %1361 = vmatpush.msra.mxu0 %v1253
        %1362 = vmatpush.msra.mxu0 %v1252
        %1363 = vmatmul.f32.gmra.mxu0 %v1309
        %v1364 = vpop.f32.mrf.mxu0
        %v1365 = vadd.f32 %v1342, %v1364
        %1366 = vmatmul.f32.gmra.mxu0 %v1312
        %v1367 = vpop.f32.mrf.mxu0
        %v1368 = vadd.f32 %v1345, %v1367
        %1369 = vdwg.mxu0
        %1370 = vmatpush.msra.mxu0 %v1283
        %1371 = vmatpush.msra.mxu0 %v1282
        %1372 = vmatpush.msra.mxu0 %v1281
        %1373 = vmatpush.msra.mxu0 %v1280
        %1374 = vmatpush.msra.mxu0 %v1279
        %1375 = vmatpush.msra.mxu0 %v1278
        %1376 = vmatpush.msra.mxu0 %v1277
        %1377 = vmatpush.msra.mxu0 %v1276
        %1378 = vmatpush.msra.mxu0 %v1275
        %1379 = vmatpush.msra.mxu0 %v1274
        %1380 = vmatpush.msra.mxu0 %v1273
        %1381 = vmatpush.msra.mxu0 %v1272
        %1382 = vmatpush.msra.mxu0 %v1271
        %1383 = vmatpush.msra.mxu0 %v1270
        %1384 = vmatpush.msra.mxu0 %v1269
        %1385 = vmatpush.msra.mxu0 %v1268
        %1386 = vmatmul.f32.gmra.mxu0 %v1310
        %v1387 = vpop.f32.mrf.mxu0
        %v1388 = vadd.f32 %v1365, %v1387
        %1389 = vmatmul.f32.gmra.mxu0 %v1313
        %v1390 = vpop.f32.mrf.mxu0
        %v1391 = vadd.f32 %v1368, %v1390
        %1392 = vdwg.mxu0
        %1393 = vmatpush.msra.mxu0 0.0
        %1394 = vmatpush.msra.mxu0 0.0
        %1395 = vmatpush.msra.mxu0 0.0
        %1396 = vmatpush.msra.mxu0 0.0
        %1397 = vmatpush.msra.mxu0 0.0
        %1398 = vmatpush.msra.mxu0 0.0
        %1399 = vmatpush.msra.mxu0 0.0
        %1400 = vmatpush.msra.mxu0 0.0
        %1401 = vmatpush.msra.mxu0 %v1291
        %1402 = vmatpush.msra.mxu0 %v1290
        %1403 = vmatpush.msra.mxu0 %v1289
        %1404 = vmatpush.msra.mxu0 %v1288
        %1405 = vmatpush.msra.mxu0 %v1287
        %1406 = vmatpush.msra.mxu0 %v1286
        %1407 = vmatpush.msra.mxu0 %v1285
        %1408 = vmatpush.msra.mxu0 %v1284
        %1409 = vmatmul.f32.gmra.mxu0 %v1320
        %v1410 = vpop.f32.mrf.mxu0
        %v1411 = vadd.f32 %v1388, %v1410
        %1412 = vmatmul.f32.gmra.mxu0 %v1322
        %v1413 = vpop.f32.mrf.mxu0
        %v1414 = vadd.f32 %v1391, %v1413
        %1415 = vdwg.mxu0
        %v1416 = vadd.f32 %v1233, %v1411
        %v1417 = vadd.f32 %v1234, %v1414
        %s1418 = scalar_lea.vmem %s3, 2688
        %v1419 = vld [vmem:[%s1418] sm:$0xff]
        %v1420 = vld [vmem:[%s1418 + $0x8] sm:$0xff]
        %v1421 = vld [vmem:[%s1418 + $0x10] sm:$0xff]
        %v1422 = vld [vmem:[%s1418 + $0x18] sm:$0xff]
        %v1423 = vld [vmem:[%s1418 + $0x20] sm:$0xff]
        %v1424 = vld [vmem:[%s1418 + $0x28] sm:$0xff]
        %v1425 = vld [vmem:[%s1418 + $0x30] sm:$0xff]
        %v1426 = vld [vmem:[%s1418 + $0x38] sm:$0xff]
        %v1427 = vld [vmem:[%s1418 + $0x40] sm:$0xff]
        %v1428 = vld [vmem:[%s1418 + $0x48] sm:$0xff]
        %v1429 = vld [vmem:[%s1418 + $0x50] sm:$0xff]
        %v1430 = vld [vmem:[%s1418 + $0x58] sm:$0xff]
        %v1431 = vld [vmem:[%s1418 + $0x60] sm:$0xff]
        %v1432 = vld [vmem:[%s1418 + $0x68] sm:$0xff]
        %v1433 = vld [vmem:[%s1418 + $0x70] sm:$0xff]
        %v1434 = vld [vmem:[%s1418 + $0x78] sm:$0xff]
        %v1435 = vld [vmem:[%s1418 + $0x80] sm:$0xff]
        %v1436 = vld [vmem:[%s1418 + $0x88] sm:$0xff]
        %v1437 = vld [vmem:[%s1418 + $0x90] sm:$0xff]
        %v1438 = vld [vmem:[%s1418 + $0x98] sm:$0xff]
        %v1439 = vld [vmem:[%s1418 + $0xa0] sm:$0xff]
        %v1440 = vld [vmem:[%s1418 + $0xa8] sm:$0xff]
        %v1441 = vld [vmem:[%s1418 + $0xb0] sm:$0xff]
        %v1442 = vld [vmem:[%s1418 + $0xb8] sm:$0xff]
        %v1443 = vld [vmem:[%s1418 + $0xc0] sm:$0xff]
        %v1444 = vld [vmem:[%s1418 + $0xc8] sm:$0xff]
        %v1445 = vld [vmem:[%s1418 + $0xd0] sm:$0xff]
        %v1446 = vld [vmem:[%s1418 + $0xd8] sm:$0xff]
        %v1447 = vld [vmem:[%s1418 + $0xe0] sm:$0xff]
        %v1448 = vld [vmem:[%s1418 + $0xe8] sm:$0xff]
        %v1449 = vld [vmem:[%s1418 + $0xf0] sm:$0xff]
        %v1450 = vld [vmem:[%s1418 + $0xf8] sm:$0xff]
        %v1451 = vld [vmem:[%s1418 + $0x100] sm:$0xff]
        %v1452 = vld [vmem:[%s1418 + $0x108] sm:$0xff]
        %v1453 = vld [vmem:[%s1418 + $0x110] sm:$0xff]
        %v1454 = vld [vmem:[%s1418 + $0x118] sm:$0xff]
        %v1455 = vld [vmem:[%s1418 + $0x120] sm:$0xff]
        %v1456 = vld [vmem:[%s1418 + $0x128] sm:$0xff]
        %v1457 = vld [vmem:[%s1418 + $0x130] sm:$0xff]
        %v1458 = vld [vmem:[%s1418 + $0x138] sm:$0xff]
        %v1459 = vld [vmem:[%s1418 + $0x140] sm:$0xff]
        %v1460 = vld [vmem:[%s1418 + $0x148] sm:$0xff]
        %v1461 = vld [vmem:[%s1418 + $0x150] sm:$0xff]
        %v1462 = vld [vmem:[%s1418 + $0x158] sm:$0xff]
        %v1463 = vld [vmem:[%s1418 + $0x160] sm:$0xff]
        %v1464 = vld [vmem:[%s1418 + $0x168] sm:$0xff]
        %v1465 = vld [vmem:[%s1418 + $0x170] sm:$0xff]
        %v1466 = vld [vmem:[%s1418 + $0x178] sm:$0xff]
        %v1467 = vld [vmem:[%s1418 + $0x180] sm:$0xff]
        %v1468 = vld [vmem:[%s1418 + $0x188] sm:$0xff]
        %v1469 = vld [vmem:[%s1418 + $0x190] sm:$0xff]
        %v1470 = vld [vmem:[%s1418 + $0x198] sm:$0xff]
        %v1471 = vld [vmem:[%s1418 + $0x1a0] sm:$0xff]
        %v1472 = vld [vmem:[%s1418 + $0x1a8] sm:$0xff]
        %v1473 = vld [vmem:[%s1418 + $0x1b0] sm:$0xff]
        %v1474 = vld [vmem:[%s1418 + $0x1b8] sm:$0xff]
        %vm1475 = vcmask 1045504
        %v1476 = vrot.slane %v327, 2
        %v1477 = vrot.slane %v331, 2
        %v1478 = vsel %vm1475, %v1476, %v1477
        %v1479 = vrot.slane %v328, 2
        %v1480 = vrot.slane %v332, 2
        %v1481 = vsel %vm1475, %v1479, %v1480
        %v1482 = vrot.slane %v329, 2
        %v1483 = vrot.slane %v333, 2
        %v1484 = vsel %vm1475, %v1482, %v1483
        %v1485 = vrot.slane %v330, 2
        %v1486 = vrot.slane %v334, 2
        %v1487 = vsel %vm1475, %v1485, %v1486
        %v1488 = vrot.slane %v335, 2
        %v1489 = vsel %vm1475, %v1477, %v1488
        %v1490 = vrot.slane %v336, 2
        %v1491 = vsel %vm1475, %v1480, %v1490
        %v1492 = vrot.slane %v337, 2
        %v1493 = vsel %vm1475, %v1483, %v1492
        %v1494 = vrot.slane %v338, 2
        %v1495 = vsel %vm1475, %v1486, %v1494
        %v1502 = vsel %vm489, %v1487, 0
        %v1504 = vsel %vm489, %v1495, 0
        %1506 = vmatpush.msra.mxu0 %v1434
        %1507 = vmatpush.msra.mxu0 %v1433
        %1508 = vmatpush.msra.mxu0 %v1432
        %1509 = vmatpush.msra.mxu0 %v1431
        %1510 = vmatpush.msra.mxu0 %v1430
        %1511 = vmatpush.msra.mxu0 %v1429
        %1512 = vmatpush.msra.mxu0 %v1428
        %1513 = vmatpush.msra.mxu0 %v1427
        %1514 = vmatpush.msra.mxu0 %v1426
        %1515 = vmatpush.msra.mxu0 %v1425
        %1516 = vmatpush.msra.mxu0 %v1424
        %1517 = vmatpush.msra.mxu0 %v1423
        %1518 = vmatpush.msra.mxu0 %v1422
        %1519 = vmatpush.msra.mxu0 %v1421
        %1520 = vmatpush.msra.mxu0 %v1420
        %1521 = vmatpush.msra.mxu0 %v1419
        %1522 = vmatmul.f32.gmra.mxu0 %v1478
        %v1523 = vpop.f32.mrf.mxu0
        %v1524 = vadd.f32 0.0, %v1523
        %1525 = vmatmul.f32.gmra.mxu0 %v1489
        %v1526 = vpop.f32.mrf.mxu0
        %v1527 = vadd.f32 0.0, %v1526
        %1528 = vdwg.mxu0
        %1529 = vmatpush.msra.mxu0 %v1450
        %1530 = vmatpush.msra.mxu0 %v1449
        %1531 = vmatpush.msra.mxu0 %v1448
        %1532 = vmatpush.msra.mxu0 %v1447
        %1533 = vmatpush.msra.mxu0 %v1446
        %1534 = vmatpush.msra.mxu0 %v1445
        %1535 = vmatpush.msra.mxu0 %v1444
        %1536 = vmatpush.msra.mxu0 %v1443
        %1537 = vmatpush.msra.mxu0 %v1442
        %1538 = vmatpush.msra.mxu0 %v1441
        %1539 = vmatpush.msra.mxu0 %v1440
        %1540 = vmatpush.msra.mxu0 %v1439
        %1541 = vmatpush.msra.mxu0 %v1438
        %1542 = vmatpush.msra.mxu0 %v1437
        %1543 = vmatpush.msra.mxu0 %v1436
        %1544 = vmatpush.msra.mxu0 %v1435
        %1545 = vmatmul.f32.gmra.mxu0 %v1481
        %v1546 = vpop.f32.mrf.mxu0
        %v1547 = vadd.f32 %v1524, %v1546
        %1548 = vmatmul.f32.gmra.mxu0 %v1491
        %v1549 = vpop.f32.mrf.mxu0
        %v1550 = vadd.f32 %v1527, %v1549
        %1551 = vdwg.mxu0
        %1552 = vmatpush.msra.mxu0 %v1466
        %1553 = vmatpush.msra.mxu0 %v1465
        %1554 = vmatpush.msra.mxu0 %v1464
        %1555 = vmatpush.msra.mxu0 %v1463
        %1556 = vmatpush.msra.mxu0 %v1462
        %1557 = vmatpush.msra.mxu0 %v1461
        %1558 = vmatpush.msra.mxu0 %v1460
        %1559 = vmatpush.msra.mxu0 %v1459
        %1560 = vmatpush.msra.mxu0 %v1458
        %1561 = vmatpush.msra.mxu0 %v1457
        %1562 = vmatpush.msra.mxu0 %v1456
        %1563 = vmatpush.msra.mxu0 %v1455
        %1564 = vmatpush.msra.mxu0 %v1454
        %1565 = vmatpush.msra.mxu0 %v1453
        %1566 = vmatpush.msra.mxu0 %v1452
        %1567 = vmatpush.msra.mxu0 %v1451
        %1568 = vmatmul.f32.gmra.mxu0 %v1484
        %v1569 = vpop.f32.mrf.mxu0
        %v1570 = vadd.f32 %v1547, %v1569
        %1571 = vmatmul.f32.gmra.mxu0 %v1493
        %v1572 = vpop.f32.mrf.mxu0
        %v1573 = vadd.f32 %v1550, %v1572
        %1574 = vdwg.mxu0
        %1575 = vmatpush.msra.mxu0 0.0
        %1576 = vmatpush.msra.mxu0 0.0
        %1577 = vmatpush.msra.mxu0 0.0
        %1578 = vmatpush.msra.mxu0 0.0
        %1579 = vmatpush.msra.mxu0 0.0
        %1580 = vmatpush.msra.mxu0 0.0
        %1581 = vmatpush.msra.mxu0 0.0
        %1582 = vmatpush.msra.mxu0 0.0
        %1583 = vmatpush.msra.mxu0 %v1474
        %1584 = vmatpush.msra.mxu0 %v1473
        %1585 = vmatpush.msra.mxu0 %v1472
        %1586 = vmatpush.msra.mxu0 %v1471
        %1587 = vmatpush.msra.mxu0 %v1470
        %1588 = vmatpush.msra.mxu0 %v1469
        %1589 = vmatpush.msra.mxu0 %v1468
        %1590 = vmatpush.msra.mxu0 %v1467
        %1591 = vmatmul.f32.gmra.mxu0 %v1502
        %v1592 = vpop.f32.mrf.mxu0
        %v1593 = vadd.f32 %v1570, %v1592
        %1594 = vmatmul.f32.gmra.mxu0 %v1504
        %v1595 = vpop.f32.mrf.mxu0
        %v1596 = vadd.f32 %v1573, %v1595
        %1597 = vdwg.mxu0
        %v1598 = vadd.f32 %v1416, %v1593
        %v1599 = vadd.f32 %v1417, %v1596
        %s1600 = scalar_lea.vmem %s3, 3136
        %v1601 = vld [vmem:[%s1600] sm:$0xff]
        %v1602 = vld [vmem:[%s1600 + $0x8] sm:$0xff]
        %v1603 = vld [vmem:[%s1600 + $0x10] sm:$0xff]
        %v1604 = vld [vmem:[%s1600 + $0x18] sm:$0xff]
        %v1605 = vld [vmem:[%s1600 + $0x20] sm:$0xff]
        %v1606 = vld [vmem:[%s1600 + $0x28] sm:$0xff]
        %v1607 = vld [vmem:[%s1600 + $0x30] sm:$0xff]
        %v1608 = vld [vmem:[%s1600 + $0x38] sm:$0xff]
        %v1609 = vld [vmem:[%s1600 + $0x40] sm:$0xff]
        %v1610 = vld [vmem:[%s1600 + $0x48] sm:$0xff]
        %v1611 = vld [vmem:[%s1600 + $0x50] sm:$0xff]
        %v1612 = vld [vmem:[%s1600 + $0x58] sm:$0xff]
        %v1613 = vld [vmem:[%s1600 + $0x60] sm:$0xff]
        %v1614 = vld [vmem:[%s1600 + $0x68] sm:$0xff]
        %v1615 = vld [vmem:[%s1600 + $0x70] sm:$0xff]
        %v1616 = vld [vmem:[%s1600 + $0x78] sm:$0xff]
        %v1617 = vld [vmem:[%s1600 + $0x80] sm:$0xff]
        %v1618 = vld [vmem:[%s1600 + $0x88] sm:$0xff]
        %v1619 = vld [vmem:[%s1600 + $0x90] sm:$0xff]
        %v1620 = vld [vmem:[%s1600 + $0x98] sm:$0xff]
        %v1621 = vld [vmem:[%s1600 + $0xa0] sm:$0xff]
        %v1622 = vld [vmem:[%s1600 + $0xa8] sm:$0xff]
        %v1623 = vld [vmem:[%s1600 + $0xb0] sm:$0xff]
        %v1624 = vld [vmem:[%s1600 + $0xb8] sm:$0xff]
        %v1625 = vld [vmem:[%s1600 + $0xc0] sm:$0xff]
        %v1626 = vld [vmem:[%s1600 + $0xc8] sm:$0xff]
        %v1627 = vld [vmem:[%s1600 + $0xd0] sm:$0xff]
        %v1628 = vld [vmem:[%s1600 + $0xd8] sm:$0xff]
        %v1629 = vld [vmem:[%s1600 + $0xe0] sm:$0xff]
        %v1630 = vld [vmem:[%s1600 + $0xe8] sm:$0xff]
        %v1631 = vld [vmem:[%s1600 + $0xf0] sm:$0xff]
        %v1632 = vld [vmem:[%s1600 + $0xf8] sm:$0xff]
        %v1633 = vld [vmem:[%s1600 + $0x100] sm:$0xff]
        %v1634 = vld [vmem:[%s1600 + $0x108] sm:$0xff]
        %v1635 = vld [vmem:[%s1600 + $0x110] sm:$0xff]
        %v1636 = vld [vmem:[%s1600 + $0x118] sm:$0xff]
        %v1637 = vld [vmem:[%s1600 + $0x120] sm:$0xff]
        %v1638 = vld [vmem:[%s1600 + $0x128] sm:$0xff]
        %v1639 = vld [vmem:[%s1600 + $0x130] sm:$0xff]
        %v1640 = vld [vmem:[%s1600 + $0x138] sm:$0xff]
        %v1641 = vld [vmem:[%s1600 + $0x140] sm:$0xff]
        %v1642 = vld [vmem:[%s1600 + $0x148] sm:$0xff]
        %v1643 = vld [vmem:[%s1600 + $0x150] sm:$0xff]
        %v1644 = vld [vmem:[%s1600 + $0x158] sm:$0xff]
        %v1645 = vld [vmem:[%s1600 + $0x160] sm:$0xff]
        %v1646 = vld [vmem:[%s1600 + $0x168] sm:$0xff]
        %v1647 = vld [vmem:[%s1600 + $0x170] sm:$0xff]
        %v1648 = vld [vmem:[%s1600 + $0x178] sm:$0xff]
        %v1649 = vld [vmem:[%s1600 + $0x180] sm:$0xff]
        %v1650 = vld [vmem:[%s1600 + $0x188] sm:$0xff]
        %v1651 = vld [vmem:[%s1600 + $0x190] sm:$0xff]
        %v1652 = vld [vmem:[%s1600 + $0x198] sm:$0xff]
        %v1653 = vld [vmem:[%s1600 + $0x1a0] sm:$0xff]
        %v1654 = vld [vmem:[%s1600 + $0x1a8] sm:$0xff]
        %v1655 = vld [vmem:[%s1600 + $0x1b0] sm:$0xff]
        %v1656 = vld [vmem:[%s1600 + $0x1b8] sm:$0xff]
        %1657 = vrot.lane.b32.xlu0 %v1478, 100
        %v1658 = vpop.permute.xlu0 %1657
        %1659 = vrot.lane.b32.xlu0 %v1481, 100
        %v1660 = vpop.permute.xlu0 %1659
        %1661 = vrot.lane.b32.xlu0 %v1484, 100
        %v1662 = vpop.permute.xlu0 %1661
        %1663 = vrot.lane.b32.xlu0 %v1487, 100
        %v1664 = vpop.permute.xlu0 %1663
        %1665 = vrot.lane.b32.xlu0 %v1489, 100
        %v1666 = vpop.permute.xlu0 %1665
        %1667 = vrot.lane.b32.xlu0 %v1491, 100
        %v1668 = vpop.permute.xlu0 %1667
        %1669 = vrot.lane.b32.xlu0 %v1493, 100
        %v1670 = vpop.permute.xlu0 %1669
        %1671 = vrot.lane.b32.xlu0 %v1495, 100
        %v1672 = vpop.permute.xlu0 %1671
        %v1673 = vsel %vm476, %v1658, %v1660
        %v1674 = vsel %vm476, %v1660, %v1662
        %v1675 = vsel %vm476, %v1662, %v1664
        %v1676 = vsel %vm476, %v1666, %v1668
        %v1677 = vsel %vm476, %v1668, %v1670
        %v1678 = vsel %vm476, %v1670, %v1672
        %v1685 = vsel %vm489, %v1664, 0
        %v1687 = vsel %vm489, %v1672, 0
        %1689 = vmatpush.msra.mxu0 %v1616
        %1690 = vmatpush.msra.mxu0 %v1615
        %1691 = vmatpush.msra.mxu0 %v1614
        %1692 = vmatpush.msra.mxu0 %v1613
        %1693 = vmatpush.msra.mxu0 %v1612
        %1694 = vmatpush.msra.mxu0 %v1611
        %1695 = vmatpush.msra.mxu0 %v1610
        %1696 = vmatpush.msra.mxu0 %v1609
        %1697 = vmatpush.msra.mxu0 %v1608
        %1698 = vmatpush.msra.mxu0 %v1607
        %1699 = vmatpush.msra.mxu0 %v1606
        %1700 = vmatpush.msra.mxu0 %v1605
        %1701 = vmatpush.msra.mxu0 %v1604
        %1702 = vmatpush.msra.mxu0 %v1603
        %1703 = vmatpush.msra.mxu0 %v1602
        %1704 = vmatpush.msra.mxu0 %v1601
        %1705 = vmatmul.f32.gmra.mxu0 %v1673
        %v1706 = vpop.f32.mrf.mxu0
        %v1707 = vadd.f32 0.0, %v1706
        %1708 = vmatmul.f32.gmra.mxu0 %v1676
        %v1709 = vpop.f32.mrf.mxu0
        %v1710 = vadd.f32 0.0, %v1709
        %1711 = vdwg.mxu0
        %1712 = vmatpush.msra.mxu0 %v1632
        %1713 = vmatpush.msra.mxu0 %v1631
        %1714 = vmatpush.msra.mxu0 %v1630
        %1715 = vmatpush.msra.mxu0 %v1629
        %1716 = vmatpush.msra.mxu0 %v1628
        %1717 = vmatpush.msra.mxu0 %v1627
        %1718 = vmatpush.msra.mxu0 %v1626
        %1719 = vmatpush.msra.mxu0 %v1625
        %1720 = vmatpush.msra.mxu0 %v1624
        %1721 = vmatpush.msra.mxu0 %v1623
        %1722 = vmatpush.msra.mxu0 %v1622
        %1723 = vmatpush.msra.mxu0 %v1621
        %1724 = vmatpush.msra.mxu0 %v1620
        %1725 = vmatpush.msra.mxu0 %v1619
        %1726 = vmatpush.msra.mxu0 %v1618
        %1727 = vmatpush.msra.mxu0 %v1617
        %1728 = vmatmul.f32.gmra.mxu0 %v1674
        %v1729 = vpop.f32.mrf.mxu0
        %v1730 = vadd.f32 %v1707, %v1729
        %1731 = vmatmul.f32.gmra.mxu0 %v1677
        %v1732 = vpop.f32.mrf.mxu0
        %v1733 = vadd.f32 %v1710, %v1732
        %1734 = vdwg.mxu0
        %1735 = vmatpush.msra.mxu0 %v1648
        %1736 = vmatpush.msra.mxu0 %v1647
        %1737 = vmatpush.msra.mxu0 %v1646
        %1738 = vmatpush.msra.mxu0 %v1645
        %1739 = vmatpush.msra.mxu0 %v1644
        %1740 = vmatpush.msra.mxu0 %v1643
        %1741 = vmatpush.msra.mxu0 %v1642
        %1742 = vmatpush.msra.mxu0 %v1641
        %1743 = vmatpush.msra.mxu0 %v1640
        %1744 = vmatpush.msra.mxu0 %v1639
        %1745 = vmatpush.msra.mxu0 %v1638
        %1746 = vmatpush.msra.mxu0 %v1637
        %1747 = vmatpush.msra.mxu0 %v1636
        %1748 = vmatpush.msra.mxu0 %v1635
        %1749 = vmatpush.msra.mxu0 %v1634
        %1750 = vmatpush.msra.mxu0 %v1633
        %1751 = vmatmul.f32.gmra.mxu0 %v1675
        %v1752 = vpop.f32.mrf.mxu0
        %v1753 = vadd.f32 %v1730, %v1752
        %1754 = vmatmul.f32.gmra.mxu0 %v1678
        %v1755 = vpop.f32.mrf.mxu0
        %v1756 = vadd.f32 %v1733, %v1755
        %1757 = vdwg.mxu0
        %1758 = vmatpush.msra.mxu0 0.0
        %1759 = vmatpush.msra.mxu0 0.0
        %1760 = vmatpush.msra.mxu0 0.0
        %1761 = vmatpush.msra.mxu0 0.0
        %1762 = vmatpush.msra.mxu0 0.0
        %1763 = vmatpush.msra.mxu0 0.0
        %1764 = vmatpush.msra.mxu0 0.0
        %1765 = vmatpush.msra.mxu0 0.0
        %1766 = vmatpush.msra.mxu0 %v1656
        %1767 = vmatpush.msra.mxu0 %v1655
        %1768 = vmatpush.msra.mxu0 %v1654
        %1769 = vmatpush.msra.mxu0 %v1653
        %1770 = vmatpush.msra.mxu0 %v1652
        %1771 = vmatpush.msra.mxu0 %v1651
        %1772 = vmatpush.msra.mxu0 %v1650
        %1773 = vmatpush.msra.mxu0 %v1649
        %1774 = vmatmul.f32.gmra.mxu0 %v1685
        %v1775 = vpop.f32.mrf.mxu0
        %v1776 = vadd.f32 %v1753, %v1775
        %1777 = vmatmul.f32.gmra.mxu0 %v1687
        %v1778 = vpop.f32.mrf.mxu0
        %v1779 = vadd.f32 %v1756, %v1778
        %1780 = vdwg.mxu0
        %v1781 = vadd.f32 %v1598, %v1776
        %v1782 = vadd.f32 %v1599, %v1779
        %s1783 = scalar_lea.vmem %s3, 3584
        %v1784 = vld [vmem:[%s1783] sm:$0xff]
        %v1785 = vld [vmem:[%s1783 + $0x8] sm:$0xff]
        %v1786 = vld [vmem:[%s1783 + $0x10] sm:$0xff]
        %v1787 = vld [vmem:[%s1783 + $0x18] sm:$0xff]
        %v1788 = vld [vmem:[%s1783 + $0x20] sm:$0xff]
        %v1789 = vld [vmem:[%s1783 + $0x28] sm:$0xff]
        %v1790 = vld [vmem:[%s1783 + $0x30] sm:$0xff]
        %v1791 = vld [vmem:[%s1783 + $0x38] sm:$0xff]
        %v1792 = vld [vmem:[%s1783 + $0x40] sm:$0xff]
        %v1793 = vld [vmem:[%s1783 + $0x48] sm:$0xff]
        %v1794 = vld [vmem:[%s1783 + $0x50] sm:$0xff]
        %v1795 = vld [vmem:[%s1783 + $0x58] sm:$0xff]
        %v1796 = vld [vmem:[%s1783 + $0x60] sm:$0xff]
        %v1797 = vld [vmem:[%s1783 + $0x68] sm:$0xff]
        %v1798 = vld [vmem:[%s1783 + $0x70] sm:$0xff]
        %v1799 = vld [vmem:[%s1783 + $0x78] sm:$0xff]
        %v1800 = vld [vmem:[%s1783 + $0x80] sm:$0xff]
        %v1801 = vld [vmem:[%s1783 + $0x88] sm:$0xff]
        %v1802 = vld [vmem:[%s1783 + $0x90] sm:$0xff]
        %v1803 = vld [vmem:[%s1783 + $0x98] sm:$0xff]
        %v1804 = vld [vmem:[%s1783 + $0xa0] sm:$0xff]
        %v1805 = vld [vmem:[%s1783 + $0xa8] sm:$0xff]
        %v1806 = vld [vmem:[%s1783 + $0xb0] sm:$0xff]
        %v1807 = vld [vmem:[%s1783 + $0xb8] sm:$0xff]
        %v1808 = vld [vmem:[%s1783 + $0xc0] sm:$0xff]
        %v1809 = vld [vmem:[%s1783 + $0xc8] sm:$0xff]
        %v1810 = vld [vmem:[%s1783 + $0xd0] sm:$0xff]
        %v1811 = vld [vmem:[%s1783 + $0xd8] sm:$0xff]
        %v1812 = vld [vmem:[%s1783 + $0xe0] sm:$0xff]
        %v1813 = vld [vmem:[%s1783 + $0xe8] sm:$0xff]
        %v1814 = vld [vmem:[%s1783 + $0xf0] sm:$0xff]
        %v1815 = vld [vmem:[%s1783 + $0xf8] sm:$0xff]
        %v1816 = vld [vmem:[%s1783 + $0x100] sm:$0xff]
        %v1817 = vld [vmem:[%s1783 + $0x108] sm:$0xff]
        %v1818 = vld [vmem:[%s1783 + $0x110] sm:$0xff]
        %v1819 = vld [vmem:[%s1783 + $0x118] sm:$0xff]
        %v1820 = vld [vmem:[%s1783 + $0x120] sm:$0xff]
        %v1821 = vld [vmem:[%s1783 + $0x128] sm:$0xff]
        %v1822 = vld [vmem:[%s1783 + $0x130] sm:$0xff]
        %v1823 = vld [vmem:[%s1783 + $0x138] sm:$0xff]
        %v1824 = vld [vmem:[%s1783 + $0x140] sm:$0xff]
        %v1825 = vld [vmem:[%s1783 + $0x148] sm:$0xff]
        %v1826 = vld [vmem:[%s1783 + $0x150] sm:$0xff]
        %v1827 = vld [vmem:[%s1783 + $0x158] sm:$0xff]
        %v1828 = vld [vmem:[%s1783 + $0x160] sm:$0xff]
        %v1829 = vld [vmem:[%s1783 + $0x168] sm:$0xff]
        %v1830 = vld [vmem:[%s1783 + $0x170] sm:$0xff]
        %v1831 = vld [vmem:[%s1783 + $0x178] sm:$0xff]
        %v1832 = vld [vmem:[%s1783 + $0x180] sm:$0xff]
        %v1833 = vld [vmem:[%s1783 + $0x188] sm:$0xff]
        %v1834 = vld [vmem:[%s1783 + $0x190] sm:$0xff]
        %v1835 = vld [vmem:[%s1783 + $0x198] sm:$0xff]
        %v1836 = vld [vmem:[%s1783 + $0x1a0] sm:$0xff]
        %v1837 = vld [vmem:[%s1783 + $0x1a8] sm:$0xff]
        %v1838 = vld [vmem:[%s1783 + $0x1b0] sm:$0xff]
        %v1839 = vld [vmem:[%s1783 + $0x1b8] sm:$0xff]
        %1840 = vrot.lane.b32.xlu0 %v1478, 72
        %v1841 = vpop.permute.xlu0 %1840
        %1842 = vrot.lane.b32.xlu0 %v1481, 72
        %v1843 = vpop.permute.xlu0 %1842
        %1844 = vrot.lane.b32.xlu0 %v1484, 72
        %v1845 = vpop.permute.xlu0 %1844
        %1846 = vrot.lane.b32.xlu0 %v1487, 72
        %v1847 = vpop.permute.xlu0 %1846
        %1848 = vrot.lane.b32.xlu0 %v1489, 72
        %v1849 = vpop.permute.xlu0 %1848
        %1850 = vrot.lane.b32.xlu0 %v1491, 72
        %v1851 = vpop.permute.xlu0 %1850
        %1852 = vrot.lane.b32.xlu0 %v1493, 72
        %v1853 = vpop.permute.xlu0 %1852
        %1854 = vrot.lane.b32.xlu0 %v1495, 72
        %v1855 = vpop.permute.xlu0 %1854
        %v1856 = vsel %vm755, %v1841, %v1843
        %v1857 = vsel %vm755, %v1843, %v1845
        %v1858 = vsel %vm755, %v1845, %v1847
        %v1859 = vsel %vm755, %v1849, %v1851
        %v1860 = vsel %vm755, %v1851, %v1853
        %v1861 = vsel %vm755, %v1853, %v1855
        %v1868 = vsel %vm489, %v1847, 0
        %v1870 = vsel %vm489, %v1855, 0
        %1872 = vmatpush.msra.mxu0 %v1799
        %1873 = vmatpush.msra.mxu0 %v1798
        %1874 = vmatpush.msra.mxu0 %v1797
        %1875 = vmatpush.msra.mxu0 %v1796
        %1876 = vmatpush.msra.mxu0 %v1795
        %1877 = vmatpush.msra.mxu0 %v1794
        %1878 = vmatpush.msra.mxu0 %v1793
        %1879 = vmatpush.msra.mxu0 %v1792
        %1880 = vmatpush.msra.mxu0 %v1791
        %1881 = vmatpush.msra.mxu0 %v1790
        %1882 = vmatpush.msra.mxu0 %v1789
        %1883 = vmatpush.msra.mxu0 %v1788
        %1884 = vmatpush.msra.mxu0 %v1787
        %1885 = vmatpush.msra.mxu0 %v1786
        %1886 = vmatpush.msra.mxu0 %v1785
        %1887 = vmatpush.msra.mxu0 %v1784
        %1888 = vmatmul.f32.gmra.mxu0 %v1856
        %v1889 = vpop.f32.mrf.mxu0
        %v1890 = vadd.f32 0.0, %v1889
        %1891 = vmatmul.f32.gmra.mxu0 %v1859
        %v1892 = vpop.f32.mrf.mxu0
        %v1893 = vadd.f32 0.0, %v1892
        %1894 = vdwg.mxu0
        %1895 = vmatpush.msra.mxu0 %v1815
        %1896 = vmatpush.msra.mxu0 %v1814
        %1897 = vmatpush.msra.mxu0 %v1813
        %1898 = vmatpush.msra.mxu0 %v1812
        %1899 = vmatpush.msra.mxu0 %v1811
        %1900 = vmatpush.msra.mxu0 %v1810
        %1901 = vmatpush.msra.mxu0 %v1809
        %1902 = vmatpush.msra.mxu0 %v1808
        %1903 = vmatpush.msra.mxu0 %v1807
        %1904 = vmatpush.msra.mxu0 %v1806
        %1905 = vmatpush.msra.mxu0 %v1805
        %1906 = vmatpush.msra.mxu0 %v1804
        %1907 = vmatpush.msra.mxu0 %v1803
        %1908 = vmatpush.msra.mxu0 %v1802
        %1909 = vmatpush.msra.mxu0 %v1801
        %1910 = vmatpush.msra.mxu0 %v1800
        %1911 = vmatmul.f32.gmra.mxu0 %v1857
        %v1912 = vpop.f32.mrf.mxu0
        %v1913 = vadd.f32 %v1890, %v1912
        %1914 = vmatmul.f32.gmra.mxu0 %v1860
        %v1915 = vpop.f32.mrf.mxu0
        %v1916 = vadd.f32 %v1893, %v1915
        %1917 = vdwg.mxu0
        %1918 = vmatpush.msra.mxu0 %v1831
        %1919 = vmatpush.msra.mxu0 %v1830
        %1920 = vmatpush.msra.mxu0 %v1829
        %1921 = vmatpush.msra.mxu0 %v1828
        %1922 = vmatpush.msra.mxu0 %v1827
        %1923 = vmatpush.msra.mxu0 %v1826
        %1924 = vmatpush.msra.mxu0 %v1825
        %1925 = vmatpush.msra.mxu0 %v1824
        %1926 = vmatpush.msra.mxu0 %v1823
        %1927 = vmatpush.msra.mxu0 %v1822
        %1928 = vmatpush.msra.mxu0 %v1821
        %1929 = vmatpush.msra.mxu0 %v1820
        %1930 = vmatpush.msra.mxu0 %v1819
        %1931 = vmatpush.msra.mxu0 %v1818
        %1932 = vmatpush.msra.mxu0 %v1817
        %1933 = vmatpush.msra.mxu0 %v1816
        %1934 = vmatmul.f32.gmra.mxu0 %v1858
        %v1935 = vpop.f32.mrf.mxu0
        %v1936 = vadd.f32 %v1913, %v1935
        %1937 = vmatmul.f32.gmra.mxu0 %v1861
        %v1938 = vpop.f32.mrf.mxu0
        %v1939 = vadd.f32 %v1916, %v1938
        %1940 = vdwg.mxu0
        %1941 = vmatpush.msra.mxu0 0.0
        %1942 = vmatpush.msra.mxu0 0.0
        %1943 = vmatpush.msra.mxu0 0.0
        %1944 = vmatpush.msra.mxu0 0.0
        %1945 = vmatpush.msra.mxu0 0.0
        %1946 = vmatpush.msra.mxu0 0.0
        %1947 = vmatpush.msra.mxu0 0.0
        %1948 = vmatpush.msra.mxu0 0.0
        %1949 = vmatpush.msra.mxu0 %v1839
        %1950 = vmatpush.msra.mxu0 %v1838
        %1951 = vmatpush.msra.mxu0 %v1837
        %1952 = vmatpush.msra.mxu0 %v1836
        %1953 = vmatpush.msra.mxu0 %v1835
        %1954 = vmatpush.msra.mxu0 %v1834
        %1955 = vmatpush.msra.mxu0 %v1833
        %1956 = vmatpush.msra.mxu0 %v1832
        %1957 = vmatmul.f32.gmra.mxu0 %v1868
        %v1958 = vpop.f32.mrf.mxu0
        %v1959 = vadd.f32 %v1936, %v1958
        %1960 = vmatmul.f32.gmra.mxu0 %v1870
        %v1961 = vpop.f32.mrf.mxu0
        %v1962 = vadd.f32 %v1939, %v1961
        %1963 = vdwg.mxu0
        %v1964 = vadd.f32 %v1781, %v1959
        %v1965 = vadd.f32 %v1782, %v1962
        %1966 = vst [vmem:[%s270] sm:$0xff] %v1964
        %1967 = vst [vmem:[%s270 + $0x8] sm:$0xff] %v1965
        %v1968 = vadd.f32 %v1964, %v1965
        %v1969 = vrot.slane %v1968, 4
        %v1970 = vadd.f32 %v1968, %v1969
        %v1971 = vrot.slane %v1970, 2
        %v1972 = vadd.f32 %v1970, %v1971
        %v1973 = vrot.slane %v1972, 1
        %v1974 = vadd.f32 %v1972, %v1973
        %1975 = vst [vmem:[%s254] sm:$0x1] %v1974
        %v1976 = vmul.f32 %v1964, %v1964
        %v1977 = vmul.f32 %v1965, %v1965
        %v1978 = vadd.f32 %v1976, %v1977
        %v1979 = vrot.slane %v1978, 4
        %v1980 = vadd.f32 %v1978, %v1979
        %v1981 = vrot.slane %v1980, 2
        %v1982 = vadd.f32 %v1980, %v1981
        %v1983 = vrot.slane %v1982, 1
        %v1984 = vadd.f32 %v1982, %v1983
        %1985 = vst [vmem:[%s260] sm:$0x1] %v1984
        %p1986 = scmp.lt.s32.totalorder %s24, 1
        %s1987 = scalar_select %p1986, %s24, 1
        %s1988 = smul.addr %s1987, 2
        %s1989 = smul.addr %s1988, 8
        %s1990 = scalar_lea.vmem %s4, %s1989
        %s1991 = sand.u32 %s147, 1
        %s1992 = scalar_lea.sflag [#allocation3], %s1991
        %s1993 = sand.u32 %s147, 1
        %s1994 = scalar_lea.vmem [#allocation2], %s1993
        %s1995 = sand.u32 %s173, 1
        %s1996 = scalar_lea.sflag [#allocation5], %s1995
        %s1997 = sand.u32 %s173, 1
        %s1998 = scalar_lea.vmem [#allocation4], %s1997
        // Predicated region
        $region37: #{densenet_block.7} parent=35 // pred_check
          %p1999 = pneg %p131
        $region38: #{densenet_block.7} parent=35 // pred_check_branch
          %2001 = sbr.rel (%p1999) target = $region40
        $region39: #{densenet_block.7} parent=35 // pred_region
          _
        $region40: #{densenet_block.7} parent=35 // pred_fallthru
          _
        // Predicated region
        $region41: #{densenet_block.7} parent=35 // pred_check
          %p2002 = pneg %p157
        $region42: #{densenet_block.7} parent=35 // pred_check_branch
          %2004 = sbr.rel (%p2002) target = $region44
        $region43: #{densenet_block.7} parent=35 // pred_region
          %2006 = vsyncadd %s1992, 0
          %s2007 = scalar_lea.hbm %s5, %s24
          %s2009 = sshll.u32 %s1994, 4
          %s2010 = int_to_ptr.vmem [resolvable:$true] %s2009
          %s2011 = sshll.u32 %s2007, 4
          %s2012 = int_to_ptr.hbm [resolvable:$true] %s2011
          %2014 = dma.vmem_to_hbm [thread:$0]  %s2010, 16, %s2012, %s1992
        $region44: #{densenet_block.7} parent=35 // pred_fallthru
          _
        // Predicated region
        $region45: #{densenet_block.7} parent=35 // pred_check
          %p2015 = pneg %p183
        $region46: #{densenet_block.7} parent=35 // pred_check_branch
          %2017 = sbr.rel (%p2015) target = $region48
        $region47: #{densenet_block.7} parent=35 // pred_region
          %2019 = vsyncadd %s1996, 0
          %s2020 = scalar_lea.hbm %s6, %s24
          %s2022 = sshll.u32 %s1998, 4
          %s2023 = int_to_ptr.vmem [resolvable:$true] %s2022
          %s2024 = sshll.u32 %s2020, 4
          %s2025 = int_to_ptr.hbm [resolvable:$true] %s2024
          %2027 = dma.vmem_to_hbm [thread:$0]  %s2023, 16, %s2025, %s1996
        $region48: #{densenet_block.7} parent=35 // pred_fallthru
          _
      $region36: #{densenet_block.7} parent=5 // pred_fallthru
        _
      %p2028 = scmp.le.s32.totalorder 2, %s19
      // Predicated region
      $region49: #{densenet_block.7} parent=5 // pred_check
        %p2029 = pneg %p2028
      $region50: #{densenet_block.7} parent=5 // pred_check_branch
        %2031 = sbr.rel (%p2029) target = $region52
      $region51: #{densenet_block.7} parent=5 // pred_region
        %s2032 = ssub.s32 %s19, 2
        // Predicated region
        $region53: #{densenet_block.7} parent=51 // pred_check
          %p2033 = pneg %p137
        $region54: #{densenet_block.7} parent=51 // pred_check_branch
          %2035 = sbr.rel (%p2033) target = $region56
        $region55: #{densenet_block.7} parent=51 // pred_region
          %p2036 = scmp.lt.s32.totalorder %s25, 1
          %s2037 = scalar_select %p2036, %s25, 1
          %s2038 = smul.addr %s2037, 2
          %s2039 = smul.addr %s2038, 8
          %s2040 = scalar_lea.vmem %s4, %s2039
        $region56: #{densenet_block.7} parent=51 // pred_fallthru
          _
        // Predicated region
        $region57: #{densenet_block.7} parent=51 // pred_check
          %p2041 = pneg %p163
        $region58: #{densenet_block.7} parent=51 // pred_check_branch
          %2043 = sbr.rel (%p2041) target = $region60
        $region59: #{densenet_block.7} parent=51 // pred_region
          %s2044 = sand.u32 %s148, 1
          %s2045 = scalar_lea.sflag [#allocation3], %s2044
          %s2046 = sand.u32 %s148, 1
          %s2047 = scalar_lea.vmem [#allocation2], %s2046
          %2049 = dma.done %s2045, 16
        $region60: #{densenet_block.7} parent=51 // pred_fallthru
          _
        // Predicated region
        $region61: #{densenet_block.7} parent=51 // pred_check
          %p2050 = pneg %p189
        $region62: #{densenet_block.7} parent=51 // pred_check_branch
          %2052 = sbr.rel (%p2050) target = $region64
        $region63: #{densenet_block.7} parent=51 // pred_region
          %s2053 = sand.u32 %s174, 1
          %s2054 = scalar_lea.sflag [#allocation5], %s2053
          %s2055 = sand.u32 %s174, 1
          %s2056 = scalar_lea.vmem [#allocation4], %s2055
          %2058 = dma.done %s2054, 16
        $region64: #{densenet_block.7} parent=51 // pred_fallthru
          _
      $region52: #{densenet_block.7} parent=5 // pred_fallthru
        _
    $region6: #{densenet_block.7} parent=1 // loop_footer
      %s23 = sadd.s32 1, %s19
    $region7: #{densenet_block.7} parent=1 // loop_footer_branch
      %18 = sbr.rel target = $region3
    $region8: #{densenet_block.7} parent=1 // loop_exit
      _
    %2059 = vsyncpa [#allocation3], 1
    %s2060 = scalar_lea.sflag [#allocation3], 1
    %2061 = vsyncpa %s2060, 1
    %2062 = vsyncpa [#allocation5], 1
    %s2063 = scalar_lea.sflag [#allocation5], 1
    %2064 = vsyncpa %s2063, 1

</llo_original>
